<compile_context>
chip_gen: v5e
topology: v5e:2x2
jax: 0.10.0
libtpu: 0.0.40
codegen_flags: <defaults>
</compile_context>

<pallas_src>
import jax
import jax.numpy as jnp
from jax import lax
from jax.experimental import pallas as pl
from jax.experimental.pallas import tpu as pltpu


# ----------------------------------------------------------------------------
# Fused kernel: 3 x (conv3x3 "same" + ReLU + maxpool2x2)  +  fc1/ReLU/fc2/L2norm
# ----------------------------------------------------------------------------
def _make_encoder_kernel(H, W, cins, c_hid, n_out, pad_rows, head_rows):
    """Builds the fused kernel for a fixed static configuration.

    Activation layout: a 2-D raster (N=H*W rows, channels on lanes).  Stage s
    uses dilation d = 2**(s-1); valid data lives on the (i % d == 0, j % d == 0)
    sub-grid, other rows carry garbage that is never read by valid outputs.
    A single f32 VMEM scratch of shape (N + 2*pad_rows, Cmax) holds the
    activation with `pad_rows` zero rows above/below so that a shift of
    (oy, ox) in image space becomes a static row offset d*(oy*W + ox); only the
    column (j) wrap-around needs a mask.
    """
    N = H * W

    def kernel(col_ref, x_ref,
               w1_ref, b1_ref, w2_ref, b2_ref, w3_ref, b3_ref,
               w1p_ref, fb1_ref, fw2_ref, fb2_ref,
               o_ref, scr_ref):
        # Zero the scratch once; pad rows stay zero for the whole kernel.
        scr_ref[...] = jnp.zeros_like(scr_ref)
        col = col_ref[...]                                  # (N, 1) int32, j index

        # Stage 1 input activation -> scratch.
        scr_ref[pad_rows:pad_rows + N, 0:cins[0]] = x_ref[...]

        def conv_relu_pool_stage(w_ref, b_ref, cin, d):
            # -- conv3x3 "same" as 9 accumulating tap matmuls (bf16 MXU, f32 acc)
            left_ok = col >= d                              # valid when ox == -1
            right_ok = col < (W - d)                        # valid when ox == +1
            acc = jnp.zeros((N, c_hid), jnp.float32)
            for t in range(9):
                oy, ox = t // 3 - 1, t % 3 - 1
                off = d * (oy * W + ox)
                tap = scr_ref[pad_rows + off:pad_rows + off + N, 0:cin]
                if ox == -1:
                    tap = jnp.where(left_ok, tap, 0.0)
                elif ox == 1:
                    tap = jnp.where(right_ok, tap, 0.0)
                acc = acc + jnp.dot(tap.astype(jnp.bfloat16), w_ref[t],
                                    preferred_element_type=jnp.float32)
            y = jnp.maximum(acc + b_ref[...], 0.0)          # bias + ReLU
            # -- 2x2 maxpool: store y, take max over 4 shifted reloads.
            scr_ref[pad_rows:pad_rows + N, 0:c_hid] = y
            pooled = None
            for py in (0, 1):
                for px in (0, 1):
                    poff = d * (py * W + px)
                    m = scr_ref[pad_rows + poff:pad_rows + poff + N, 0:c_hid]
                    pooled = m if pooled is None else jnp.maximum(pooled, m)
            # pooled activation (valid on the 2d-subgrid) becomes next input.
            scr_ref[pad_rows:pad_rows + N, 0:c_hid] = pooled

        conv_relu_pool_stage(w1_ref, b1_ref, cins[0], 1)
        conv_relu_pool_stage(w2_ref, b2_ref, cins[1], 2)
        conv_relu_pool_stage(w3_ref, b3_ref, cins[2], 4)

        # -- FC head.  The CHW flatten + fc1 is folded into per-position dots
        #    against the row-permuted fc1 weight (w1p[p] has shape (c_hid, c_hid)).
        acc1 = jnp.zeros((1, c_hid), jnp.float32)
        for p, r in enumerate(head_rows):
            v = scr_ref[pad_rows + r:pad_rows + r + 1, 0:c_hid]   # (1, c_hid)
            acc1 = acc1 + jnp.dot(v, w1p_ref[p],
                                  preferred_element_type=jnp.float32)
        h1 = jnp.maximum(acc1 + fb1_ref[...], 0.0)
        y = jnp.dot(h1, fw2_ref[...], preferred_element_type=jnp.float32) + fb2_ref[...]
        # F.normalize: x / max(||x||, 1e-12)  ==  x * rsqrt(max(||x||^2, 1e-24))
        ssq = jnp.sum(y * y, axis=-1, keepdims=True)
        o_ref[...] = y * lax.rsqrt(jnp.maximum(ssq, 1e-24))

    return kernel


def encoder_forward(x_chw, params, image_size):
    """x_chw: (C, H, W) -- PyTorch layout; forward adds the batch dim of 1."""
    H, W = image_size
    assert H % 8 == 0 and W % 8 == 0, "image must be divisible by 2**3"
    c_in = x_chw.shape[0]
    c_hid = params["conv1_b"].shape[0]
    n_out = params["fc2_b"].shape[0]
    N = H * W
    cin1 = max(8, ((c_in + 7) // 8) * 8)          # pad conv1 K to sublane multiple
    pad_rows = ((4 * (W + 1) + 7) // 8) * 8        # covers max |shift| = 4*(W+1)
    Hp, Wp = H // 8, W // 8                        # final spatial map
    P = Hp * Wp

    # ---- host-side (one-time) operand prep: layout only, no compute ----------
    x2d = jnp.transpose(x_chw, (1, 2, 0)).reshape(N, c_in).astype(jnp.float32)
    x2d = jnp.pad(x2d, ((0, 0), (0, cin1 - c_in)))

    def conv_w(name, cin_pad):
        w = params[name]                                       # (3,3,Cin,Cout) HWIO
        w = w.reshape(9, w.shape[2], w.shape[3])
        if w.shape[1] < cin_pad:
            w = jnp.pad(w, ((0, 0), (0, cin_pad - w.shape[1]), (0, 0)))
        return w.astype(jnp.bfloat16)

    w1 = conv_w("conv1_w", cin1)
    w2 = conv_w("conv2_w", c_hid)
    w3 = conv_w("conv3_w", c_hid)
    b1 = params["conv1_b"].reshape(1, c_hid).astype(jnp.float32)
    b2 = params["conv2_b"].reshape(1, c_hid).astype(jnp.float32)
    b3 = params["conv3_b"].reshape(1, c_hid).astype(jnp.float32)
    # fc1 weight rows are ordered by k = c*P + p (torch CHW flatten); permute to
    # blocks of p so the kernel can consume one (c_hid, c_hid) block per position.
    w1p = params["fc1_w"].reshape(c_hid, P, c_hid).transpose(1, 0, 2).astype(jnp.float32)
    fb1 = params["fc1_b"].reshape(1, c_hid).astype(jnp.float32)
    fw2 = params["fc2_w"].astype(jnp.float32)
    fb2 = params["fc2_b"].reshape(1, n_out).astype(jnp.float32)

    col_ids = (jnp.arange(N, dtype=jnp.int32) % W).reshape(N, 1)
    # Final 2x2 (Hp x Wp) map lives on the stride-8 subgrid of the 16x16 raster.
    head_rows = tuple((8 * h) * W + 8 * w for h in range(Hp) for w in range(Wp))

    kernel = _make_encoder_kernel(H, W, (cin1, c_hid, c_hid), c_hid, n_out,
                                  pad_rows, head_rows)
    scratch_w = max(cin1, c_hid)

    out = pl.pallas_call(
        kernel,
        grid=(1,),
        in_specs=[
            pl.BlockSpec((N, 1), lambda i: (0, 0)),
            pl.BlockSpec((N, cin1), lambda i: (0, 0)),
            pl.BlockSpec((9, cin1, c_hid), lambda i: (0, 0, 0)),
            pl.BlockSpec((1, c_hid), lambda i: (0, 0)),
            pl.BlockSpec((9, c_hid, c_hid), lambda i: (0, 0, 0)),
            pl.BlockSpec((1, c_hid), lambda i: (0, 0)),
            pl.BlockSpec((9, c_hid, c_hid), lambda i: (0, 0, 0)),
            pl.BlockSpec((1, c_hid), lambda i: (0, 0)),
            pl.BlockSpec((P, c_hid, c_hid), lambda i: (0, 0, 0)),
            pl.BlockSpec((1, c_hid), lambda i: (0, 0)),
            pl.BlockSpec((c_hid, n_out), lambda i: (0, 0)),
            pl.BlockSpec((1, n_out), lambda i: (0, 0)),
        ],
        out_specs=pl.BlockSpec((1, n_out), lambda i: (0, 0)),
        out_shape=jax.ShapeDtypeStruct((1, n_out), jnp.float32),
        scratch_shapes=[pltpu.VMEM((N + 2 * pad_rows, scratch_w), jnp.float32)],
        compiler_params=pltpu.CompilerParams(dimension_semantics=("arbitrary",)),
    )(col_ids, x2d, w1, b1, w2, b2, w3, b3, w1p, fb1, fw2, fb2)
    return out[0]  # .squeeze()


# ----------------------------------------------------------------------------
# Pure-JAX reference (sanity check) and deterministic param init
# ----------------------------------------------------------------------------
def reference_forward(x_chw, params, image_size):
    x = jnp.transpose(x_chw, (1, 2, 0)).astype(jnp.float32)[None]   # (1,H,W,C)
    for i in range(3):
        wi, bi = params[f"conv{i + 1}_w"], params[f"conv{i + 1}_b"]
        y = lax.conv_general_dilated(x, wi, (1, 1), "SAME",
                                     dimension_numbers=("NHWC", "HWIO", "NHWC"))
        y = jnp.maximum(y + bi, 0.0)
        x = lax.reduce_window(y, -jnp.inf, lax.max,
                              (1, 2, 2, 1), (1, 2, 2, 1), "VALID")
    flat = jnp.transpose(x[0], (2, 0, 1)).reshape(1, -1)
    h1 = jnp.maximum(flat @ params["fc1_w"] + params["fc1_b"], 0.0)
    y = h1 @ params["fc2_w"] + params["fc2_b"]
    norm = jnp.sqrt(jnp.sum(y * y, axis=-1, keepdims=True))
    return (y / jnp.maximum(norm, 1e-12))[0]


def init_params(key, n_channels, conv_hid, n_out, image_size):
    final_size = conv_hid * (image_size[0] // 8) * (image_size[1] // 8)
    ks = jax.random.split(key, 10)

    def w(k, shape, fan_in):
        return jax.random.normal(k, shape, jnp.float32) / jnp.sqrt(float(fan_in))

    return {
        "conv1_w": w(ks[0], (3, 3, n_channels, conv_hid), 9 * n_channels),
        "conv1_b": w(ks[1], (conv_hid,), 9 * n_channels),
        "conv2_w": w(ks[2], (3, 3, conv_hid, conv_hid), 9 * conv_hid),
        "conv2_b": w(ks[3], (conv_hid,), 9 * conv_hid),
        "conv3_w": w(ks[4], (3, 3, conv_hid, conv_hid), 9 * conv_hid),
        "conv3_b": w(ks[5], (conv_hid,), 9 * conv_hid),
        "fc1_w": w(ks[6], (final_size, conv_hid), final_size),
        "fc1_b": w(ks[7], (conv_hid,), final_size),
        "fc2_w": w(ks[8], (conv_hid, n_out), conv_hid),
        "fc2_b": w(ks[9], (n_out,), conv_hid),
    }


if __name__ == "__main__":
    n_channels, conv_hid, n_out = 4, 32, 4
    image_size = (16, 16)  # divisible by 2**3 as the module requires

    key = jax.random.PRNGKey(0)
    kx, kp = jax.random.split(key)
    x = jax.random.normal(kx, (n_channels,) + image_size, jnp.float32)
    params = init_params(kp, n_channels, conv_hid, n_out, image_size)

    out = jax.block_until_ready(encoder_forward(x, params, image_size))
    ref = jax.block_until_ready(reference_forward(x, params, image_size))

    assert out.shape == (n_out,), out.shape
    err = float(jnp.max(jnp.abs(out - ref)))
    assert err < 3e-2, (err, out, ref)
    print("KERNEL_OK")
</pallas_src>

<mosaic_0001>
module attributes {stable_mosaic.version = 11 : i64} {
  func.func @kernel(%arg0: i32, %arg1: memref<256x1xi32, #tpu.memory_space<vmem>>, %arg2: memref<256x8xf32, #tpu.memory_space<vmem>>, %arg3: memref<9x8x32xbf16, #tpu.memory_space<vmem>>, %arg4: memref<1x32xf32, #tpu.memory_space<vmem>>, %arg5: memref<9x32x32xbf16, #tpu.memory_space<vmem>>, %arg6: memref<1x32xf32, #tpu.memory_space<vmem>>, %arg7: memref<9x32x32xbf16, #tpu.memory_space<vmem>>, %arg8: memref<1x32xf32, #tpu.memory_space<vmem>>, %arg9: memref<4x32x32xf32, #tpu.memory_space<vmem>>, %arg10: memref<1x32xf32, #tpu.memory_space<vmem>>, %arg11: memref<32x4xf32, #tpu.memory_space<vmem>>, %arg12: memref<1x4xf32, #tpu.memory_space<vmem>>, %arg13: memref<1x4xf32, #tpu.memory_space<vmem>>, %arg14: memref<400x32xf32, #tpu.memory_space<vmem>>) attributes {dimension_semantics = [#tpu.dimension_semantics<arbitrary>], iteration_bounds = array<i64: 1>, scalar_prefetch = 0 : i64, scratch_operands = 1 : i64, tpu.core_type = #tpu.core_type<tc>, window_params = [{pipeline_mode = #tpu.pipeline_mode<synchronous>, transform_indices = @transform_0, window_bounds = array<i64: 256, 1>}, {pipeline_mode = #tpu.pipeline_mode<synchronous>, transform_indices = @transform_1, window_bounds = array<i64: 256, 8>}, {pipeline_mode = #tpu.pipeline_mode<synchronous>, transform_indices = @transform_2, window_bounds = array<i64: 9, 8, 32>}, {pipeline_mode = #tpu.pipeline_mode<synchronous>, transform_indices = @transform_3, window_bounds = array<i64: 1, 32>}, {pipeline_mode = #tpu.pipeline_mode<synchronous>, transform_indices = @transform_4, window_bounds = array<i64: 9, 32, 32>}, {pipeline_mode = #tpu.pipeline_mode<synchronous>, transform_indices = @transform_5, window_bounds = array<i64: 1, 32>}, {pipeline_mode = #tpu.pipeline_mode<synchronous>, transform_indices = @transform_6, window_bounds = array<i64: 9, 32, 32>}, {pipeline_mode = #tpu.pipeline_mode<synchronous>, transform_indices = @transform_7, window_bounds = array<i64: 1, 32>}, {pipeline_mode = #tpu.pipeline_mode<synchronous>, transform_indices = @transform_8, window_bounds = array<i64: 4, 32, 32>}, {pipeline_mode = #tpu.pipeline_mode<synchronous>, transform_indices = @transform_9, window_bounds = array<i64: 1, 32>}, {pipeline_mode = #tpu.pipeline_mode<synchronous>, transform_indices = @transform_10, window_bounds = array<i64: 32, 4>}, {pipeline_mode = #tpu.pipeline_mode<synchronous>, transform_indices = @transform_11, window_bounds = array<i64: 1, 4>}, {pipeline_mode = #tpu.pipeline_mode<synchronous>, transform_indices = @transform_12, window_bounds = array<i64: 1, 4>}]} {
    %cst = arith.constant 0.000000e+00 : f32
    %0 = vector.broadcast %cst : f32 to vector<400x32xf32>
    %c0 = arith.constant 0 : index
    %c0_0 = arith.constant 0 : index
    %1 = vector.load %arg14[%c0, %c0_0] : memref<400x32xf32, #tpu.memory_space<vmem>>, vector<400x32xf32>
    tpu.vector_store %arg14[%c0, %c0_0], %0 {strides = array<i32>} : memref<400x32xf32, #tpu.memory_space<vmem>>, vector<400x32xf32>,
    %c0_1 = arith.constant 0 : index
    %c0_2 = arith.constant 0 : index
    %2 = vector.load %arg1[%c0_1, %c0_2] : memref<256x1xi32, #tpu.memory_space<vmem>>, vector<256x1xi32>
    %c0_3 = arith.constant 0 : index
    %c0_4 = arith.constant 0 : index
    %3 = vector.load %arg2[%c0_3, %c0_4] : memref<256x8xf32, #tpu.memory_space<vmem>>, vector<256x8xf32>
    %c72 = arith.constant 72 : index
    %c0_5 = arith.constant 0 : index
    %4 = vector.load %arg14[%c72, %c0_5] : memref<400x32xf32, #tpu.memory_space<vmem>>, vector<256x8xf32>
    tpu.vector_store %arg14[%c72, %c0_5], %3 {strides = array<i32>} : memref<400x32xf32, #tpu.memory_space<vmem>>, vector<256x8xf32>,
    %c1_i32 = arith.constant 1 : i32
    %5 = vector.broadcast %c1_i32 : i32 to vector<256x1xi32>
    %6 = arith.cmpi sge, %2, %5 : vector<256x1xi32>
    %c15_i32 = arith.constant 15 : i32
    %7 = vector.broadcast %c15_i32 : i32 to vector<256x1xi32>
    %8 = arith.cmpi slt, %2, %7 : vector<256x1xi32>
    %cst_6 = arith.constant 0.000000e+00 : f32
    %9 = vector.broadcast %cst_6 : f32 to vector<256x32xf32>
    %c55 = arith.constant 55 : index
    %c0_7 = arith.constant 0 : index
    %10 = vector.load %arg14[%c55, %c0_7] : memref<400x32xf32, #tpu.memory_space<vmem>>, vector<256x8xf32>
    %cst_8 = arith.constant 0.000000e+00 : f32
    %11 = vector.shape_cast %6 : vector<256x1xi1> to vector<256x1xi1>
    %12 = vector.broadcast %11 : vector<256x1xi1> to vector<256x8xi1>
    %13 = vector.broadcast %cst_8 : f32 to vector<256x8xf32>
    %14 = arith.select %12, %10, %13 : vector<256x8xi1>, vector<256x8xf32>
    %15 = arith.truncf %14 : vector<256x8xf32> to vector<256x8xbf16>
    %c0_9 = arith.constant 0 : index
    %c0_10 = arith.constant 0 : index
    %c0_11 = arith.constant 0 : index
    %16 = vector.load %arg3[%c0_9, %c0_10, %c0_11] : memref<9x8x32xbf16, #tpu.memory_space<vmem>>, vector<1x8x32xbf16>
    %17 = vector.shape_cast %16 : vector<1x8x32xbf16> to vector<8x32xbf16>
    %cst_12 = arith.constant dense<0.000000e+00> : vector<256x32xf32>
    %18 = tpu.matmul %15, %17, %cst_12 {dimension_numbers = #tpu.dot_dimension_numbers<[1], [0], [0], [1], [0, 0, 1, 1], [], []>} : vector<256x8xbf16>, vector<8x32xbf16>, vector<256x32xf32> -> vector<256x32xf32>
    %19 = arith.addf %9, %18 : vector<256x32xf32>
    %c56 = arith.constant 56 : index
    %c0_13 = arith.constant 0 : index
    %20 = vector.load %arg14[%c56, %c0_13] : memref<400x32xf32, #tpu.memory_space<vmem>>, vector<256x8xf32>
    %21 = arith.truncf %20 : vector<256x8xf32> to vector<256x8xbf16>
    %c1 = arith.constant 1 : index
    %c0_14 = arith.constant 0 : index
    %c0_15 = arith.constant 0 : index
    %22 = vector.load %arg3[%c1, %c0_14, %c0_15] : memref<9x8x32xbf16, #tpu.memory_space<vmem>>, vector<1x8x32xbf16>
    %23 = vector.shape_cast %22 : vector<1x8x32xbf16> to vector<8x32xbf16>
    %cst_16 = arith.constant dense<0.000000e+00> : vector<256x32xf32>
    %24 = tpu.matmul %21, %23, %cst_16 {dimension_numbers = #tpu.dot_dimension_numbers<[1], [0], [0], [1], [0, 0, 1, 1], [], []>} : vector<256x8xbf16>, vector<8x32xbf16>, vector<256x32xf32> -> vector<256x32xf32>
    %25 = arith.addf %19, %24 : vector<256x32xf32>
    %c57 = arith.constant 57 : index
    %c0_17 = arith.constant 0 : index
    %26 = vector.load %arg14[%c57, %c0_17] : memref<400x32xf32, #tpu.memory_space<vmem>>, vector<256x8xf32>
    %cst_18 = arith.constant 0.000000e+00 : f32
    %27 = vector.shape_cast %8 : vector<256x1xi1> to vector<256x1xi1>
    %28 = vector.broadcast %27 : vector<256x1xi1> to vector<256x8xi1>
    %29 = vector.broadcast %cst_18 : f32 to vector<256x8xf32>
    %30 = arith.select %28, %26, %29 : vector<256x8xi1>, vector<256x8xf32>
    %31 = arith.truncf %30 : vector<256x8xf32> to vector<256x8xbf16>
    %c2 = arith.constant 2 : index
    %c0_19 = arith.constant 0 : index
    %c0_20 = arith.constant 0 : index
    %32 = vector.load %arg3[%c2, %c0_19, %c0_20] : memref<9x8x32xbf16, #tpu.memory_space<vmem>>, vector<1x8x32xbf16>
    %33 = vector.shape_cast %32 : vector<1x8x32xbf16> to vector<8x32xbf16>
    %cst_21 = arith.constant dense<0.000000e+00> : vector<256x32xf32>
    %34 = tpu.matmul %31, %33, %cst_21 {dimension_numbers = #tpu.dot_dimension_numbers<[1], [0], [0], [1], [0, 0, 1, 1], [], []>} : vector<256x8xbf16>, vector<8x32xbf16>, vector<256x32xf32> -> vector<256x32xf32>
    %35 = arith.addf %25, %34 : vector<256x32xf32>
    %c71 = arith.constant 71 : index
    %c0_22 = arith.constant 0 : index
    %36 = vector.load %arg14[%c71, %c0_22] : memref<400x32xf32, #tpu.memory_space<vmem>>, vector<256x8xf32>
    %cst_23 = arith.constant 0.000000e+00 : f32
    %37 = vector.shape_cast %6 : vector<256x1xi1> to vector<256x1xi1>
    %38 = vector.broadcast %37 : vector<256x1xi1> to vector<256x8xi1>
    %39 = vector.broadcast %cst_23 : f32 to vector<256x8xf32>
    %40 = arith.select %38, %36, %39 : vector<256x8xi1>, vector<256x8xf32>
    %41 = arith.truncf %40 : vector<256x8xf32> to vector<256x8xbf16>
    %c3 = arith.constant 3 : index
    %c0_24 = arith.constant 0 : index
    %c0_25 = arith.constant 0 : index
    %42 = vector.load %arg3[%c3, %c0_24, %c0_25] : memref<9x8x32xbf16, #tpu.memory_space<vmem>>, vector<1x8x32xbf16>
    %43 = vector.shape_cast %42 : vector<1x8x32xbf16> to vector<8x32xbf16>
    %cst_26 = arith.constant dense<0.000000e+00> : vector<256x32xf32>
    %44 = tpu.matmul %41, %43, %cst_26 {dimension_numbers = #tpu.dot_dimension_numbers<[1], [0], [0], [1], [0, 0, 1, 1], [], []>} : vector<256x8xbf16>, vector<8x32xbf16>, vector<256x32xf32> -> vector<256x32xf32>
    %45 = arith.addf %35, %44 : vector<256x32xf32>
    %c72_27 = arith.constant 72 : index
    %c0_28 = arith.constant 0 : index
    %46 = vector.load %arg14[%c72_27, %c0_28] : memref<400x32xf32, #tpu.memory_space<vmem>>, vector<256x8xf32>
    %47 = arith.truncf %46 : vector<256x8xf32> to vector<256x8xbf16>
    %c4 = arith.constant 4 : index
    %c0_29 = arith.constant 0 : index
    %c0_30 = arith.constant 0 : index
    %48 = vector.load %arg3[%c4, %c0_29, %c0_30] : memref<9x8x32xbf16, #tpu.memory_space<vmem>>, vector<1x8x32xbf16>
    %49 = vector.shape_cast %48 : vector<1x8x32xbf16> to vector<8x32xbf16>
    %cst_31 = arith.constant dense<0.000000e+00> : vector<256x32xf32>
    %50 = tpu.matmul %47, %49, %cst_31 {dimension_numbers = #tpu.dot_dimension_numbers<[1], [0], [0], [1], [0, 0, 1, 1], [], []>} : vector<256x8xbf16>, vector<8x32xbf16>, vector<256x32xf32> -> vector<256x32xf32>
    %51 = arith.addf %45, %50 : vector<256x32xf32>
    %c73 = arith.constant 73 : index
    %c0_32 = arith.constant 0 : index
    %52 = vector.load %arg14[%c73, %c0_32] : memref<400x32xf32, #tpu.memory_space<vmem>>, vector<256x8xf32>
    %cst_33 = arith.constant 0.000000e+00 : f32
    %53 = vector.shape_cast %8 : vector<256x1xi1> to vector<256x1xi1>
    %54 = vector.broadcast %53 : vector<256x1xi1> to vector<256x8xi1>
    %55 = vector.broadcast %cst_33 : f32 to vector<256x8xf32>
    %56 = arith.select %54, %52, %55 : vector<256x8xi1>, vector<256x8xf32>
    %57 = arith.truncf %56 : vector<256x8xf32> to vector<256x8xbf16>
    %c5 = arith.constant 5 : index
    %c0_34 = arith.constant 0 : index
    %c0_35 = arith.constant 0 : index
    %58 = vector.load %arg3[%c5, %c0_34, %c0_35] : memref<9x8x32xbf16, #tpu.memory_space<vmem>>, vector<1x8x32xbf16>
    %59 = vector.shape_cast %58 : vector<1x8x32xbf16> to vector<8x32xbf16>
    %cst_36 = arith.constant dense<0.000000e+00> : vector<256x32xf32>
    %60 = tpu.matmul %57, %59, %cst_36 {dimension_numbers = #tpu.dot_dimension_numbers<[1], [0], [0], [1], [0, 0, 1, 1], [], []>} : vector<256x8xbf16>, vector<8x32xbf16>, vector<256x32xf32> -> vector<256x32xf32>
    %61 = arith.addf %51, %60 : vector<256x32xf32>
    %c87 = arith.constant 87 : index
    %c0_37 = arith.constant 0 : index
    %62 = vector.load %arg14[%c87, %c0_37] : memref<400x32xf32, #tpu.memory_space<vmem>>, vector<256x8xf32>
    %cst_38 = arith.constant 0.000000e+00 : f32
    %63 = vector.shape_cast %6 : vector<256x1xi1> to vector<256x1xi1>
    %64 = vector.broadcast %63 : vector<256x1xi1> to vector<256x8xi1>
    %65 = vector.broadcast %cst_38 : f32 to vector<256x8xf32>
    %66 = arith.select %64, %62, %65 : vector<256x8xi1>, vector<256x8xf32>
    %67 = arith.truncf %66 : vector<256x8xf32> to vector<256x8xbf16>
    %c6 = arith.constant 6 : index
    %c0_39 = arith.constant 0 : index
    %c0_40 = arith.constant 0 : index
    %68 = vector.load %arg3[%c6, %c0_39, %c0_40] : memref<9x8x32xbf16, #tpu.memory_space<vmem>>, vector<1x8x32xbf16>
    %69 = vector.shape_cast %68 : vector<1x8x32xbf16> to vector<8x32xbf16>
    %cst_41 = arith.constant dense<0.000000e+00> : vector<256x32xf32>
    %70 = tpu.matmul %67, %69, %cst_41 {dimension_numbers = #tpu.dot_dimension_numbers<[1], [0], [0], [1], [0, 0, 1, 1], [], []>} : vector<256x8xbf16>, vector<8x32xbf16>, vector<256x32xf32> -> vector<256x32xf32>
    %71 = arith.addf %61, %70 : vector<256x32xf32>
    %c88 = arith.constant 88 : index
    %c0_42 = arith.constant 0 : index
    %72 = vector.load %arg14[%c88, %c0_42] : memref<400x32xf32, #tpu.memory_space<vmem>>, vector<256x8xf32>
    %73 = arith.truncf %72 : vector<256x8xf32> to vector<256x8xbf16>
    %c7 = arith.constant 7 : index
    %c0_43 = arith.constant 0 : index
    %c0_44 = arith.constant 0 : index
    %74 = vector.load %arg3[%c7, %c0_43, %c0_44] : memref<9x8x32xbf16, #tpu.memory_space<vmem>>, vector<1x8x32xbf16>
    %75 = vector.shape_cast %74 : vector<1x8x32xbf16> to vector<8x32xbf16>
    %cst_45 = arith.constant dense<0.000000e+00> : vector<256x32xf32>
    %76 = tpu.matmul %73, %75, %cst_45 {dimension_numbers = #tpu.dot_dimension_numbers<[1], [0], [0], [1], [0, 0, 1, 1], [], []>} : vector<256x8xbf16>, vector<8x32xbf16>, vector<256x32xf32> -> vector<256x32xf32>
    %77 = arith.addf %71, %76 : vector<256x32xf32>
    %c89 = arith.constant 89 : index
    %c0_46 = arith.constant 0 : index
    %78 = vector.load %arg14[%c89, %c0_46] : memref<400x32xf32, #tpu.memory_space<vmem>>, vector<256x8xf32>
    %cst_47 = arith.constant 0.000000e+00 : f32
    %79 = vector.shape_cast %8 : vector<256x1xi1> to vector<256x1xi1>
    %80 = vector.broadcast %79 : vector<256x1xi1> to vector<256x8xi1>
    %81 = vector.broadcast %cst_47 : f32 to vector<256x8xf32>
    %82 = arith.select %80, %78, %81 : vector<256x8xi1>, vector<256x8xf32>
    %83 = arith.truncf %82 : vector<256x8xf32> to vector<256x8xbf16>
    %c8 = arith.constant 8 : index
    %c0_48 = arith.constant 0 : index
    %c0_49 = arith.constant 0 : index
    %84 = vector.load %arg3[%c8, %c0_48, %c0_49] : memref<9x8x32xbf16, #tpu.memory_space<vmem>>, vector<1x8x32xbf16>
    %85 = vector.shape_cast %84 : vector<1x8x32xbf16> to vector<8x32xbf16>
    %cst_50 = arith.constant dense<0.000000e+00> : vector<256x32xf32>
    %86 = tpu.matmul %83, %85, %cst_50 {dimension_numbers = #tpu.dot_dimension_numbers<[1], [0], [0], [1], [0, 0, 1, 1], [], []>} : vector<256x8xbf16>, vector<8x32xbf16>, vector<256x32xf32> -> vector<256x32xf32>
    %87 = arith.addf %77, %86 : vector<256x32xf32>
    %c0_51 = arith.constant 0 : index
    %c0_52 = arith.constant 0 : index
    %88 = vector.load %arg4[%c0_51, %c0_52] : memref<1x32xf32, #tpu.memory_space<vmem>>, vector<1x32xf32>
    %89 = vector.broadcast %88 : vector<1x32xf32> to vector<256x32xf32>
    %90 = arith.addf %87, %89 : vector<256x32xf32>
    %cst_53 = arith.constant 0.000000e+00 : f32
    %91 = vector.broadcast %cst_53 : f32 to vector<256x32xf32>
    %92 = arith.maximumf %90, %91 : vector<256x32xf32>
    %c72_54 = arith.constant 72 : index
    %c0_55 = arith.constant 0 : index
    %93 = vector.load %arg14[%c72_54, %c0_55] : memref<400x32xf32, #tpu.memory_space<vmem>>, vector<256x32xf32>
    tpu.vector_store %arg14[%c72_54, %c0_55], %92 {strides = array<i32>} : memref<400x32xf32, #tpu.memory_space<vmem>>, vector<256x32xf32>,
    %c72_56 = arith.constant 72 : index
    %c0_57 = arith.constant 0 : index
    %94 = vector.load %arg14[%c72_56, %c0_57] : memref<400x32xf32, #tpu.memory_space<vmem>>, vector<256x32xf32>
    %c73_58 = arith.constant 73 : index
    %c0_59 = arith.constant 0 : index
    %95 = vector.load %arg14[%c73_58, %c0_59] : memref<400x32xf32, #tpu.memory_space<vmem>>, vector<256x32xf32>
    %96 = arith.maximumf %94, %95 : vector<256x32xf32>
    %c88_60 = arith.constant 88 : index
    %c0_61 = arith.constant 0 : index
    %97 = vector.load %arg14[%c88_60, %c0_61] : memref<400x32xf32, #tpu.memory_space<vmem>>, vector<256x32xf32>
    %98 = arith.maximumf %96, %97 : vector<256x32xf32>
    %c89_62 = arith.constant 89 : index
    %c0_63 = arith.constant 0 : index
    %99 = vector.load %arg14[%c89_62, %c0_63] : memref<400x32xf32, #tpu.memory_space<vmem>>, vector<256x32xf32>
    %100 = arith.maximumf %98, %99 : vector<256x32xf32>
    %c72_64 = arith.constant 72 : index
    %c0_65 = arith.constant 0 : index
    %101 = vector.load %arg14[%c72_64, %c0_65] : memref<400x32xf32, #tpu.memory_space<vmem>>, vector<256x32xf32>
    tpu.vector_store %arg14[%c72_64, %c0_65], %100 {strides = array<i32>} : memref<400x32xf32, #tpu.memory_space<vmem>>, vector<256x32xf32>,
    %c2_i32 = arith.constant 2 : i32
    %102 = vector.broadcast %c2_i32 : i32 to vector<256x1xi32>
    %103 = arith.cmpi sge, %2, %102 : vector<256x1xi32>
    %c14_i32 = arith.constant 14 : i32
    %104 = vector.broadcast %c14_i32 : i32 to vector<256x1xi32>
    %105 = arith.cmpi slt, %2, %104 : vector<256x1xi32>
    %cst_66 = arith.constant 0.000000e+00 : f32
    %106 = vector.broadcast %cst_66 : f32 to vector<256x32xf32>
    %c38 = arith.constant 38 : index
    %c0_67 = arith.constant 0 : index
    %107 = vector.load %arg14[%c38, %c0_67] : memref<400x32xf32, #tpu.memory_space<vmem>>, vector<256x32xf32>
    %cst_68 = arith.constant 0.000000e+00 : f32
    %108 = vector.shape_cast %103 : vector<256x1xi1> to vector<256x1xi1>
    %109 = vector.broadcast %108 : vector<256x1xi1> to vector<256x32xi1>
    %110 = vector.broadcast %cst_68 : f32 to vector<256x32xf32>
    %111 = arith.select %109, %107, %110 : vector<256x32xi1>, vector<256x32xf32>
    %112 = arith.truncf %111 : vector<256x32xf32> to vector<256x32xbf16>
    %c0_69 = arith.constant 0 : index
    %c0_70 = arith.constant 0 : index
    %c0_71 = arith.constant 0 : index
    %113 = vector.load %arg5[%c0_69, %c0_70, %c0_71] : memref<9x32x32xbf16, #tpu.memory_space<vmem>>, vector<1x32x32xbf16>
    %114 = vector.shape_cast %113 : vector<1x32x32xbf16> to vector<32x32xbf16>
    %cst_72 = arith.constant dense<0.000000e+00> : vector<256x32xf32>
    %115 = tpu.matmul %112, %114, %cst_72 {dimension_numbers = #tpu.dot_dimension_numbers<[1], [0], [0], [1], [0, 0, 1, 1], [], []>} : vector<256x32xbf16>, vector<32x32xbf16>, vector<256x32xf32> -> vector<256x32xf32>
    %116 = arith.addf %106, %115 : vector<256x32xf32>
    %c40 = arith.constant 40 : index
    %c0_73 = arith.constant 0 : index
    %117 = vector.load %arg14[%c40, %c0_73] : memref<400x32xf32, #tpu.memory_space<vmem>>, vector<256x32xf32>
    %118 = arith.truncf %117 : vector<256x32xf32> to vector<256x32xbf16>
    %c1_74 = arith.constant 1 : index
    %c0_75 = arith.constant 0 : index
    %c0_76 = arith.constant 0 : index
    %119 = vector.load %arg5[%c1_74, %c0_75, %c0_76] : memref<9x32x32xbf16, #tpu.memory_space<vmem>>, vector<1x32x32xbf16>
    %120 = vector.shape_cast %119 : vector<1x32x32xbf16> to vector<32x32xbf16>
    %cst_77 = arith.constant dense<0.000000e+00> : vector<256x32xf32>
    %121 = tpu.matmul %118, %120, %cst_77 {dimension_numbers = #tpu.dot_dimension_numbers<[1], [0], [0], [1], [0, 0, 1, 1], [], []>} : vector<256x32xbf16>, vector<32x32xbf16>, vector<256x32xf32> -> vector<256x32xf32>
    %122 = arith.addf %116, %121 : vector<256x32xf32>
    %c42 = arith.constant 42 : index
    %c0_78 = arith.constant 0 : index
    %123 = vector.load %arg14[%c42, %c0_78] : memref<400x32xf32, #tpu.memory_space<vmem>>, vector<256x32xf32>
    %cst_79 = arith.constant 0.000000e+00 : f32
    %124 = vector.shape_cast %105 : vector<256x1xi1> to vector<256x1xi1>
    %125 = vector.broadcast %124 : vector<256x1xi1> to vector<256x32xi1>
    %126 = vector.broadcast %cst_79 : f32 to vector<256x32xf32>
    %127 = arith.select %125, %123, %126 : vector<256x32xi1>, vector<256x32xf32>
    %128 = arith.truncf %127 : vector<256x32xf32> to vector<256x32xbf16>
    %c2_80 = arith.constant 2 : index
    %c0_81 = arith.constant 0 : index
    %c0_82 = arith.constant 0 : index
    %129 = vector.load %arg5[%c2_80, %c0_81, %c0_82] : memref<9x32x32xbf16, #tpu.memory_space<vmem>>, vector<1x32x32xbf16>
    %130 = vector.shape_cast %129 : vector<1x32x32xbf16> to vector<32x32xbf16>
    %cst_83 = arith.constant dense<0.000000e+00> : vector<256x32xf32>
    %131 = tpu.matmul %128, %130, %cst_83 {dimension_numbers = #tpu.dot_dimension_numbers<[1], [0], [0], [1], [0, 0, 1, 1], [], []>} : vector<256x32xbf16>, vector<32x32xbf16>, vector<256x32xf32> -> vector<256x32xf32>
    %132 = arith.addf %122, %131 : vector<256x32xf32>
    %c70 = arith.constant 70 : index
    %c0_84 = arith.constant 0 : index
    %133 = vector.load %arg14[%c70, %c0_84] : memref<400x32xf32, #tpu.memory_space<vmem>>, vector<256x32xf32>
    %cst_85 = arith.constant 0.000000e+00 : f32
    %134 = vector.shape_cast %103 : vector<256x1xi1> to vector<256x1xi1>
    %135 = vector.broadcast %134 : vector<256x1xi1> to vector<256x32xi1>
    %136 = vector.broadcast %cst_85 : f32 to vector<256x32xf32>
    %137 = arith.select %135, %133, %136 : vector<256x32xi1>, vector<256x32xf32>
    %138 = arith.truncf %137 : vector<256x32xf32> to vector<256x32xbf16>
    %c3_86 = arith.constant 3 : index
    %c0_87 = arith.constant 0 : index
    %c0_88 = arith.constant 0 : index
    %139 = vector.load %arg5[%c3_86, %c0_87, %c0_88] : memref<9x32x32xbf16, #tpu.memory_space<vmem>>, vector<1x32x32xbf16>
    %140 = vector.shape_cast %139 : vector<1x32x32xbf16> to vector<32x32xbf16>
    %cst_89 = arith.constant dense<0.000000e+00> : vector<256x32xf32>
    %141 = tpu.matmul %138, %140, %cst_89 {dimension_numbers = #tpu.dot_dimension_numbers<[1], [0], [0], [1], [0, 0, 1, 1], [], []>} : vector<256x32xbf16>, vector<32x32xbf16>, vector<256x32xf32> -> vector<256x32xf32>
    %142 = arith.addf %132, %141 : vector<256x32xf32>
    %c72_90 = arith.constant 72 : index
    %c0_91 = arith.constant 0 : index
    %143 = vector.load %arg14[%c72_90, %c0_91] : memref<400x32xf32, #tpu.memory_space<vmem>>, vector<256x32xf32>
    %144 = arith.truncf %143 : vector<256x32xf32> to vector<256x32xbf16>
    %c4_92 = arith.constant 4 : index
    %c0_93 = arith.constant 0 : index
    %c0_94 = arith.constant 0 : index
    %145 = vector.load %arg5[%c4_92, %c0_93, %c0_94] : memref<9x32x32xbf16, #tpu.memory_space<vmem>>, vector<1x32x32xbf16>
    %146 = vector.shape_cast %145 : vector<1x32x32xbf16> to vector<32x32xbf16>
    %cst_95 = arith.constant dense<0.000000e+00> : vector<256x32xf32>
    %147 = tpu.matmul %144, %146, %cst_95 {dimension_numbers = #tpu.dot_dimension_numbers<[1], [0], [0], [1], [0, 0, 1, 1], [], []>} : vector<256x32xbf16>, vector<32x32xbf16>, vector<256x32xf32> -> vector<256x32xf32>
    %148 = arith.addf %142, %147 : vector<256x32xf32>
    %c74 = arith.constant 74 : index
    %c0_96 = arith.constant 0 : index
    %149 = vector.load %arg14[%c74, %c0_96] : memref<400x32xf32, #tpu.memory_space<vmem>>, vector<256x32xf32>
    %cst_97 = arith.constant 0.000000e+00 : f32
    %150 = vector.shape_cast %105 : vector<256x1xi1> to vector<256x1xi1>
    %151 = vector.broadcast %150 : vector<256x1xi1> to vector<256x32xi1>
    %152 = vector.broadcast %cst_97 : f32 to vector<256x32xf32>
    %153 = arith.select %151, %149, %152 : vector<256x32xi1>, vector<256x32xf32>
    %154 = arith.truncf %153 : vector<256x32xf32> to vector<256x32xbf16>
    %c5_98 = arith.constant 5 : index
    %c0_99 = arith.constant 0 : index
    %c0_100 = arith.constant 0 : index
    %155 = vector.load %arg5[%c5_98, %c0_99, %c0_100] : memref<9x32x32xbf16, #tpu.memory_space<vmem>>, vector<1x32x32xbf16>
    %156 = vector.shape_cast %155 : vector<1x32x32xbf16> to vector<32x32xbf16>
    %cst_101 = arith.constant dense<0.000000e+00> : vector<256x32xf32>
    %157 = tpu.matmul %154, %156, %cst_101 {dimension_numbers = #tpu.dot_dimension_numbers<[1], [0], [0], [1], [0, 0, 1, 1], [], []>} : vector<256x32xbf16>, vector<32x32xbf16>, vector<256x32xf32> -> vector<256x32xf32>
    %158 = arith.addf %148, %157 : vector<256x32xf32>
    %c102 = arith.constant 102 : index
    %c0_102 = arith.constant 0 : index
    %159 = vector.load %arg14[%c102, %c0_102] : memref<400x32xf32, #tpu.memory_space<vmem>>, vector<256x32xf32>
    %cst_103 = arith.constant 0.000000e+00 : f32
    %160 = vector.shape_cast %103 : vector<256x1xi1> to vector<256x1xi1>
    %161 = vector.broadcast %160 : vector<256x1xi1> to vector<256x32xi1>
    %162 = vector.broadcast %cst_103 : f32 to vector<256x32xf32>
    %163 = arith.select %161, %159, %162 : vector<256x32xi1>, vector<256x32xf32>
    %164 = arith.truncf %163 : vector<256x32xf32> to vector<256x32xbf16>
    %c6_104 = arith.constant 6 : index
    %c0_105 = arith.constant 0 : index
    %c0_106 = arith.constant 0 : index
    %165 = vector.load %arg5[%c6_104, %c0_105, %c0_106] : memref<9x32x32xbf16, #tpu.memory_space<vmem>>, vector<1x32x32xbf16>
    %166 = vector.shape_cast %165 : vector<1x32x32xbf16> to vector<32x32xbf16>
    %cst_107 = arith.constant dense<0.000000e+00> : vector<256x32xf32>
    %167 = tpu.matmul %164, %166, %cst_107 {dimension_numbers = #tpu.dot_dimension_numbers<[1], [0], [0], [1], [0, 0, 1, 1], [], []>} : vector<256x32xbf16>, vector<32x32xbf16>, vector<256x32xf32> -> vector<256x32xf32>
    %168 = arith.addf %158, %167 : vector<256x32xf32>
    %c104 = arith.constant 104 : index
    %c0_108 = arith.constant 0 : index
    %169 = vector.load %arg14[%c104, %c0_108] : memref<400x32xf32, #tpu.memory_space<vmem>>, vector<256x32xf32>
    %170 = arith.truncf %169 : vector<256x32xf32> to vector<256x32xbf16>
    %c7_109 = arith.constant 7 : index
    %c0_110 = arith.constant 0 : index
    %c0_111 = arith.constant 0 : index
    %171 = vector.load %arg5[%c7_109, %c0_110, %c0_111] : memref<9x32x32xbf16, #tpu.memory_space<vmem>>, vector<1x32x32xbf16>
    %172 = vector.shape_cast %171 : vector<1x32x32xbf16> to vector<32x32xbf16>
    %cst_112 = arith.constant dense<0.000000e+00> : vector<256x32xf32>
    %173 = tpu.matmul %170, %172, %cst_112 {dimension_numbers = #tpu.dot_dimension_numbers<[1], [0], [0], [1], [0, 0, 1, 1], [], []>} : vector<256x32xbf16>, vector<32x32xbf16>, vector<256x32xf32> -> vector<256x32xf32>
    %174 = arith.addf %168, %173 : vector<256x32xf32>
    %c106 = arith.constant 106 : index
    %c0_113 = arith.constant 0 : index
    %175 = vector.load %arg14[%c106, %c0_113] : memref<400x32xf32, #tpu.memory_space<vmem>>, vector<256x32xf32>
    %cst_114 = arith.constant 0.000000e+00 : f32
    %176 = vector.shape_cast %105 : vector<256x1xi1> to vector<256x1xi1>
    %177 = vector.broadcast %176 : vector<256x1xi1> to vector<256x32xi1>
    %178 = vector.broadcast %cst_114 : f32 to vector<256x32xf32>
    %179 = arith.select %177, %175, %178 : vector<256x32xi1>, vector<256x32xf32>
    %180 = arith.truncf %179 : vector<256x32xf32> to vector<256x32xbf16>
    %c8_115 = arith.constant 8 : index
    %c0_116 = arith.constant 0 : index
    %c0_117 = arith.constant 0 : index
    %181 = vector.load %arg5[%c8_115, %c0_116, %c0_117] : memref<9x32x32xbf16, #tpu.memory_space<vmem>>, vector<1x32x32xbf16>
    %182 = vector.shape_cast %181 : vector<1x32x32xbf16> to vector<32x32xbf16>
    %cst_118 = arith.constant dense<0.000000e+00> : vector<256x32xf32>
    %183 = tpu.matmul %180, %182, %cst_118 {dimension_numbers = #tpu.dot_dimension_numbers<[1], [0], [0], [1], [0, 0, 1, 1], [], []>} : vector<256x32xbf16>, vector<32x32xbf16>, vector<256x32xf32> -> vector<256x32xf32>
    %184 = arith.addf %174, %183 : vector<256x32xf32>
    %c0_119 = arith.constant 0 : index
    %c0_120 = arith.constant 0 : index
    %185 = vector.load %arg6[%c0_119, %c0_120] : memref<1x32xf32, #tpu.memory_space<vmem>>, vector<1x32xf32>
    %186 = vector.broadcast %185 : vector<1x32xf32> to vector<256x32xf32>
    %187 = arith.addf %184, %186 : vector<256x32xf32>
    %cst_121 = arith.constant 0.000000e+00 : f32
    %188 = vector.broadcast %cst_121 : f32 to vector<256x32xf32>
    %189 = arith.maximumf %187, %188 : vector<256x32xf32>
    %c72_122 = arith.constant 72 : index
    %c0_123 = arith.constant 0 : index
    %190 = vector.load %arg14[%c72_122, %c0_123] : memref<400x32xf32, #tpu.memory_space<vmem>>, vector<256x32xf32>
    tpu.vector_store %arg14[%c72_122, %c0_123], %189 {strides = array<i32>} : memref<400x32xf32, #tpu.memory_space<vmem>>, vector<256x32xf32>,
    %c72_124 = arith.constant 72 : index
    %c0_125 = arith.constant 0 : index
    %191 = vector.load %arg14[%c72_124, %c0_125] : memref<400x32xf32, #tpu.memory_space<vmem>>, vector<256x32xf32>
    %c74_126 = arith.constant 74 : index
    %c0_127 = arith.constant 0 : index
    %192 = vector.load %arg14[%c74_126, %c0_127] : memref<400x32xf32, #tpu.memory_space<vmem>>, vector<256x32xf32>
    %193 = arith.maximumf %191, %192 : vector<256x32xf32>
    %c104_128 = arith.constant 104 : index
    %c0_129 = arith.constant 0 : index
    %194 = vector.load %arg14[%c104_128, %c0_129] : memref<400x32xf32, #tpu.memory_space<vmem>>, vector<256x32xf32>
    %195 = arith.maximumf %193, %194 : vector<256x32xf32>
    %c106_130 = arith.constant 106 : index
    %c0_131 = arith.constant 0 : index
    %196 = vector.load %arg14[%c106_130, %c0_131] : memref<400x32xf32, #tpu.memory_space<vmem>>, vector<256x32xf32>
    %197 = arith.maximumf %195, %196 : vector<256x32xf32>
    %c72_132 = arith.constant 72 : index
    %c0_133 = arith.constant 0 : index
    %198 = vector.load %arg14[%c72_132, %c0_133] : memref<400x32xf32, #tpu.memory_space<vmem>>, vector<256x32xf32>
    tpu.vector_store %arg14[%c72_132, %c0_133], %197 {strides = array<i32>} : memref<400x32xf32, #tpu.memory_space<vmem>>, vector<256x32xf32>,
    %c4_i32 = arith.constant 4 : i32
    %199 = vector.broadcast %c4_i32 : i32 to vector<256x1xi32>
    %200 = arith.cmpi sge, %2, %199 : vector<256x1xi32>
    %c12_i32 = arith.constant 12 : i32
    %201 = vector.broadcast %c12_i32 : i32 to vector<256x1xi32>
    %202 = arith.cmpi slt, %2, %201 : vector<256x1xi32>
    %cst_134 = arith.constant 0.000000e+00 : f32
    %203 = vector.broadcast %cst_134 : f32 to vector<256x32xf32>
    %c4_135 = arith.constant 4 : index
    %c0_136 = arith.constant 0 : index
    %204 = vector.load %arg14[%c4_135, %c0_136] : memref<400x32xf32, #tpu.memory_space<vmem>>, vector<256x32xf32>
    %cst_137 = arith.constant 0.000000e+00 : f32
    %205 = vector.shape_cast %200 : vector<256x1xi1> to vector<256x1xi1>
    %206 = vector.broadcast %205 : vector<256x1xi1> to vector<256x32xi1>
    %207 = vector.broadcast %cst_137 : f32 to vector<256x32xf32>
    %208 = arith.select %206, %204, %207 : vector<256x32xi1>, vector<256x32xf32>
    %209 = arith.truncf %208 : vector<256x32xf32> to vector<256x32xbf16>
    %c0_138 = arith.constant 0 : index
    %c0_139 = arith.constant 0 : index
    %c0_140 = arith.constant 0 : index
    %210 = vector.load %arg7[%c0_138, %c0_139, %c0_140] : memref<9x32x32xbf16, #tpu.memory_space<vmem>>, vector<1x32x32xbf16>
    %211 = vector.shape_cast %210 : vector<1x32x32xbf16> to vector<32x32xbf16>
    %cst_141 = arith.constant dense<0.000000e+00> : vector<256x32xf32>
    %212 = tpu.matmul %209, %211, %cst_141 {dimension_numbers = #tpu.dot_dimension_numbers<[1], [0], [0], [1], [0, 0, 1, 1], [], []>} : vector<256x32xbf16>, vector<32x32xbf16>, vector<256x32xf32> -> vector<256x32xf32>
    %213 = arith.addf %203, %212 : vector<256x32xf32>
    %c8_142 = arith.constant 8 : index
    %c0_143 = arith.constant 0 : index
    %214 = vector.load %arg14[%c8_142, %c0_143] : memref<400x32xf32, #tpu.memory_space<vmem>>, vector<256x32xf32>
    %215 = arith.truncf %214 : vector<256x32xf32> to vector<256x32xbf16>
    %c1_144 = arith.constant 1 : index
    %c0_145 = arith.constant 0 : index
    %c0_146 = arith.constant 0 : index
    %216 = vector.load %arg7[%c1_144, %c0_145, %c0_146] : memref<9x32x32xbf16, #tpu.memory_space<vmem>>, vector<1x32x32xbf16>
    %217 = vector.shape_cast %216 : vector<1x32x32xbf16> to vector<32x32xbf16>
    %cst_147 = arith.constant dense<0.000000e+00> : vector<256x32xf32>
    %218 = tpu.matmul %215, %217, %cst_147 {dimension_numbers = #tpu.dot_dimension_numbers<[1], [0], [0], [1], [0, 0, 1, 1], [], []>} : vector<256x32xbf16>, vector<32x32xbf16>, vector<256x32xf32> -> vector<256x32xf32>
    %219 = arith.addf %213, %218 : vector<256x32xf32>
    %c12 = arith.constant 12 : index
    %c0_148 = arith.constant 0 : index
    %220 = vector.load %arg14[%c12, %c0_148] : memref<400x32xf32, #tpu.memory_space<vmem>>, vector<256x32xf32>
    %cst_149 = arith.constant 0.000000e+00 : f32
    %221 = vector.shape_cast %202 : vector<256x1xi1> to vector<256x1xi1>
    %222 = vector.broadcast %221 : vector<256x1xi1> to vector<256x32xi1>
    %223 = vector.broadcast %cst_149 : f32 to vector<256x32xf32>
    %224 = arith.select %222, %220, %223 : vector<256x32xi1>, vector<256x32xf32>
    %225 = arith.truncf %224 : vector<256x32xf32> to vector<256x32xbf16>
    %c2_150 = arith.constant 2 : index
    %c0_151 = arith.constant 0 : index
    %c0_152 = arith.constant 0 : index
    %226 = vector.load %arg7[%c2_150, %c0_151, %c0_152] : memref<9x32x32xbf16, #tpu.memory_space<vmem>>, vector<1x32x32xbf16>
    %227 = vector.shape_cast %226 : vector<1x32x32xbf16> to vector<32x32xbf16>
    %cst_153 = arith.constant dense<0.000000e+00> : vector<256x32xf32>
    %228 = tpu.matmul %225, %227, %cst_153 {dimension_numbers = #tpu.dot_dimension_numbers<[1], [0], [0], [1], [0, 0, 1, 1], [], []>} : vector<256x32xbf16>, vector<32x32xbf16>, vector<256x32xf32> -> vector<256x32xf32>
    %229 = arith.addf %219, %228 : vector<256x32xf32>
    %c68 = arith.constant 68 : index
    %c0_154 = arith.constant 0 : index
    %230 = vector.load %arg14[%c68, %c0_154] : memref<400x32xf32, #tpu.memory_space<vmem>>, vector<256x32xf32>
    %cst_155 = arith.constant 0.000000e+00 : f32
    %231 = vector.shape_cast %200 : vector<256x1xi1> to vector<256x1xi1>
    %232 = vector.broadcast %231 : vector<256x1xi1> to vector<256x32xi1>
    %233 = vector.broadcast %cst_155 : f32 to vector<256x32xf32>
    %234 = arith.select %232, %230, %233 : vector<256x32xi1>, vector<256x32xf32>
    %235 = arith.truncf %234 : vector<256x32xf32> to vector<256x32xbf16>
    %c3_156 = arith.constant 3 : index
    %c0_157 = arith.constant 0 : index
    %c0_158 = arith.constant 0 : index
    %236 = vector.load %arg7[%c3_156, %c0_157, %c0_158] : memref<9x32x32xbf16, #tpu.memory_space<vmem>>, vector<1x32x32xbf16>
    %237 = vector.shape_cast %236 : vector<1x32x32xbf16> to vector<32x32xbf16>
    %cst_159 = arith.constant dense<0.000000e+00> : vector<256x32xf32>
    %238 = tpu.matmul %235, %237, %cst_159 {dimension_numbers = #tpu.dot_dimension_numbers<[1], [0], [0], [1], [0, 0, 1, 1], [], []>} : vector<256x32xbf16>, vector<32x32xbf16>, vector<256x32xf32> -> vector<256x32xf32>
    %239 = arith.addf %229, %238 : vector<256x32xf32>
    %c72_160 = arith.constant 72 : index
    %c0_161 = arith.constant 0 : index
    %240 = vector.load %arg14[%c72_160, %c0_161] : memref<400x32xf32, #tpu.memory_space<vmem>>, vector<256x32xf32>
    %241 = arith.truncf %240 : vector<256x32xf32> to vector<256x32xbf16>
    %c4_162 = arith.constant 4 : index
    %c0_163 = arith.constant 0 : index
    %c0_164 = arith.constant 0 : index
    %242 = vector.load %arg7[%c4_162, %c0_163, %c0_164] : memref<9x32x32xbf16, #tpu.memory_space<vmem>>, vector<1x32x32xbf16>
    %243 = vector.shape_cast %242 : vector<1x32x32xbf16> to vector<32x32xbf16>
    %cst_165 = arith.constant dense<0.000000e+00> : vector<256x32xf32>
    %244 = tpu.matmul %241, %243, %cst_165 {dimension_numbers = #tpu.dot_dimension_numbers<[1], [0], [0], [1], [0, 0, 1, 1], [], []>} : vector<256x32xbf16>, vector<32x32xbf16>, vector<256x32xf32> -> vector<256x32xf32>
    %245 = arith.addf %239, %244 : vector<256x32xf32>
    %c76 = arith.constant 76 : index
    %c0_166 = arith.constant 0 : index
    %246 = vector.load %arg14[%c76, %c0_166] : memref<400x32xf32, #tpu.memory_space<vmem>>, vector<256x32xf32>
    %cst_167 = arith.constant 0.000000e+00 : f32
    %247 = vector.shape_cast %202 : vector<256x1xi1> to vector<256x1xi1>
    %248 = vector.broadcast %247 : vector<256x1xi1> to vector<256x32xi1>
    %249 = vector.broadcast %cst_167 : f32 to vector<256x32xf32>
    %250 = arith.select %248, %246, %249 : vector<256x32xi1>, vector<256x32xf32>
    %251 = arith.truncf %250 : vector<256x32xf32> to vector<256x32xbf16>
    %c5_168 = arith.constant 5 : index
    %c0_169 = arith.constant 0 : index
    %c0_170 = arith.constant 0 : index
    %252 = vector.load %arg7[%c5_168, %c0_169, %c0_170] : memref<9x32x32xbf16, #tpu.memory_space<vmem>>, vector<1x32x32xbf16>
    %253 = vector.shape_cast %252 : vector<1x32x32xbf16> to vector<32x32xbf16>
    %cst_171 = arith.constant dense<0.000000e+00> : vector<256x32xf32>
    %254 = tpu.matmul %251, %253, %cst_171 {dimension_numbers = #tpu.dot_dimension_numbers<[1], [0], [0], [1], [0, 0, 1, 1], [], []>} : vector<256x32xbf16>, vector<32x32xbf16>, vector<256x32xf32> -> vector<256x32xf32>
    %255 = arith.addf %245, %254 : vector<256x32xf32>
    %c132 = arith.constant 132 : index
    %c0_172 = arith.constant 0 : index
    %256 = vector.load %arg14[%c132, %c0_172] : memref<400x32xf32, #tpu.memory_space<vmem>>, vector<256x32xf32>
    %cst_173 = arith.constant 0.000000e+00 : f32
    %257 = vector.shape_cast %200 : vector<256x1xi1> to vector<256x1xi1>
    %258 = vector.broadcast %257 : vector<256x1xi1> to vector<256x32xi1>
    %259 = vector.broadcast %cst_173 : f32 to vector<256x32xf32>
    %260 = arith.select %258, %256, %259 : vector<256x32xi1>, vector<256x32xf32>
    %261 = arith.truncf %260 : vector<256x32xf32> to vector<256x32xbf16>
    %c6_174 = arith.constant 6 : index
    %c0_175 = arith.constant 0 : index
    %c0_176 = arith.constant 0 : index
    %262 = vector.load %arg7[%c6_174, %c0_175, %c0_176] : memref<9x32x32xbf16, #tpu.memory_space<vmem>>, vector<1x32x32xbf16>
    %263 = vector.shape_cast %262 : vector<1x32x32xbf16> to vector<32x32xbf16>
    %cst_177 = arith.constant dense<0.000000e+00> : vector<256x32xf32>
    %264 = tpu.matmul %261, %263, %cst_177 {dimension_numbers = #tpu.dot_dimension_numbers<[1], [0], [0], [1], [0, 0, 1, 1], [], []>} : vector<256x32xbf16>, vector<32x32xbf16>, vector<256x32xf32> -> vector<256x32xf32>
    %265 = arith.addf %255, %264 : vector<256x32xf32>
    %c136 = arith.constant 136 : index
    %c0_178 = arith.constant 0 : index
    %266 = vector.load %arg14[%c136, %c0_178] : memref<400x32xf32, #tpu.memory_space<vmem>>, vector<256x32xf32>
    %267 = arith.truncf %266 : vector<256x32xf32> to vector<256x32xbf16>
    %c7_179 = arith.constant 7 : index
    %c0_180 = arith.constant 0 : index
    %c0_181 = arith.constant 0 : index
    %268 = vector.load %arg7[%c7_179, %c0_180, %c0_181] : memref<9x32x32xbf16, #tpu.memory_space<vmem>>, vector<1x32x32xbf16>
    %269 = vector.shape_cast %268 : vector<1x32x32xbf16> to vector<32x32xbf16>
    %cst_182 = arith.constant dense<0.000000e+00> : vector<256x32xf32>
    %270 = tpu.matmul %267, %269, %cst_182 {dimension_numbers = #tpu.dot_dimension_numbers<[1], [0], [0], [1], [0, 0, 1, 1], [], []>} : vector<256x32xbf16>, vector<32x32xbf16>, vector<256x32xf32> -> vector<256x32xf32>
    %271 = arith.addf %265, %270 : vector<256x32xf32>
    %c140 = arith.constant 140 : index
    %c0_183 = arith.constant 0 : index
    %272 = vector.load %arg14[%c140, %c0_183] : memref<400x32xf32, #tpu.memory_space<vmem>>, vector<256x32xf32>
    %cst_184 = arith.constant 0.000000e+00 : f32
    %273 = vector.shape_cast %202 : vector<256x1xi1> to vector<256x1xi1>
    %274 = vector.broadcast %273 : vector<256x1xi1> to vector<256x32xi1>
    %275 = vector.broadcast %cst_184 : f32 to vector<256x32xf32>
    %276 = arith.select %274, %272, %275 : vector<256x32xi1>, vector<256x32xf32>
    %277 = arith.truncf %276 : vector<256x32xf32> to vector<256x32xbf16>
    %c8_185 = arith.constant 8 : index
    %c0_186 = arith.constant 0 : index
    %c0_187 = arith.constant 0 : index
    %278 = vector.load %arg7[%c8_185, %c0_186, %c0_187] : memref<9x32x32xbf16, #tpu.memory_space<vmem>>, vector<1x32x32xbf16>
    %279 = vector.shape_cast %278 : vector<1x32x32xbf16> to vector<32x32xbf16>
    %cst_188 = arith.constant dense<0.000000e+00> : vector<256x32xf32>
    %280 = tpu.matmul %277, %279, %cst_188 {dimension_numbers = #tpu.dot_dimension_numbers<[1], [0], [0], [1], [0, 0, 1, 1], [], []>} : vector<256x32xbf16>, vector<32x32xbf16>, vector<256x32xf32> -> vector<256x32xf32>
    %281 = arith.addf %271, %280 : vector<256x32xf32>
    %c0_189 = arith.constant 0 : index
    %c0_190 = arith.constant 0 : index
    %282 = vector.load %arg8[%c0_189, %c0_190] : memref<1x32xf32, #tpu.memory_space<vmem>>, vector<1x32xf32>
    %283 = vector.broadcast %282 : vector<1x32xf32> to vector<256x32xf32>
    %284 = arith.addf %281, %283 : vector<256x32xf32>
    %cst_191 = arith.constant 0.000000e+00 : f32
    %285 = vector.broadcast %cst_191 : f32 to vector<256x32xf32>
    %286 = arith.maximumf %284, %285 : vector<256x32xf32>
    %c72_192 = arith.constant 72 : index
    %c0_193 = arith.constant 0 : index
    %287 = vector.load %arg14[%c72_192, %c0_193] : memref<400x32xf32, #tpu.memory_space<vmem>>, vector<256x32xf32>
    tpu.vector_store %arg14[%c72_192, %c0_193], %286 {strides = array<i32>} : memref<400x32xf32, #tpu.memory_space<vmem>>, vector<256x32xf32>,
    %c72_194 = arith.constant 72 : index
    %c0_195 = arith.constant 0 : index
    %288 = vector.load %arg14[%c72_194, %c0_195] : memref<400x32xf32, #tpu.memory_space<vmem>>, vector<256x32xf32>
    %c76_196 = arith.constant 76 : index
    %c0_197 = arith.constant 0 : index
    %289 = vector.load %arg14[%c76_196, %c0_197] : memref<400x32xf32, #tpu.memory_space<vmem>>, vector<256x32xf32>
    %290 = arith.maximumf %288, %289 : vector<256x32xf32>
    %c136_198 = arith.constant 136 : index
    %c0_199 = arith.constant 0 : index
    %291 = vector.load %arg14[%c136_198, %c0_199] : memref<400x32xf32, #tpu.memory_space<vmem>>, vector<256x32xf32>
    %292 = arith.maximumf %290, %291 : vector<256x32xf32>
    %c140_200 = arith.constant 140 : index
    %c0_201 = arith.constant 0 : index
    %293 = vector.load %arg14[%c140_200, %c0_201] : memref<400x32xf32, #tpu.memory_space<vmem>>, vector<256x32xf32>
    %294 = arith.maximumf %292, %293 : vector<256x32xf32>
    %c72_202 = arith.constant 72 : index
    %c0_203 = arith.constant 0 : index
    %295 = vector.load %arg14[%c72_202, %c0_203] : memref<400x32xf32, #tpu.memory_space<vmem>>, vector<256x32xf32>
    tpu.vector_store %arg14[%c72_202, %c0_203], %294 {strides = array<i32>} : memref<400x32xf32, #tpu.memory_space<vmem>>, vector<256x32xf32>,
    %cst_204 = arith.constant 0.000000e+00 : f32
    %296 = vector.broadcast %cst_204 : f32 to vector<1x32xf32>
    %c72_205 = arith.constant 72 : index
    %c0_206 = arith.constant 0 : index
    %297 = vector.load %arg14[%c72_205, %c0_206] : memref<400x32xf32, #tpu.memory_space<vmem>>, vector<1x32xf32>
    %c0_207 = arith.constant 0 : index
    %c0_208 = arith.constant 0 : index
    %c0_209 = arith.constant 0 : index
    %298 = vector.load %arg9[%c0_207, %c0_208, %c0_209] : memref<4x32x32xf32, #tpu.memory_space<vmem>>, vector<1x32x32xf32>
    %299 = vector.shape_cast %298 : vector<1x32x32xf32> to vector<32x32xf32>
    %cst_210 = arith.constant dense<0.000000e+00> : vector<1x32xf32>
    %300 = tpu.matmul %297, %299, %cst_210 {dimension_numbers = #tpu.dot_dimension_numbers<[1], [0], [0], [1], [0, 0, 1, 1], [], []>} : vector<1x32xf32>, vector<32x32xf32>, vector<1x32xf32> -> vector<1x32xf32>
    %301 = arith.addf %296, %300 : vector<1x32xf32>
    %c80 = arith.constant 80 : index
    %c0_211 = arith.constant 0 : index
    %302 = vector.load %arg14[%c80, %c0_211] : memref<400x32xf32, #tpu.memory_space<vmem>>, vector<1x32xf32>
    %c1_212 = arith.constant 1 : index
    %c0_213 = arith.constant 0 : index
    %c0_214 = arith.constant 0 : index
    %303 = vector.load %arg9[%c1_212, %c0_213, %c0_214] : memref<4x32x32xf32, #tpu.memory_space<vmem>>, vector<1x32x32xf32>
    %304 = vector.shape_cast %303 : vector<1x32x32xf32> to vector<32x32xf32>
    %cst_215 = arith.constant dense<0.000000e+00> : vector<1x32xf32>
    %305 = tpu.matmul %302, %304, %cst_215 {dimension_numbers = #tpu.dot_dimension_numbers<[1], [0], [0], [1], [0, 0, 1, 1], [], []>} : vector<1x32xf32>, vector<32x32xf32>, vector<1x32xf32> -> vector<1x32xf32>
    %306 = arith.addf %301, %305 : vector<1x32xf32>
    %c200 = arith.constant 200 : index
    %c0_216 = arith.constant 0 : index
    %307 = vector.load %arg14[%c200, %c0_216] : memref<400x32xf32, #tpu.memory_space<vmem>>, vector<1x32xf32>
    %c2_217 = arith.constant 2 : index
    %c0_218 = arith.constant 0 : index
    %c0_219 = arith.constant 0 : index
    %308 = vector.load %arg9[%c2_217, %c0_218, %c0_219] : memref<4x32x32xf32, #tpu.memory_space<vmem>>, vector<1x32x32xf32>
    %309 = vector.shape_cast %308 : vector<1x32x32xf32> to vector<32x32xf32>
    %cst_220 = arith.constant dense<0.000000e+00> : vector<1x32xf32>
    %310 = tpu.matmul %307, %309, %cst_220 {dimension_numbers = #tpu.dot_dimension_numbers<[1], [0], [0], [1], [0, 0, 1, 1], [], []>} : vector<1x32xf32>, vector<32x32xf32>, vector<1x32xf32> -> vector<1x32xf32>
    %311 = arith.addf %306, %310 : vector<1x32xf32>
    %c208 = arith.constant 208 : index
    %c0_221 = arith.constant 0 : index
    %312 = vector.load %arg14[%c208, %c0_221] : memref<400x32xf32, #tpu.memory_space<vmem>>, vector<1x32xf32>
    %c3_222 = arith.constant 3 : index
    %c0_223 = arith.constant 0 : index
    %c0_224 = arith.constant 0 : index
    %313 = vector.load %arg9[%c3_222, %c0_223, %c0_224] : memref<4x32x32xf32, #tpu.memory_space<vmem>>, vector<1x32x32xf32>
    %314 = vector.shape_cast %313 : vector<1x32x32xf32> to vector<32x32xf32>
    %cst_225 = arith.constant dense<0.000000e+00> : vector<1x32xf32>
    %315 = tpu.matmul %312, %314, %cst_225 {dimension_numbers = #tpu.dot_dimension_numbers<[1], [0], [0], [1], [0, 0, 1, 1], [], []>} : vector<1x32xf32>, vector<32x32xf32>, vector<1x32xf32> -> vector<1x32xf32>
    %316 = arith.addf %311, %315 : vector<1x32xf32>
    %c0_226 = arith.constant 0 : index
    %c0_227 = arith.constant 0 : index
    %317 = vector.load %arg10[%c0_226, %c0_227] : memref<1x32xf32, #tpu.memory_space<vmem>>, vector<1x32xf32>
    %318 = arith.addf %316, %317 : vector<1x32xf32>
    %cst_228 = arith.constant 0.000000e+00 : f32
    %319 = vector.broadcast %cst_228 : f32 to vector<1x32xf32>
    %320 = arith.maximumf %318, %319 : vector<1x32xf32>
    %c0_229 = arith.constant 0 : index
    %c0_230 = arith.constant 0 : index
    %321 = vector.load %arg11[%c0_229, %c0_230] : memref<32x4xf32, #tpu.memory_space<vmem>>, vector<32x4xf32>
    %cst_231 = arith.constant dense<0.000000e+00> : vector<1x4xf32>
    %322 = tpu.matmul %320, %321, %cst_231 {dimension_numbers = #tpu.dot_dimension_numbers<[1], [0], [0], [1], [0, 0, 1, 1], [], []>} : vector<1x32xf32>, vector<32x4xf32>, vector<1x4xf32> -> vector<1x4xf32>
    %c0_232 = arith.constant 0 : index
    %c0_233 = arith.constant 0 : index
    %323 = vector.load %arg12[%c0_232, %c0_233] : memref<1x4xf32, #tpu.memory_space<vmem>>, vector<1x4xf32>
    %324 = arith.addf %322, %323 : vector<1x4xf32>
    %325 = arith.mulf %324, %324 : vector<1x4xf32>
    %cst_234 = arith.constant dense<0.000000e+00> : vector<1xf32>
    %326 = vector.multi_reduction <add>, %325, %cst_234 [1] : vector<1x4xf32> to vector<1xf32>
    %327 = vector.shape_cast %326 : vector<1xf32> to vector<1x1xf32>
    %cst_235 = arith.constant 1.000000e-24 : f32
    %328 = vector.broadcast %cst_235 : f32 to vector<1x1xf32>
    %329 = arith.maximumf %327, %328 : vector<1x1xf32>
    %330 = math.rsqrt %329 : vector<1x1xf32>
    %331 = vector.broadcast %330 : vector<1x1xf32> to vector<1x4xf32>
    %332 = arith.mulf %324, %331 : vector<1x4xf32>
    %c0_236 = arith.constant 0 : index
    %c0_237 = arith.constant 0 : index
    %333 = vector.load %arg13[%c0_236, %c0_237] : memref<1x4xf32, #tpu.memory_space<vmem>>, vector<1x4xf32>
    tpu.vector_store %arg13[%c0_236, %c0_237], %332 {strides = array<i32>} : memref<1x4xf32, #tpu.memory_space<vmem>>, vector<1x4xf32>,
    return
  }
  func.func @transform_0(%arg0: i32) -> (i32, i32) {
    %c0_i32 = arith.constant 0 : i32
    %c0_i32_0 = arith.constant 0 : i32
    %c0_i32_1 = arith.constant 0 : i32
    return %c0_i32, %c0_i32_0 : i32, i32
  }
  func.func @transform_1(%arg0: i32) -> (i32, i32) {
    %c0_i32 = arith.constant 0 : i32
    %c0_i32_0 = arith.constant 0 : i32
    %c0_i32_1 = arith.constant 0 : i32
    return %c0_i32, %c0_i32_0 : i32, i32
  }
  func.func @transform_2(%arg0: i32) -> (i32, i32, i32) {
    %c0_i32 = arith.constant 0 : i32
    %c0_i32_0 = arith.constant 0 : i32
    %c0_i32_1 = arith.constant 0 : i32
    %c0_i32_2 = arith.constant 0 : i32
    return %c0_i32, %c0_i32_0, %c0_i32_1 : i32, i32, i32
  }
  func.func @transform_3(%arg0: i32) -> (i32, i32) {
    %c0_i32 = arith.constant 0 : i32
    %c0_i32_0 = arith.constant 0 : i32
    %c0_i32_1 = arith.constant 0 : i32
    return %c0_i32, %c0_i32_0 : i32, i32
  }
  func.func @transform_4(%arg0: i32) -> (i32, i32, i32) {
    %c0_i32 = arith.constant 0 : i32
    %c0_i32_0 = arith.constant 0 : i32
    %c0_i32_1 = arith.constant 0 : i32
    %c0_i32_2 = arith.constant 0 : i32
    return %c0_i32, %c0_i32_0, %c0_i32_1 : i32, i32, i32
  }
  func.func @transform_5(%arg0: i32) -> (i32, i32) {
    %c0_i32 = arith.constant 0 : i32
    %c0_i32_0 = arith.constant 0 : i32
    %c0_i32_1 = arith.constant 0 : i32
    return %c0_i32, %c0_i32_0 : i32, i32
  }
  func.func @transform_6(%arg0: i32) -> (i32, i32, i32) {
    %c0_i32 = arith.constant 0 : i32
    %c0_i32_0 = arith.constant 0 : i32
    %c0_i32_1 = arith.constant 0 : i32
    %c0_i32_2 = arith.constant 0 : i32
    return %c0_i32, %c0_i32_0, %c0_i32_1 : i32, i32, i32
  }
  func.func @transform_7(%arg0: i32) -> (i32, i32) {
    %c0_i32 = arith.constant 0 : i32
    %c0_i32_0 = arith.constant 0 : i32
    %c0_i32_1 = arith.constant 0 : i32
    return %c0_i32, %c0_i32_0 : i32, i32
  }
  func.func @transform_8(%arg0: i32) -> (i32, i32, i32) {
    %c0_i32 = arith.constant 0 : i32
    %c0_i32_0 = arith.constant 0 : i32
    %c0_i32_1 = arith.constant 0 : i32
    %c0_i32_2 = arith.constant 0 : i32
    return %c0_i32, %c0_i32_0, %c0_i32_1 : i32, i32, i32
  }
  func.func @transform_9(%arg0: i32) -> (i32, i32) {
    %c0_i32 = arith.constant 0 : i32
    %c0_i32_0 = arith.constant 0 : i32
    %c0_i32_1 = arith.constant 0 : i32
    return %c0_i32, %c0_i32_0 : i32, i32
  }
  func.func @transform_10(%arg0: i32) -> (i32, i32) {
    %c0_i32 = arith.constant 0 : i32
    %c0_i32_0 = arith.constant 0 : i32
    %c0_i32_1 = arith.constant 0 : i32
    return %c0_i32, %c0_i32_0 : i32, i32
  }
  func.func @transform_11(%arg0: i32) -> (i32, i32) {
    %c0_i32 = arith.constant 0 : i32
    %c0_i32_0 = arith.constant 0 : i32
    %c0_i32_1 = arith.constant 0 : i32
    return %c0_i32, %c0_i32_0 : i32, i32
  }
  func.func @transform_12(%arg0: i32) -> (i32, i32) {
    %c0_i32 = arith.constant 0 : i32
    %c0_i32_0 = arith.constant 0 : i32
    %c0_i32_1 = arith.constant 0 : i32
    return %c0_i32, %c0_i32_0 : i32, i32
  }
}

</mosaic_0001>

<llo_original>
// kernel: tpu_custom_call.1
$region0: #{tpu_custom_call.1}
  #allocation0 [shape = 'u32[]', space=smem, size = 0x4, offset = 0x4, fixed_abs, tag = 'smem constant byte address 0x4 - core index']
  #allocation1 [shape = 'u32[72,128]{1,0:T(1,128)}', space=vmem, size = 0x9000, scoped, tag = 'internal scratch']
  #allocation2 [shape = 'f32[400,32]{1,0:T(8,128)}', space=vmem, size = 0x32000, scoped, tag = 'scratch operand']
  %s0 = inlined_call_operand.vmem [shape: s32[256,1], index: 0, kind: input, shape index: {}]
  %s1 = inlined_call_operand.vmem [shape: f32[256,8], index: 1, kind: input, shape index: {}]
  %s2 = inlined_call_operand.vmem [shape: bf16[9,8,32], index: 2, kind: input, shape index: {}]
  %s3 = inlined_call_operand.vmem [shape: f32[1,32], index: 3, kind: input, shape index: {}]
  %s4 = inlined_call_operand.vmem [shape: bf16[9,32,32], index: 4, kind: input, shape index: {}]
  %s5 = inlined_call_operand.vmem [shape: f32[1,32], index: 5, kind: input, shape index: {}]
  %s6 = inlined_call_operand.vmem [shape: bf16[9,32,32], index: 6, kind: input, shape index: {}]
  %s7 = inlined_call_operand.vmem [shape: f32[1,32], index: 7, kind: input, shape index: {}]
  %s8 = inlined_call_operand.vmem [shape: f32[4,32,32], index: 8, kind: input, shape index: {}]
  %s9 = inlined_call_operand.vmem [shape: f32[1,32], index: 9, kind: input, shape index: {}]
  %s10 = inlined_call_operand.vmem [shape: f32[32,4], index: 10, kind: input, shape index: {}]
  %s11 = inlined_call_operand.vmem [shape: f32[1,4], index: 11, kind: input, shape index: {}]
  %s12 = inlined_call_operand.hbm [shape: f32[1,4], index: 12, kind: output, shape index: {}]
  %s13 = sld [smem:[#allocation0]]
  $region58: #{tpu_custom_call.1} parent=0
    _
  %s15 = ssub.s32 1, %s13
  %s16 = scalar_select 0, %s15, %s13
  $region1: #{tpu_custom_call.1} parent=0
    #allocation3 [shape = 'u8[512]{0}', space=vmem, size = 0x400, scoped, tag = 'output window, operand 0, single buffered']
    #allocation4 [shape = 's32[1]{0}', space=sflag, size = 0x4, scoped, tag = 'scoped memory for tpu_custom_call.1']
    %17 = vsyncpa [#allocation4], 0
    // Predicated region
    $region2: #{tpu_custom_call.1} parent=1 // pred_check
      _
    $region3: #{tpu_custom_call.1} parent=1 // pred_check_branch
      %19 = sbr.rel (0) target = $region5
    $region4: #{tpu_custom_call.1} parent=1 // pred_region
      _
    $region5: #{tpu_custom_call.1} parent=1 // pred_fallthru
      _
    // Predicated region
    $region6: #{tpu_custom_call.1} parent=1 // pred_check
      _
    $region7: #{tpu_custom_call.1} parent=1 // pred_check_branch
      %21 = sbr.rel (0) target = $region9
    $region8: #{tpu_custom_call.1} parent=1 // pred_region
      _
    $region9: #{tpu_custom_call.1} parent=1 // pred_fallthru
      _
    // Predicated region
    $region10: #{tpu_custom_call.1} parent=1 // pred_check
      _
    $region11: #{tpu_custom_call.1} parent=1 // pred_check_branch
      %23 = sbr.rel (0) target = $region13
    $region12: #{tpu_custom_call.1} parent=1 // pred_region
      _
    $region13: #{tpu_custom_call.1} parent=1 // pred_fallthru
      _
    // Predicated region
    $region14: #{tpu_custom_call.1} parent=1 // pred_check
      _
    $region15: #{tpu_custom_call.1} parent=1 // pred_check_branch
      %25 = sbr.rel (0) target = $region17
    $region16: #{tpu_custom_call.1} parent=1 // pred_region
      _
    $region17: #{tpu_custom_call.1} parent=1 // pred_fallthru
      _
    // Predicated region
    $region18: #{tpu_custom_call.1} parent=1 // pred_check
      _
    $region19: #{tpu_custom_call.1} parent=1 // pred_check_branch
      %27 = sbr.rel (0) target = $region21
    $region20: #{tpu_custom_call.1} parent=1 // pred_region
      _
    $region21: #{tpu_custom_call.1} parent=1 // pred_fallthru
      _
    // Predicated region
    $region22: #{tpu_custom_call.1} parent=1 // pred_check
      _
    $region23: #{tpu_custom_call.1} parent=1 // pred_check_branch
      %29 = sbr.rel (0) target = $region25
    $region24: #{tpu_custom_call.1} parent=1 // pred_region
      _
    $region25: #{tpu_custom_call.1} parent=1 // pred_fallthru
      _
    // Predicated region
    $region26: #{tpu_custom_call.1} parent=1 // pred_check
      _
    $region27: #{tpu_custom_call.1} parent=1 // pred_check_branch
      %31 = sbr.rel (0) target = $region29
    $region28: #{tpu_custom_call.1} parent=1 // pred_region
      _
    $region29: #{tpu_custom_call.1} parent=1 // pred_fallthru
      _
    // Predicated region
    $region30: #{tpu_custom_call.1} parent=1 // pred_check
      _
    $region31: #{tpu_custom_call.1} parent=1 // pred_check_branch
      %33 = sbr.rel (0) target = $region33
    $region32: #{tpu_custom_call.1} parent=1 // pred_region
      _
    $region33: #{tpu_custom_call.1} parent=1 // pred_fallthru
      _
    // Predicated region
    $region34: #{tpu_custom_call.1} parent=1 // pred_check
      _
    $region35: #{tpu_custom_call.1} parent=1 // pred_check_branch
      %35 = sbr.rel (0) target = $region37
    $region36: #{tpu_custom_call.1} parent=1 // pred_region
      _
    $region37: #{tpu_custom_call.1} parent=1 // pred_fallthru
      _
    // Predicated region
    $region38: #{tpu_custom_call.1} parent=1 // pred_check
      _
    $region39: #{tpu_custom_call.1} parent=1 // pred_check_branch
      %37 = sbr.rel (0) target = $region41
    $region40: #{tpu_custom_call.1} parent=1 // pred_region
      _
    $region41: #{tpu_custom_call.1} parent=1 // pred_fallthru
      _
    // Predicated region
    $region42: #{tpu_custom_call.1} parent=1 // pred_check
      _
    $region43: #{tpu_custom_call.1} parent=1 // pred_check_branch
      %39 = sbr.rel (0) target = $region45
    $region44: #{tpu_custom_call.1} parent=1 // pred_region
      _
    $region45: #{tpu_custom_call.1} parent=1 // pred_fallthru
      _
    // Predicated region
    $region46: #{tpu_custom_call.1} parent=1 // pred_check
      _
    $region47: #{tpu_custom_call.1} parent=1 // pred_check_branch
      %41 = sbr.rel (0) target = $region49
    $region48: #{tpu_custom_call.1} parent=1 // pred_region
      _
    $region49: #{tpu_custom_call.1} parent=1 // pred_fallthru
      _
    %vm43 = vcmask 261120
    %44 = vst.msk [vmem:[#allocation2] sm:$0xff] %vm43, 0.0
    %45 = vst.msk [vmem:[#allocation2 + $0x8] sm:$0xff] %vm43, 0.0
    %46 = vst.msk [vmem:[#allocation2 + $0x10] sm:$0xff] %vm43, 0.0
    %47 = vst.msk [vmem:[#allocation2 + $0x18] sm:$0xff] %vm43, 0.0
    %48 = vst.msk [vmem:[#allocation2 + $0x20] sm:$0xff] %vm43, 0.0
    %49 = vst.msk [vmem:[#allocation2 + $0x28] sm:$0xff] %vm43, 0.0
    %50 = vst.msk [vmem:[#allocation2 + $0x30] sm:$0xff] %vm43, 0.0
    %51 = vst.msk [vmem:[#allocation2 + $0x38] sm:$0xff] %vm43, 0.0
    %52 = vst.msk [vmem:[#allocation2 + $0x40] sm:$0xff] %vm43, 0.0
    %53 = vst.msk [vmem:[#allocation2 + $0x48] sm:$0xff] %vm43, 0.0
    %54 = vst.msk [vmem:[#allocation2 + $0x50] sm:$0xff] %vm43, 0.0
    %55 = vst.msk [vmem:[#allocation2 + $0x58] sm:$0xff] %vm43, 0.0
    %56 = vst.msk [vmem:[#allocation2 + $0x60] sm:$0xff] %vm43, 0.0
    %57 = vst.msk [vmem:[#allocation2 + $0x68] sm:$0xff] %vm43, 0.0
    %58 = vst.msk [vmem:[#allocation2 + $0x70] sm:$0xff] %vm43, 0.0
    %59 = vst.msk [vmem:[#allocation2 + $0x78] sm:$0xff] %vm43, 0.0
    %60 = vst.msk [vmem:[#allocation2 + $0x80] sm:$0xff] %vm43, 0.0
    %61 = vst.msk [vmem:[#allocation2 + $0x88] sm:$0xff] %vm43, 0.0
    %62 = vst.msk [vmem:[#allocation2 + $0x90] sm:$0xff] %vm43, 0.0
    %63 = vst.msk [vmem:[#allocation2 + $0x98] sm:$0xff] %vm43, 0.0
    %64 = vst.msk [vmem:[#allocation2 + $0xa0] sm:$0xff] %vm43, 0.0
    %65 = vst.msk [vmem:[#allocation2 + $0xa8] sm:$0xff] %vm43, 0.0
    %66 = vst.msk [vmem:[#allocation2 + $0xb0] sm:$0xff] %vm43, 0.0
    %67 = vst.msk [vmem:[#allocation2 + $0xb8] sm:$0xff] %vm43, 0.0
    %68 = vst.msk [vmem:[#allocation2 + $0xc0] sm:$0xff] %vm43, 0.0
    %69 = vst.msk [vmem:[#allocation2 + $0xc8] sm:$0xff] %vm43, 0.0
    %70 = vst.msk [vmem:[#allocation2 + $0xd0] sm:$0xff] %vm43, 0.0
    %71 = vst.msk [vmem:[#allocation2 + $0xd8] sm:$0xff] %vm43, 0.0
    %72 = vst.msk [vmem:[#allocation2 + $0xe0] sm:$0xff] %vm43, 0.0
    %73 = vst.msk [vmem:[#allocation2 + $0xe8] sm:$0xff] %vm43, 0.0
    %74 = vst.msk [vmem:[#allocation2 + $0xf0] sm:$0xff] %vm43, 0.0
    %75 = vst.msk [vmem:[#allocation2 + $0xf8] sm:$0xff] %vm43, 0.0
    %76 = vst.msk [vmem:[#allocation2 + $0x100] sm:$0xff] %vm43, 0.0
    %77 = vst.msk [vmem:[#allocation2 + $0x108] sm:$0xff] %vm43, 0.0
    %78 = vst.msk [vmem:[#allocation2 + $0x110] sm:$0xff] %vm43, 0.0
    %79 = vst.msk [vmem:[#allocation2 + $0x118] sm:$0xff] %vm43, 0.0
    %80 = vst.msk [vmem:[#allocation2 + $0x120] sm:$0xff] %vm43, 0.0
    %81 = vst.msk [vmem:[#allocation2 + $0x128] sm:$0xff] %vm43, 0.0
    %82 = vst.msk [vmem:[#allocation2 + $0x130] sm:$0xff] %vm43, 0.0
    %83 = vst.msk [vmem:[#allocation2 + $0x138] sm:$0xff] %vm43, 0.0
    %84 = vst.msk [vmem:[#allocation2 + $0x140] sm:$0xff] %vm43, 0.0
    %85 = vst.msk [vmem:[#allocation2 + $0x148] sm:$0xff] %vm43, 0.0
    %86 = vst.msk [vmem:[#allocation2 + $0x150] sm:$0xff] %vm43, 0.0
    %87 = vst.msk [vmem:[#allocation2 + $0x158] sm:$0xff] %vm43, 0.0
    %88 = vst.msk [vmem:[#allocation2 + $0x160] sm:$0xff] %vm43, 0.0
    %89 = vst.msk [vmem:[#allocation2 + $0x168] sm:$0xff] %vm43, 0.0
    %90 = vst.msk [vmem:[#allocation2 + $0x170] sm:$0xff] %vm43, 0.0
    %91 = vst.msk [vmem:[#allocation2 + $0x178] sm:$0xff] %vm43, 0.0
    %92 = vst.msk [vmem:[#allocation2 + $0x180] sm:$0xff] %vm43, 0.0
    %93 = vst.msk [vmem:[#allocation2 + $0x188] sm:$0xff] %vm43, 0.0
    %v94 = vld [vmem:[%s0] sm:$0xff]
    %v95 = vld [vmem:[%s0 + $0x8] sm:$0xff]
    %v96 = vld [vmem:[%s0 + $0x10] sm:$0xff]
    %v97 = vld [vmem:[%s0 + $0x18] sm:$0xff]
    %v98 = vld [vmem:[%s0 + $0x20] sm:$0xff]
    %v99 = vld [vmem:[%s0 + $0x28] sm:$0xff]
    %v100 = vld [vmem:[%s0 + $0x30] sm:$0xff]
    %v101 = vld [vmem:[%s0 + $0x38] sm:$0xff]
    %v102 = vld [vmem:[%s0 + $0x40] sm:$0xff]
    %v103 = vld [vmem:[%s0 + $0x48] sm:$0xff]
    %v104 = vld [vmem:[%s0 + $0x50] sm:$0xff]
    %v105 = vld [vmem:[%s0 + $0x58] sm:$0xff]
    %v106 = vld [vmem:[%s0 + $0x60] sm:$0xff]
    %v107 = vld [vmem:[%s0 + $0x68] sm:$0xff]
    %v108 = vld [vmem:[%s0 + $0x70] sm:$0xff]
    %v109 = vld [vmem:[%s0 + $0x78] sm:$0xff]
    %v110 = vld [vmem:[%s0 + $0x80] sm:$0xff]
    %v111 = vld [vmem:[%s0 + $0x88] sm:$0xff]
    %v112 = vld [vmem:[%s0 + $0x90] sm:$0xff]
    %v113 = vld [vmem:[%s0 + $0x98] sm:$0xff]
    %v114 = vld [vmem:[%s0 + $0xa0] sm:$0xff]
    %v115 = vld [vmem:[%s0 + $0xa8] sm:$0xff]
    %v116 = vld [vmem:[%s0 + $0xb0] sm:$0xff]
    %v117 = vld [vmem:[%s0 + $0xb8] sm:$0xff]
    %v118 = vld [vmem:[%s0 + $0xc0] sm:$0xff]
    %v119 = vld [vmem:[%s0 + $0xc8] sm:$0xff]
    %v120 = vld [vmem:[%s0 + $0xd0] sm:$0xff]
    %v121 = vld [vmem:[%s0 + $0xd8] sm:$0xff]
    %v122 = vld [vmem:[%s0 + $0xe0] sm:$0xff]
    %v123 = vld [vmem:[%s0 + $0xe8] sm:$0xff]
    %v124 = vld [vmem:[%s0 + $0xf0] sm:$0xff]
    %v125 = vld [vmem:[%s0 + $0xf8] sm:$0xff]
    %v126 = vld [vmem:[%s1] sm:$0xff]
    %v127 = vld [vmem:[%s1 + $0x8] sm:$0xff]
    %v128 = vld [vmem:[%s1 + $0x10] sm:$0xff]
    %v129 = vld [vmem:[%s1 + $0x18] sm:$0xff]
    %v130 = vld [vmem:[%s1 + $0x20] sm:$0xff]
    %v131 = vld [vmem:[%s1 + $0x28] sm:$0xff]
    %v132 = vld [vmem:[%s1 + $0x30] sm:$0xff]
    %v133 = vld [vmem:[%s1 + $0x38] sm:$0xff]
    %v134 = vld [vmem:[%s1 + $0x40] sm:$0xff]
    %v135 = vld [vmem:[%s1 + $0x48] sm:$0xff]
    %v136 = vld [vmem:[%s1 + $0x50] sm:$0xff]
    %v137 = vld [vmem:[%s1 + $0x58] sm:$0xff]
    %v138 = vld [vmem:[%s1 + $0x60] sm:$0xff]
    %v139 = vld [vmem:[%s1 + $0x68] sm:$0xff]
    %v140 = vld [vmem:[%s1 + $0x70] sm:$0xff]
    %v141 = vld [vmem:[%s1 + $0x78] sm:$0xff]
    %v142 = vld [vmem:[%s1 + $0x80] sm:$0xff]
    %v143 = vld [vmem:[%s1 + $0x88] sm:$0xff]
    %v144 = vld [vmem:[%s1 + $0x90] sm:$0xff]
    %v145 = vld [vmem:[%s1 + $0x98] sm:$0xff]
    %v146 = vld [vmem:[%s1 + $0xa0] sm:$0xff]
    %v147 = vld [vmem:[%s1 + $0xa8] sm:$0xff]
    %v148 = vld [vmem:[%s1 + $0xb0] sm:$0xff]
    %v149 = vld [vmem:[%s1 + $0xb8] sm:$0xff]
    %v150 = vld [vmem:[%s1 + $0xc0] sm:$0xff]
    %v151 = vld [vmem:[%s1 + $0xc8] sm:$0xff]
    %v152 = vld [vmem:[%s1 + $0xd0] sm:$0xff]
    %v153 = vld [vmem:[%s1 + $0xd8] sm:$0xff]
    %v154 = vld [vmem:[%s1 + $0xe0] sm:$0xff]
    %v155 = vld [vmem:[%s1 + $0xe8] sm:$0xff]
    %v156 = vld [vmem:[%s1 + $0xf0] sm:$0xff]
    %v157 = vld [vmem:[%s1 + $0xf8] sm:$0xff]
    %vm158 = vcmask 64512
    %159 = vst.msk [vmem:[#allocation2 + $0x48] sm:$0xff] %vm158, %v126
    %160 = vst.msk [vmem:[#allocation2 + $0x50] sm:$0xff] %vm158, %v127
    %161 = vst.msk [vmem:[#allocation2 + $0x58] sm:$0xff] %vm158, %v128
    %162 = vst.msk [vmem:[#allocation2 + $0x60] sm:$0xff] %vm158, %v129
    %163 = vst.msk [vmem:[#allocation2 + $0x68] sm:$0xff] %vm158, %v130
    %164 = vst.msk [vmem:[#allocation2 + $0x70] sm:$0xff] %vm158, %v131
    %165 = vst.msk [vmem:[#allocation2 + $0x78] sm:$0xff] %vm158, %v132
    %166 = vst.msk [vmem:[#allocation2 + $0x80] sm:$0xff] %vm158, %v133
    %167 = vst.msk [vmem:[#allocation2 + $0x88] sm:$0xff] %vm158, %v134
    %168 = vst.msk [vmem:[#allocation2 + $0x90] sm:$0xff] %vm158, %v135
    %169 = vst.msk [vmem:[#allocation2 + $0x98] sm:$0xff] %vm158, %v136
    %170 = vst.msk [vmem:[#allocation2 + $0xa0] sm:$0xff] %vm158, %v137
    %171 = vst.msk [vmem:[#allocation2 + $0xa8] sm:$0xff] %vm158, %v138
    %172 = vst.msk [vmem:[#allocation2 + $0xb0] sm:$0xff] %vm158, %v139
    %173 = vst.msk [vmem:[#allocation2 + $0xb8] sm:$0xff] %vm158, %v140
    %174 = vst.msk [vmem:[#allocation2 + $0xc0] sm:$0xff] %vm158, %v141
    %175 = vst.msk [vmem:[#allocation2 + $0xc8] sm:$0xff] %vm158, %v142
    %176 = vst.msk [vmem:[#allocation2 + $0xd0] sm:$0xff] %vm158, %v143
    %177 = vst.msk [vmem:[#allocation2 + $0xd8] sm:$0xff] %vm158, %v144
    %178 = vst.msk [vmem:[#allocation2 + $0xe0] sm:$0xff] %vm158, %v145
    %179 = vst.msk [vmem:[#allocation2 + $0xe8] sm:$0xff] %vm158, %v146
    %180 = vst.msk [vmem:[#allocation2 + $0xf0] sm:$0xff] %vm158, %v147
    %181 = vst.msk [vmem:[#allocation2 + $0xf8] sm:$0xff] %vm158, %v148
    %182 = vst.msk [vmem:[#allocation2 + $0x100] sm:$0xff] %vm158, %v149
    %183 = vst.msk [vmem:[#allocation2 + $0x108] sm:$0xff] %vm158, %v150
    %184 = vst.msk [vmem:[#allocation2 + $0x110] sm:$0xff] %vm158, %v151
    %185 = vst.msk [vmem:[#allocation2 + $0x118] sm:$0xff] %vm158, %v152
    %186 = vst.msk [vmem:[#allocation2 + $0x120] sm:$0xff] %vm158, %v153
    %187 = vst.msk [vmem:[#allocation2 + $0x128] sm:$0xff] %vm158, %v154
    %188 = vst.msk [vmem:[#allocation2 + $0x130] sm:$0xff] %vm158, %v155
    %189 = vst.msk [vmem:[#allocation2 + $0x138] sm:$0xff] %vm158, %v156
    %190 = vst.msk [vmem:[#allocation2 + $0x140] sm:$0xff] %vm158, %v157
    %vm191 = vcmp.ge.s32.totalorder %v94, 1
    %vm192 = vcmp.ge.s32.totalorder %v95, 1
    %vm193 = vcmp.ge.s32.totalorder %v96, 1
    %vm194 = vcmp.ge.s32.totalorder %v97, 1
    %vm195 = vcmp.ge.s32.totalorder %v98, 1
    %vm196 = vcmp.ge.s32.totalorder %v99, 1
    %vm197 = vcmp.ge.s32.totalorder %v100, 1
    %vm198 = vcmp.ge.s32.totalorder %v101, 1
    %vm199 = vcmp.ge.s32.totalorder %v102, 1
    %vm200 = vcmp.ge.s32.totalorder %v103, 1
    %vm201 = vcmp.ge.s32.totalorder %v104, 1
    %vm202 = vcmp.ge.s32.totalorder %v105, 1
    %vm203 = vcmp.ge.s32.totalorder %v106, 1
    %vm204 = vcmp.ge.s32.totalorder %v107, 1
    %vm205 = vcmp.ge.s32.totalorder %v108, 1
    %vm206 = vcmp.ge.s32.totalorder %v109, 1
    %vm207 = vcmp.ge.s32.totalorder %v110, 1
    %vm208 = vcmp.ge.s32.totalorder %v111, 1
    %vm209 = vcmp.ge.s32.totalorder %v112, 1
    %vm210 = vcmp.ge.s32.totalorder %v113, 1
    %vm211 = vcmp.ge.s32.totalorder %v114, 1
    %vm212 = vcmp.ge.s32.totalorder %v115, 1
    %vm213 = vcmp.ge.s32.totalorder %v116, 1
    %vm214 = vcmp.ge.s32.totalorder %v117, 1
    %vm215 = vcmp.ge.s32.totalorder %v118, 1
    %vm216 = vcmp.ge.s32.totalorder %v119, 1
    %vm217 = vcmp.ge.s32.totalorder %v120, 1
    %vm218 = vcmp.ge.s32.totalorder %v121, 1
    %vm219 = vcmp.ge.s32.totalorder %v122, 1
    %vm220 = vcmp.ge.s32.totalorder %v123, 1
    %vm221 = vcmp.ge.s32.totalorder %v124, 1
    %vm222 = vcmp.ge.s32.totalorder %v125, 1
    %vm223 = vcmp.lt.s32.totalorder %v94, 15
    %vm224 = vcmp.lt.s32.totalorder %v95, 15
    %vm225 = vcmp.lt.s32.totalorder %v96, 15
    %vm226 = vcmp.lt.s32.totalorder %v97, 15
    %vm227 = vcmp.lt.s32.totalorder %v98, 15
    %vm228 = vcmp.lt.s32.totalorder %v99, 15
    %vm229 = vcmp.lt.s32.totalorder %v100, 15
    %vm230 = vcmp.lt.s32.totalorder %v101, 15
    %vm231 = vcmp.lt.s32.totalorder %v102, 15
    %vm232 = vcmp.lt.s32.totalorder %v103, 15
    %vm233 = vcmp.lt.s32.totalorder %v104, 15
    %vm234 = vcmp.lt.s32.totalorder %v105, 15
    %vm235 = vcmp.lt.s32.totalorder %v106, 15
    %vm236 = vcmp.lt.s32.totalorder %v107, 15
    %vm237 = vcmp.lt.s32.totalorder %v108, 15
    %vm238 = vcmp.lt.s32.totalorder %v109, 15
    %vm239 = vcmp.lt.s32.totalorder %v110, 15
    %vm240 = vcmp.lt.s32.totalorder %v111, 15
    %vm241 = vcmp.lt.s32.totalorder %v112, 15
    %vm242 = vcmp.lt.s32.totalorder %v113, 15
    %vm243 = vcmp.lt.s32.totalorder %v114, 15
    %vm244 = vcmp.lt.s32.totalorder %v115, 15
    %vm245 = vcmp.lt.s32.totalorder %v116, 15
    %vm246 = vcmp.lt.s32.totalorder %v117, 15
    %vm247 = vcmp.lt.s32.totalorder %v118, 15
    %vm248 = vcmp.lt.s32.totalorder %v119, 15
    %vm249 = vcmp.lt.s32.totalorder %v120, 15
    %vm250 = vcmp.lt.s32.totalorder %v121, 15
    %vm251 = vcmp.lt.s32.totalorder %v122, 15
    %vm252 = vcmp.lt.s32.totalorder %v123, 15
    %vm253 = vcmp.lt.s32.totalorder %v124, 15
    %vm254 = vcmp.lt.s32.totalorder %v125, 15
    %v255 = vld [vmem:[#allocation2 + $0x37] sm:$0xff]
    %v256 = vld [vmem:[#allocation2 + $0x3f] sm:$0xff]
    %v257 = vld [vmem:[#allocation2 + $0x47] sm:$0xff]
    %v258 = vld [vmem:[#allocation2 + $0x4f] sm:$0xff]
    %v259 = vld [vmem:[#allocation2 + $0x57] sm:$0xff]
    %v260 = vld [vmem:[#allocation2 + $0x5f] sm:$0xff]
    %v261 = vld [vmem:[#allocation2 + $0x67] sm:$0xff]
    %v262 = vld [vmem:[#allocation2 + $0x6f] sm:$0xff]
    %v263 = vld [vmem:[#allocation2 + $0x77] sm:$0xff]
    %v264 = vld [vmem:[#allocation2 + $0x7f] sm:$0xff]
    %v265 = vld [vmem:[#allocation2 + $0x87] sm:$0xff]
    %v266 = vld [vmem:[#allocation2 + $0x8f] sm:$0xff]
    %v267 = vld [vmem:[#allocation2 + $0x97] sm:$0xff]
    %v268 = vld [vmem:[#allocation2 + $0x9f] sm:$0xff]
    %v269 = vld [vmem:[#allocation2 + $0xa7] sm:$0xff]
    %v270 = vld [vmem:[#allocation2 + $0xaf] sm:$0xff]
    %v271 = vld [vmem:[#allocation2 + $0xb7] sm:$0xff]
    %v272 = vld [vmem:[#allocation2 + $0xbf] sm:$0xff]
    %v273 = vld [vmem:[#allocation2 + $0xc7] sm:$0xff]
    %v274 = vld [vmem:[#allocation2 + $0xcf] sm:$0xff]
    %v275 = vld [vmem:[#allocation2 + $0xd7] sm:$0xff]
    %v276 = vld [vmem:[#allocation2 + $0xdf] sm:$0xff]
    %v277 = vld [vmem:[#allocation2 + $0xe7] sm:$0xff]
    %v278 = vld [vmem:[#allocation2 + $0xef] sm:$0xff]
    %v279 = vld [vmem:[#allocation2 + $0xf7] sm:$0xff]
    %v280 = vld [vmem:[#allocation2 + $0xff] sm:$0xff]
    %v281 = vld [vmem:[#allocation2 + $0x107] sm:$0xff]
    %v282 = vld [vmem:[#allocation2 + $0x10f] sm:$0xff]
    %v283 = vld [vmem:[#allocation2 + $0x117] sm:$0xff]
    %v284 = vld [vmem:[#allocation2 + $0x11f] sm:$0xff]
    %v285 = vld [vmem:[#allocation2 + $0x127] sm:$0xff]
    %v286 = vld [vmem:[#allocation2 + $0x12f] sm:$0xff]
    %v287 = vsel %vm191, 1, 0
    %v288 = vsel %vm192, 1, 0
    %v289 = vsel %vm193, 1, 0
    %v290 = vsel %vm194, 1, 0
    %v291 = vsel %vm195, 1, 0
    %v292 = vsel %vm196, 1, 0
    %v293 = vsel %vm197, 1, 0
    %v294 = vsel %vm198, 1, 0
    %v295 = vsel %vm199, 1, 0
    %v296 = vsel %vm200, 1, 0
    %v297 = vsel %vm201, 1, 0
    %v298 = vsel %vm202, 1, 0
    %v299 = vsel %vm203, 1, 0
    %v300 = vsel %vm204, 1, 0
    %v301 = vsel %vm205, 1, 0
    %v302 = vsel %vm206, 1, 0
    %v303 = vsel %vm207, 1, 0
    %v304 = vsel %vm208, 1, 0
    %v305 = vsel %vm209, 1, 0
    %v306 = vsel %vm210, 1, 0
    %v307 = vsel %vm211, 1, 0
    %v308 = vsel %vm212, 1, 0
    %v309 = vsel %vm213, 1, 0
    %v310 = vsel %vm214, 1, 0
    %v311 = vsel %vm215, 1, 0
    %v312 = vsel %vm216, 1, 0
    %v313 = vsel %vm217, 1, 0
    %v314 = vsel %vm218, 1, 0
    %v315 = vsel %vm219, 1, 0
    %v316 = vsel %vm220, 1, 0
    %v317 = vsel %vm221, 1, 0
    %v318 = vsel %vm222, 1, 0
    %319 = vset.pattern.permute.xlu0 0
    %320 = vperm.xlu0 %319, %v287
    %v321 = vpop.permute.xlu0 %320
    %322 = vset.pattern.permute.xlu0 0
    %323 = vperm.xlu0 %322, %v288
    %v324 = vpop.permute.xlu0 %323
    %325 = vset.pattern.permute.xlu0 0
    %326 = vperm.xlu0 %325, %v289
    %v327 = vpop.permute.xlu0 %326
    %328 = vset.pattern.permute.xlu0 0
    %329 = vperm.xlu0 %328, %v290
    %v330 = vpop.permute.xlu0 %329
    %331 = vset.pattern.permute.xlu0 0
    %332 = vperm.xlu0 %331, %v291
    %v333 = vpop.permute.xlu0 %332
    %334 = vset.pattern.permute.xlu0 0
    %335 = vperm.xlu0 %334, %v292
    %v336 = vpop.permute.xlu0 %335
    %337 = vset.pattern.permute.xlu0 0
    %338 = vperm.xlu0 %337, %v293
    %v339 = vpop.permute.xlu0 %338
    %340 = vset.pattern.permute.xlu0 0
    %341 = vperm.xlu0 %340, %v294
    %v342 = vpop.permute.xlu0 %341
    %343 = vset.pattern.permute.xlu0 0
    %344 = vperm.xlu0 %343, %v295
    %v345 = vpop.permute.xlu0 %344
    %346 = vset.pattern.permute.xlu0 0
    %347 = vperm.xlu0 %346, %v296
    %v348 = vpop.permute.xlu0 %347
    %349 = vset.pattern.permute.xlu0 0
    %350 = vperm.xlu0 %349, %v297
    %v351 = vpop.permute.xlu0 %350
    %352 = vset.pattern.permute.xlu0 0
    %353 = vperm.xlu0 %352, %v298
    %v354 = vpop.permute.xlu0 %353
    %355 = vset.pattern.permute.xlu0 0
    %356 = vperm.xlu0 %355, %v299
    %v357 = vpop.permute.xlu0 %356
    %358 = vset.pattern.permute.xlu0 0
    %359 = vperm.xlu0 %358, %v300
    %v360 = vpop.permute.xlu0 %359
    %361 = vset.pattern.permute.xlu0 0
    %362 = vperm.xlu0 %361, %v301
    %v363 = vpop.permute.xlu0 %362
    %364 = vset.pattern.permute.xlu0 0
    %365 = vperm.xlu0 %364, %v302
    %v366 = vpop.permute.xlu0 %365
    %367 = vset.pattern.permute.xlu0 0
    %368 = vperm.xlu0 %367, %v303
    %v369 = vpop.permute.xlu0 %368
    %370 = vset.pattern.permute.xlu0 0
    %371 = vperm.xlu0 %370, %v304
    %v372 = vpop.permute.xlu0 %371
    %373 = vset.pattern.permute.xlu0 0
    %374 = vperm.xlu0 %373, %v305
    %v375 = vpop.permute.xlu0 %374
    %376 = vset.pattern.permute.xlu0 0
    %377 = vperm.xlu0 %376, %v306
    %v378 = vpop.permute.xlu0 %377
    %379 = vset.pattern.permute.xlu0 0
    %380 = vperm.xlu0 %379, %v307
    %v381 = vpop.permute.xlu0 %380
    %382 = vset.pattern.permute.xlu0 0
    %383 = vperm.xlu0 %382, %v308
    %v384 = vpop.permute.xlu0 %383
    %385 = vset.pattern.permute.xlu0 0
    %386 = vperm.xlu0 %385, %v309
    %v387 = vpop.permute.xlu0 %386
    %388 = vset.pattern.permute.xlu0 0
    %389 = vperm.xlu0 %388, %v310
    %v390 = vpop.permute.xlu0 %389
    %391 = vset.pattern.permute.xlu0 0
    %392 = vperm.xlu0 %391, %v311
    %v393 = vpop.permute.xlu0 %392
    %394 = vset.pattern.permute.xlu0 0
    %395 = vperm.xlu0 %394, %v312
    %v396 = vpop.permute.xlu0 %395
    %397 = vset.pattern.permute.xlu0 0
    %398 = vperm.xlu0 %397, %v313
    %v399 = vpop.permute.xlu0 %398
    %400 = vset.pattern.permute.xlu0 0
    %401 = vperm.xlu0 %400, %v314
    %v402 = vpop.permute.xlu0 %401
    %403 = vset.pattern.permute.xlu0 0
    %404 = vperm.xlu0 %403, %v315
    %v405 = vpop.permute.xlu0 %404
    %406 = vset.pattern.permute.xlu0 0
    %407 = vperm.xlu0 %406, %v316
    %v408 = vpop.permute.xlu0 %407
    %409 = vset.pattern.permute.xlu0 0
    %410 = vperm.xlu0 %409, %v317
    %v411 = vpop.permute.xlu0 %410
    %412 = vset.pattern.permute.xlu0 0
    %413 = vperm.xlu0 %412, %v318
    %v414 = vpop.permute.xlu0 %413
    %vm415 = vcmp.eq.s32.totalorder %v321, 1
    %vm416 = vcmp.eq.s32.totalorder %v324, 1
    %vm417 = vcmp.eq.s32.totalorder %v327, 1
    %vm418 = vcmp.eq.s32.totalorder %v330, 1
    %vm419 = vcmp.eq.s32.totalorder %v333, 1
    %vm420 = vcmp.eq.s32.totalorder %v336, 1
    %vm421 = vcmp.eq.s32.totalorder %v339, 1
    %vm422 = vcmp.eq.s32.totalorder %v342, 1
    %vm423 = vcmp.eq.s32.totalorder %v345, 1
    %vm424 = vcmp.eq.s32.totalorder %v348, 1
    %vm425 = vcmp.eq.s32.totalorder %v351, 1
    %vm426 = vcmp.eq.s32.totalorder %v354, 1
    %vm427 = vcmp.eq.s32.totalorder %v357, 1
    %vm428 = vcmp.eq.s32.totalorder %v360, 1
    %vm429 = vcmp.eq.s32.totalorder %v363, 1
    %vm430 = vcmp.eq.s32.totalorder %v366, 1
    %vm431 = vcmp.eq.s32.totalorder %v369, 1
    %vm432 = vcmp.eq.s32.totalorder %v372, 1
    %vm433 = vcmp.eq.s32.totalorder %v375, 1
    %vm434 = vcmp.eq.s32.totalorder %v378, 1
    %vm435 = vcmp.eq.s32.totalorder %v381, 1
    %vm436 = vcmp.eq.s32.totalorder %v384, 1
    %vm437 = vcmp.eq.s32.totalorder %v387, 1
    %vm438 = vcmp.eq.s32.totalorder %v390, 1
    %vm439 = vcmp.eq.s32.totalorder %v393, 1
    %vm440 = vcmp.eq.s32.totalorder %v396, 1
    %vm441 = vcmp.eq.s32.totalorder %v399, 1
    %vm442 = vcmp.eq.s32.totalorder %v402, 1
    %vm443 = vcmp.eq.s32.totalorder %v405, 1
    %vm444 = vcmp.eq.s32.totalorder %v408, 1
    %vm445 = vcmp.eq.s32.totalorder %v411, 1
    %vm446 = vcmp.eq.s32.totalorder %v414, 1
    %v447 = vsel %vm415, %v255, 0.0
    %v448 = vsel %vm416, %v256, 0.0
    %v449 = vsel %vm417, %v257, 0.0
    %v450 = vsel %vm418, %v258, 0.0
    %v451 = vsel %vm419, %v259, 0.0
    %v452 = vsel %vm420, %v260, 0.0
    %v453 = vsel %vm421, %v261, 0.0
    %v454 = vsel %vm422, %v262, 0.0
    %v455 = vsel %vm423, %v263, 0.0
    %v456 = vsel %vm424, %v264, 0.0
    %v457 = vsel %vm425, %v265, 0.0
    %v458 = vsel %vm426, %v266, 0.0
    %v459 = vsel %vm427, %v267, 0.0
    %v460 = vsel %vm428, %v268, 0.0
    %v461 = vsel %vm429, %v269, 0.0
    %v462 = vsel %vm430, %v270, 0.0
    %v463 = vsel %vm431, %v271, 0.0
    %v464 = vsel %vm432, %v272, 0.0
    %v465 = vsel %vm433, %v273, 0.0
    %v466 = vsel %vm434, %v274, 0.0
    %v467 = vsel %vm435, %v275, 0.0
    %v468 = vsel %vm436, %v276, 0.0
    %v469 = vsel %vm437, %v277, 0.0
    %v470 = vsel %vm438, %v278, 0.0
    %v471 = vsel %vm439, %v279, 0.0
    %v472 = vsel %vm440, %v280, 0.0
    %v473 = vsel %vm441, %v281, 0.0
    %v474 = vsel %vm442, %v282, 0.0
    %v475 = vsel %vm443, %v283, 0.0
    %v476 = vsel %vm444, %v284, 0.0
    %v477 = vsel %vm445, %v285, 0.0
    %v478 = vsel %vm446, %v286, 0.0
    %v479 = vpack.c.bf16 %v448, %v447
    %v480 = vpack.c.bf16 %v450, %v449
    %v481 = vpack.c.bf16 %v452, %v451
    %v482 = vpack.c.bf16 %v454, %v453
    %v483 = vpack.c.bf16 %v456, %v455
    %v484 = vpack.c.bf16 %v458, %v457
    %v485 = vpack.c.bf16 %v460, %v459
    %v486 = vpack.c.bf16 %v462, %v461
    %v487 = vpack.c.bf16 %v464, %v463
    %v488 = vpack.c.bf16 %v466, %v465
    %v489 = vpack.c.bf16 %v468, %v467
    %v490 = vpack.c.bf16 %v470, %v469
    %v491 = vpack.c.bf16 %v472, %v471
    %v492 = vpack.c.bf16 %v474, %v473
    %v493 = vpack.c.bf16 %v476, %v475
    %v494 = vpack.c.bf16 %v478, %v477
    %v495 = vld [vmem:[%s2] sm:$0xf]
    %v496 = vld [vmem:[#allocation2 + $0x38] sm:$0xff]
    %v497 = vld [vmem:[#allocation2 + $0x40] sm:$0xff]
    %v498 = vld [vmem:[#allocation2 + $0x48] sm:$0xff]
    %v499 = vld [vmem:[#allocation2 + $0x50] sm:$0xff]
    %v500 = vld [vmem:[#allocation2 + $0x58] sm:$0xff]
    %v501 = vld [vmem:[#allocation2 + $0x60] sm:$0xff]
    %v502 = vld [vmem:[#allocation2 + $0x68] sm:$0xff]
    %v503 = vld [vmem:[#allocation2 + $0x70] sm:$0xff]
    %v504 = vld [vmem:[#allocation2 + $0x78] sm:$0xff]
    %v505 = vld [vmem:[#allocation2 + $0x80] sm:$0xff]
    %v506 = vld [vmem:[#allocation2 + $0x88] sm:$0xff]
    %v507 = vld [vmem:[#allocation2 + $0x90] sm:$0xff]
    %v508 = vld [vmem:[#allocation2 + $0x98] sm:$0xff]
    %v509 = vld [vmem:[#allocation2 + $0xa0] sm:$0xff]
    %v510 = vld [vmem:[#allocation2 + $0xa8] sm:$0xff]
    %v511 = vld [vmem:[#allocation2 + $0xb0] sm:$0xff]
    %v512 = vld [vmem:[#allocation2 + $0xb8] sm:$0xff]
    %v513 = vld [vmem:[#allocation2 + $0xc0] sm:$0xff]
    %v514 = vld [vmem:[#allocation2 + $0xc8] sm:$0xff]
    %v515 = vld [vmem:[#allocation2 + $0xd0] sm:$0xff]
    %v516 = vld [vmem:[#allocation2 + $0xd8] sm:$0xff]
    %v517 = vld [vmem:[#allocation2 + $0xe0] sm:$0xff]
    %v518 = vld [vmem:[#allocation2 + $0xe8] sm:$0xff]
    %v519 = vld [vmem:[#allocation2 + $0xf0] sm:$0xff]
    %v520 = vld [vmem:[#allocation2 + $0xf8] sm:$0xff]
    %v521 = vld [vmem:[#allocation2 + $0x100] sm:$0xff]
    %v522 = vld [vmem:[#allocation2 + $0x108] sm:$0xff]
    %v523 = vld [vmem:[#allocation2 + $0x110] sm:$0xff]
    %v524 = vld [vmem:[#allocation2 + $0x118] sm:$0xff]
    %v525 = vld [vmem:[#allocation2 + $0x120] sm:$0xff]
    %v526 = vld [vmem:[#allocation2 + $0x128] sm:$0xff]
    %v527 = vld [vmem:[#allocation2 + $0x130] sm:$0xff]
    %v528 = vpack.c.bf16 %v497, %v496
    %v529 = vpack.c.bf16 %v499, %v498
    %v530 = vpack.c.bf16 %v501, %v500
    %v531 = vpack.c.bf16 %v503, %v502
    %v532 = vpack.c.bf16 %v505, %v504
    %v533 = vpack.c.bf16 %v507, %v506
    %v534 = vpack.c.bf16 %v509, %v508
    %v535 = vpack.c.bf16 %v511, %v510
    %v536 = vpack.c.bf16 %v513, %v512
    %v537 = vpack.c.bf16 %v515, %v514
    %v538 = vpack.c.bf16 %v517, %v516
    %v539 = vpack.c.bf16 %v519, %v518
    %v540 = vpack.c.bf16 %v521, %v520
    %v541 = vpack.c.bf16 %v523, %v522
    %v542 = vpack.c.bf16 %v525, %v524
    %v543 = vpack.c.bf16 %v527, %v526
    %s544 = scalar_lea.vmem %s2, 4
    %v545 = vld [vmem:[%s544] sm:$0xf]
    %v547 = vsel %vm158, %v528, 0
    %v550 = vsel %vm158, %v529, 0
    %v553 = vsel %vm158, %v530, 0
    %v556 = vsel %vm158, %v531, 0
    %v559 = vsel %vm158, %v532, 0
    %v562 = vsel %vm158, %v533, 0
    %v565 = vsel %vm158, %v534, 0
    %v568 = vsel %vm158, %v535, 0
    %v571 = vsel %vm158, %v536, 0
    %v574 = vsel %vm158, %v537, 0
    %v577 = vsel %vm158, %v538, 0
    %v580 = vsel %vm158, %v539, 0
    %v583 = vsel %vm158, %v540, 0
    %v586 = vsel %vm158, %v541, 0
    %v589 = vsel %vm158, %v542, 0
    %v592 = vsel %vm158, %v543, 0
    %vm594 = vcmask 1043456
    %v596 = vsel %vm594, %v545, 0
    %598 = vmatpush.bf16.msra.mxu0 0
    %599 = vmatpush.bf16.msra.mxu0 0
    %600 = vmatpush.bf16.msra.mxu0 0
    %601 = vmatpush.bf16.msra.mxu0 0
    %602 = vmatpush.bf16.msra.mxu0 0
    %603 = vmatpush.bf16.msra.mxu0 0
    %604 = vmatpush.bf16.msra.mxu0 0
    %605 = vmatpush.bf16.msra.mxu0 %v596
    %606 = vmatmul.bf16.gmra.mxu0 %v547
    %v607 = vpop.f32.mrf.mxu0
    %v608 = vadd.f32 0.0, %v607
    %v609 = vpop.f32.mrf.mxu0
    %v610 = vadd.f32 0.0, %v609
    %611 = vmatmul.bf16.gmra.mxu0 %v550
    %v612 = vpop.f32.mrf.mxu0
    %v613 = vadd.f32 0.0, %v612
    %v614 = vpop.f32.mrf.mxu0
    %v615 = vadd.f32 0.0, %v614
    %616 = vmatmul.bf16.gmra.mxu0 %v553
    %v617 = vpop.f32.mrf.mxu0
    %v618 = vadd.f32 0.0, %v617
    %v619 = vpop.f32.mrf.mxu0
    %v620 = vadd.f32 0.0, %v619
    %621 = vmatmul.bf16.gmra.mxu0 %v556
    %v622 = vpop.f32.mrf.mxu0
    %v623 = vadd.f32 0.0, %v622
    %v624 = vpop.f32.mrf.mxu0
    %v625 = vadd.f32 0.0, %v624
    %626 = vmatmul.bf16.gmra.mxu0 %v559
    %v627 = vpop.f32.mrf.mxu0
    %v628 = vadd.f32 0.0, %v627
    %v629 = vpop.f32.mrf.mxu0
    %v630 = vadd.f32 0.0, %v629
    %631 = vmatmul.bf16.gmra.mxu0 %v562
    %v632 = vpop.f32.mrf.mxu0
    %v633 = vadd.f32 0.0, %v632
    %v634 = vpop.f32.mrf.mxu0
    %v635 = vadd.f32 0.0, %v634
    %636 = vmatmul.bf16.gmra.mxu0 %v565
    %v637 = vpop.f32.mrf.mxu0
    %v638 = vadd.f32 0.0, %v637
    %v639 = vpop.f32.mrf.mxu0
    %v640 = vadd.f32 0.0, %v639
    %641 = vmatmul.bf16.gmra.mxu0 %v568
    %v642 = vpop.f32.mrf.mxu0
    %v643 = vadd.f32 0.0, %v642
    %v644 = vpop.f32.mrf.mxu0
    %v645 = vadd.f32 0.0, %v644
    %646 = vmatmul.bf16.gmra.mxu0 %v571
    %v647 = vpop.f32.mrf.mxu0
    %v648 = vadd.f32 0.0, %v647
    %v649 = vpop.f32.mrf.mxu0
    %v650 = vadd.f32 0.0, %v649
    %651 = vmatmul.bf16.gmra.mxu0 %v574
    %v652 = vpop.f32.mrf.mxu0
    %v653 = vadd.f32 0.0, %v652
    %v654 = vpop.f32.mrf.mxu0
    %v655 = vadd.f32 0.0, %v654
    %656 = vmatmul.bf16.gmra.mxu0 %v577
    %v657 = vpop.f32.mrf.mxu0
    %v658 = vadd.f32 0.0, %v657
    %v659 = vpop.f32.mrf.mxu0
    %v660 = vadd.f32 0.0, %v659
    %661 = vmatmul.bf16.gmra.mxu0 %v580
    %v662 = vpop.f32.mrf.mxu0
    %v663 = vadd.f32 0.0, %v662
    %v664 = vpop.f32.mrf.mxu0
    %v665 = vadd.f32 0.0, %v664
    %666 = vmatmul.bf16.gmra.mxu0 %v583
    %v667 = vpop.f32.mrf.mxu0
    %v668 = vadd.f32 0.0, %v667
    %v669 = vpop.f32.mrf.mxu0
    %v670 = vadd.f32 0.0, %v669
    %671 = vmatmul.bf16.gmra.mxu0 %v586
    %v672 = vpop.f32.mrf.mxu0
    %v673 = vadd.f32 0.0, %v672
    %v674 = vpop.f32.mrf.mxu0
    %v675 = vadd.f32 0.0, %v674
    %676 = vmatmul.bf16.gmra.mxu0 %v589
    %v677 = vpop.f32.mrf.mxu0
    %v678 = vadd.f32 0.0, %v677
    %v679 = vpop.f32.mrf.mxu0
    %v680 = vadd.f32 0.0, %v679
    %681 = vmatmul.bf16.gmra.mxu0 %v592
    %v682 = vpop.f32.mrf.mxu0
    %v683 = vadd.f32 0.0, %v682
    %v684 = vpop.f32.mrf.mxu0
    %v685 = vadd.f32 0.0, %v684
    %686 = vdwg.mxu0
    %v688 = vsel %vm158, %v479, 0
    %v691 = vsel %vm158, %v480, 0
    %v694 = vsel %vm158, %v481, 0
    %v697 = vsel %vm158, %v482, 0
    %v700 = vsel %vm158, %v483, 0
    %v703 = vsel %vm158, %v484, 0
    %v706 = vsel %vm158, %v485, 0
    %v709 = vsel %vm158, %v486, 0
    %v712 = vsel %vm158, %v487, 0
    %v715 = vsel %vm158, %v488, 0
    %v718 = vsel %vm158, %v489, 0
    %v721 = vsel %vm158, %v490, 0
    %v724 = vsel %vm158, %v491, 0
    %v727 = vsel %vm158, %v492, 0
    %v730 = vsel %vm158, %v493, 0
    %v733 = vsel %vm158, %v494, 0
    %v736 = vsel %vm594, %v495, 0
    %738 = vmatpush.bf16.msra.mxu0 0
    %739 = vmatpush.bf16.msra.mxu0 0
    %740 = vmatpush.bf16.msra.mxu0 0
    %741 = vmatpush.bf16.msra.mxu0 0
    %742 = vmatpush.bf16.msra.mxu0 0
    %743 = vmatpush.bf16.msra.mxu0 0
    %744 = vmatpush.bf16.msra.mxu0 0
    %745 = vmatpush.bf16.msra.mxu0 %v736
    %746 = vmatmul.bf16.gmra.mxu0 %v688
    %v747 = vpop.f32.mrf.mxu0
    %v748 = vadd.f32 %v608, %v747
    %v749 = vpop.f32.mrf.mxu0
    %v750 = vadd.f32 %v610, %v749
    %751 = vmatmul.bf16.gmra.mxu0 %v691
    %v752 = vpop.f32.mrf.mxu0
    %v753 = vadd.f32 %v613, %v752
    %v754 = vpop.f32.mrf.mxu0
    %v755 = vadd.f32 %v615, %v754
    %756 = vmatmul.bf16.gmra.mxu0 %v694
    %v757 = vpop.f32.mrf.mxu0
    %v758 = vadd.f32 %v618, %v757
    %v759 = vpop.f32.mrf.mxu0
    %v760 = vadd.f32 %v620, %v759
    %761 = vmatmul.bf16.gmra.mxu0 %v697
    %v762 = vpop.f32.mrf.mxu0
    %v763 = vadd.f32 %v623, %v762
    %v764 = vpop.f32.mrf.mxu0
    %v765 = vadd.f32 %v625, %v764
    %766 = vmatmul.bf16.gmra.mxu0 %v700
    %v767 = vpop.f32.mrf.mxu0
    %v768 = vadd.f32 %v628, %v767
    %v769 = vpop.f32.mrf.mxu0
    %v770 = vadd.f32 %v630, %v769
    %771 = vmatmul.bf16.gmra.mxu0 %v703
    %v772 = vpop.f32.mrf.mxu0
    %v773 = vadd.f32 %v633, %v772
    %v774 = vpop.f32.mrf.mxu0
    %v775 = vadd.f32 %v635, %v774
    %776 = vmatmul.bf16.gmra.mxu0 %v706
    %v777 = vpop.f32.mrf.mxu0
    %v778 = vadd.f32 %v638, %v777
    %v779 = vpop.f32.mrf.mxu0
    %v780 = vadd.f32 %v640, %v779
    %781 = vmatmul.bf16.gmra.mxu0 %v709
    %v782 = vpop.f32.mrf.mxu0
    %v783 = vadd.f32 %v643, %v782
    %v784 = vpop.f32.mrf.mxu0
    %v785 = vadd.f32 %v645, %v784
    %786 = vmatmul.bf16.gmra.mxu0 %v712
    %v787 = vpop.f32.mrf.mxu0
    %v788 = vadd.f32 %v648, %v787
    %v789 = vpop.f32.mrf.mxu0
    %v790 = vadd.f32 %v650, %v789
    %791 = vmatmul.bf16.gmra.mxu0 %v715
    %v792 = vpop.f32.mrf.mxu0
    %v793 = vadd.f32 %v653, %v792
    %v794 = vpop.f32.mrf.mxu0
    %v795 = vadd.f32 %v655, %v794
    %796 = vmatmul.bf16.gmra.mxu0 %v718
    %v797 = vpop.f32.mrf.mxu0
    %v798 = vadd.f32 %v658, %v797
    %v799 = vpop.f32.mrf.mxu0
    %v800 = vadd.f32 %v660, %v799
    %801 = vmatmul.bf16.gmra.mxu0 %v721
    %v802 = vpop.f32.mrf.mxu0
    %v803 = vadd.f32 %v663, %v802
    %v804 = vpop.f32.mrf.mxu0
    %v805 = vadd.f32 %v665, %v804
    %806 = vmatmul.bf16.gmra.mxu0 %v724
    %v807 = vpop.f32.mrf.mxu0
    %v808 = vadd.f32 %v668, %v807
    %v809 = vpop.f32.mrf.mxu0
    %v810 = vadd.f32 %v670, %v809
    %811 = vmatmul.bf16.gmra.mxu0 %v727
    %v812 = vpop.f32.mrf.mxu0
    %v813 = vadd.f32 %v673, %v812
    %v814 = vpop.f32.mrf.mxu0
    %v815 = vadd.f32 %v675, %v814
    %816 = vmatmul.bf16.gmra.mxu0 %v730
    %v817 = vpop.f32.mrf.mxu0
    %v818 = vadd.f32 %v678, %v817
    %v819 = vpop.f32.mrf.mxu0
    %v820 = vadd.f32 %v680, %v819
    %821 = vmatmul.bf16.gmra.mxu0 %v733
    %v822 = vpop.f32.mrf.mxu0
    %v823 = vadd.f32 %v683, %v822
    %v824 = vpop.f32.mrf.mxu0
    %v825 = vadd.f32 %v685, %v824
    %826 = vdwg.mxu0
    %v827 = vld [vmem:[#allocation2 + $0x39] sm:$0xff]
    %v828 = vld [vmem:[#allocation2 + $0x41] sm:$0xff]
    %v829 = vld [vmem:[#allocation2 + $0x49] sm:$0xff]
    %v830 = vld [vmem:[#allocation2 + $0x51] sm:$0xff]
    %v831 = vld [vmem:[#allocation2 + $0x59] sm:$0xff]
    %v832 = vld [vmem:[#allocation2 + $0x61] sm:$0xff]
    %v833 = vld [vmem:[#allocation2 + $0x69] sm:$0xff]
    %v834 = vld [vmem:[#allocation2 + $0x71] sm:$0xff]
    %v835 = vld [vmem:[#allocation2 + $0x79] sm:$0xff]
    %v836 = vld [vmem:[#allocation2 + $0x81] sm:$0xff]
    %v837 = vld [vmem:[#allocation2 + $0x89] sm:$0xff]
    %v838 = vld [vmem:[#allocation2 + $0x91] sm:$0xff]
    %v839 = vld [vmem:[#allocation2 + $0x99] sm:$0xff]
    %v840 = vld [vmem:[#allocation2 + $0xa1] sm:$0xff]
    %v841 = vld [vmem:[#allocation2 + $0xa9] sm:$0xff]
    %v842 = vld [vmem:[#allocation2 + $0xb1] sm:$0xff]
    %v843 = vld [vmem:[#allocation2 + $0xb9] sm:$0xff]
    %v844 = vld [vmem:[#allocation2 + $0xc1] sm:$0xff]
    %v845 = vld [vmem:[#allocation2 + $0xc9] sm:$0xff]
    %v846 = vld [vmem:[#allocation2 + $0xd1] sm:$0xff]
    %v847 = vld [vmem:[#allocation2 + $0xd9] sm:$0xff]
    %v848 = vld [vmem:[#allocation2 + $0xe1] sm:$0xff]
    %v849 = vld [vmem:[#allocation2 + $0xe9] sm:$0xff]
    %v850 = vld [vmem:[#allocation2 + $0xf1] sm:$0xff]
    %v851 = vld [vmem:[#allocation2 + $0xf9] sm:$0xff]
    %v852 = vld [vmem:[#allocation2 + $0x101] sm:$0xff]
    %v853 = vld [vmem:[#allocation2 + $0x109] sm:$0xff]
    %v854 = vld [vmem:[#allocation2 + $0x111] sm:$0xff]
    %v855 = vld [vmem:[#allocation2 + $0x119] sm:$0xff]
    %v856 = vld [vmem:[#allocation2 + $0x121] sm:$0xff]
    %v857 = vld [vmem:[#allocation2 + $0x129] sm:$0xff]
    %v858 = vld [vmem:[#allocation2 + $0x131] sm:$0xff]
    %v859 = vsel %vm223, 1, 0
    %v860 = vsel %vm224, 1, 0
    %v861 = vsel %vm225, 1, 0
    %v862 = vsel %vm226, 1, 0
    %v863 = vsel %vm227, 1, 0
    %v864 = vsel %vm228, 1, 0
    %v865 = vsel %vm229, 1, 0
    %v866 = vsel %vm230, 1, 0
    %v867 = vsel %vm231, 1, 0
    %v868 = vsel %vm232, 1, 0
    %v869 = vsel %vm233, 1, 0
    %v870 = vsel %vm234, 1, 0
    %v871 = vsel %vm235, 1, 0
    %v872 = vsel %vm236, 1, 0
    %v873 = vsel %vm237, 1, 0
    %v874 = vsel %vm238, 1, 0
    %v875 = vsel %vm239, 1, 0
    %v876 = vsel %vm240, 1, 0
    %v877 = vsel %vm241, 1, 0
    %v878 = vsel %vm242, 1, 0
    %v879 = vsel %vm243, 1, 0
    %v880 = vsel %vm244, 1, 0
    %v881 = vsel %vm245, 1, 0
    %v882 = vsel %vm246, 1, 0
    %v883 = vsel %vm247, 1, 0
    %v884 = vsel %vm248, 1, 0
    %v885 = vsel %vm249, 1, 0
    %v886 = vsel %vm250, 1, 0
    %v887 = vsel %vm251, 1, 0
    %v888 = vsel %vm252, 1, 0
    %v889 = vsel %vm253, 1, 0
    %v890 = vsel %vm254, 1, 0
    %891 = vset.pattern.permute.xlu0 0
    %892 = vperm.xlu0 %891, %v859
    %v893 = vpop.permute.xlu0 %892
    %894 = vset.pattern.permute.xlu0 0
    %895 = vperm.xlu0 %894, %v860
    %v896 = vpop.permute.xlu0 %895
    %897 = vset.pattern.permute.xlu0 0
    %898 = vperm.xlu0 %897, %v861
    %v899 = vpop.permute.xlu0 %898
    %900 = vset.pattern.permute.xlu0 0
    %901 = vperm.xlu0 %900, %v862
    %v902 = vpop.permute.xlu0 %901
    %903 = vset.pattern.permute.xlu0 0
    %904 = vperm.xlu0 %903, %v863
    %v905 = vpop.permute.xlu0 %904
    %906 = vset.pattern.permute.xlu0 0
    %907 = vperm.xlu0 %906, %v864
    %v908 = vpop.permute.xlu0 %907
    %909 = vset.pattern.permute.xlu0 0
    %910 = vperm.xlu0 %909, %v865
    %v911 = vpop.permute.xlu0 %910
    %912 = vset.pattern.permute.xlu0 0
    %913 = vperm.xlu0 %912, %v866
    %v914 = vpop.permute.xlu0 %913
    %915 = vset.pattern.permute.xlu0 0
    %916 = vperm.xlu0 %915, %v867
    %v917 = vpop.permute.xlu0 %916
    %918 = vset.pattern.permute.xlu0 0
    %919 = vperm.xlu0 %918, %v868
    %v920 = vpop.permute.xlu0 %919
    %921 = vset.pattern.permute.xlu0 0
    %922 = vperm.xlu0 %921, %v869
    %v923 = vpop.permute.xlu0 %922
    %924 = vset.pattern.permute.xlu0 0
    %925 = vperm.xlu0 %924, %v870
    %v926 = vpop.permute.xlu0 %925
    %927 = vset.pattern.permute.xlu0 0
    %928 = vperm.xlu0 %927, %v871
    %v929 = vpop.permute.xlu0 %928
    %930 = vset.pattern.permute.xlu0 0
    %931 = vperm.xlu0 %930, %v872
    %v932 = vpop.permute.xlu0 %931
    %933 = vset.pattern.permute.xlu0 0
    %934 = vperm.xlu0 %933, %v873
    %v935 = vpop.permute.xlu0 %934
    %936 = vset.pattern.permute.xlu0 0
    %937 = vperm.xlu0 %936, %v874
    %v938 = vpop.permute.xlu0 %937
    %939 = vset.pattern.permute.xlu0 0
    %940 = vperm.xlu0 %939, %v875
    %v941 = vpop.permute.xlu0 %940
    %942 = vset.pattern.permute.xlu0 0
    %943 = vperm.xlu0 %942, %v876
    %v944 = vpop.permute.xlu0 %943
    %945 = vset.pattern.permute.xlu0 0
    %946 = vperm.xlu0 %945, %v877
    %v947 = vpop.permute.xlu0 %946
    %948 = vset.pattern.permute.xlu0 0
    %949 = vperm.xlu0 %948, %v878
    %v950 = vpop.permute.xlu0 %949
    %951 = vset.pattern.permute.xlu0 0
    %952 = vperm.xlu0 %951, %v879
    %v953 = vpop.permute.xlu0 %952
    %954 = vset.pattern.permute.xlu0 0
    %955 = vperm.xlu0 %954, %v880
    %v956 = vpop.permute.xlu0 %955
    %957 = vset.pattern.permute.xlu0 0
    %958 = vperm.xlu0 %957, %v881
    %v959 = vpop.permute.xlu0 %958
    %960 = vset.pattern.permute.xlu0 0
    %961 = vperm.xlu0 %960, %v882
    %v962 = vpop.permute.xlu0 %961
    %963 = vset.pattern.permute.xlu0 0
    %964 = vperm.xlu0 %963, %v883
    %v965 = vpop.permute.xlu0 %964
    %966 = vset.pattern.permute.xlu0 0
    %967 = vperm.xlu0 %966, %v884
    %v968 = vpop.permute.xlu0 %967
    %969 = vset.pattern.permute.xlu0 0
    %970 = vperm.xlu0 %969, %v885
    %v971 = vpop.permute.xlu0 %970
    %972 = vset.pattern.permute.xlu0 0
    %973 = vperm.xlu0 %972, %v886
    %v974 = vpop.permute.xlu0 %973
    %975 = vset.pattern.permute.xlu0 0
    %976 = vperm.xlu0 %975, %v887
    %v977 = vpop.permute.xlu0 %976
    %978 = vset.pattern.permute.xlu0 0
    %979 = vperm.xlu0 %978, %v888
    %v980 = vpop.permute.xlu0 %979
    %981 = vset.pattern.permute.xlu0 0
    %982 = vperm.xlu0 %981, %v889
    %v983 = vpop.permute.xlu0 %982
    %984 = vset.pattern.permute.xlu0 0
    %985 = vperm.xlu0 %984, %v890
    %v986 = vpop.permute.xlu0 %985
    %vm987 = vcmp.eq.s32.totalorder %v893, 1
    %vm988 = vcmp.eq.s32.totalorder %v896, 1
    %vm989 = vcmp.eq.s32.totalorder %v899, 1
    %vm990 = vcmp.eq.s32.totalorder %v902, 1
    %vm991 = vcmp.eq.s32.totalorder %v905, 1
    %vm992 = vcmp.eq.s32.totalorder %v908, 1
    %vm993 = vcmp.eq.s32.totalorder %v911, 1
    %vm994 = vcmp.eq.s32.totalorder %v914, 1
    %vm995 = vcmp.eq.s32.totalorder %v917, 1
    %vm996 = vcmp.eq.s32.totalorder %v920, 1
    %vm997 = vcmp.eq.s32.totalorder %v923, 1
    %vm998 = vcmp.eq.s32.totalorder %v926, 1
    %vm999 = vcmp.eq.s32.totalorder %v929, 1
    %vm1000 = vcmp.eq.s32.totalorder %v932, 1
    %vm1001 = vcmp.eq.s32.totalorder %v935, 1
    %vm1002 = vcmp.eq.s32.totalorder %v938, 1
    %vm1003 = vcmp.eq.s32.totalorder %v941, 1
    %vm1004 = vcmp.eq.s32.totalorder %v944, 1
    %vm1005 = vcmp.eq.s32.totalorder %v947, 1
    %vm1006 = vcmp.eq.s32.totalorder %v950, 1
    %vm1007 = vcmp.eq.s32.totalorder %v953, 1
    %vm1008 = vcmp.eq.s32.totalorder %v956, 1
    %vm1009 = vcmp.eq.s32.totalorder %v959, 1
    %vm1010 = vcmp.eq.s32.totalorder %v962, 1
    %vm1011 = vcmp.eq.s32.totalorder %v965, 1
    %vm1012 = vcmp.eq.s32.totalorder %v968, 1
    %vm1013 = vcmp.eq.s32.totalorder %v971, 1
    %vm1014 = vcmp.eq.s32.totalorder %v974, 1
    %vm1015 = vcmp.eq.s32.totalorder %v977, 1
    %vm1016 = vcmp.eq.s32.totalorder %v980, 1
    %vm1017 = vcmp.eq.s32.totalorder %v983, 1
    %vm1018 = vcmp.eq.s32.totalorder %v986, 1
    %v1019 = vsel %vm987, %v827, 0.0
    %v1020 = vsel %vm988, %v828, 0.0
    %v1021 = vsel %vm989, %v829, 0.0
    %v1022 = vsel %vm990, %v830, 0.0
    %v1023 = vsel %vm991, %v831, 0.0
    %v1024 = vsel %vm992, %v832, 0.0
    %v1025 = vsel %vm993, %v833, 0.0
    %v1026 = vsel %vm994, %v834, 0.0
    %v1027 = vsel %vm995, %v835, 0.0
    %v1028 = vsel %vm996, %v836, 0.0
    %v1029 = vsel %vm997, %v837, 0.0
    %v1030 = vsel %vm998, %v838, 0.0
    %v1031 = vsel %vm999, %v839, 0.0
    %v1032 = vsel %vm1000, %v840, 0.0
    %v1033 = vsel %vm1001, %v841, 0.0
    %v1034 = vsel %vm1002, %v842, 0.0
    %v1035 = vsel %vm1003, %v843, 0.0
    %v1036 = vsel %vm1004, %v844, 0.0
    %v1037 = vsel %vm1005, %v845, 0.0
    %v1038 = vsel %vm1006, %v846, 0.0
    %v1039 = vsel %vm1007, %v847, 0.0
    %v1040 = vsel %vm1008, %v848, 0.0
    %v1041 = vsel %vm1009, %v849, 0.0
    %v1042 = vsel %vm1010, %v850, 0.0
    %v1043 = vsel %vm1011, %v851, 0.0
    %v1044 = vsel %vm1012, %v852, 0.0
    %v1045 = vsel %vm1013, %v853, 0.0
    %v1046 = vsel %vm1014, %v854, 0.0
    %v1047 = vsel %vm1015, %v855, 0.0
    %v1048 = vsel %vm1016, %v856, 0.0
    %v1049 = vsel %vm1017, %v857, 0.0
    %v1050 = vsel %vm1018, %v858, 0.0
    %v1051 = vpack.c.bf16 %v1020, %v1019
    %v1052 = vpack.c.bf16 %v1022, %v1021
    %v1053 = vpack.c.bf16 %v1024, %v1023
    %v1054 = vpack.c.bf16 %v1026, %v1025
    %v1055 = vpack.c.bf16 %v1028, %v1027
    %v1056 = vpack.c.bf16 %v1030, %v1029
    %v1057 = vpack.c.bf16 %v1032, %v1031
    %v1058 = vpack.c.bf16 %v1034, %v1033
    %v1059 = vpack.c.bf16 %v1036, %v1035
    %v1060 = vpack.c.bf16 %v1038, %v1037
    %v1061 = vpack.c.bf16 %v1040, %v1039
    %v1062 = vpack.c.bf16 %v1042, %v1041
    %v1063 = vpack.c.bf16 %v1044, %v1043
    %v1064 = vpack.c.bf16 %v1046, %v1045
    %v1065 = vpack.c.bf16 %v1048, %v1047
    %v1066 = vpack.c.bf16 %v1050, %v1049
    %s1067 = scalar_lea.vmem %s2, 8
    %v1068 = vld [vmem:[%s1067] sm:$0xf]
    %v1070 = vsel %vm158, %v1051, 0
    %v1073 = vsel %vm158, %v1052, 0
    %v1076 = vsel %vm158, %v1053, 0
    %v1079 = vsel %vm158, %v1054, 0
    %v1082 = vsel %vm158, %v1055, 0
    %v1085 = vsel %vm158, %v1056, 0
    %v1088 = vsel %vm158, %v1057, 0
    %v1091 = vsel %vm158, %v1058, 0
    %v1094 = vsel %vm158, %v1059, 0
    %v1097 = vsel %vm158, %v1060, 0
    %v1100 = vsel %vm158, %v1061, 0
    %v1103 = vsel %vm158, %v1062, 0
    %v1106 = vsel %vm158, %v1063, 0
    %v1109 = vsel %vm158, %v1064, 0
    %v1112 = vsel %vm158, %v1065, 0
    %v1115 = vsel %vm158, %v1066, 0
    %v1118 = vsel %vm594, %v1068, 0
    %1120 = vmatpush.bf16.msra.mxu0 0
    %1121 = vmatpush.bf16.msra.mxu0 0
    %1122 = vmatpush.bf16.msra.mxu0 0
    %1123 = vmatpush.bf16.msra.mxu0 0
    %1124 = vmatpush.bf16.msra.mxu0 0
    %1125 = vmatpush.bf16.msra.mxu0 0
    %1126 = vmatpush.bf16.msra.mxu0 0
    %1127 = vmatpush.bf16.msra.mxu0 %v1118
    %1128 = vmatmul.bf16.gmra.mxu0 %v1070
    %v1129 = vpop.f32.mrf.mxu0
    %v1130 = vadd.f32 0.0, %v1129
    %v1131 = vpop.f32.mrf.mxu0
    %v1132 = vadd.f32 0.0, %v1131
    %1133 = vmatmul.bf16.gmra.mxu0 %v1073
    %v1134 = vpop.f32.mrf.mxu0
    %v1135 = vadd.f32 0.0, %v1134
    %v1136 = vpop.f32.mrf.mxu0
    %v1137 = vadd.f32 0.0, %v1136
    %1138 = vmatmul.bf16.gmra.mxu0 %v1076
    %v1139 = vpop.f32.mrf.mxu0
    %v1140 = vadd.f32 0.0, %v1139
    %v1141 = vpop.f32.mrf.mxu0
    %v1142 = vadd.f32 0.0, %v1141
    %1143 = vmatmul.bf16.gmra.mxu0 %v1079
    %v1144 = vpop.f32.mrf.mxu0
    %v1145 = vadd.f32 0.0, %v1144
    %v1146 = vpop.f32.mrf.mxu0
    %v1147 = vadd.f32 0.0, %v1146
    %1148 = vmatmul.bf16.gmra.mxu0 %v1082
    %v1149 = vpop.f32.mrf.mxu0
    %v1150 = vadd.f32 0.0, %v1149
    %v1151 = vpop.f32.mrf.mxu0
    %v1152 = vadd.f32 0.0, %v1151
    %1153 = vmatmul.bf16.gmra.mxu0 %v1085
    %v1154 = vpop.f32.mrf.mxu0
    %v1155 = vadd.f32 0.0, %v1154
    %v1156 = vpop.f32.mrf.mxu0
    %v1157 = vadd.f32 0.0, %v1156
    %1158 = vmatmul.bf16.gmra.mxu0 %v1088
    %v1159 = vpop.f32.mrf.mxu0
    %v1160 = vadd.f32 0.0, %v1159
    %v1161 = vpop.f32.mrf.mxu0
    %v1162 = vadd.f32 0.0, %v1161
    %1163 = vmatmul.bf16.gmra.mxu0 %v1091
    %v1164 = vpop.f32.mrf.mxu0
    %v1165 = vadd.f32 0.0, %v1164
    %v1166 = vpop.f32.mrf.mxu0
    %v1167 = vadd.f32 0.0, %v1166
    %1168 = vmatmul.bf16.gmra.mxu0 %v1094
    %v1169 = vpop.f32.mrf.mxu0
    %v1170 = vadd.f32 0.0, %v1169
    %v1171 = vpop.f32.mrf.mxu0
    %v1172 = vadd.f32 0.0, %v1171
    %1173 = vmatmul.bf16.gmra.mxu0 %v1097
    %v1174 = vpop.f32.mrf.mxu0
    %v1175 = vadd.f32 0.0, %v1174
    %v1176 = vpop.f32.mrf.mxu0
    %v1177 = vadd.f32 0.0, %v1176
    %1178 = vmatmul.bf16.gmra.mxu0 %v1100
    %v1179 = vpop.f32.mrf.mxu0
    %v1180 = vadd.f32 0.0, %v1179
    %v1181 = vpop.f32.mrf.mxu0
    %v1182 = vadd.f32 0.0, %v1181
    %1183 = vmatmul.bf16.gmra.mxu0 %v1103
    %v1184 = vpop.f32.mrf.mxu0
    %v1185 = vadd.f32 0.0, %v1184
    %v1186 = vpop.f32.mrf.mxu0
    %v1187 = vadd.f32 0.0, %v1186
    %1188 = vmatmul.bf16.gmra.mxu0 %v1106
    %v1189 = vpop.f32.mrf.mxu0
    %v1190 = vadd.f32 0.0, %v1189
    %v1191 = vpop.f32.mrf.mxu0
    %v1192 = vadd.f32 0.0, %v1191
    %1193 = vmatmul.bf16.gmra.mxu0 %v1109
    %v1194 = vpop.f32.mrf.mxu0
    %v1195 = vadd.f32 0.0, %v1194
    %v1196 = vpop.f32.mrf.mxu0
    %v1197 = vadd.f32 0.0, %v1196
    %1198 = vmatmul.bf16.gmra.mxu0 %v1112
    %v1199 = vpop.f32.mrf.mxu0
    %v1200 = vadd.f32 0.0, %v1199
    %v1201 = vpop.f32.mrf.mxu0
    %v1202 = vadd.f32 0.0, %v1201
    %1203 = vmatmul.bf16.gmra.mxu0 %v1115
    %v1204 = vpop.f32.mrf.mxu0
    %v1205 = vadd.f32 0.0, %v1204
    %v1206 = vpop.f32.mrf.mxu0
    %v1207 = vadd.f32 0.0, %v1206
    %1208 = vdwg.mxu0
    %v1209 = vadd.f32 %v748, %v1130
    %v1210 = vadd.f32 %v750, %v1132
    %v1211 = vadd.f32 %v753, %v1135
    %v1212 = vadd.f32 %v755, %v1137
    %v1213 = vadd.f32 %v758, %v1140
    %v1214 = vadd.f32 %v760, %v1142
    %v1215 = vadd.f32 %v763, %v1145
    %v1216 = vadd.f32 %v765, %v1147
    %v1217 = vadd.f32 %v768, %v1150
    %v1218 = vadd.f32 %v770, %v1152
    %v1219 = vadd.f32 %v773, %v1155
    %v1220 = vadd.f32 %v775, %v1157
    %v1221 = vadd.f32 %v778, %v1160
    %v1222 = vadd.f32 %v780, %v1162
    %v1223 = vadd.f32 %v783, %v1165
    %v1224 = vadd.f32 %v785, %v1167
    %v1225 = vadd.f32 %v788, %v1170
    %v1226 = vadd.f32 %v790, %v1172
    %v1227 = vadd.f32 %v793, %v1175
    %v1228 = vadd.f32 %v795, %v1177
    %v1229 = vadd.f32 %v798, %v1180
    %v1230 = vadd.f32 %v800, %v1182
    %v1231 = vadd.f32 %v803, %v1185
    %v1232 = vadd.f32 %v805, %v1187
    %v1233 = vadd.f32 %v808, %v1190
    %v1234 = vadd.f32 %v810, %v1192
    %v1235 = vadd.f32 %v813, %v1195
    %v1236 = vadd.f32 %v815, %v1197
    %v1237 = vadd.f32 %v818, %v1200
    %v1238 = vadd.f32 %v820, %v1202
    %v1239 = vadd.f32 %v823, %v1205
    %v1240 = vadd.f32 %v825, %v1207
    %v1241 = vld [vmem:[#allocation2 + $0x47] sm:$0xff]
    %v1242 = vld [vmem:[#allocation2 + $0x4f] sm:$0xff]
    %v1243 = vld [vmem:[#allocation2 + $0x57] sm:$0xff]
    %v1244 = vld [vmem:[#allocation2 + $0x5f] sm:$0xff]
    %v1245 = vld [vmem:[#allocation2 + $0x67] sm:$0xff]
    %v1246 = vld [vmem:[#allocation2 + $0x6f] sm:$0xff]
    %v1247 = vld [vmem:[#allocation2 + $0x77] sm:$0xff]
    %v1248 = vld [vmem:[#allocation2 + $0x7f] sm:$0xff]
    %v1249 = vld [vmem:[#allocation2 + $0x87] sm:$0xff]
    %v1250 = vld [vmem:[#allocation2 + $0x8f] sm:$0xff]
    %v1251 = vld [vmem:[#allocation2 + $0x97] sm:$0xff]
    %v1252 = vld [vmem:[#allocation2 + $0x9f] sm:$0xff]
    %v1253 = vld [vmem:[#allocation2 + $0xa7] sm:$0xff]
    %v1254 = vld [vmem:[#allocation2 + $0xaf] sm:$0xff]
    %v1255 = vld [vmem:[#allocation2 + $0xb7] sm:$0xff]
    %v1256 = vld [vmem:[#allocation2 + $0xbf] sm:$0xff]
    %v1257 = vld [vmem:[#allocation2 + $0xc7] sm:$0xff]
    %v1258 = vld [vmem:[#allocation2 + $0xcf] sm:$0xff]
    %v1259 = vld [vmem:[#allocation2 + $0xd7] sm:$0xff]
    %v1260 = vld [vmem:[#allocation2 + $0xdf] sm:$0xff]
    %v1261 = vld [vmem:[#allocation2 + $0xe7] sm:$0xff]
    %v1262 = vld [vmem:[#allocation2 + $0xef] sm:$0xff]
    %v1263 = vld [vmem:[#allocation2 + $0xf7] sm:$0xff]
    %v1264 = vld [vmem:[#allocation2 + $0xff] sm:$0xff]
    %v1265 = vld [vmem:[#allocation2 + $0x107] sm:$0xff]
    %v1266 = vld [vmem:[#allocation2 + $0x10f] sm:$0xff]
    %v1267 = vld [vmem:[#allocation2 + $0x117] sm:$0xff]
    %v1268 = vld [vmem:[#allocation2 + $0x11f] sm:$0xff]
    %v1269 = vld [vmem:[#allocation2 + $0x127] sm:$0xff]
    %v1270 = vld [vmem:[#allocation2 + $0x12f] sm:$0xff]
    %v1271 = vld [vmem:[#allocation2 + $0x137] sm:$0xff]
    %v1272 = vld [vmem:[#allocation2 + $0x13f] sm:$0xff]
    %v1273 = vsel %vm415, %v1241, 0.0
    %v1274 = vsel %vm416, %v1242, 0.0
    %v1275 = vsel %vm417, %v1243, 0.0
    %v1276 = vsel %vm418, %v1244, 0.0
    %v1277 = vsel %vm419, %v1245, 0.0
    %v1278 = vsel %vm420, %v1246, 0.0
    %v1279 = vsel %vm421, %v1247, 0.0
    %v1280 = vsel %vm422, %v1248, 0.0
    %v1281 = vsel %vm423, %v1249, 0.0
    %v1282 = vsel %vm424, %v1250, 0.0
    %v1283 = vsel %vm425, %v1251, 0.0
    %v1284 = vsel %vm426, %v1252, 0.0
    %v1285 = vsel %vm427, %v1253, 0.0
    %v1286 = vsel %vm428, %v1254, 0.0
    %v1287 = vsel %vm429, %v1255, 0.0
    %v1288 = vsel %vm430, %v1256, 0.0
    %v1289 = vsel %vm431, %v1257, 0.0
    %v1290 = vsel %vm432, %v1258, 0.0
    %v1291 = vsel %vm433, %v1259, 0.0
    %v1292 = vsel %vm434, %v1260, 0.0
    %v1293 = vsel %vm435, %v1261, 0.0
    %v1294 = vsel %vm436, %v1262, 0.0
    %v1295 = vsel %vm437, %v1263, 0.0
    %v1296 = vsel %vm438, %v1264, 0.0
    %v1297 = vsel %vm439, %v1265, 0.0
    %v1298 = vsel %vm440, %v1266, 0.0
    %v1299 = vsel %vm441, %v1267, 0.0
    %v1300 = vsel %vm442, %v1268, 0.0
    %v1301 = vsel %vm443, %v1269, 0.0
    %v1302 = vsel %vm444, %v1270, 0.0
    %v1303 = vsel %vm445, %v1271, 0.0
    %v1304 = vsel %vm446, %v1272, 0.0
    %v1305 = vpack.c.bf16 %v1274, %v1273
    %v1306 = vpack.c.bf16 %v1276, %v1275
    %v1307 = vpack.c.bf16 %v1278, %v1277
    %v1308 = vpack.c.bf16 %v1280, %v1279
    %v1309 = vpack.c.bf16 %v1282, %v1281
    %v1310 = vpack.c.bf16 %v1284, %v1283
    %v1311 = vpack.c.bf16 %v1286, %v1285
    %v1312 = vpack.c.bf16 %v1288, %v1287
    %v1313 = vpack.c.bf16 %v1290, %v1289
    %v1314 = vpack.c.bf16 %v1292, %v1291
    %v1315 = vpack.c.bf16 %v1294, %v1293
    %v1316 = vpack.c.bf16 %v1296, %v1295
    %v1317 = vpack.c.bf16 %v1298, %v1297
    %v1318 = vpack.c.bf16 %v1300, %v1299
    %v1319 = vpack.c.bf16 %v1302, %v1301
    %v1320 = vpack.c.bf16 %v1304, %v1303
    %s1321 = scalar_lea.vmem %s2, 12
    %v1322 = vld [vmem:[%s1321] sm:$0xf]
    %v1324 = vsel %vm158, %v1305, 0
    %v1327 = vsel %vm158, %v1306, 0
    %v1330 = vsel %vm158, %v1307, 0
    %v1333 = vsel %vm158, %v1308, 0
    %v1336 = vsel %vm158, %v1309, 0
    %v1339 = vsel %vm158, %v1310, 0
    %v1342 = vsel %vm158, %v1311, 0
    %v1345 = vsel %vm158, %v1312, 0
    %v1348 = vsel %vm158, %v1313, 0
    %v1351 = vsel %vm158, %v1314, 0
    %v1354 = vsel %vm158, %v1315, 0
    %v1357 = vsel %vm158, %v1316, 0
    %v1360 = vsel %vm158, %v1317, 0
    %v1363 = vsel %vm158, %v1318, 0
    %v1366 = vsel %vm158, %v1319, 0
    %v1369 = vsel %vm158, %v1320, 0
    %v1372 = vsel %vm594, %v1322, 0
    %1374 = vmatpush.bf16.msra.mxu0 0
    %1375 = vmatpush.bf16.msra.mxu0 0
    %1376 = vmatpush.bf16.msra.mxu0 0
    %1377 = vmatpush.bf16.msra.mxu0 0
    %1378 = vmatpush.bf16.msra.mxu0 0
    %1379 = vmatpush.bf16.msra.mxu0 0
    %1380 = vmatpush.bf16.msra.mxu0 0
    %1381 = vmatpush.bf16.msra.mxu0 %v1372
    %1382 = vmatmul.bf16.gmra.mxu0 %v1324
    %v1383 = vpop.f32.mrf.mxu0
    %v1384 = vadd.f32 0.0, %v1383
    %v1385 = vpop.f32.mrf.mxu0
    %v1386 = vadd.f32 0.0, %v1385
    %1387 = vmatmul.bf16.gmra.mxu0 %v1327
    %v1388 = vpop.f32.mrf.mxu0
    %v1389 = vadd.f32 0.0, %v1388
    %v1390 = vpop.f32.mrf.mxu0
    %v1391 = vadd.f32 0.0, %v1390
    %1392 = vmatmul.bf16.gmra.mxu0 %v1330
    %v1393 = vpop.f32.mrf.mxu0
    %v1394 = vadd.f32 0.0, %v1393
    %v1395 = vpop.f32.mrf.mxu0
    %v1396 = vadd.f32 0.0, %v1395
    %1397 = vmatmul.bf16.gmra.mxu0 %v1333
    %v1398 = vpop.f32.mrf.mxu0
    %v1399 = vadd.f32 0.0, %v1398
    %v1400 = vpop.f32.mrf.mxu0
    %v1401 = vadd.f32 0.0, %v1400
    %1402 = vmatmul.bf16.gmra.mxu0 %v1336
    %v1403 = vpop.f32.mrf.mxu0
    %v1404 = vadd.f32 0.0, %v1403
    %v1405 = vpop.f32.mrf.mxu0
    %v1406 = vadd.f32 0.0, %v1405
    %1407 = vmatmul.bf16.gmra.mxu0 %v1339
    %v1408 = vpop.f32.mrf.mxu0
    %v1409 = vadd.f32 0.0, %v1408
    %v1410 = vpop.f32.mrf.mxu0
    %v1411 = vadd.f32 0.0, %v1410
    %1412 = vmatmul.bf16.gmra.mxu0 %v1342
    %v1413 = vpop.f32.mrf.mxu0
    %v1414 = vadd.f32 0.0, %v1413
    %v1415 = vpop.f32.mrf.mxu0
    %v1416 = vadd.f32 0.0, %v1415
    %1417 = vmatmul.bf16.gmra.mxu0 %v1345
    %v1418 = vpop.f32.mrf.mxu0
    %v1419 = vadd.f32 0.0, %v1418
    %v1420 = vpop.f32.mrf.mxu0
    %v1421 = vadd.f32 0.0, %v1420
    %1422 = vmatmul.bf16.gmra.mxu0 %v1348
    %v1423 = vpop.f32.mrf.mxu0
    %v1424 = vadd.f32 0.0, %v1423
    %v1425 = vpop.f32.mrf.mxu0
    %v1426 = vadd.f32 0.0, %v1425
    %1427 = vmatmul.bf16.gmra.mxu0 %v1351
    %v1428 = vpop.f32.mrf.mxu0
    %v1429 = vadd.f32 0.0, %v1428
    %v1430 = vpop.f32.mrf.mxu0
    %v1431 = vadd.f32 0.0, %v1430
    %1432 = vmatmul.bf16.gmra.mxu0 %v1354
    %v1433 = vpop.f32.mrf.mxu0
    %v1434 = vadd.f32 0.0, %v1433
    %v1435 = vpop.f32.mrf.mxu0
    %v1436 = vadd.f32 0.0, %v1435
    %1437 = vmatmul.bf16.gmra.mxu0 %v1357
    %v1438 = vpop.f32.mrf.mxu0
    %v1439 = vadd.f32 0.0, %v1438
    %v1440 = vpop.f32.mrf.mxu0
    %v1441 = vadd.f32 0.0, %v1440
    %1442 = vmatmul.bf16.gmra.mxu0 %v1360
    %v1443 = vpop.f32.mrf.mxu0
    %v1444 = vadd.f32 0.0, %v1443
    %v1445 = vpop.f32.mrf.mxu0
    %v1446 = vadd.f32 0.0, %v1445
    %1447 = vmatmul.bf16.gmra.mxu0 %v1363
    %v1448 = vpop.f32.mrf.mxu0
    %v1449 = vadd.f32 0.0, %v1448
    %v1450 = vpop.f32.mrf.mxu0
    %v1451 = vadd.f32 0.0, %v1450
    %1452 = vmatmul.bf16.gmra.mxu0 %v1366
    %v1453 = vpop.f32.mrf.mxu0
    %v1454 = vadd.f32 0.0, %v1453
    %v1455 = vpop.f32.mrf.mxu0
    %v1456 = vadd.f32 0.0, %v1455
    %1457 = vmatmul.bf16.gmra.mxu0 %v1369
    %v1458 = vpop.f32.mrf.mxu0
    %v1459 = vadd.f32 0.0, %v1458
    %v1460 = vpop.f32.mrf.mxu0
    %v1461 = vadd.f32 0.0, %v1460
    %1462 = vdwg.mxu0
    %v1463 = vadd.f32 %v1209, %v1384
    %v1464 = vadd.f32 %v1210, %v1386
    %v1465 = vadd.f32 %v1211, %v1389
    %v1466 = vadd.f32 %v1212, %v1391
    %v1467 = vadd.f32 %v1213, %v1394
    %v1468 = vadd.f32 %v1214, %v1396
    %v1469 = vadd.f32 %v1215, %v1399
    %v1470 = vadd.f32 %v1216, %v1401
    %v1471 = vadd.f32 %v1217, %v1404
    %v1472 = vadd.f32 %v1218, %v1406
    %v1473 = vadd.f32 %v1219, %v1409
    %v1474 = vadd.f32 %v1220, %v1411
    %v1475 = vadd.f32 %v1221, %v1414
    %v1476 = vadd.f32 %v1222, %v1416
    %v1477 = vadd.f32 %v1223, %v1419
    %v1478 = vadd.f32 %v1224, %v1421
    %v1479 = vadd.f32 %v1225, %v1424
    %v1480 = vadd.f32 %v1226, %v1426
    %v1481 = vadd.f32 %v1227, %v1429
    %v1482 = vadd.f32 %v1228, %v1431
    %v1483 = vadd.f32 %v1229, %v1434
    %v1484 = vadd.f32 %v1230, %v1436
    %v1485 = vadd.f32 %v1231, %v1439
    %v1486 = vadd.f32 %v1232, %v1441
    %v1487 = vadd.f32 %v1233, %v1444
    %v1488 = vadd.f32 %v1234, %v1446
    %v1489 = vadd.f32 %v1235, %v1449
    %v1490 = vadd.f32 %v1236, %v1451
    %v1491 = vadd.f32 %v1237, %v1454
    %v1492 = vadd.f32 %v1238, %v1456
    %v1493 = vadd.f32 %v1239, %v1459
    %v1494 = vadd.f32 %v1240, %v1461
    %v1495 = vld [vmem:[#allocation2 + $0x48] sm:$0xff]
    %v1496 = vld [vmem:[#allocation2 + $0x50] sm:$0xff]
    %v1497 = vld [vmem:[#allocation2 + $0x58] sm:$0xff]
    %v1498 = vld [vmem:[#allocation2 + $0x60] sm:$0xff]
    %v1499 = vld [vmem:[#allocation2 + $0x68] sm:$0xff]
    %v1500 = vld [vmem:[#allocation2 + $0x70] sm:$0xff]
    %v1501 = vld [vmem:[#allocation2 + $0x78] sm:$0xff]
    %v1502 = vld [vmem:[#allocation2 + $0x80] sm:$0xff]
    %v1503 = vld [vmem:[#allocation2 + $0x88] sm:$0xff]
    %v1504 = vld [vmem:[#allocation2 + $0x90] sm:$0xff]
    %v1505 = vld [vmem:[#allocation2 + $0x98] sm:$0xff]
    %v1506 = vld [vmem:[#allocation2 + $0xa0] sm:$0xff]
    %v1507 = vld [vmem:[#allocation2 + $0xa8] sm:$0xff]
    %v1508 = vld [vmem:[#allocation2 + $0xb0] sm:$0xff]
    %v1509 = vld [vmem:[#allocation2 + $0xb8] sm:$0xff]
    %v1510 = vld [vmem:[#allocation2 + $0xc0] sm:$0xff]
    %v1511 = vld [vmem:[#allocation2 + $0xc8] sm:$0xff]
    %v1512 = vld [vmem:[#allocation2 + $0xd0] sm:$0xff]
    %v1513 = vld [vmem:[#allocation2 + $0xd8] sm:$0xff]
    %v1514 = vld [vmem:[#allocation2 + $0xe0] sm:$0xff]
    %v1515 = vld [vmem:[#allocation2 + $0xe8] sm:$0xff]
    %v1516 = vld [vmem:[#allocation2 + $0xf0] sm:$0xff]
    %v1517 = vld [vmem:[#allocation2 + $0xf8] sm:$0xff]
    %v1518 = vld [vmem:[#allocation2 + $0x100] sm:$0xff]
    %v1519 = vld [vmem:[#allocation2 + $0x108] sm:$0xff]
    %v1520 = vld [vmem:[#allocation2 + $0x110] sm:$0xff]
    %v1521 = vld [vmem:[#allocation2 + $0x118] sm:$0xff]
    %v1522 = vld [vmem:[#allocation2 + $0x120] sm:$0xff]
    %v1523 = vld [vmem:[#allocation2 + $0x128] sm:$0xff]
    %v1524 = vld [vmem:[#allocation2 + $0x130] sm:$0xff]
    %v1525 = vld [vmem:[#allocation2 + $0x138] sm:$0xff]
    %v1526 = vld [vmem:[#allocation2 + $0x140] sm:$0xff]
    %v1527 = vpack.c.bf16 %v1496, %v1495
    %v1528 = vpack.c.bf16 %v1498, %v1497
    %v1529 = vpack.c.bf16 %v1500, %v1499
    %v1530 = vpack.c.bf16 %v1502, %v1501
    %v1531 = vpack.c.bf16 %v1504, %v1503
    %v1532 = vpack.c.bf16 %v1506, %v1505
    %v1533 = vpack.c.bf16 %v1508, %v1507
    %v1534 = vpack.c.bf16 %v1510, %v1509
    %v1535 = vpack.c.bf16 %v1512, %v1511
    %v1536 = vpack.c.bf16 %v1514, %v1513
    %v1537 = vpack.c.bf16 %v1516, %v1515
    %v1538 = vpack.c.bf16 %v1518, %v1517
    %v1539 = vpack.c.bf16 %v1520, %v1519
    %v1540 = vpack.c.bf16 %v1522, %v1521
    %v1541 = vpack.c.bf16 %v1524, %v1523
    %v1542 = vpack.c.bf16 %v1526, %v1525
    %s1543 = scalar_lea.vmem %s2, 16
    %v1544 = vld [vmem:[%s1543] sm:$0xf]
    %v1546 = vsel %vm158, %v1527, 0
    %v1549 = vsel %vm158, %v1528, 0
    %v1552 = vsel %vm158, %v1529, 0
    %v1555 = vsel %vm158, %v1530, 0
    %v1558 = vsel %vm158, %v1531, 0
    %v1561 = vsel %vm158, %v1532, 0
    %v1564 = vsel %vm158, %v1533, 0
    %v1567 = vsel %vm158, %v1534, 0
    %v1570 = vsel %vm158, %v1535, 0
    %v1573 = vsel %vm158, %v1536, 0
    %v1576 = vsel %vm158, %v1537, 0
    %v1579 = vsel %vm158, %v1538, 0
    %v1582 = vsel %vm158, %v1539, 0
    %v1585 = vsel %vm158, %v1540, 0
    %v1588 = vsel %vm158, %v1541, 0
    %v1591 = vsel %vm158, %v1542, 0
    %v1594 = vsel %vm594, %v1544, 0
    %1596 = vmatpush.bf16.msra.mxu0 0
    %1597 = vmatpush.bf16.msra.mxu0 0
    %1598 = vmatpush.bf16.msra.mxu0 0
    %1599 = vmatpush.bf16.msra.mxu0 0
    %1600 = vmatpush.bf16.msra.mxu0 0
    %1601 = vmatpush.bf16.msra.mxu0 0
    %1602 = vmatpush.bf16.msra.mxu0 0
    %1603 = vmatpush.bf16.msra.mxu0 %v1594
    %1604 = vmatmul.bf16.gmra.mxu0 %v1546
    %v1605 = vpop.f32.mrf.mxu0
    %v1606 = vadd.f32 0.0, %v1605
    %v1607 = vpop.f32.mrf.mxu0
    %v1608 = vadd.f32 0.0, %v1607
    %1609 = vmatmul.bf16.gmra.mxu0 %v1549
    %v1610 = vpop.f32.mrf.mxu0
    %v1611 = vadd.f32 0.0, %v1610
    %v1612 = vpop.f32.mrf.mxu0
    %v1613 = vadd.f32 0.0, %v1612
    %1614 = vmatmul.bf16.gmra.mxu0 %v1552
    %v1615 = vpop.f32.mrf.mxu0
    %v1616 = vadd.f32 0.0, %v1615
    %v1617 = vpop.f32.mrf.mxu0
    %v1618 = vadd.f32 0.0, %v1617
    %1619 = vmatmul.bf16.gmra.mxu0 %v1555
    %v1620 = vpop.f32.mrf.mxu0
    %v1621 = vadd.f32 0.0, %v1620
    %v1622 = vpop.f32.mrf.mxu0
    %v1623 = vadd.f32 0.0, %v1622
    %1624 = vmatmul.bf16.gmra.mxu0 %v1558
    %v1625 = vpop.f32.mrf.mxu0
    %v1626 = vadd.f32 0.0, %v1625
    %v1627 = vpop.f32.mrf.mxu0
    %v1628 = vadd.f32 0.0, %v1627
    %1629 = vmatmul.bf16.gmra.mxu0 %v1561
    %v1630 = vpop.f32.mrf.mxu0
    %v1631 = vadd.f32 0.0, %v1630
    %v1632 = vpop.f32.mrf.mxu0
    %v1633 = vadd.f32 0.0, %v1632
    %1634 = vmatmul.bf16.gmra.mxu0 %v1564
    %v1635 = vpop.f32.mrf.mxu0
    %v1636 = vadd.f32 0.0, %v1635
    %v1637 = vpop.f32.mrf.mxu0
    %v1638 = vadd.f32 0.0, %v1637
    %1639 = vmatmul.bf16.gmra.mxu0 %v1567
    %v1640 = vpop.f32.mrf.mxu0
    %v1641 = vadd.f32 0.0, %v1640
    %v1642 = vpop.f32.mrf.mxu0
    %v1643 = vadd.f32 0.0, %v1642
    %1644 = vmatmul.bf16.gmra.mxu0 %v1570
    %v1645 = vpop.f32.mrf.mxu0
    %v1646 = vadd.f32 0.0, %v1645
    %v1647 = vpop.f32.mrf.mxu0
    %v1648 = vadd.f32 0.0, %v1647
    %1649 = vmatmul.bf16.gmra.mxu0 %v1573
    %v1650 = vpop.f32.mrf.mxu0
    %v1651 = vadd.f32 0.0, %v1650
    %v1652 = vpop.f32.mrf.mxu0
    %v1653 = vadd.f32 0.0, %v1652
    %1654 = vmatmul.bf16.gmra.mxu0 %v1576
    %v1655 = vpop.f32.mrf.mxu0
    %v1656 = vadd.f32 0.0, %v1655
    %v1657 = vpop.f32.mrf.mxu0
    %v1658 = vadd.f32 0.0, %v1657
    %1659 = vmatmul.bf16.gmra.mxu0 %v1579
    %v1660 = vpop.f32.mrf.mxu0
    %v1661 = vadd.f32 0.0, %v1660
    %v1662 = vpop.f32.mrf.mxu0
    %v1663 = vadd.f32 0.0, %v1662
    %1664 = vmatmul.bf16.gmra.mxu0 %v1582
    %v1665 = vpop.f32.mrf.mxu0
    %v1666 = vadd.f32 0.0, %v1665
    %v1667 = vpop.f32.mrf.mxu0
    %v1668 = vadd.f32 0.0, %v1667
    %1669 = vmatmul.bf16.gmra.mxu0 %v1585
    %v1670 = vpop.f32.mrf.mxu0
    %v1671 = vadd.f32 0.0, %v1670
    %v1672 = vpop.f32.mrf.mxu0
    %v1673 = vadd.f32 0.0, %v1672
    %1674 = vmatmul.bf16.gmra.mxu0 %v1588
    %v1675 = vpop.f32.mrf.mxu0
    %v1676 = vadd.f32 0.0, %v1675
    %v1677 = vpop.f32.mrf.mxu0
    %v1678 = vadd.f32 0.0, %v1677
    %1679 = vmatmul.bf16.gmra.mxu0 %v1591
    %v1680 = vpop.f32.mrf.mxu0
    %v1681 = vadd.f32 0.0, %v1680
    %v1682 = vpop.f32.mrf.mxu0
    %v1683 = vadd.f32 0.0, %v1682
    %1684 = vdwg.mxu0
    %v1685 = vadd.f32 %v1463, %v1606
    %v1686 = vadd.f32 %v1464, %v1608
    %v1687 = vadd.f32 %v1465, %v1611
    %v1688 = vadd.f32 %v1466, %v1613
    %v1689 = vadd.f32 %v1467, %v1616
    %v1690 = vadd.f32 %v1468, %v1618
    %v1691 = vadd.f32 %v1469, %v1621
    %v1692 = vadd.f32 %v1470, %v1623
    %v1693 = vadd.f32 %v1471, %v1626
    %v1694 = vadd.f32 %v1472, %v1628
    %v1695 = vadd.f32 %v1473, %v1631
    %v1696 = vadd.f32 %v1474, %v1633
    %v1697 = vadd.f32 %v1475, %v1636
    %v1698 = vadd.f32 %v1476, %v1638
    %v1699 = vadd.f32 %v1477, %v1641
    %v1700 = vadd.f32 %v1478, %v1643
    %v1701 = vadd.f32 %v1479, %v1646
    %v1702 = vadd.f32 %v1480, %v1648
    %v1703 = vadd.f32 %v1481, %v1651
    %v1704 = vadd.f32 %v1482, %v1653
    %v1705 = vadd.f32 %v1483, %v1656
    %v1706 = vadd.f32 %v1484, %v1658
    %v1707 = vadd.f32 %v1485, %v1661
    %v1708 = vadd.f32 %v1486, %v1663
    %v1709 = vadd.f32 %v1487, %v1666
    %v1710 = vadd.f32 %v1488, %v1668
    %v1711 = vadd.f32 %v1489, %v1671
    %v1712 = vadd.f32 %v1490, %v1673
    %v1713 = vadd.f32 %v1491, %v1676
    %v1714 = vadd.f32 %v1492, %v1678
    %v1715 = vadd.f32 %v1493, %v1681
    %v1716 = vadd.f32 %v1494, %v1683
    %v1717 = vld [vmem:[#allocation2 + $0x49] sm:$0xff]
    %v1718 = vld [vmem:[#allocation2 + $0x51] sm:$0xff]
    %v1719 = vld [vmem:[#allocation2 + $0x59] sm:$0xff]
    %v1720 = vld [vmem:[#allocation2 + $0x61] sm:$0xff]
    %v1721 = vld [vmem:[#allocation2 + $0x69] sm:$0xff]
    %v1722 = vld [vmem:[#allocation2 + $0x71] sm:$0xff]
    %v1723 = vld [vmem:[#allocation2 + $0x79] sm:$0xff]
    %v1724 = vld [vmem:[#allocation2 + $0x81] sm:$0xff]
    %v1725 = vld [vmem:[#allocation2 + $0x89] sm:$0xff]
    %v1726 = vld [vmem:[#allocation2 + $0x91] sm:$0xff]
    %v1727 = vld [vmem:[#allocation2 + $0x99] sm:$0xff]
    %v1728 = vld [vmem:[#allocation2 + $0xa1] sm:$0xff]
    %v1729 = vld [vmem:[#allocation2 + $0xa9] sm:$0xff]
    %v1730 = vld [vmem:[#allocation2 + $0xb1] sm:$0xff]
    %v1731 = vld [vmem:[#allocation2 + $0xb9] sm:$0xff]
    %v1732 = vld [vmem:[#allocation2 + $0xc1] sm:$0xff]
    %v1733 = vld [vmem:[#allocation2 + $0xc9] sm:$0xff]
    %v1734 = vld [vmem:[#allocation2 + $0xd1] sm:$0xff]
    %v1735 = vld [vmem:[#allocation2 + $0xd9] sm:$0xff]
    %v1736 = vld [vmem:[#allocation2 + $0xe1] sm:$0xff]
    %v1737 = vld [vmem:[#allocation2 + $0xe9] sm:$0xff]
    %v1738 = vld [vmem:[#allocation2 + $0xf1] sm:$0xff]
    %v1739 = vld [vmem:[#allocation2 + $0xf9] sm:$0xff]
    %v1740 = vld [vmem:[#allocation2 + $0x101] sm:$0xff]
    %v1741 = vld [vmem:[#allocation2 + $0x109] sm:$0xff]
    %v1742 = vld [vmem:[#allocation2 + $0x111] sm:$0xff]
    %v1743 = vld [vmem:[#allocation2 + $0x119] sm:$0xff]
    %v1744 = vld [vmem:[#allocation2 + $0x121] sm:$0xff]
    %v1745 = vld [vmem:[#allocation2 + $0x129] sm:$0xff]
    %v1746 = vld [vmem:[#allocation2 + $0x131] sm:$0xff]
    %v1747 = vld [vmem:[#allocation2 + $0x139] sm:$0xff]
    %v1748 = vld [vmem:[#allocation2 + $0x141] sm:$0xff]
    %v1749 = vsel %vm987, %v1717, 0.0
    %v1750 = vsel %vm988, %v1718, 0.0
    %v1751 = vsel %vm989, %v1719, 0.0
    %v1752 = vsel %vm990, %v1720, 0.0
    %v1753 = vsel %vm991, %v1721, 0.0
    %v1754 = vsel %vm992, %v1722, 0.0
    %v1755 = vsel %vm993, %v1723, 0.0
    %v1756 = vsel %vm994, %v1724, 0.0
    %v1757 = vsel %vm995, %v1725, 0.0
    %v1758 = vsel %vm996, %v1726, 0.0
    %v1759 = vsel %vm997, %v1727, 0.0
    %v1760 = vsel %vm998, %v1728, 0.0
    %v1761 = vsel %vm999, %v1729, 0.0
    %v1762 = vsel %vm1000, %v1730, 0.0
    %v1763 = vsel %vm1001, %v1731, 0.0
    %v1764 = vsel %vm1002, %v1732, 0.0
    %v1765 = vsel %vm1003, %v1733, 0.0
    %v1766 = vsel %vm1004, %v1734, 0.0
    %v1767 = vsel %vm1005, %v1735, 0.0
    %v1768 = vsel %vm1006, %v1736, 0.0
    %v1769 = vsel %vm1007, %v1737, 0.0
    %v1770 = vsel %vm1008, %v1738, 0.0
    %v1771 = vsel %vm1009, %v1739, 0.0
    %v1772 = vsel %vm1010, %v1740, 0.0
    %v1773 = vsel %vm1011, %v1741, 0.0
    %v1774 = vsel %vm1012, %v1742, 0.0
    %v1775 = vsel %vm1013, %v1743, 0.0
    %v1776 = vsel %vm1014, %v1744, 0.0
    %v1777 = vsel %vm1015, %v1745, 0.0
    %v1778 = vsel %vm1016, %v1746, 0.0
    %v1779 = vsel %vm1017, %v1747, 0.0
    %v1780 = vsel %vm1018, %v1748, 0.0
    %v1781 = vpack.c.bf16 %v1750, %v1749
    %v1782 = vpack.c.bf16 %v1752, %v1751
    %v1783 = vpack.c.bf16 %v1754, %v1753
    %v1784 = vpack.c.bf16 %v1756, %v1755
    %v1785 = vpack.c.bf16 %v1758, %v1757
    %v1786 = vpack.c.bf16 %v1760, %v1759
    %v1787 = vpack.c.bf16 %v1762, %v1761
    %v1788 = vpack.c.bf16 %v1764, %v1763
    %v1789 = vpack.c.bf16 %v1766, %v1765
    %v1790 = vpack.c.bf16 %v1768, %v1767
    %v1791 = vpack.c.bf16 %v1770, %v1769
    %v1792 = vpack.c.bf16 %v1772, %v1771
    %v1793 = vpack.c.bf16 %v1774, %v1773
    %v1794 = vpack.c.bf16 %v1776, %v1775
    %v1795 = vpack.c.bf16 %v1778, %v1777
    %v1796 = vpack.c.bf16 %v1780, %v1779
    %s1797 = scalar_lea.vmem %s2, 20
    %v1798 = vld [vmem:[%s1797] sm:$0xf]
    %v1800 = vsel %vm158, %v1781, 0
    %v1803 = vsel %vm158, %v1782, 0
    %v1806 = vsel %vm158, %v1783, 0
    %v1809 = vsel %vm158, %v1784, 0
    %v1812 = vsel %vm158, %v1785, 0
    %v1815 = vsel %vm158, %v1786, 0
    %v1818 = vsel %vm158, %v1787, 0
    %v1821 = vsel %vm158, %v1788, 0
    %v1824 = vsel %vm158, %v1789, 0
    %v1827 = vsel %vm158, %v1790, 0
    %v1830 = vsel %vm158, %v1791, 0
    %v1833 = vsel %vm158, %v1792, 0
    %v1836 = vsel %vm158, %v1793, 0
    %v1839 = vsel %vm158, %v1794, 0
    %v1842 = vsel %vm158, %v1795, 0
    %v1845 = vsel %vm158, %v1796, 0
    %v1848 = vsel %vm594, %v1798, 0
    %1850 = vmatpush.bf16.msra.mxu0 0
    %1851 = vmatpush.bf16.msra.mxu0 0
    %1852 = vmatpush.bf16.msra.mxu0 0
    %1853 = vmatpush.bf16.msra.mxu0 0
    %1854 = vmatpush.bf16.msra.mxu0 0
    %1855 = vmatpush.bf16.msra.mxu0 0
    %1856 = vmatpush.bf16.msra.mxu0 0
    %1857 = vmatpush.bf16.msra.mxu0 %v1848
    %1858 = vmatmul.bf16.gmra.mxu0 %v1800
    %v1859 = vpop.f32.mrf.mxu0
    %v1860 = vadd.f32 0.0, %v1859
    %v1861 = vpop.f32.mrf.mxu0
    %v1862 = vadd.f32 0.0, %v1861
    %1863 = vmatmul.bf16.gmra.mxu0 %v1803
    %v1864 = vpop.f32.mrf.mxu0
    %v1865 = vadd.f32 0.0, %v1864
    %v1866 = vpop.f32.mrf.mxu0
    %v1867 = vadd.f32 0.0, %v1866
    %1868 = vmatmul.bf16.gmra.mxu0 %v1806
    %v1869 = vpop.f32.mrf.mxu0
    %v1870 = vadd.f32 0.0, %v1869
    %v1871 = vpop.f32.mrf.mxu0
    %v1872 = vadd.f32 0.0, %v1871
    %1873 = vmatmul.bf16.gmra.mxu0 %v1809
    %v1874 = vpop.f32.mrf.mxu0
    %v1875 = vadd.f32 0.0, %v1874
    %v1876 = vpop.f32.mrf.mxu0
    %v1877 = vadd.f32 0.0, %v1876
    %1878 = vmatmul.bf16.gmra.mxu0 %v1812
    %v1879 = vpop.f32.mrf.mxu0
    %v1880 = vadd.f32 0.0, %v1879
    %v1881 = vpop.f32.mrf.mxu0
    %v1882 = vadd.f32 0.0, %v1881
    %1883 = vmatmul.bf16.gmra.mxu0 %v1815
    %v1884 = vpop.f32.mrf.mxu0
    %v1885 = vadd.f32 0.0, %v1884
    %v1886 = vpop.f32.mrf.mxu0
    %v1887 = vadd.f32 0.0, %v1886
    %1888 = vmatmul.bf16.gmra.mxu0 %v1818
    %v1889 = vpop.f32.mrf.mxu0
    %v1890 = vadd.f32 0.0, %v1889
    %v1891 = vpop.f32.mrf.mxu0
    %v1892 = vadd.f32 0.0, %v1891
    %1893 = vmatmul.bf16.gmra.mxu0 %v1821
    %v1894 = vpop.f32.mrf.mxu0
    %v1895 = vadd.f32 0.0, %v1894
    %v1896 = vpop.f32.mrf.mxu0
    %v1897 = vadd.f32 0.0, %v1896
    %1898 = vmatmul.bf16.gmra.mxu0 %v1824
    %v1899 = vpop.f32.mrf.mxu0
    %v1900 = vadd.f32 0.0, %v1899
    %v1901 = vpop.f32.mrf.mxu0
    %v1902 = vadd.f32 0.0, %v1901
    %1903 = vmatmul.bf16.gmra.mxu0 %v1827
    %v1904 = vpop.f32.mrf.mxu0
    %v1905 = vadd.f32 0.0, %v1904
    %v1906 = vpop.f32.mrf.mxu0
    %v1907 = vadd.f32 0.0, %v1906
    %1908 = vmatmul.bf16.gmra.mxu0 %v1830
    %v1909 = vpop.f32.mrf.mxu0
    %v1910 = vadd.f32 0.0, %v1909
    %v1911 = vpop.f32.mrf.mxu0
    %v1912 = vadd.f32 0.0, %v1911
    %1913 = vmatmul.bf16.gmra.mxu0 %v1833
    %v1914 = vpop.f32.mrf.mxu0
    %v1915 = vadd.f32 0.0, %v1914
    %v1916 = vpop.f32.mrf.mxu0
    %v1917 = vadd.f32 0.0, %v1916
    %1918 = vmatmul.bf16.gmra.mxu0 %v1836
    %v1919 = vpop.f32.mrf.mxu0
    %v1920 = vadd.f32 0.0, %v1919
    %v1921 = vpop.f32.mrf.mxu0
    %v1922 = vadd.f32 0.0, %v1921
    %1923 = vmatmul.bf16.gmra.mxu0 %v1839
    %v1924 = vpop.f32.mrf.mxu0
    %v1925 = vadd.f32 0.0, %v1924
    %v1926 = vpop.f32.mrf.mxu0
    %v1927 = vadd.f32 0.0, %v1926
    %1928 = vmatmul.bf16.gmra.mxu0 %v1842
    %v1929 = vpop.f32.mrf.mxu0
    %v1930 = vadd.f32 0.0, %v1929
    %v1931 = vpop.f32.mrf.mxu0
    %v1932 = vadd.f32 0.0, %v1931
    %1933 = vmatmul.bf16.gmra.mxu0 %v1845
    %v1934 = vpop.f32.mrf.mxu0
    %v1935 = vadd.f32 0.0, %v1934
    %v1936 = vpop.f32.mrf.mxu0
    %v1937 = vadd.f32 0.0, %v1936
    %1938 = vdwg.mxu0
    %v1939 = vadd.f32 %v1685, %v1860
    %v1940 = vadd.f32 %v1686, %v1862
    %v1941 = vadd.f32 %v1687, %v1865
    %v1942 = vadd.f32 %v1688, %v1867
    %v1943 = vadd.f32 %v1689, %v1870
    %v1944 = vadd.f32 %v1690, %v1872
    %v1945 = vadd.f32 %v1691, %v1875
    %v1946 = vadd.f32 %v1692, %v1877
    %v1947 = vadd.f32 %v1693, %v1880
    %v1948 = vadd.f32 %v1694, %v1882
    %v1949 = vadd.f32 %v1695, %v1885
    %v1950 = vadd.f32 %v1696, %v1887
    %v1951 = vadd.f32 %v1697, %v1890
    %v1952 = vadd.f32 %v1698, %v1892
    %v1953 = vadd.f32 %v1699, %v1895
    %v1954 = vadd.f32 %v1700, %v1897
    %v1955 = vadd.f32 %v1701, %v1900
    %v1956 = vadd.f32 %v1702, %v1902
    %v1957 = vadd.f32 %v1703, %v1905
    %v1958 = vadd.f32 %v1704, %v1907
    %v1959 = vadd.f32 %v1705, %v1910
    %v1960 = vadd.f32 %v1706, %v1912
    %v1961 = vadd.f32 %v1707, %v1915
    %v1962 = vadd.f32 %v1708, %v1917
    %v1963 = vadd.f32 %v1709, %v1920
    %v1964 = vadd.f32 %v1710, %v1922
    %v1965 = vadd.f32 %v1711, %v1925
    %v1966 = vadd.f32 %v1712, %v1927
    %v1967 = vadd.f32 %v1713, %v1930
    %v1968 = vadd.f32 %v1714, %v1932
    %v1969 = vadd.f32 %v1715, %v1935
    %v1970 = vadd.f32 %v1716, %v1937
    %v1971 = vld [vmem:[#allocation2 + $0x57] sm:$0xff]
    %v1972 = vld [vmem:[#allocation2 + $0x5f] sm:$0xff]
    %v1973 = vld [vmem:[#allocation2 + $0x67] sm:$0xff]
    %v1974 = vld [vmem:[#allocation2 + $0x6f] sm:$0xff]
    %v1975 = vld [vmem:[#allocation2 + $0x77] sm:$0xff]
    %v1976 = vld [vmem:[#allocation2 + $0x7f] sm:$0xff]
    %v1977 = vld [vmem:[#allocation2 + $0x87] sm:$0xff]
    %v1978 = vld [vmem:[#allocation2 + $0x8f] sm:$0xff]
    %v1979 = vld [vmem:[#allocation2 + $0x97] sm:$0xff]
    %v1980 = vld [vmem:[#allocation2 + $0x9f] sm:$0xff]
    %v1981 = vld [vmem:[#allocation2 + $0xa7] sm:$0xff]
    %v1982 = vld [vmem:[#allocation2 + $0xaf] sm:$0xff]
    %v1983 = vld [vmem:[#allocation2 + $0xb7] sm:$0xff]
    %v1984 = vld [vmem:[#allocation2 + $0xbf] sm:$0xff]
    %v1985 = vld [vmem:[#allocation2 + $0xc7] sm:$0xff]
    %v1986 = vld [vmem:[#allocation2 + $0xcf] sm:$0xff]
    %v1987 = vld [vmem:[#allocation2 + $0xd7] sm:$0xff]
    %v1988 = vld [vmem:[#allocation2 + $0xdf] sm:$0xff]
    %v1989 = vld [vmem:[#allocation2 + $0xe7] sm:$0xff]
    %v1990 = vld [vmem:[#allocation2 + $0xef] sm:$0xff]
    %v1991 = vld [vmem:[#allocation2 + $0xf7] sm:$0xff]
    %v1992 = vld [vmem:[#allocation2 + $0xff] sm:$0xff]
    %v1993 = vld [vmem:[#allocation2 + $0x107] sm:$0xff]
    %v1994 = vld [vmem:[#allocation2 + $0x10f] sm:$0xff]
    %v1995 = vld [vmem:[#allocation2 + $0x117] sm:$0xff]
    %v1996 = vld [vmem:[#allocation2 + $0x11f] sm:$0xff]
    %v1997 = vld [vmem:[#allocation2 + $0x127] sm:$0xff]
    %v1998 = vld [vmem:[#allocation2 + $0x12f] sm:$0xff]
    %v1999 = vld [vmem:[#allocation2 + $0x137] sm:$0xff]
    %v2000 = vld [vmem:[#allocation2 + $0x13f] sm:$0xff]
    %v2001 = vld [vmem:[#allocation2 + $0x147] sm:$0xff]
    %v2002 = vld [vmem:[#allocation2 + $0x14f] sm:$0xff]
    %v2003 = vsel %vm415, %v1971, 0.0
    %v2004 = vsel %vm416, %v1972, 0.0
    %v2005 = vsel %vm417, %v1973, 0.0
    %v2006 = vsel %vm418, %v1974, 0.0
    %v2007 = vsel %vm419, %v1975, 0.0
    %v2008 = vsel %vm420, %v1976, 0.0
    %v2009 = vsel %vm421, %v1977, 0.0
    %v2010 = vsel %vm422, %v1978, 0.0
    %v2011 = vsel %vm423, %v1979, 0.0
    %v2012 = vsel %vm424, %v1980, 0.0
    %v2013 = vsel %vm425, %v1981, 0.0
    %v2014 = vsel %vm426, %v1982, 0.0
    %v2015 = vsel %vm427, %v1983, 0.0
    %v2016 = vsel %vm428, %v1984, 0.0
    %v2017 = vsel %vm429, %v1985, 0.0
    %v2018 = vsel %vm430, %v1986, 0.0
    %v2019 = vsel %vm431, %v1987, 0.0
    %v2020 = vsel %vm432, %v1988, 0.0
    %v2021 = vsel %vm433, %v1989, 0.0
    %v2022 = vsel %vm434, %v1990, 0.0
    %v2023 = vsel %vm435, %v1991, 0.0
    %v2024 = vsel %vm436, %v1992, 0.0
    %v2025 = vsel %vm437, %v1993, 0.0
    %v2026 = vsel %vm438, %v1994, 0.0
    %v2027 = vsel %vm439, %v1995, 0.0
    %v2028 = vsel %vm440, %v1996, 0.0
    %v2029 = vsel %vm441, %v1997, 0.0
    %v2030 = vsel %vm442, %v1998, 0.0
    %v2031 = vsel %vm443, %v1999, 0.0
    %v2032 = vsel %vm444, %v2000, 0.0
    %v2033 = vsel %vm445, %v2001, 0.0
    %v2034 = vsel %vm446, %v2002, 0.0
    %v2035 = vpack.c.bf16 %v2004, %v2003
    %v2036 = vpack.c.bf16 %v2006, %v2005
    %v2037 = vpack.c.bf16 %v2008, %v2007
    %v2038 = vpack.c.bf16 %v2010, %v2009
    %v2039 = vpack.c.bf16 %v2012, %v2011
    %v2040 = vpack.c.bf16 %v2014, %v2013
    %v2041 = vpack.c.bf16 %v2016, %v2015
    %v2042 = vpack.c.bf16 %v2018, %v2017
    %v2043 = vpack.c.bf16 %v2020, %v2019
    %v2044 = vpack.c.bf16 %v2022, %v2021
    %v2045 = vpack.c.bf16 %v2024, %v2023
    %v2046 = vpack.c.bf16 %v2026, %v2025
    %v2047 = vpack.c.bf16 %v2028, %v2027
    %v2048 = vpack.c.bf16 %v2030, %v2029
    %v2049 = vpack.c.bf16 %v2032, %v2031
    %v2050 = vpack.c.bf16 %v2034, %v2033
    %s2051 = scalar_lea.vmem %s2, 24
    %v2052 = vld [vmem:[%s2051] sm:$0xf]
    %v2054 = vsel %vm158, %v2035, 0
    %v2057 = vsel %vm158, %v2036, 0
    %v2060 = vsel %vm158, %v2037, 0
    %v2063 = vsel %vm158, %v2038, 0
    %v2066 = vsel %vm158, %v2039, 0
    %v2069 = vsel %vm158, %v2040, 0
    %v2072 = vsel %vm158, %v2041, 0
    %v2075 = vsel %vm158, %v2042, 0
    %v2078 = vsel %vm158, %v2043, 0
    %v2081 = vsel %vm158, %v2044, 0
    %v2084 = vsel %vm158, %v2045, 0
    %v2087 = vsel %vm158, %v2046, 0
    %v2090 = vsel %vm158, %v2047, 0
    %v2093 = vsel %vm158, %v2048, 0
    %v2096 = vsel %vm158, %v2049, 0
    %v2099 = vsel %vm158, %v2050, 0
    %v2102 = vsel %vm594, %v2052, 0
    %2104 = vmatpush.bf16.msra.mxu0 0
    %2105 = vmatpush.bf16.msra.mxu0 0
    %2106 = vmatpush.bf16.msra.mxu0 0
    %2107 = vmatpush.bf16.msra.mxu0 0
    %2108 = vmatpush.bf16.msra.mxu0 0
    %2109 = vmatpush.bf16.msra.mxu0 0
    %2110 = vmatpush.bf16.msra.mxu0 0
    %2111 = vmatpush.bf16.msra.mxu0 %v2102
    %2112 = vmatmul.bf16.gmra.mxu0 %v2054
    %v2113 = vpop.f32.mrf.mxu0
    %v2114 = vadd.f32 0.0, %v2113
    %v2115 = vpop.f32.mrf.mxu0
    %v2116 = vadd.f32 0.0, %v2115
    %2117 = vmatmul.bf16.gmra.mxu0 %v2057
    %v2118 = vpop.f32.mrf.mxu0
    %v2119 = vadd.f32 0.0, %v2118
    %v2120 = vpop.f32.mrf.mxu0
    %v2121 = vadd.f32 0.0, %v2120
    %2122 = vmatmul.bf16.gmra.mxu0 %v2060
    %v2123 = vpop.f32.mrf.mxu0
    %v2124 = vadd.f32 0.0, %v2123
    %v2125 = vpop.f32.mrf.mxu0
    %v2126 = vadd.f32 0.0, %v2125
    %2127 = vmatmul.bf16.gmra.mxu0 %v2063
    %v2128 = vpop.f32.mrf.mxu0
    %v2129 = vadd.f32 0.0, %v2128
    %v2130 = vpop.f32.mrf.mxu0
    %v2131 = vadd.f32 0.0, %v2130
    %2132 = vmatmul.bf16.gmra.mxu0 %v2066
    %v2133 = vpop.f32.mrf.mxu0
    %v2134 = vadd.f32 0.0, %v2133
    %v2135 = vpop.f32.mrf.mxu0
    %v2136 = vadd.f32 0.0, %v2135
    %2137 = vmatmul.bf16.gmra.mxu0 %v2069
    %v2138 = vpop.f32.mrf.mxu0
    %v2139 = vadd.f32 0.0, %v2138
    %v2140 = vpop.f32.mrf.mxu0
    %v2141 = vadd.f32 0.0, %v2140
    %2142 = vmatmul.bf16.gmra.mxu0 %v2072
    %v2143 = vpop.f32.mrf.mxu0
    %v2144 = vadd.f32 0.0, %v2143
    %v2145 = vpop.f32.mrf.mxu0
    %v2146 = vadd.f32 0.0, %v2145
    %2147 = vmatmul.bf16.gmra.mxu0 %v2075
    %v2148 = vpop.f32.mrf.mxu0
    %v2149 = vadd.f32 0.0, %v2148
    %v2150 = vpop.f32.mrf.mxu0
    %v2151 = vadd.f32 0.0, %v2150
    %2152 = vmatmul.bf16.gmra.mxu0 %v2078
    %v2153 = vpop.f32.mrf.mxu0
    %v2154 = vadd.f32 0.0, %v2153
    %v2155 = vpop.f32.mrf.mxu0
    %v2156 = vadd.f32 0.0, %v2155
    %2157 = vmatmul.bf16.gmra.mxu0 %v2081
    %v2158 = vpop.f32.mrf.mxu0
    %v2159 = vadd.f32 0.0, %v2158
    %v2160 = vpop.f32.mrf.mxu0
    %v2161 = vadd.f32 0.0, %v2160
    %2162 = vmatmul.bf16.gmra.mxu0 %v2084
    %v2163 = vpop.f32.mrf.mxu0
    %v2164 = vadd.f32 0.0, %v2163
    %v2165 = vpop.f32.mrf.mxu0
    %v2166 = vadd.f32 0.0, %v2165
    %2167 = vmatmul.bf16.gmra.mxu0 %v2087
    %v2168 = vpop.f32.mrf.mxu0
    %v2169 = vadd.f32 0.0, %v2168
    %v2170 = vpop.f32.mrf.mxu0
    %v2171 = vadd.f32 0.0, %v2170
    %2172 = vmatmul.bf16.gmra.mxu0 %v2090
    %v2173 = vpop.f32.mrf.mxu0
    %v2174 = vadd.f32 0.0, %v2173
    %v2175 = vpop.f32.mrf.mxu0
    %v2176 = vadd.f32 0.0, %v2175
    %2177 = vmatmul.bf16.gmra.mxu0 %v2093
    %v2178 = vpop.f32.mrf.mxu0
    %v2179 = vadd.f32 0.0, %v2178
    %v2180 = vpop.f32.mrf.mxu0
    %v2181 = vadd.f32 0.0, %v2180
    %2182 = vmatmul.bf16.gmra.mxu0 %v2096
    %v2183 = vpop.f32.mrf.mxu0
    %v2184 = vadd.f32 0.0, %v2183
    %v2185 = vpop.f32.mrf.mxu0
    %v2186 = vadd.f32 0.0, %v2185
    %2187 = vmatmul.bf16.gmra.mxu0 %v2099
    %v2188 = vpop.f32.mrf.mxu0
    %v2189 = vadd.f32 0.0, %v2188
    %v2190 = vpop.f32.mrf.mxu0
    %v2191 = vadd.f32 0.0, %v2190
    %2192 = vdwg.mxu0
    %v2193 = vadd.f32 %v1939, %v2114
    %v2194 = vadd.f32 %v1940, %v2116
    %v2195 = vadd.f32 %v1941, %v2119
    %v2196 = vadd.f32 %v1942, %v2121
    %v2197 = vadd.f32 %v1943, %v2124
    %v2198 = vadd.f32 %v1944, %v2126
    %v2199 = vadd.f32 %v1945, %v2129
    %v2200 = vadd.f32 %v1946, %v2131
    %v2201 = vadd.f32 %v1947, %v2134
    %v2202 = vadd.f32 %v1948, %v2136
    %v2203 = vadd.f32 %v1949, %v2139
    %v2204 = vadd.f32 %v1950, %v2141
    %v2205 = vadd.f32 %v1951, %v2144
    %v2206 = vadd.f32 %v1952, %v2146
    %v2207 = vadd.f32 %v1953, %v2149
    %v2208 = vadd.f32 %v1954, %v2151
    %v2209 = vadd.f32 %v1955, %v2154
    %v2210 = vadd.f32 %v1956, %v2156
    %v2211 = vadd.f32 %v1957, %v2159
    %v2212 = vadd.f32 %v1958, %v2161
    %v2213 = vadd.f32 %v1959, %v2164
    %v2214 = vadd.f32 %v1960, %v2166
    %v2215 = vadd.f32 %v1961, %v2169
    %v2216 = vadd.f32 %v1962, %v2171
    %v2217 = vadd.f32 %v1963, %v2174
    %v2218 = vadd.f32 %v1964, %v2176
    %v2219 = vadd.f32 %v1965, %v2179
    %v2220 = vadd.f32 %v1966, %v2181
    %v2221 = vadd.f32 %v1967, %v2184
    %v2222 = vadd.f32 %v1968, %v2186
    %v2223 = vadd.f32 %v1969, %v2189
    %v2224 = vadd.f32 %v1970, %v2191
    %v2225 = vld [vmem:[#allocation2 + $0x58] sm:$0xff]
    %v2226 = vld [vmem:[#allocation2 + $0x60] sm:$0xff]
    %v2227 = vld [vmem:[#allocation2 + $0x68] sm:$0xff]
    %v2228 = vld [vmem:[#allocation2 + $0x70] sm:$0xff]
    %v2229 = vld [vmem:[#allocation2 + $0x78] sm:$0xff]
    %v2230 = vld [vmem:[#allocation2 + $0x80] sm:$0xff]
    %v2231 = vld [vmem:[#allocation2 + $0x88] sm:$0xff]
    %v2232 = vld [vmem:[#allocation2 + $0x90] sm:$0xff]
    %v2233 = vld [vmem:[#allocation2 + $0x98] sm:$0xff]
    %v2234 = vld [vmem:[#allocation2 + $0xa0] sm:$0xff]
    %v2235 = vld [vmem:[#allocation2 + $0xa8] sm:$0xff]
    %v2236 = vld [vmem:[#allocation2 + $0xb0] sm:$0xff]
    %v2237 = vld [vmem:[#allocation2 + $0xb8] sm:$0xff]
    %v2238 = vld [vmem:[#allocation2 + $0xc0] sm:$0xff]
    %v2239 = vld [vmem:[#allocation2 + $0xc8] sm:$0xff]
    %v2240 = vld [vmem:[#allocation2 + $0xd0] sm:$0xff]
    %v2241 = vld [vmem:[#allocation2 + $0xd8] sm:$0xff]
    %v2242 = vld [vmem:[#allocation2 + $0xe0] sm:$0xff]
    %v2243 = vld [vmem:[#allocation2 + $0xe8] sm:$0xff]
    %v2244 = vld [vmem:[#allocation2 + $0xf0] sm:$0xff]
    %v2245 = vld [vmem:[#allocation2 + $0xf8] sm:$0xff]
    %v2246 = vld [vmem:[#allocation2 + $0x100] sm:$0xff]
    %v2247 = vld [vmem:[#allocation2 + $0x108] sm:$0xff]
    %v2248 = vld [vmem:[#allocation2 + $0x110] sm:$0xff]
    %v2249 = vld [vmem:[#allocation2 + $0x118] sm:$0xff]
    %v2250 = vld [vmem:[#allocation2 + $0x120] sm:$0xff]
    %v2251 = vld [vmem:[#allocation2 + $0x128] sm:$0xff]
    %v2252 = vld [vmem:[#allocation2 + $0x130] sm:$0xff]
    %v2253 = vld [vmem:[#allocation2 + $0x138] sm:$0xff]
    %v2254 = vld [vmem:[#allocation2 + $0x140] sm:$0xff]
    %v2255 = vld [vmem:[#allocation2 + $0x148] sm:$0xff]
    %v2256 = vld [vmem:[#allocation2 + $0x150] sm:$0xff]
    %v2257 = vpack.c.bf16 %v2226, %v2225
    %v2258 = vpack.c.bf16 %v2228, %v2227
    %v2259 = vpack.c.bf16 %v2230, %v2229
    %v2260 = vpack.c.bf16 %v2232, %v2231
    %v2261 = vpack.c.bf16 %v2234, %v2233
    %v2262 = vpack.c.bf16 %v2236, %v2235
    %v2263 = vpack.c.bf16 %v2238, %v2237
    %v2264 = vpack.c.bf16 %v2240, %v2239
    %v2265 = vpack.c.bf16 %v2242, %v2241
    %v2266 = vpack.c.bf16 %v2244, %v2243
    %v2267 = vpack.c.bf16 %v2246, %v2245
    %v2268 = vpack.c.bf16 %v2248, %v2247
    %v2269 = vpack.c.bf16 %v2250, %v2249
    %v2270 = vpack.c.bf16 %v2252, %v2251
    %v2271 = vpack.c.bf16 %v2254, %v2253
    %v2272 = vpack.c.bf16 %v2256, %v2255
    %s2273 = scalar_lea.vmem %s2, 28
    %v2274 = vld [vmem:[%s2273] sm:$0xf]
    %v2276 = vsel %vm158, %v2257, 0
    %v2279 = vsel %vm158, %v2258, 0
    %v2282 = vsel %vm158, %v2259, 0
    %v2285 = vsel %vm158, %v2260, 0
    %v2288 = vsel %vm158, %v2261, 0
    %v2291 = vsel %vm158, %v2262, 0
    %v2294 = vsel %vm158, %v2263, 0
    %v2297 = vsel %vm158, %v2264, 0
    %v2300 = vsel %vm158, %v2265, 0
    %v2303 = vsel %vm158, %v2266, 0
    %v2306 = vsel %vm158, %v2267, 0
    %v2309 = vsel %vm158, %v2268, 0
    %v2312 = vsel %vm158, %v2269, 0
    %v2315 = vsel %vm158, %v2270, 0
    %v2318 = vsel %vm158, %v2271, 0
    %v2321 = vsel %vm158, %v2272, 0
    %v2324 = vsel %vm594, %v2274, 0
    %2326 = vmatpush.bf16.msra.mxu0 0
    %2327 = vmatpush.bf16.msra.mxu0 0
    %2328 = vmatpush.bf16.msra.mxu0 0
    %2329 = vmatpush.bf16.msra.mxu0 0
    %2330 = vmatpush.bf16.msra.mxu0 0
    %2331 = vmatpush.bf16.msra.mxu0 0
    %2332 = vmatpush.bf16.msra.mxu0 0
    %2333 = vmatpush.bf16.msra.mxu0 %v2324
    %2334 = vmatmul.bf16.gmra.mxu0 %v2276
    %v2335 = vpop.f32.mrf.mxu0
    %v2336 = vadd.f32 0.0, %v2335
    %v2337 = vpop.f32.mrf.mxu0
    %v2338 = vadd.f32 0.0, %v2337
    %2339 = vmatmul.bf16.gmra.mxu0 %v2279
    %v2340 = vpop.f32.mrf.mxu0
    %v2341 = vadd.f32 0.0, %v2340
    %v2342 = vpop.f32.mrf.mxu0
    %v2343 = vadd.f32 0.0, %v2342
    %2344 = vmatmul.bf16.gmra.mxu0 %v2282
    %v2345 = vpop.f32.mrf.mxu0
    %v2346 = vadd.f32 0.0, %v2345
    %v2347 = vpop.f32.mrf.mxu0
    %v2348 = vadd.f32 0.0, %v2347
    %2349 = vmatmul.bf16.gmra.mxu0 %v2285
    %v2350 = vpop.f32.mrf.mxu0
    %v2351 = vadd.f32 0.0, %v2350
    %v2352 = vpop.f32.mrf.mxu0
    %v2353 = vadd.f32 0.0, %v2352
    %2354 = vmatmul.bf16.gmra.mxu0 %v2288
    %v2355 = vpop.f32.mrf.mxu0
    %v2356 = vadd.f32 0.0, %v2355
    %v2357 = vpop.f32.mrf.mxu0
    %v2358 = vadd.f32 0.0, %v2357
    %2359 = vmatmul.bf16.gmra.mxu0 %v2291
    %v2360 = vpop.f32.mrf.mxu0
    %v2361 = vadd.f32 0.0, %v2360
    %v2362 = vpop.f32.mrf.mxu0
    %v2363 = vadd.f32 0.0, %v2362
    %2364 = vmatmul.bf16.gmra.mxu0 %v2294
    %v2365 = vpop.f32.mrf.mxu0
    %v2366 = vadd.f32 0.0, %v2365
    %v2367 = vpop.f32.mrf.mxu0
    %v2368 = vadd.f32 0.0, %v2367
    %2369 = vmatmul.bf16.gmra.mxu0 %v2297
    %v2370 = vpop.f32.mrf.mxu0
    %v2371 = vadd.f32 0.0, %v2370
    %v2372 = vpop.f32.mrf.mxu0
    %v2373 = vadd.f32 0.0, %v2372
    %2374 = vmatmul.bf16.gmra.mxu0 %v2300
    %v2375 = vpop.f32.mrf.mxu0
    %v2376 = vadd.f32 0.0, %v2375
    %v2377 = vpop.f32.mrf.mxu0
    %v2378 = vadd.f32 0.0, %v2377
    %2379 = vmatmul.bf16.gmra.mxu0 %v2303
    %v2380 = vpop.f32.mrf.mxu0
    %v2381 = vadd.f32 0.0, %v2380
    %v2382 = vpop.f32.mrf.mxu0
    %v2383 = vadd.f32 0.0, %v2382
    %2384 = vmatmul.bf16.gmra.mxu0 %v2306
    %v2385 = vpop.f32.mrf.mxu0
    %v2386 = vadd.f32 0.0, %v2385
    %v2387 = vpop.f32.mrf.mxu0
    %v2388 = vadd.f32 0.0, %v2387
    %2389 = vmatmul.bf16.gmra.mxu0 %v2309
    %v2390 = vpop.f32.mrf.mxu0
    %v2391 = vadd.f32 0.0, %v2390
    %v2392 = vpop.f32.mrf.mxu0
    %v2393 = vadd.f32 0.0, %v2392
    %2394 = vmatmul.bf16.gmra.mxu0 %v2312
    %v2395 = vpop.f32.mrf.mxu0
    %v2396 = vadd.f32 0.0, %v2395
    %v2397 = vpop.f32.mrf.mxu0
    %v2398 = vadd.f32 0.0, %v2397
    %2399 = vmatmul.bf16.gmra.mxu0 %v2315
    %v2400 = vpop.f32.mrf.mxu0
    %v2401 = vadd.f32 0.0, %v2400
    %v2402 = vpop.f32.mrf.mxu0
    %v2403 = vadd.f32 0.0, %v2402
    %2404 = vmatmul.bf16.gmra.mxu0 %v2318
    %v2405 = vpop.f32.mrf.mxu0
    %v2406 = vadd.f32 0.0, %v2405
    %v2407 = vpop.f32.mrf.mxu0
    %v2408 = vadd.f32 0.0, %v2407
    %2409 = vmatmul.bf16.gmra.mxu0 %v2321
    %v2410 = vpop.f32.mrf.mxu0
    %v2411 = vadd.f32 0.0, %v2410
    %v2412 = vpop.f32.mrf.mxu0
    %v2413 = vadd.f32 0.0, %v2412
    %2414 = vdwg.mxu0
    %v2415 = vadd.f32 %v2193, %v2336
    %v2416 = vadd.f32 %v2194, %v2338
    %v2417 = vadd.f32 %v2195, %v2341
    %v2418 = vadd.f32 %v2196, %v2343
    %v2419 = vadd.f32 %v2197, %v2346
    %v2420 = vadd.f32 %v2198, %v2348
    %v2421 = vadd.f32 %v2199, %v2351
    %v2422 = vadd.f32 %v2200, %v2353
    %v2423 = vadd.f32 %v2201, %v2356
    %v2424 = vadd.f32 %v2202, %v2358
    %v2425 = vadd.f32 %v2203, %v2361
    %v2426 = vadd.f32 %v2204, %v2363
    %v2427 = vadd.f32 %v2205, %v2366
    %v2428 = vadd.f32 %v2206, %v2368
    %v2429 = vadd.f32 %v2207, %v2371
    %v2430 = vadd.f32 %v2208, %v2373
    %v2431 = vadd.f32 %v2209, %v2376
    %v2432 = vadd.f32 %v2210, %v2378
    %v2433 = vadd.f32 %v2211, %v2381
    %v2434 = vadd.f32 %v2212, %v2383
    %v2435 = vadd.f32 %v2213, %v2386
    %v2436 = vadd.f32 %v2214, %v2388
    %v2437 = vadd.f32 %v2215, %v2391
    %v2438 = vadd.f32 %v2216, %v2393
    %v2439 = vadd.f32 %v2217, %v2396
    %v2440 = vadd.f32 %v2218, %v2398
    %v2441 = vadd.f32 %v2219, %v2401
    %v2442 = vadd.f32 %v2220, %v2403
    %v2443 = vadd.f32 %v2221, %v2406
    %v2444 = vadd.f32 %v2222, %v2408
    %v2445 = vadd.f32 %v2223, %v2411
    %v2446 = vadd.f32 %v2224, %v2413
    %v2447 = vld [vmem:[#allocation2 + $0x59] sm:$0xff]
    %v2448 = vld [vmem:[#allocation2 + $0x61] sm:$0xff]
    %v2449 = vld [vmem:[#allocation2 + $0x69] sm:$0xff]
    %v2450 = vld [vmem:[#allocation2 + $0x71] sm:$0xff]
    %v2451 = vld [vmem:[#allocation2 + $0x79] sm:$0xff]
    %v2452 = vld [vmem:[#allocation2 + $0x81] sm:$0xff]
    %v2453 = vld [vmem:[#allocation2 + $0x89] sm:$0xff]
    %v2454 = vld [vmem:[#allocation2 + $0x91] sm:$0xff]
    %v2455 = vld [vmem:[#allocation2 + $0x99] sm:$0xff]
    %v2456 = vld [vmem:[#allocation2 + $0xa1] sm:$0xff]
    %v2457 = vld [vmem:[#allocation2 + $0xa9] sm:$0xff]
    %v2458 = vld [vmem:[#allocation2 + $0xb1] sm:$0xff]
    %v2459 = vld [vmem:[#allocation2 + $0xb9] sm:$0xff]
    %v2460 = vld [vmem:[#allocation2 + $0xc1] sm:$0xff]
    %v2461 = vld [vmem:[#allocation2 + $0xc9] sm:$0xff]
    %v2462 = vld [vmem:[#allocation2 + $0xd1] sm:$0xff]
    %v2463 = vld [vmem:[#allocation2 + $0xd9] sm:$0xff]
    %v2464 = vld [vmem:[#allocation2 + $0xe1] sm:$0xff]
    %v2465 = vld [vmem:[#allocation2 + $0xe9] sm:$0xff]
    %v2466 = vld [vmem:[#allocation2 + $0xf1] sm:$0xff]
    %v2467 = vld [vmem:[#allocation2 + $0xf9] sm:$0xff]
    %v2468 = vld [vmem:[#allocation2 + $0x101] sm:$0xff]
    %v2469 = vld [vmem:[#allocation2 + $0x109] sm:$0xff]
    %v2470 = vld [vmem:[#allocation2 + $0x111] sm:$0xff]
    %v2471 = vld [vmem:[#allocation2 + $0x119] sm:$0xff]
    %v2472 = vld [vmem:[#allocation2 + $0x121] sm:$0xff]
    %v2473 = vld [vmem:[#allocation2 + $0x129] sm:$0xff]
    %v2474 = vld [vmem:[#allocation2 + $0x131] sm:$0xff]
    %v2475 = vld [vmem:[#allocation2 + $0x139] sm:$0xff]
    %v2476 = vld [vmem:[#allocation2 + $0x141] sm:$0xff]
    %v2477 = vld [vmem:[#allocation2 + $0x149] sm:$0xff]
    %v2478 = vld [vmem:[#allocation2 + $0x151] sm:$0xff]
    %v2479 = vsel %vm987, %v2447, 0.0
    %v2480 = vsel %vm988, %v2448, 0.0
    %v2481 = vsel %vm989, %v2449, 0.0
    %v2482 = vsel %vm990, %v2450, 0.0
    %v2483 = vsel %vm991, %v2451, 0.0
    %v2484 = vsel %vm992, %v2452, 0.0
    %v2485 = vsel %vm993, %v2453, 0.0
    %v2486 = vsel %vm994, %v2454, 0.0
    %v2487 = vsel %vm995, %v2455, 0.0
    %v2488 = vsel %vm996, %v2456, 0.0
    %v2489 = vsel %vm997, %v2457, 0.0
    %v2490 = vsel %vm998, %v2458, 0.0
    %v2491 = vsel %vm999, %v2459, 0.0
    %v2492 = vsel %vm1000, %v2460, 0.0
    %v2493 = vsel %vm1001, %v2461, 0.0
    %v2494 = vsel %vm1002, %v2462, 0.0
    %v2495 = vsel %vm1003, %v2463, 0.0
    %v2496 = vsel %vm1004, %v2464, 0.0
    %v2497 = vsel %vm1005, %v2465, 0.0
    %v2498 = vsel %vm1006, %v2466, 0.0
    %v2499 = vsel %vm1007, %v2467, 0.0
    %v2500 = vsel %vm1008, %v2468, 0.0
    %v2501 = vsel %vm1009, %v2469, 0.0
    %v2502 = vsel %vm1010, %v2470, 0.0
    %v2503 = vsel %vm1011, %v2471, 0.0
    %v2504 = vsel %vm1012, %v2472, 0.0
    %v2505 = vsel %vm1013, %v2473, 0.0
    %v2506 = vsel %vm1014, %v2474, 0.0
    %v2507 = vsel %vm1015, %v2475, 0.0
    %v2508 = vsel %vm1016, %v2476, 0.0
    %v2509 = vsel %vm1017, %v2477, 0.0
    %v2510 = vsel %vm1018, %v2478, 0.0
    %v2511 = vpack.c.bf16 %v2480, %v2479
    %v2512 = vpack.c.bf16 %v2482, %v2481
    %v2513 = vpack.c.bf16 %v2484, %v2483
    %v2514 = vpack.c.bf16 %v2486, %v2485
    %v2515 = vpack.c.bf16 %v2488, %v2487
    %v2516 = vpack.c.bf16 %v2490, %v2489
    %v2517 = vpack.c.bf16 %v2492, %v2491
    %v2518 = vpack.c.bf16 %v2494, %v2493
    %v2519 = vpack.c.bf16 %v2496, %v2495
    %v2520 = vpack.c.bf16 %v2498, %v2497
    %v2521 = vpack.c.bf16 %v2500, %v2499
    %v2522 = vpack.c.bf16 %v2502, %v2501
    %v2523 = vpack.c.bf16 %v2504, %v2503
    %v2524 = vpack.c.bf16 %v2506, %v2505
    %v2525 = vpack.c.bf16 %v2508, %v2507
    %v2526 = vpack.c.bf16 %v2510, %v2509
    %s2527 = scalar_lea.vmem %s2, 32
    %v2528 = vld [vmem:[%s2527] sm:$0xf]
    %v2530 = vsel %vm158, %v2511, 0
    %v2533 = vsel %vm158, %v2512, 0
    %v2536 = vsel %vm158, %v2513, 0
    %v2539 = vsel %vm158, %v2514, 0
    %v2542 = vsel %vm158, %v2515, 0
    %v2545 = vsel %vm158, %v2516, 0
    %v2548 = vsel %vm158, %v2517, 0
    %v2551 = vsel %vm158, %v2518, 0
    %v2554 = vsel %vm158, %v2519, 0
    %v2557 = vsel %vm158, %v2520, 0
    %v2560 = vsel %vm158, %v2521, 0
    %v2563 = vsel %vm158, %v2522, 0
    %v2566 = vsel %vm158, %v2523, 0
    %v2569 = vsel %vm158, %v2524, 0
    %v2572 = vsel %vm158, %v2525, 0
    %v2575 = vsel %vm158, %v2526, 0
    %v2578 = vsel %vm594, %v2528, 0
    %2580 = vmatpush.bf16.msra.mxu0 0
    %2581 = vmatpush.bf16.msra.mxu0 0
    %2582 = vmatpush.bf16.msra.mxu0 0
    %2583 = vmatpush.bf16.msra.mxu0 0
    %2584 = vmatpush.bf16.msra.mxu0 0
    %2585 = vmatpush.bf16.msra.mxu0 0
    %2586 = vmatpush.bf16.msra.mxu0 0
    %2587 = vmatpush.bf16.msra.mxu0 %v2578
    %2588 = vmatmul.bf16.gmra.mxu0 %v2530
    %v2589 = vpop.f32.mrf.mxu0
    %v2590 = vadd.f32 0.0, %v2589
    %v2591 = vpop.f32.mrf.mxu0
    %v2592 = vadd.f32 0.0, %v2591
    %2593 = vmatmul.bf16.gmra.mxu0 %v2533
    %v2594 = vpop.f32.mrf.mxu0
    %v2595 = vadd.f32 0.0, %v2594
    %v2596 = vpop.f32.mrf.mxu0
    %v2597 = vadd.f32 0.0, %v2596
    %2598 = vmatmul.bf16.gmra.mxu0 %v2536
    %v2599 = vpop.f32.mrf.mxu0
    %v2600 = vadd.f32 0.0, %v2599
    %v2601 = vpop.f32.mrf.mxu0
    %v2602 = vadd.f32 0.0, %v2601
    %2603 = vmatmul.bf16.gmra.mxu0 %v2539
    %v2604 = vpop.f32.mrf.mxu0
    %v2605 = vadd.f32 0.0, %v2604
    %v2606 = vpop.f32.mrf.mxu0
    %v2607 = vadd.f32 0.0, %v2606
    %2608 = vmatmul.bf16.gmra.mxu0 %v2542
    %v2609 = vpop.f32.mrf.mxu0
    %v2610 = vadd.f32 0.0, %v2609
    %v2611 = vpop.f32.mrf.mxu0
    %v2612 = vadd.f32 0.0, %v2611
    %2613 = vmatmul.bf16.gmra.mxu0 %v2545
    %v2614 = vpop.f32.mrf.mxu0
    %v2615 = vadd.f32 0.0, %v2614
    %v2616 = vpop.f32.mrf.mxu0
    %v2617 = vadd.f32 0.0, %v2616
    %2618 = vmatmul.bf16.gmra.mxu0 %v2548
    %v2619 = vpop.f32.mrf.mxu0
    %v2620 = vadd.f32 0.0, %v2619
    %v2621 = vpop.f32.mrf.mxu0
    %v2622 = vadd.f32 0.0, %v2621
    %2623 = vmatmul.bf16.gmra.mxu0 %v2551
    %v2624 = vpop.f32.mrf.mxu0
    %v2625 = vadd.f32 0.0, %v2624
    %v2626 = vpop.f32.mrf.mxu0
    %v2627 = vadd.f32 0.0, %v2626
    %2628 = vmatmul.bf16.gmra.mxu0 %v2554
    %v2629 = vpop.f32.mrf.mxu0
    %v2630 = vadd.f32 0.0, %v2629
    %v2631 = vpop.f32.mrf.mxu0
    %v2632 = vadd.f32 0.0, %v2631
    %2633 = vmatmul.bf16.gmra.mxu0 %v2557
    %v2634 = vpop.f32.mrf.mxu0
    %v2635 = vadd.f32 0.0, %v2634
    %v2636 = vpop.f32.mrf.mxu0
    %v2637 = vadd.f32 0.0, %v2636
    %2638 = vmatmul.bf16.gmra.mxu0 %v2560
    %v2639 = vpop.f32.mrf.mxu0
    %v2640 = vadd.f32 0.0, %v2639
    %v2641 = vpop.f32.mrf.mxu0
    %v2642 = vadd.f32 0.0, %v2641
    %2643 = vmatmul.bf16.gmra.mxu0 %v2563
    %v2644 = vpop.f32.mrf.mxu0
    %v2645 = vadd.f32 0.0, %v2644
    %v2646 = vpop.f32.mrf.mxu0
    %v2647 = vadd.f32 0.0, %v2646
    %2648 = vmatmul.bf16.gmra.mxu0 %v2566
    %v2649 = vpop.f32.mrf.mxu0
    %v2650 = vadd.f32 0.0, %v2649
    %v2651 = vpop.f32.mrf.mxu0
    %v2652 = vadd.f32 0.0, %v2651
    %2653 = vmatmul.bf16.gmra.mxu0 %v2569
    %v2654 = vpop.f32.mrf.mxu0
    %v2655 = vadd.f32 0.0, %v2654
    %v2656 = vpop.f32.mrf.mxu0
    %v2657 = vadd.f32 0.0, %v2656
    %2658 = vmatmul.bf16.gmra.mxu0 %v2572
    %v2659 = vpop.f32.mrf.mxu0
    %v2660 = vadd.f32 0.0, %v2659
    %v2661 = vpop.f32.mrf.mxu0
    %v2662 = vadd.f32 0.0, %v2661
    %2663 = vmatmul.bf16.gmra.mxu0 %v2575
    %v2664 = vpop.f32.mrf.mxu0
    %v2665 = vadd.f32 0.0, %v2664
    %v2666 = vpop.f32.mrf.mxu0
    %v2667 = vadd.f32 0.0, %v2666
    %2668 = vdwg.mxu0
    %v2669 = vadd.f32 %v2415, %v2590
    %v2670 = vadd.f32 %v2416, %v2592
    %v2671 = vadd.f32 %v2417, %v2595
    %v2672 = vadd.f32 %v2418, %v2597
    %v2673 = vadd.f32 %v2419, %v2600
    %v2674 = vadd.f32 %v2420, %v2602
    %v2675 = vadd.f32 %v2421, %v2605
    %v2676 = vadd.f32 %v2422, %v2607
    %v2677 = vadd.f32 %v2423, %v2610
    %v2678 = vadd.f32 %v2424, %v2612
    %v2679 = vadd.f32 %v2425, %v2615
    %v2680 = vadd.f32 %v2426, %v2617
    %v2681 = vadd.f32 %v2427, %v2620
    %v2682 = vadd.f32 %v2428, %v2622
    %v2683 = vadd.f32 %v2429, %v2625
    %v2684 = vadd.f32 %v2430, %v2627
    %v2685 = vadd.f32 %v2431, %v2630
    %v2686 = vadd.f32 %v2432, %v2632
    %v2687 = vadd.f32 %v2433, %v2635
    %v2688 = vadd.f32 %v2434, %v2637
    %v2689 = vadd.f32 %v2435, %v2640
    %v2690 = vadd.f32 %v2436, %v2642
    %v2691 = vadd.f32 %v2437, %v2645
    %v2692 = vadd.f32 %v2438, %v2647
    %v2693 = vadd.f32 %v2439, %v2650
    %v2694 = vadd.f32 %v2440, %v2652
    %v2695 = vadd.f32 %v2441, %v2655
    %v2696 = vadd.f32 %v2442, %v2657
    %v2697 = vadd.f32 %v2443, %v2660
    %v2698 = vadd.f32 %v2444, %v2662
    %v2699 = vadd.f32 %v2445, %v2665
    %v2700 = vadd.f32 %v2446, %v2667
    %v2701 = vld [vmem:[%s3] sm:$0x1]
    %v2703 = vperm.slane %v2701, 0
    %v2705 = vadd.f32 %v2669, %v2703
    %v2706 = vadd.f32 %v2670, %v2703
    %v2707 = vadd.f32 %v2671, %v2703
    %v2708 = vadd.f32 %v2672, %v2703
    %v2709 = vadd.f32 %v2673, %v2703
    %v2710 = vadd.f32 %v2674, %v2703
    %v2711 = vadd.f32 %v2675, %v2703
    %v2712 = vadd.f32 %v2676, %v2703
    %v2713 = vadd.f32 %v2677, %v2703
    %v2714 = vadd.f32 %v2678, %v2703
    %v2715 = vadd.f32 %v2679, %v2703
    %v2716 = vadd.f32 %v2680, %v2703
    %v2717 = vadd.f32 %v2681, %v2703
    %v2718 = vadd.f32 %v2682, %v2703
    %v2719 = vadd.f32 %v2683, %v2703
    %v2720 = vadd.f32 %v2684, %v2703
    %v2721 = vadd.f32 %v2685, %v2703
    %v2722 = vadd.f32 %v2686, %v2703
    %v2723 = vadd.f32 %v2687, %v2703
    %v2724 = vadd.f32 %v2688, %v2703
    %v2725 = vadd.f32 %v2689, %v2703
    %v2726 = vadd.f32 %v2690, %v2703
    %v2727 = vadd.f32 %v2691, %v2703
    %v2728 = vadd.f32 %v2692, %v2703
    %v2729 = vadd.f32 %v2693, %v2703
    %v2730 = vadd.f32 %v2694, %v2703
    %v2731 = vadd.f32 %v2695, %v2703
    %v2732 = vadd.f32 %v2696, %v2703
    %v2733 = vadd.f32 %v2697, %v2703
    %v2734 = vadd.f32 %v2698, %v2703
    %v2735 = vadd.f32 %v2699, %v2703
    %v2736 = vadd.f32 %v2700, %v2703
    %v2737 = vmax.f32 %v2705, 0.0
    %v2738 = vmax.f32 %v2706, 0.0
    %v2739 = vmax.f32 %v2707, 0.0
    %v2740 = vmax.f32 %v2708, 0.0
    %v2741 = vmax.f32 %v2709, 0.0
    %v2742 = vmax.f32 %v2710, 0.0
    %v2743 = vmax.f32 %v2711, 0.0
    %v2744 = vmax.f32 %v2712, 0.0
    %v2745 = vmax.f32 %v2713, 0.0
    %v2746 = vmax.f32 %v2714, 0.0
    %v2747 = vmax.f32 %v2715, 0.0
    %v2748 = vmax.f32 %v2716, 0.0
    %v2749 = vmax.f32 %v2717, 0.0
    %v2750 = vmax.f32 %v2718, 0.0
    %v2751 = vmax.f32 %v2719, 0.0
    %v2752 = vmax.f32 %v2720, 0.0
    %v2753 = vmax.f32 %v2721, 0.0
    %v2754 = vmax.f32 %v2722, 0.0
    %v2755 = vmax.f32 %v2723, 0.0
    %v2756 = vmax.f32 %v2724, 0.0
    %v2757 = vmax.f32 %v2725, 0.0
    %v2758 = vmax.f32 %v2726, 0.0
    %v2759 = vmax.f32 %v2727, 0.0
    %v2760 = vmax.f32 %v2728, 0.0
    %v2761 = vmax.f32 %v2729, 0.0
    %v2762 = vmax.f32 %v2730, 0.0
    %v2763 = vmax.f32 %v2731, 0.0
    %v2764 = vmax.f32 %v2732, 0.0
    %v2765 = vmax.f32 %v2733, 0.0
    %v2766 = vmax.f32 %v2734, 0.0
    %v2767 = vmax.f32 %v2735, 0.0
    %v2768 = vmax.f32 %v2736, 0.0
    %2769 = vst.msk [vmem:[#allocation2 + $0x48] sm:$0xff] %vm43, %v2737
    %2770 = vst.msk [vmem:[#allocation2 + $0x50] sm:$0xff] %vm43, %v2738
    %2771 = vst.msk [vmem:[#allocation2 + $0x58] sm:$0xff] %vm43, %v2739
    %2772 = vst.msk [vmem:[#allocation2 + $0x60] sm:$0xff] %vm43, %v2740
    %2773 = vst.msk [vmem:[#allocation2 + $0x68] sm:$0xff] %vm43, %v2741
    %2774 = vst.msk [vmem:[#allocation2 + $0x70] sm:$0xff] %vm43, %v2742
    %2775 = vst.msk [vmem:[#allocation2 + $0x78] sm:$0xff] %vm43, %v2743
    %2776 = vst.msk [vmem:[#allocation2 + $0x80] sm:$0xff] %vm43, %v2744
    %2777 = vst.msk [vmem:[#allocation2 + $0x88] sm:$0xff] %vm43, %v2745
    %2778 = vst.msk [vmem:[#allocation2 + $0x90] sm:$0xff] %vm43, %v2746
    %2779 = vst.msk [vmem:[#allocation2 + $0x98] sm:$0xff] %vm43, %v2747
    %2780 = vst.msk [vmem:[#allocation2 + $0xa0] sm:$0xff] %vm43, %v2748
    %2781 = vst.msk [vmem:[#allocation2 + $0xa8] sm:$0xff] %vm43, %v2749
    %2782 = vst.msk [vmem:[#allocation2 + $0xb0] sm:$0xff] %vm43, %v2750
    %2783 = vst.msk [vmem:[#allocation2 + $0xb8] sm:$0xff] %vm43, %v2751
    %2784 = vst.msk [vmem:[#allocation2 + $0xc0] sm:$0xff] %vm43, %v2752
    %2785 = vst.msk [vmem:[#allocation2 + $0xc8] sm:$0xff] %vm43, %v2753
    %2786 = vst.msk [vmem:[#allocation2 + $0xd0] sm:$0xff] %vm43, %v2754
    %2787 = vst.msk [vmem:[#allocation2 + $0xd8] sm:$0xff] %vm43, %v2755
    %2788 = vst.msk [vmem:[#allocation2 + $0xe0] sm:$0xff] %vm43, %v2756
    %2789 = vst.msk [vmem:[#allocation2 + $0xe8] sm:$0xff] %vm43, %v2757
    %2790 = vst.msk [vmem:[#allocation2 + $0xf0] sm:$0xff] %vm43, %v2758
    %2791 = vst.msk [vmem:[#allocation2 + $0xf8] sm:$0xff] %vm43, %v2759
    %2792 = vst.msk [vmem:[#allocation2 + $0x100] sm:$0xff] %vm43, %v2760
    %2793 = vst.msk [vmem:[#allocation2 + $0x108] sm:$0xff] %vm43, %v2761
    %2794 = vst.msk [vmem:[#allocation2 + $0x110] sm:$0xff] %vm43, %v2762
    %2795 = vst.msk [vmem:[#allocation2 + $0x118] sm:$0xff] %vm43, %v2763
    %2796 = vst.msk [vmem:[#allocation2 + $0x120] sm:$0xff] %vm43, %v2764
    %2797 = vst.msk [vmem:[#allocation2 + $0x128] sm:$0xff] %vm43, %v2765
    %2798 = vst.msk [vmem:[#allocation2 + $0x130] sm:$0xff] %vm43, %v2766
    %2799 = vst.msk [vmem:[#allocation2 + $0x138] sm:$0xff] %vm43, %v2767
    %2800 = vst.msk [vmem:[#allocation2 + $0x140] sm:$0xff] %vm43, %v2768
    %v2801 = vld [vmem:[#allocation2 + $0x48] sm:$0xff]
    %v2802 = vld [vmem:[#allocation2 + $0x50] sm:$0xff]
    %v2803 = vld [vmem:[#allocation2 + $0x58] sm:$0xff]
    %v2804 = vld [vmem:[#allocation2 + $0x60] sm:$0xff]
    %v2805 = vld [vmem:[#allocation2 + $0x68] sm:$0xff]
    %v2806 = vld [vmem:[#allocation2 + $0x70] sm:$0xff]
    %v2807 = vld [vmem:[#allocation2 + $0x78] sm:$0xff]
    %v2808 = vld [vmem:[#allocation2 + $0x80] sm:$0xff]
    %v2809 = vld [vmem:[#allocation2 + $0x88] sm:$0xff]
    %v2810 = vld [vmem:[#allocation2 + $0x90] sm:$0xff]
    %v2811 = vld [vmem:[#allocation2 + $0x98] sm:$0xff]
    %v2812 = vld [vmem:[#allocation2 + $0xa0] sm:$0xff]
    %v2813 = vld [vmem:[#allocation2 + $0xa8] sm:$0xff]
    %v2814 = vld [vmem:[#allocation2 + $0xb0] sm:$0xff]
    %v2815 = vld [vmem:[#allocation2 + $0xb8] sm:$0xff]
    %v2816 = vld [vmem:[#allocation2 + $0xc0] sm:$0xff]
    %v2817 = vld [vmem:[#allocation2 + $0xc8] sm:$0xff]
    %v2818 = vld [vmem:[#allocation2 + $0xd0] sm:$0xff]
    %v2819 = vld [vmem:[#allocation2 + $0xd8] sm:$0xff]
    %v2820 = vld [vmem:[#allocation2 + $0xe0] sm:$0xff]
    %v2821 = vld [vmem:[#allocation2 + $0xe8] sm:$0xff]
    %v2822 = vld [vmem:[#allocation2 + $0xf0] sm:$0xff]
    %v2823 = vld [vmem:[#allocation2 + $0xf8] sm:$0xff]
    %v2824 = vld [vmem:[#allocation2 + $0x100] sm:$0xff]
    %v2825 = vld [vmem:[#allocation2 + $0x108] sm:$0xff]
    %v2826 = vld [vmem:[#allocation2 + $0x110] sm:$0xff]
    %v2827 = vld [vmem:[#allocation2 + $0x118] sm:$0xff]
    %v2828 = vld [vmem:[#allocation2 + $0x120] sm:$0xff]
    %v2829 = vld [vmem:[#allocation2 + $0x128] sm:$0xff]
    %v2830 = vld [vmem:[#allocation2 + $0x130] sm:$0xff]
    %v2831 = vld [vmem:[#allocation2 + $0x138] sm:$0xff]
    %v2832 = vld [vmem:[#allocation2 + $0x140] sm:$0xff]
    %v2833 = vld [vmem:[#allocation2 + $0x49] sm:$0xff]
    %v2834 = vld [vmem:[#allocation2 + $0x51] sm:$0xff]
    %v2835 = vld [vmem:[#allocation2 + $0x59] sm:$0xff]
    %v2836 = vld [vmem:[#allocation2 + $0x61] sm:$0xff]
    %v2837 = vld [vmem:[#allocation2 + $0x69] sm:$0xff]
    %v2838 = vld [vmem:[#allocation2 + $0x71] sm:$0xff]
    %v2839 = vld [vmem:[#allocation2 + $0x79] sm:$0xff]
    %v2840 = vld [vmem:[#allocation2 + $0x81] sm:$0xff]
    %v2841 = vld [vmem:[#allocation2 + $0x89] sm:$0xff]
    %v2842 = vld [vmem:[#allocation2 + $0x91] sm:$0xff]
    %v2843 = vld [vmem:[#allocation2 + $0x99] sm:$0xff]
    %v2844 = vld [vmem:[#allocation2 + $0xa1] sm:$0xff]
    %v2845 = vld [vmem:[#allocation2 + $0xa9] sm:$0xff]
    %v2846 = vld [vmem:[#allocation2 + $0xb1] sm:$0xff]
    %v2847 = vld [vmem:[#allocation2 + $0xb9] sm:$0xff]
    %v2848 = vld [vmem:[#allocation2 + $0xc1] sm:$0xff]
    %v2849 = vld [vmem:[#allocation2 + $0xc9] sm:$0xff]
    %v2850 = vld [vmem:[#allocation2 + $0xd1] sm:$0xff]
    %v2851 = vld [vmem:[#allocation2 + $0xd9] sm:$0xff]
    %v2852 = vld [vmem:[#allocation2 + $0xe1] sm:$0xff]
    %v2853 = vld [vmem:[#allocation2 + $0xe9] sm:$0xff]
    %v2854 = vld [vmem:[#allocation2 + $0xf1] sm:$0xff]
    %v2855 = vld [vmem:[#allocation2 + $0xf9] sm:$0xff]
    %v2856 = vld [vmem:[#allocation2 + $0x101] sm:$0xff]
    %v2857 = vld [vmem:[#allocation2 + $0x109] sm:$0xff]
    %v2858 = vld [vmem:[#allocation2 + $0x111] sm:$0xff]
    %v2859 = vld [vmem:[#allocation2 + $0x119] sm:$0xff]
    %v2860 = vld [vmem:[#allocation2 + $0x121] sm:$0xff]
    %v2861 = vld [vmem:[#allocation2 + $0x129] sm:$0xff]
    %v2862 = vld [vmem:[#allocation2 + $0x131] sm:$0xff]
    %v2863 = vld [vmem:[#allocation2 + $0x139] sm:$0xff]
    %v2864 = vld [vmem:[#allocation2 + $0x141] sm:$0xff]
    %v2865 = vmax.f32 %v2801, %v2833
    %v2866 = vmax.f32 %v2802, %v2834
    %v2867 = vmax.f32 %v2803, %v2835
    %v2868 = vmax.f32 %v2804, %v2836
    %v2869 = vmax.f32 %v2805, %v2837
    %v2870 = vmax.f32 %v2806, %v2838
    %v2871 = vmax.f32 %v2807, %v2839
    %v2872 = vmax.f32 %v2808, %v2840
    %v2873 = vmax.f32 %v2809, %v2841
    %v2874 = vmax.f32 %v2810, %v2842
    %v2875 = vmax.f32 %v2811, %v2843
    %v2876 = vmax.f32 %v2812, %v2844
    %v2877 = vmax.f32 %v2813, %v2845
    %v2878 = vmax.f32 %v2814, %v2846
    %v2879 = vmax.f32 %v2815, %v2847
    %v2880 = vmax.f32 %v2816, %v2848
    %v2881 = vmax.f32 %v2817, %v2849
    %v2882 = vmax.f32 %v2818, %v2850
    %v2883 = vmax.f32 %v2819, %v2851
    %v2884 = vmax.f32 %v2820, %v2852
    %v2885 = vmax.f32 %v2821, %v2853
    %v2886 = vmax.f32 %v2822, %v2854
    %v2887 = vmax.f32 %v2823, %v2855
    %v2888 = vmax.f32 %v2824, %v2856
    %v2889 = vmax.f32 %v2825, %v2857
    %v2890 = vmax.f32 %v2826, %v2858
    %v2891 = vmax.f32 %v2827, %v2859
    %v2892 = vmax.f32 %v2828, %v2860
    %v2893 = vmax.f32 %v2829, %v2861
    %v2894 = vmax.f32 %v2830, %v2862
    %v2895 = vmax.f32 %v2831, %v2863
    %v2896 = vmax.f32 %v2832, %v2864
    %v2897 = vld [vmem:[#allocation2 + $0x148] sm:$0xff]
    %v2898 = vld [vmem:[#allocation2 + $0x150] sm:$0xff]
    %v2899 = vmax.f32 %v2865, %v2803
    %v2900 = vmax.f32 %v2866, %v2804
    %v2901 = vmax.f32 %v2867, %v2805
    %v2902 = vmax.f32 %v2868, %v2806
    %v2903 = vmax.f32 %v2869, %v2807
    %v2904 = vmax.f32 %v2870, %v2808
    %v2905 = vmax.f32 %v2871, %v2809
    %v2906 = vmax.f32 %v2872, %v2810
    %v2907 = vmax.f32 %v2873, %v2811
    %v2908 = vmax.f32 %v2874, %v2812
    %v2909 = vmax.f32 %v2875, %v2813
    %v2910 = vmax.f32 %v2876, %v2814
    %v2911 = vmax.f32 %v2877, %v2815
    %v2912 = vmax.f32 %v2878, %v2816
    %v2913 = vmax.f32 %v2879, %v2817
    %v2914 = vmax.f32 %v2880, %v2818
    %v2915 = vmax.f32 %v2881, %v2819
    %v2916 = vmax.f32 %v2882, %v2820
    %v2917 = vmax.f32 %v2883, %v2821
    %v2918 = vmax.f32 %v2884, %v2822
    %v2919 = vmax.f32 %v2885, %v2823
    %v2920 = vmax.f32 %v2886, %v2824
    %v2921 = vmax.f32 %v2887, %v2825
    %v2922 = vmax.f32 %v2888, %v2826
    %v2923 = vmax.f32 %v2889, %v2827
    %v2924 = vmax.f32 %v2890, %v2828
    %v2925 = vmax.f32 %v2891, %v2829
    %v2926 = vmax.f32 %v2892, %v2830
    %v2927 = vmax.f32 %v2893, %v2831
    %v2928 = vmax.f32 %v2894, %v2832
    %v2929 = vmax.f32 %v2895, %v2897
    %v2930 = vmax.f32 %v2896, %v2898
    %v2931 = vld [vmem:[#allocation2 + $0x149] sm:$0xff]
    %v2932 = vld [vmem:[#allocation2 + $0x151] sm:$0xff]
    %v2933 = vmax.f32 %v2899, %v2835
    %v2934 = vmax.f32 %v2900, %v2836
    %v2935 = vmax.f32 %v2901, %v2837
    %v2936 = vmax.f32 %v2902, %v2838
    %v2937 = vmax.f32 %v2903, %v2839
    %v2938 = vmax.f32 %v2904, %v2840
    %v2939 = vmax.f32 %v2905, %v2841
    %v2940 = vmax.f32 %v2906, %v2842
    %v2941 = vmax.f32 %v2907, %v2843
    %v2942 = vmax.f32 %v2908, %v2844
    %v2943 = vmax.f32 %v2909, %v2845
    %v2944 = vmax.f32 %v2910, %v2846
    %v2945 = vmax.f32 %v2911, %v2847
    %v2946 = vmax.f32 %v2912, %v2848
    %v2947 = vmax.f32 %v2913, %v2849
    %v2948 = vmax.f32 %v2914, %v2850
    %v2949 = vmax.f32 %v2915, %v2851
    %v2950 = vmax.f32 %v2916, %v2852
    %v2951 = vmax.f32 %v2917, %v2853
    %v2952 = vmax.f32 %v2918, %v2854
    %v2953 = vmax.f32 %v2919, %v2855
    %v2954 = vmax.f32 %v2920, %v2856
    %v2955 = vmax.f32 %v2921, %v2857
    %v2956 = vmax.f32 %v2922, %v2858
    %v2957 = vmax.f32 %v2923, %v2859
    %v2958 = vmax.f32 %v2924, %v2860
    %v2959 = vmax.f32 %v2925, %v2861
    %v2960 = vmax.f32 %v2926, %v2862
    %v2961 = vmax.f32 %v2927, %v2863
    %v2962 = vmax.f32 %v2928, %v2864
    %v2963 = vmax.f32 %v2929, %v2931
    %v2964 = vmax.f32 %v2930, %v2932
    %2965 = vst.msk [vmem:[#allocation2 + $0x48] sm:$0xff] %vm43, %v2933
    %2966 = vst.msk [vmem:[#allocation2 + $0x50] sm:$0xff] %vm43, %v2934
    %2967 = vst.msk [vmem:[#allocation2 + $0x58] sm:$0xff] %vm43, %v2935
    %2968 = vst.msk [vmem:[#allocation2 + $0x60] sm:$0xff] %vm43, %v2936
    %2969 = vst.msk [vmem:[#allocation2 + $0x68] sm:$0xff] %vm43, %v2937
    %2970 = vst.msk [vmem:[#allocation2 + $0x70] sm:$0xff] %vm43, %v2938
    %2971 = vst.msk [vmem:[#allocation2 + $0x78] sm:$0xff] %vm43, %v2939
    %2972 = vst.msk [vmem:[#allocation2 + $0x80] sm:$0xff] %vm43, %v2940
    %2973 = vst.msk [vmem:[#allocation2 + $0x88] sm:$0xff] %vm43, %v2941
    %2974 = vst.msk [vmem:[#allocation2 + $0x90] sm:$0xff] %vm43, %v2942
    %2975 = vst.msk [vmem:[#allocation2 + $0x98] sm:$0xff] %vm43, %v2943
    %2976 = vst.msk [vmem:[#allocation2 + $0xa0] sm:$0xff] %vm43, %v2944
    %2977 = vst.msk [vmem:[#allocation2 + $0xa8] sm:$0xff] %vm43, %v2945
    %2978 = vst.msk [vmem:[#allocation2 + $0xb0] sm:$0xff] %vm43, %v2946
    %2979 = vst.msk [vmem:[#allocation2 + $0xb8] sm:$0xff] %vm43, %v2947
    %2980 = vst.msk [vmem:[#allocation2 + $0xc0] sm:$0xff] %vm43, %v2948
    %2981 = vst.msk [vmem:[#allocation2 + $0xc8] sm:$0xff] %vm43, %v2949
    %2982 = vst.msk [vmem:[#allocation2 + $0xd0] sm:$0xff] %vm43, %v2950
    %2983 = vst.msk [vmem:[#allocation2 + $0xd8] sm:$0xff] %vm43, %v2951
    %2984 = vst.msk [vmem:[#allocation2 + $0xe0] sm:$0xff] %vm43, %v2952
    %2985 = vst.msk [vmem:[#allocation2 + $0xe8] sm:$0xff] %vm43, %v2953
    %2986 = vst.msk [vmem:[#allocation2 + $0xf0] sm:$0xff] %vm43, %v2954
    %2987 = vst.msk [vmem:[#allocation2 + $0xf8] sm:$0xff] %vm43, %v2955
    %2988 = vst.msk [vmem:[#allocation2 + $0x100] sm:$0xff] %vm43, %v2956
    %2989 = vst.msk [vmem:[#allocation2 + $0x108] sm:$0xff] %vm43, %v2957
    %2990 = vst.msk [vmem:[#allocation2 + $0x110] sm:$0xff] %vm43, %v2958
    %2991 = vst.msk [vmem:[#allocation2 + $0x118] sm:$0xff] %vm43, %v2959
    %2992 = vst.msk [vmem:[#allocation2 + $0x120] sm:$0xff] %vm43, %v2960
    %2993 = vst.msk [vmem:[#allocation2 + $0x128] sm:$0xff] %vm43, %v2961
    %2994 = vst.msk [vmem:[#allocation2 + $0x130] sm:$0xff] %vm43, %v2962
    %2995 = vst.msk [vmem:[#allocation2 + $0x138] sm:$0xff] %vm43, %v2963
    %2996 = vst.msk [vmem:[#allocation2 + $0x140] sm:$0xff] %vm43, %v2964
    %vm2997 = vcmp.ge.s32.totalorder %v94, 2
    %vm2998 = vcmp.ge.s32.totalorder %v95, 2
    %vm2999 = vcmp.ge.s32.totalorder %v96, 2
    %vm3000 = vcmp.ge.s32.totalorder %v97, 2
    %vm3001 = vcmp.ge.s32.totalorder %v98, 2
    %vm3002 = vcmp.ge.s32.totalorder %v99, 2
    %vm3003 = vcmp.ge.s32.totalorder %v100, 2
    %vm3004 = vcmp.ge.s32.totalorder %v101, 2
    %vm3005 = vcmp.ge.s32.totalorder %v102, 2
    %vm3006 = vcmp.ge.s32.totalorder %v103, 2
    %vm3007 = vcmp.ge.s32.totalorder %v104, 2
    %vm3008 = vcmp.ge.s32.totalorder %v105, 2
    %vm3009 = vcmp.ge.s32.totalorder %v106, 2
    %vm3010 = vcmp.ge.s32.totalorder %v107, 2
    %vm3011 = vcmp.ge.s32.totalorder %v108, 2
    %vm3012 = vcmp.ge.s32.totalorder %v109, 2
    %vm3013 = vcmp.ge.s32.totalorder %v110, 2
    %vm3014 = vcmp.ge.s32.totalorder %v111, 2
    %vm3015 = vcmp.ge.s32.totalorder %v112, 2
    %vm3016 = vcmp.ge.s32.totalorder %v113, 2
    %vm3017 = vcmp.ge.s32.totalorder %v114, 2
    %vm3018 = vcmp.ge.s32.totalorder %v115, 2
    %vm3019 = vcmp.ge.s32.totalorder %v116, 2
    %vm3020 = vcmp.ge.s32.totalorder %v117, 2
    %vm3021 = vcmp.ge.s32.totalorder %v118, 2
    %vm3022 = vcmp.ge.s32.totalorder %v119, 2
    %vm3023 = vcmp.ge.s32.totalorder %v120, 2
    %vm3024 = vcmp.ge.s32.totalorder %v121, 2
    %vm3025 = vcmp.ge.s32.totalorder %v122, 2
    %vm3026 = vcmp.ge.s32.totalorder %v123, 2
    %vm3027 = vcmp.ge.s32.totalorder %v124, 2
    %vm3028 = vcmp.ge.s32.totalorder %v125, 2
    %vm3029 = vcmp.lt.s32.totalorder %v94, 14
    %vm3030 = vcmp.lt.s32.totalorder %v95, 14
    %vm3031 = vcmp.lt.s32.totalorder %v96, 14
    %vm3032 = vcmp.lt.s32.totalorder %v97, 14
    %vm3033 = vcmp.lt.s32.totalorder %v98, 14
    %vm3034 = vcmp.lt.s32.totalorder %v99, 14
    %vm3035 = vcmp.lt.s32.totalorder %v100, 14
    %vm3036 = vcmp.lt.s32.totalorder %v101, 14
    %vm3037 = vcmp.lt.s32.totalorder %v102, 14
    %vm3038 = vcmp.lt.s32.totalorder %v103, 14
    %vm3039 = vcmp.lt.s32.totalorder %v104, 14
    %vm3040 = vcmp.lt.s32.totalorder %v105, 14
    %vm3041 = vcmp.lt.s32.totalorder %v106, 14
    %vm3042 = vcmp.lt.s32.totalorder %v107, 14
    %vm3043 = vcmp.lt.s32.totalorder %v108, 14
    %vm3044 = vcmp.lt.s32.totalorder %v109, 14
    %vm3045 = vcmp.lt.s32.totalorder %v110, 14
    %vm3046 = vcmp.lt.s32.totalorder %v111, 14
    %vm3047 = vcmp.lt.s32.totalorder %v112, 14
    %vm3048 = vcmp.lt.s32.totalorder %v113, 14
    %vm3049 = vcmp.lt.s32.totalorder %v114, 14
    %vm3050 = vcmp.lt.s32.totalorder %v115, 14
    %vm3051 = vcmp.lt.s32.totalorder %v116, 14
    %vm3052 = vcmp.lt.s32.totalorder %v117, 14
    %vm3053 = vcmp.lt.s32.totalorder %v118, 14
    %vm3054 = vcmp.lt.s32.totalorder %v119, 14
    %vm3055 = vcmp.lt.s32.totalorder %v120, 14
    %vm3056 = vcmp.lt.s32.totalorder %v121, 14
    %vm3057 = vcmp.lt.s32.totalorder %v122, 14
    %vm3058 = vcmp.lt.s32.totalorder %v123, 14
    %vm3059 = vcmp.lt.s32.totalorder %v124, 14
    %vm3060 = vcmp.lt.s32.totalorder %v125, 14
    %v3061 = vld [vmem:[#allocation2 + $0x26] sm:$0xff]
    %v3062 = vld [vmem:[#allocation2 + $0x2e] sm:$0xff]
    %v3063 = vld [vmem:[#allocation2 + $0x36] sm:$0xff]
    %v3064 = vld [vmem:[#allocation2 + $0x3e] sm:$0xff]
    %v3065 = vld [vmem:[#allocation2 + $0x46] sm:$0xff]
    %v3066 = vld [vmem:[#allocation2 + $0x4e] sm:$0xff]
    %v3067 = vld [vmem:[#allocation2 + $0x56] sm:$0xff]
    %v3068 = vld [vmem:[#allocation2 + $0x5e] sm:$0xff]
    %v3069 = vld [vmem:[#allocation2 + $0x66] sm:$0xff]
    %v3070 = vld [vmem:[#allocation2 + $0x6e] sm:$0xff]
    %v3071 = vld [vmem:[#allocation2 + $0x76] sm:$0xff]
    %v3072 = vld [vmem:[#allocation2 + $0x7e] sm:$0xff]
    %v3073 = vld [vmem:[#allocation2 + $0x86] sm:$0xff]
    %v3074 = vld [vmem:[#allocation2 + $0x8e] sm:$0xff]
    %v3075 = vld [vmem:[#allocation2 + $0x96] sm:$0xff]
    %v3076 = vld [vmem:[#allocation2 + $0x9e] sm:$0xff]
    %v3077 = vld [vmem:[#allocation2 + $0xa6] sm:$0xff]
    %v3078 = vld [vmem:[#allocation2 + $0xae] sm:$0xff]
    %v3079 = vld [vmem:[#allocation2 + $0xb6] sm:$0xff]
    %v3080 = vld [vmem:[#allocation2 + $0xbe] sm:$0xff]
    %v3081 = vld [vmem:[#allocation2 + $0xc6] sm:$0xff]
    %v3082 = vld [vmem:[#allocation2 + $0xce] sm:$0xff]
    %v3083 = vld [vmem:[#allocation2 + $0xd6] sm:$0xff]
    %v3084 = vld [vmem:[#allocation2 + $0xde] sm:$0xff]
    %v3085 = vld [vmem:[#allocation2 + $0xe6] sm:$0xff]
    %v3086 = vld [vmem:[#allocation2 + $0xee] sm:$0xff]
    %v3087 = vld [vmem:[#allocation2 + $0xf6] sm:$0xff]
    %v3088 = vld [vmem:[#allocation2 + $0xfe] sm:$0xff]
    %v3089 = vld [vmem:[#allocation2 + $0x106] sm:$0xff]
    %v3090 = vld [vmem:[#allocation2 + $0x10e] sm:$0xff]
    %v3091 = vld [vmem:[#allocation2 + $0x116] sm:$0xff]
    %v3092 = vld [vmem:[#allocation2 + $0x11e] sm:$0xff]
    %v3093 = vsel %vm2997, 1, 0
    %v3094 = vsel %vm2998, 1, 0
    %v3095 = vsel %vm2999, 1, 0
    %v3096 = vsel %vm3000, 1, 0
    %v3097 = vsel %vm3001, 1, 0
    %v3098 = vsel %vm3002, 1, 0
    %v3099 = vsel %vm3003, 1, 0
    %v3100 = vsel %vm3004, 1, 0
    %v3101 = vsel %vm3005, 1, 0
    %v3102 = vsel %vm3006, 1, 0
    %v3103 = vsel %vm3007, 1, 0
    %v3104 = vsel %vm3008, 1, 0
    %v3105 = vsel %vm3009, 1, 0
    %v3106 = vsel %vm3010, 1, 0
    %v3107 = vsel %vm3011, 1, 0
    %v3108 = vsel %vm3012, 1, 0
    %v3109 = vsel %vm3013, 1, 0
    %v3110 = vsel %vm3014, 1, 0
    %v3111 = vsel %vm3015, 1, 0
    %v3112 = vsel %vm3016, 1, 0
    %v3113 = vsel %vm3017, 1, 0
    %v3114 = vsel %vm3018, 1, 0
    %v3115 = vsel %vm3019, 1, 0
    %v3116 = vsel %vm3020, 1, 0
    %v3117 = vsel %vm3021, 1, 0
    %v3118 = vsel %vm3022, 1, 0
    %v3119 = vsel %vm3023, 1, 0
    %v3120 = vsel %vm3024, 1, 0
    %v3121 = vsel %vm3025, 1, 0
    %v3122 = vsel %vm3026, 1, 0
    %v3123 = vsel %vm3027, 1, 0
    %v3124 = vsel %vm3028, 1, 0
    %3125 = vset.pattern.permute.xlu0 0
    %3126 = vperm.xlu0 %3125, %v3093
    %v3127 = vpop.permute.xlu0 %3126
    %3128 = vset.pattern.permute.xlu0 0
    %3129 = vperm.xlu0 %3128, %v3094
    %v3130 = vpop.permute.xlu0 %3129
    %3131 = vset.pattern.permute.xlu0 0
    %3132 = vperm.xlu0 %3131, %v3095
    %v3133 = vpop.permute.xlu0 %3132
    %3134 = vset.pattern.permute.xlu0 0
    %3135 = vperm.xlu0 %3134, %v3096
    %v3136 = vpop.permute.xlu0 %3135
    %3137 = vset.pattern.permute.xlu0 0
    %3138 = vperm.xlu0 %3137, %v3097
    %v3139 = vpop.permute.xlu0 %3138
    %3140 = vset.pattern.permute.xlu0 0
    %3141 = vperm.xlu0 %3140, %v3098
    %v3142 = vpop.permute.xlu0 %3141
    %3143 = vset.pattern.permute.xlu0 0
    %3144 = vperm.xlu0 %3143, %v3099
    %v3145 = vpop.permute.xlu0 %3144
    %3146 = vset.pattern.permute.xlu0 0
    %3147 = vperm.xlu0 %3146, %v3100
    %v3148 = vpop.permute.xlu0 %3147
    %3149 = vset.pattern.permute.xlu0 0
    %3150 = vperm.xlu0 %3149, %v3101
    %v3151 = vpop.permute.xlu0 %3150
    %3152 = vset.pattern.permute.xlu0 0
    %3153 = vperm.xlu0 %3152, %v3102
    %v3154 = vpop.permute.xlu0 %3153
    %3155 = vset.pattern.permute.xlu0 0
    %3156 = vperm.xlu0 %3155, %v3103
    %v3157 = vpop.permute.xlu0 %3156
    %3158 = vset.pattern.permute.xlu0 0
    %3159 = vperm.xlu0 %3158, %v3104
    %v3160 = vpop.permute.xlu0 %3159
    %3161 = vset.pattern.permute.xlu0 0
    %3162 = vperm.xlu0 %3161, %v3105
    %v3163 = vpop.permute.xlu0 %3162
    %3164 = vset.pattern.permute.xlu0 0
    %3165 = vperm.xlu0 %3164, %v3106
    %v3166 = vpop.permute.xlu0 %3165
    %3167 = vset.pattern.permute.xlu0 0
    %3168 = vperm.xlu0 %3167, %v3107
    %v3169 = vpop.permute.xlu0 %3168
    %3170 = vset.pattern.permute.xlu0 0
    %3171 = vperm.xlu0 %3170, %v3108
    %v3172 = vpop.permute.xlu0 %3171
    %3173 = vset.pattern.permute.xlu0 0
    %3174 = vperm.xlu0 %3173, %v3109
    %v3175 = vpop.permute.xlu0 %3174
    %3176 = vset.pattern.permute.xlu0 0
    %3177 = vperm.xlu0 %3176, %v3110
    %v3178 = vpop.permute.xlu0 %3177
    %3179 = vset.pattern.permute.xlu0 0
    %3180 = vperm.xlu0 %3179, %v3111
    %v3181 = vpop.permute.xlu0 %3180
    %3182 = vset.pattern.permute.xlu0 0
    %3183 = vperm.xlu0 %3182, %v3112
    %v3184 = vpop.permute.xlu0 %3183
    %3185 = vset.pattern.permute.xlu0 0
    %3186 = vperm.xlu0 %3185, %v3113
    %v3187 = vpop.permute.xlu0 %3186
    %3188 = vset.pattern.permute.xlu0 0
    %3189 = vperm.xlu0 %3188, %v3114
    %v3190 = vpop.permute.xlu0 %3189
    %3191 = vset.pattern.permute.xlu0 0
    %3192 = vperm.xlu0 %3191, %v3115
    %v3193 = vpop.permute.xlu0 %3192
    %3194 = vset.pattern.permute.xlu0 0
    %3195 = vperm.xlu0 %3194, %v3116
    %v3196 = vpop.permute.xlu0 %3195
    %3197 = vset.pattern.permute.xlu0 0
    %3198 = vperm.xlu0 %3197, %v3117
    %v3199 = vpop.permute.xlu0 %3198
    %3200 = vset.pattern.permute.xlu0 0
    %3201 = vperm.xlu0 %3200, %v3118
    %v3202 = vpop.permute.xlu0 %3201
    %3203 = vset.pattern.permute.xlu0 0
    %3204 = vperm.xlu0 %3203, %v3119
    %v3205 = vpop.permute.xlu0 %3204
    %3206 = vset.pattern.permute.xlu0 0
    %3207 = vperm.xlu0 %3206, %v3120
    %v3208 = vpop.permute.xlu0 %3207
    %3209 = vset.pattern.permute.xlu0 0
    %3210 = vperm.xlu0 %3209, %v3121
    %v3211 = vpop.permute.xlu0 %3210
    %3212 = vset.pattern.permute.xlu0 0
    %3213 = vperm.xlu0 %3212, %v3122
    %v3214 = vpop.permute.xlu0 %3213
    %3215 = vset.pattern.permute.xlu0 0
    %3216 = vperm.xlu0 %3215, %v3123
    %v3217 = vpop.permute.xlu0 %3216
    %3218 = vset.pattern.permute.xlu0 0
    %3219 = vperm.xlu0 %3218, %v3124
    %v3220 = vpop.permute.xlu0 %3219
    %vm3221 = vcmp.eq.s32.totalorder %v3127, 1
    %vm3222 = vcmp.eq.s32.totalorder %v3130, 1
    %vm3223 = vcmp.eq.s32.totalorder %v3133, 1
    %vm3224 = vcmp.eq.s32.totalorder %v3136, 1
    %vm3225 = vcmp.eq.s32.totalorder %v3139, 1
    %vm3226 = vcmp.eq.s32.totalorder %v3142, 1
    %vm3227 = vcmp.eq.s32.totalorder %v3145, 1
    %vm3228 = vcmp.eq.s32.totalorder %v3148, 1
    %vm3229 = vcmp.eq.s32.totalorder %v3151, 1
    %vm3230 = vcmp.eq.s32.totalorder %v3154, 1
    %vm3231 = vcmp.eq.s32.totalorder %v3157, 1
    %vm3232 = vcmp.eq.s32.totalorder %v3160, 1
    %vm3233 = vcmp.eq.s32.totalorder %v3163, 1
    %vm3234 = vcmp.eq.s32.totalorder %v3166, 1
    %vm3235 = vcmp.eq.s32.totalorder %v3169, 1
    %vm3236 = vcmp.eq.s32.totalorder %v3172, 1
    %vm3237 = vcmp.eq.s32.totalorder %v3175, 1
    %vm3238 = vcmp.eq.s32.totalorder %v3178, 1
    %vm3239 = vcmp.eq.s32.totalorder %v3181, 1
    %vm3240 = vcmp.eq.s32.totalorder %v3184, 1
    %vm3241 = vcmp.eq.s32.totalorder %v3187, 1
    %vm3242 = vcmp.eq.s32.totalorder %v3190, 1
    %vm3243 = vcmp.eq.s32.totalorder %v3193, 1
    %vm3244 = vcmp.eq.s32.totalorder %v3196, 1
    %vm3245 = vcmp.eq.s32.totalorder %v3199, 1
    %vm3246 = vcmp.eq.s32.totalorder %v3202, 1
    %vm3247 = vcmp.eq.s32.totalorder %v3205, 1
    %vm3248 = vcmp.eq.s32.totalorder %v3208, 1
    %vm3249 = vcmp.eq.s32.totalorder %v3211, 1
    %vm3250 = vcmp.eq.s32.totalorder %v3214, 1
    %vm3251 = vcmp.eq.s32.totalorder %v3217, 1
    %vm3252 = vcmp.eq.s32.totalorder %v3220, 1
    %v3253 = vsel %vm3221, %v3061, 0.0
    %v3254 = vsel %vm3222, %v3062, 0.0
    %v3255 = vsel %vm3223, %v3063, 0.0
    %v3256 = vsel %vm3224, %v3064, 0.0
    %v3257 = vsel %vm3225, %v3065, 0.0
    %v3258 = vsel %vm3226, %v3066, 0.0
    %v3259 = vsel %vm3227, %v3067, 0.0
    %v3260 = vsel %vm3228, %v3068, 0.0
    %v3261 = vsel %vm3229, %v3069, 0.0
    %v3262 = vsel %vm3230, %v3070, 0.0
    %v3263 = vsel %vm3231, %v3071, 0.0
    %v3264 = vsel %vm3232, %v3072, 0.0
    %v3265 = vsel %vm3233, %v3073, 0.0
    %v3266 = vsel %vm3234, %v3074, 0.0
    %v3267 = vsel %vm3235, %v3075, 0.0
    %v3268 = vsel %vm3236, %v3076, 0.0
    %v3269 = vsel %vm3237, %v3077, 0.0
    %v3270 = vsel %vm3238, %v3078, 0.0
    %v3271 = vsel %vm3239, %v3079, 0.0
    %v3272 = vsel %vm3240, %v3080, 0.0
    %v3273 = vsel %vm3241, %v3081, 0.0
    %v3274 = vsel %vm3242, %v3082, 0.0
    %v3275 = vsel %vm3243, %v3083, 0.0
    %v3276 = vsel %vm3244, %v3084, 0.0
    %v3277 = vsel %vm3245, %v3085, 0.0
    %v3278 = vsel %vm3246, %v3086, 0.0
    %v3279 = vsel %vm3247, %v3087, 0.0
    %v3280 = vsel %vm3248, %v3088, 0.0
    %v3281 = vsel %vm3249, %v3089, 0.0
    %v3282 = vsel %vm3250, %v3090, 0.0
    %v3283 = vsel %vm3251, %v3091, 0.0
    %v3284 = vsel %vm3252, %v3092, 0.0
    %v3285 = vpack.c.bf16 %v3254, %v3253
    %v3286 = vpack.c.bf16 %v3256, %v3255
    %v3287 = vpack.c.bf16 %v3258, %v3257
    %v3288 = vpack.c.bf16 %v3260, %v3259
    %v3289 = vpack.c.bf16 %v3262, %v3261
    %v3290 = vpack.c.bf16 %v3264, %v3263
    %v3291 = vpack.c.bf16 %v3266, %v3265
    %v3292 = vpack.c.bf16 %v3268, %v3267
    %v3293 = vpack.c.bf16 %v3270, %v3269
    %v3294 = vpack.c.bf16 %v3272, %v3271
    %v3295 = vpack.c.bf16 %v3274, %v3273
    %v3296 = vpack.c.bf16 %v3276, %v3275
    %v3297 = vpack.c.bf16 %v3278, %v3277
    %v3298 = vpack.c.bf16 %v3280, %v3279
    %v3299 = vpack.c.bf16 %v3282, %v3281
    %v3300 = vpack.c.bf16 %v3284, %v3283
    %v3301 = vld [vmem:[%s4] sm:$0xf]
    %v3302 = vld [vmem:[%s4 + $0x4] sm:$0xf]
    %v3303 = vld [vmem:[%s4 + $0x8] sm:$0xf]
    %v3304 = vld [vmem:[%s4 + $0xc] sm:$0xf]
    %v3305 = vld [vmem:[#allocation2 + $0x28] sm:$0xff]
    %v3306 = vld [vmem:[#allocation2 + $0x30] sm:$0xff]
    %v3307 = vld [vmem:[#allocation2 + $0x38] sm:$0xff]
    %v3308 = vld [vmem:[#allocation2 + $0x40] sm:$0xff]
    %v3309 = vld [vmem:[#allocation2 + $0x48] sm:$0xff]
    %v3310 = vld [vmem:[#allocation2 + $0x50] sm:$0xff]
    %v3311 = vld [vmem:[#allocation2 + $0x58] sm:$0xff]
    %v3312 = vld [vmem:[#allocation2 + $0x60] sm:$0xff]
    %v3313 = vld [vmem:[#allocation2 + $0x68] sm:$0xff]
    %v3314 = vld [vmem:[#allocation2 + $0x70] sm:$0xff]
    %v3315 = vld [vmem:[#allocation2 + $0x78] sm:$0xff]
    %v3316 = vld [vmem:[#allocation2 + $0x80] sm:$0xff]
    %v3317 = vld [vmem:[#allocation2 + $0x88] sm:$0xff]
    %v3318 = vld [vmem:[#allocation2 + $0x90] sm:$0xff]
    %v3319 = vld [vmem:[#allocation2 + $0x98] sm:$0xff]
    %v3320 = vld [vmem:[#allocation2 + $0xa0] sm:$0xff]
    %v3321 = vld [vmem:[#allocation2 + $0xa8] sm:$0xff]
    %v3322 = vld [vmem:[#allocation2 + $0xb0] sm:$0xff]
    %v3323 = vld [vmem:[#allocation2 + $0xb8] sm:$0xff]
    %v3324 = vld [vmem:[#allocation2 + $0xc0] sm:$0xff]
    %v3325 = vld [vmem:[#allocation2 + $0xc8] sm:$0xff]
    %v3326 = vld [vmem:[#allocation2 + $0xd0] sm:$0xff]
    %v3327 = vld [vmem:[#allocation2 + $0xd8] sm:$0xff]
    %v3328 = vld [vmem:[#allocation2 + $0xe0] sm:$0xff]
    %v3329 = vld [vmem:[#allocation2 + $0xe8] sm:$0xff]
    %v3330 = vld [vmem:[#allocation2 + $0xf0] sm:$0xff]
    %v3331 = vld [vmem:[#allocation2 + $0xf8] sm:$0xff]
    %v3332 = vld [vmem:[#allocation2 + $0x100] sm:$0xff]
    %v3333 = vld [vmem:[#allocation2 + $0x108] sm:$0xff]
    %v3334 = vld [vmem:[#allocation2 + $0x110] sm:$0xff]
    %v3335 = vld [vmem:[#allocation2 + $0x118] sm:$0xff]
    %v3336 = vld [vmem:[#allocation2 + $0x120] sm:$0xff]
    %v3337 = vpack.c.bf16 %v3306, %v3305
    %v3338 = vpack.c.bf16 %v3308, %v3307
    %v3339 = vpack.c.bf16 %v3310, %v3309
    %v3340 = vpack.c.bf16 %v3312, %v3311
    %v3341 = vpack.c.bf16 %v3314, %v3313
    %v3342 = vpack.c.bf16 %v3316, %v3315
    %v3343 = vpack.c.bf16 %v3318, %v3317
    %v3344 = vpack.c.bf16 %v3320, %v3319
    %v3345 = vpack.c.bf16 %v3322, %v3321
    %v3346 = vpack.c.bf16 %v3324, %v3323
    %v3347 = vpack.c.bf16 %v3326, %v3325
    %v3348 = vpack.c.bf16 %v3328, %v3327
    %v3349 = vpack.c.bf16 %v3330, %v3329
    %v3350 = vpack.c.bf16 %v3332, %v3331
    %v3351 = vpack.c.bf16 %v3334, %v3333
    %v3352 = vpack.c.bf16 %v3336, %v3335
    %s3353 = scalar_lea.vmem %s4, 16
    %v3354 = vld [vmem:[%s3353] sm:$0xf]
    %v3355 = vld [vmem:[%s3353 + $0x4] sm:$0xf]
    %v3356 = vld [vmem:[%s3353 + $0x8] sm:$0xf]
    %v3357 = vld [vmem:[%s3353 + $0xc] sm:$0xf]
    %v3362 = vunpack.c.l.b16 %v3354
    %v3363 = vunpack.c.l.b16 %v3355
    %v3364 = vunpack.c.l.b16 %v3356
    %v3365 = vunpack.c.l.b16 %v3357
    %v3366 = vpack.c.b16 %v3363, %v3362
    %v3367 = vpack.c.b16 %v3365, %v3364
    %v3371 = vsel %vm43, %v3337, 0
    %v3374 = vsel %vm43, %v3338, 0
    %v3377 = vsel %vm43, %v3339, 0
    %v3380 = vsel %vm43, %v3340, 0
    %v3383 = vsel %vm43, %v3341, 0
    %v3386 = vsel %vm43, %v3342, 0
    %v3389 = vsel %vm43, %v3343, 0
    %v3392 = vsel %vm43, %v3344, 0
    %v3395 = vsel %vm43, %v3345, 0
    %v3398 = vsel %vm43, %v3346, 0
    %v3401 = vsel %vm43, %v3347, 0
    %v3404 = vsel %vm43, %v3348, 0
    %v3407 = vsel %vm43, %v3349, 0
    %v3410 = vsel %vm43, %v3350, 0
    %v3413 = vsel %vm43, %v3351, 0
    %v3416 = vsel %vm43, %v3352, 0
    %3418 = vmatpush.bf16.msra.mxu0 0
    %3419 = vmatpush.bf16.msra.mxu0 0
    %3420 = vmatpush.bf16.msra.mxu0 0
    %3421 = vmatpush.bf16.msra.mxu0 0
    %3422 = vmatpush.bf16.msra.mxu0 0
    %3423 = vmatpush.bf16.msra.mxu0 0
    %3424 = vmatpush.bf16.msra.mxu0 %v3367
    %3425 = vmatpush.bf16.msra.mxu0 %v3366
    %3426 = vmatmul.bf16.gmra.mxu0 %v3371
    %v3427 = vpop.f32.mrf.mxu0
    %v3428 = vadd.f32 0.0, %v3427
    %v3429 = vpop.f32.mrf.mxu0
    %v3430 = vadd.f32 0.0, %v3429
    %3431 = vmatmul.bf16.gmra.mxu0 %v3374
    %v3432 = vpop.f32.mrf.mxu0
    %v3433 = vadd.f32 0.0, %v3432
    %v3434 = vpop.f32.mrf.mxu0
    %v3435 = vadd.f32 0.0, %v3434
    %3436 = vmatmul.bf16.gmra.mxu0 %v3377
    %v3437 = vpop.f32.mrf.mxu0
    %v3438 = vadd.f32 0.0, %v3437
    %v3439 = vpop.f32.mrf.mxu0
    %v3440 = vadd.f32 0.0, %v3439
    %3441 = vmatmul.bf16.gmra.mxu0 %v3380
    %v3442 = vpop.f32.mrf.mxu0
    %v3443 = vadd.f32 0.0, %v3442
    %v3444 = vpop.f32.mrf.mxu0
    %v3445 = vadd.f32 0.0, %v3444
    %3446 = vmatmul.bf16.gmra.mxu0 %v3383
    %v3447 = vpop.f32.mrf.mxu0
    %v3448 = vadd.f32 0.0, %v3447
    %v3449 = vpop.f32.mrf.mxu0
    %v3450 = vadd.f32 0.0, %v3449
    %3451 = vmatmul.bf16.gmra.mxu0 %v3386
    %v3452 = vpop.f32.mrf.mxu0
    %v3453 = vadd.f32 0.0, %v3452
    %v3454 = vpop.f32.mrf.mxu0
    %v3455 = vadd.f32 0.0, %v3454
    %3456 = vmatmul.bf16.gmra.mxu0 %v3389
    %v3457 = vpop.f32.mrf.mxu0
    %v3458 = vadd.f32 0.0, %v3457
    %v3459 = vpop.f32.mrf.mxu0
    %v3460 = vadd.f32 0.0, %v3459
    %3461 = vmatmul.bf16.gmra.mxu0 %v3392
    %v3462 = vpop.f32.mrf.mxu0
    %v3463 = vadd.f32 0.0, %v3462
    %v3464 = vpop.f32.mrf.mxu0
    %v3465 = vadd.f32 0.0, %v3464
    %3466 = vmatmul.bf16.gmra.mxu0 %v3395
    %v3467 = vpop.f32.mrf.mxu0
    %v3468 = vadd.f32 0.0, %v3467
    %v3469 = vpop.f32.mrf.mxu0
    %v3470 = vadd.f32 0.0, %v3469
    %3471 = vmatmul.bf16.gmra.mxu0 %v3398
    %v3472 = vpop.f32.mrf.mxu0
    %v3473 = vadd.f32 0.0, %v3472
    %v3474 = vpop.f32.mrf.mxu0
    %v3475 = vadd.f32 0.0, %v3474
    %3476 = vmatmul.bf16.gmra.mxu0 %v3401
    %v3477 = vpop.f32.mrf.mxu0
    %v3478 = vadd.f32 0.0, %v3477
    %v3479 = vpop.f32.mrf.mxu0
    %v3480 = vadd.f32 0.0, %v3479
    %3481 = vmatmul.bf16.gmra.mxu0 %v3404
    %v3482 = vpop.f32.mrf.mxu0
    %v3483 = vadd.f32 0.0, %v3482
    %v3484 = vpop.f32.mrf.mxu0
    %v3485 = vadd.f32 0.0, %v3484
    %3486 = vmatmul.bf16.gmra.mxu0 %v3407
    %v3487 = vpop.f32.mrf.mxu0
    %v3488 = vadd.f32 0.0, %v3487
    %v3489 = vpop.f32.mrf.mxu0
    %v3490 = vadd.f32 0.0, %v3489
    %3491 = vmatmul.bf16.gmra.mxu0 %v3410
    %v3492 = vpop.f32.mrf.mxu0
    %v3493 = vadd.f32 0.0, %v3492
    %v3494 = vpop.f32.mrf.mxu0
    %v3495 = vadd.f32 0.0, %v3494
    %3496 = vmatmul.bf16.gmra.mxu0 %v3413
    %v3497 = vpop.f32.mrf.mxu0
    %v3498 = vadd.f32 0.0, %v3497
    %v3499 = vpop.f32.mrf.mxu0
    %v3500 = vadd.f32 0.0, %v3499
    %3501 = vmatmul.bf16.gmra.mxu0 %v3416
    %v3502 = vpop.f32.mrf.mxu0
    %v3503 = vadd.f32 0.0, %v3502
    %v3504 = vpop.f32.mrf.mxu0
    %v3505 = vadd.f32 0.0, %v3504
    %3506 = vdwg.mxu0
    %v3511 = vunpack.c.l.b16 %v3301
    %v3512 = vunpack.c.l.b16 %v3302
    %v3513 = vunpack.c.l.b16 %v3303
    %v3514 = vunpack.c.l.b16 %v3304
    %v3515 = vpack.c.b16 %v3512, %v3511
    %v3516 = vpack.c.b16 %v3514, %v3513
    %v3520 = vsel %vm43, %v3285, 0
    %v3523 = vsel %vm43, %v3286, 0
    %v3526 = vsel %vm43, %v3287, 0
    %v3529 = vsel %vm43, %v3288, 0
    %v3532 = vsel %vm43, %v3289, 0
    %v3535 = vsel %vm43, %v3290, 0
    %v3538 = vsel %vm43, %v3291, 0
    %v3541 = vsel %vm43, %v3292, 0
    %v3544 = vsel %vm43, %v3293, 0
    %v3547 = vsel %vm43, %v3294, 0
    %v3550 = vsel %vm43, %v3295, 0
    %v3553 = vsel %vm43, %v3296, 0
    %v3556 = vsel %vm43, %v3297, 0
    %v3559 = vsel %vm43, %v3298, 0
    %v3562 = vsel %vm43, %v3299, 0
    %v3565 = vsel %vm43, %v3300, 0
    %3567 = vmatpush.bf16.msra.mxu0 0
    %3568 = vmatpush.bf16.msra.mxu0 0
    %3569 = vmatpush.bf16.msra.mxu0 0
    %3570 = vmatpush.bf16.msra.mxu0 0
    %3571 = vmatpush.bf16.msra.mxu0 0
    %3572 = vmatpush.bf16.msra.mxu0 0
    %3573 = vmatpush.bf16.msra.mxu0 %v3516
    %3574 = vmatpush.bf16.msra.mxu0 %v3515
    %3575 = vmatmul.bf16.gmra.mxu0 %v3520
    %v3576 = vpop.f32.mrf.mxu0
    %v3577 = vadd.f32 %v3428, %v3576
    %v3578 = vpop.f32.mrf.mxu0
    %v3579 = vadd.f32 %v3430, %v3578
    %3580 = vmatmul.bf16.gmra.mxu0 %v3523
    %v3581 = vpop.f32.mrf.mxu0
    %v3582 = vadd.f32 %v3433, %v3581
    %v3583 = vpop.f32.mrf.mxu0
    %v3584 = vadd.f32 %v3435, %v3583
    %3585 = vmatmul.bf16.gmra.mxu0 %v3526
    %v3586 = vpop.f32.mrf.mxu0
    %v3587 = vadd.f32 %v3438, %v3586
    %v3588 = vpop.f32.mrf.mxu0
    %v3589 = vadd.f32 %v3440, %v3588
    %3590 = vmatmul.bf16.gmra.mxu0 %v3529
    %v3591 = vpop.f32.mrf.mxu0
    %v3592 = vadd.f32 %v3443, %v3591
    %v3593 = vpop.f32.mrf.mxu0
    %v3594 = vadd.f32 %v3445, %v3593
    %3595 = vmatmul.bf16.gmra.mxu0 %v3532
    %v3596 = vpop.f32.mrf.mxu0
    %v3597 = vadd.f32 %v3448, %v3596
    %v3598 = vpop.f32.mrf.mxu0
    %v3599 = vadd.f32 %v3450, %v3598
    %3600 = vmatmul.bf16.gmra.mxu0 %v3535
    %v3601 = vpop.f32.mrf.mxu0
    %v3602 = vadd.f32 %v3453, %v3601
    %v3603 = vpop.f32.mrf.mxu0
    %v3604 = vadd.f32 %v3455, %v3603
    %3605 = vmatmul.bf16.gmra.mxu0 %v3538
    %v3606 = vpop.f32.mrf.mxu0
    %v3607 = vadd.f32 %v3458, %v3606
    %v3608 = vpop.f32.mrf.mxu0
    %v3609 = vadd.f32 %v3460, %v3608
    %3610 = vmatmul.bf16.gmra.mxu0 %v3541
    %v3611 = vpop.f32.mrf.mxu0
    %v3612 = vadd.f32 %v3463, %v3611
    %v3613 = vpop.f32.mrf.mxu0
    %v3614 = vadd.f32 %v3465, %v3613
    %3615 = vmatmul.bf16.gmra.mxu0 %v3544
    %v3616 = vpop.f32.mrf.mxu0
    %v3617 = vadd.f32 %v3468, %v3616
    %v3618 = vpop.f32.mrf.mxu0
    %v3619 = vadd.f32 %v3470, %v3618
    %3620 = vmatmul.bf16.gmra.mxu0 %v3547
    %v3621 = vpop.f32.mrf.mxu0
    %v3622 = vadd.f32 %v3473, %v3621
    %v3623 = vpop.f32.mrf.mxu0
    %v3624 = vadd.f32 %v3475, %v3623
    %3625 = vmatmul.bf16.gmra.mxu0 %v3550
    %v3626 = vpop.f32.mrf.mxu0
    %v3627 = vadd.f32 %v3478, %v3626
    %v3628 = vpop.f32.mrf.mxu0
    %v3629 = vadd.f32 %v3480, %v3628
    %3630 = vmatmul.bf16.gmra.mxu0 %v3553
    %v3631 = vpop.f32.mrf.mxu0
    %v3632 = vadd.f32 %v3483, %v3631
    %v3633 = vpop.f32.mrf.mxu0
    %v3634 = vadd.f32 %v3485, %v3633
    %3635 = vmatmul.bf16.gmra.mxu0 %v3556
    %v3636 = vpop.f32.mrf.mxu0
    %v3637 = vadd.f32 %v3488, %v3636
    %v3638 = vpop.f32.mrf.mxu0
    %v3639 = vadd.f32 %v3490, %v3638
    %3640 = vmatmul.bf16.gmra.mxu0 %v3559
    %v3641 = vpop.f32.mrf.mxu0
    %v3642 = vadd.f32 %v3493, %v3641
    %v3643 = vpop.f32.mrf.mxu0
    %v3644 = vadd.f32 %v3495, %v3643
    %3645 = vmatmul.bf16.gmra.mxu0 %v3562
    %v3646 = vpop.f32.mrf.mxu0
    %v3647 = vadd.f32 %v3498, %v3646
    %v3648 = vpop.f32.mrf.mxu0
    %v3649 = vadd.f32 %v3500, %v3648
    %3650 = vmatmul.bf16.gmra.mxu0 %v3565
    %v3651 = vpop.f32.mrf.mxu0
    %v3652 = vadd.f32 %v3503, %v3651
    %v3653 = vpop.f32.mrf.mxu0
    %v3654 = vadd.f32 %v3505, %v3653
    %3655 = vdwg.mxu0
    %v3656 = vld [vmem:[#allocation2 + $0x2a] sm:$0xff]
    %v3657 = vld [vmem:[#allocation2 + $0x32] sm:$0xff]
    %v3658 = vld [vmem:[#allocation2 + $0x3a] sm:$0xff]
    %v3659 = vld [vmem:[#allocation2 + $0x42] sm:$0xff]
    %v3660 = vld [vmem:[#allocation2 + $0x4a] sm:$0xff]
    %v3661 = vld [vmem:[#allocation2 + $0x52] sm:$0xff]
    %v3662 = vld [vmem:[#allocation2 + $0x5a] sm:$0xff]
    %v3663 = vld [vmem:[#allocation2 + $0x62] sm:$0xff]
    %v3664 = vld [vmem:[#allocation2 + $0x6a] sm:$0xff]
    %v3665 = vld [vmem:[#allocation2 + $0x72] sm:$0xff]
    %v3666 = vld [vmem:[#allocation2 + $0x7a] sm:$0xff]
    %v3667 = vld [vmem:[#allocation2 + $0x82] sm:$0xff]
    %v3668 = vld [vmem:[#allocation2 + $0x8a] sm:$0xff]
    %v3669 = vld [vmem:[#allocation2 + $0x92] sm:$0xff]
    %v3670 = vld [vmem:[#allocation2 + $0x9a] sm:$0xff]
    %v3671 = vld [vmem:[#allocation2 + $0xa2] sm:$0xff]
    %v3672 = vld [vmem:[#allocation2 + $0xaa] sm:$0xff]
    %v3673 = vld [vmem:[#allocation2 + $0xb2] sm:$0xff]
    %v3674 = vld [vmem:[#allocation2 + $0xba] sm:$0xff]
    %v3675 = vld [vmem:[#allocation2 + $0xc2] sm:$0xff]
    %v3676 = vld [vmem:[#allocation2 + $0xca] sm:$0xff]
    %v3677 = vld [vmem:[#allocation2 + $0xd2] sm:$0xff]
    %v3678 = vld [vmem:[#allocation2 + $0xda] sm:$0xff]
    %v3679 = vld [vmem:[#allocation2 + $0xe2] sm:$0xff]
    %v3680 = vld [vmem:[#allocation2 + $0xea] sm:$0xff]
    %v3681 = vld [vmem:[#allocation2 + $0xf2] sm:$0xff]
    %v3682 = vld [vmem:[#allocation2 + $0xfa] sm:$0xff]
    %v3683 = vld [vmem:[#allocation2 + $0x102] sm:$0xff]
    %v3684 = vld [vmem:[#allocation2 + $0x10a] sm:$0xff]
    %v3685 = vld [vmem:[#allocation2 + $0x112] sm:$0xff]
    %v3686 = vld [vmem:[#allocation2 + $0x11a] sm:$0xff]
    %v3687 = vld [vmem:[#allocation2 + $0x122] sm:$0xff]
    %v3688 = vsel %vm3029, 1, 0
    %v3689 = vsel %vm3030, 1, 0
    %v3690 = vsel %vm3031, 1, 0
    %v3691 = vsel %vm3032, 1, 0
    %v3692 = vsel %vm3033, 1, 0
    %v3693 = vsel %vm3034, 1, 0
    %v3694 = vsel %vm3035, 1, 0
    %v3695 = vsel %vm3036, 1, 0
    %v3696 = vsel %vm3037, 1, 0
    %v3697 = vsel %vm3038, 1, 0
    %v3698 = vsel %vm3039, 1, 0
    %v3699 = vsel %vm3040, 1, 0
    %v3700 = vsel %vm3041, 1, 0
    %v3701 = vsel %vm3042, 1, 0
    %v3702 = vsel %vm3043, 1, 0
    %v3703 = vsel %vm3044, 1, 0
    %v3704 = vsel %vm3045, 1, 0
    %v3705 = vsel %vm3046, 1, 0
    %v3706 = vsel %vm3047, 1, 0
    %v3707 = vsel %vm3048, 1, 0
    %v3708 = vsel %vm3049, 1, 0
    %v3709 = vsel %vm3050, 1, 0
    %v3710 = vsel %vm3051, 1, 0
    %v3711 = vsel %vm3052, 1, 0
    %v3712 = vsel %vm3053, 1, 0
    %v3713 = vsel %vm3054, 1, 0
    %v3714 = vsel %vm3055, 1, 0
    %v3715 = vsel %vm3056, 1, 0
    %v3716 = vsel %vm3057, 1, 0
    %v3717 = vsel %vm3058, 1, 0
    %v3718 = vsel %vm3059, 1, 0
    %v3719 = vsel %vm3060, 1, 0
    %3720 = vset.pattern.permute.xlu0 0
    %3721 = vperm.xlu0 %3720, %v3688
    %v3722 = vpop.permute.xlu0 %3721
    %3723 = vset.pattern.permute.xlu0 0
    %3724 = vperm.xlu0 %3723, %v3689
    %v3725 = vpop.permute.xlu0 %3724
    %3726 = vset.pattern.permute.xlu0 0
    %3727 = vperm.xlu0 %3726, %v3690
    %v3728 = vpop.permute.xlu0 %3727
    %3729 = vset.pattern.permute.xlu0 0
    %3730 = vperm.xlu0 %3729, %v3691
    %v3731 = vpop.permute.xlu0 %3730
    %3732 = vset.pattern.permute.xlu0 0
    %3733 = vperm.xlu0 %3732, %v3692
    %v3734 = vpop.permute.xlu0 %3733
    %3735 = vset.pattern.permute.xlu0 0
    %3736 = vperm.xlu0 %3735, %v3693
    %v3737 = vpop.permute.xlu0 %3736
    %3738 = vset.pattern.permute.xlu0 0
    %3739 = vperm.xlu0 %3738, %v3694
    %v3740 = vpop.permute.xlu0 %3739
    %3741 = vset.pattern.permute.xlu0 0
    %3742 = vperm.xlu0 %3741, %v3695
    %v3743 = vpop.permute.xlu0 %3742
    %3744 = vset.pattern.permute.xlu0 0
    %3745 = vperm.xlu0 %3744, %v3696
    %v3746 = vpop.permute.xlu0 %3745
    %3747 = vset.pattern.permute.xlu0 0
    %3748 = vperm.xlu0 %3747, %v3697
    %v3749 = vpop.permute.xlu0 %3748
    %3750 = vset.pattern.permute.xlu0 0
    %3751 = vperm.xlu0 %3750, %v3698
    %v3752 = vpop.permute.xlu0 %3751
    %3753 = vset.pattern.permute.xlu0 0
    %3754 = vperm.xlu0 %3753, %v3699
    %v3755 = vpop.permute.xlu0 %3754
    %3756 = vset.pattern.permute.xlu0 0
    %3757 = vperm.xlu0 %3756, %v3700
    %v3758 = vpop.permute.xlu0 %3757
    %3759 = vset.pattern.permute.xlu0 0
    %3760 = vperm.xlu0 %3759, %v3701
    %v3761 = vpop.permute.xlu0 %3760
    %3762 = vset.pattern.permute.xlu0 0
    %3763 = vperm.xlu0 %3762, %v3702
    %v3764 = vpop.permute.xlu0 %3763
    %3765 = vset.pattern.permute.xlu0 0
    %3766 = vperm.xlu0 %3765, %v3703
    %v3767 = vpop.permute.xlu0 %3766
    %3768 = vset.pattern.permute.xlu0 0
    %3769 = vperm.xlu0 %3768, %v3704
    %v3770 = vpop.permute.xlu0 %3769
    %3771 = vset.pattern.permute.xlu0 0
    %3772 = vperm.xlu0 %3771, %v3705
    %v3773 = vpop.permute.xlu0 %3772
    %3774 = vset.pattern.permute.xlu0 0
    %3775 = vperm.xlu0 %3774, %v3706
    %v3776 = vpop.permute.xlu0 %3775
    %3777 = vset.pattern.permute.xlu0 0
    %3778 = vperm.xlu0 %3777, %v3707
    %v3779 = vpop.permute.xlu0 %3778
    %3780 = vset.pattern.permute.xlu0 0
    %3781 = vperm.xlu0 %3780, %v3708
    %v3782 = vpop.permute.xlu0 %3781
    %3783 = vset.pattern.permute.xlu0 0
    %3784 = vperm.xlu0 %3783, %v3709
    %v3785 = vpop.permute.xlu0 %3784
    %3786 = vset.pattern.permute.xlu0 0
    %3787 = vperm.xlu0 %3786, %v3710
    %v3788 = vpop.permute.xlu0 %3787
    %3789 = vset.pattern.permute.xlu0 0
    %3790 = vperm.xlu0 %3789, %v3711
    %v3791 = vpop.permute.xlu0 %3790
    %3792 = vset.pattern.permute.xlu0 0
    %3793 = vperm.xlu0 %3792, %v3712
    %v3794 = vpop.permute.xlu0 %3793
    %3795 = vset.pattern.permute.xlu0 0
    %3796 = vperm.xlu0 %3795, %v3713
    %v3797 = vpop.permute.xlu0 %3796
    %3798 = vset.pattern.permute.xlu0 0
    %3799 = vperm.xlu0 %3798, %v3714
    %v3800 = vpop.permute.xlu0 %3799
    %3801 = vset.pattern.permute.xlu0 0
    %3802 = vperm.xlu0 %3801, %v3715
    %v3803 = vpop.permute.xlu0 %3802
    %3804 = vset.pattern.permute.xlu0 0
    %3805 = vperm.xlu0 %3804, %v3716
    %v3806 = vpop.permute.xlu0 %3805
    %3807 = vset.pattern.permute.xlu0 0
    %3808 = vperm.xlu0 %3807, %v3717
    %v3809 = vpop.permute.xlu0 %3808
    %3810 = vset.pattern.permute.xlu0 0
    %3811 = vperm.xlu0 %3810, %v3718
    %v3812 = vpop.permute.xlu0 %3811
    %3813 = vset.pattern.permute.xlu0 0
    %3814 = vperm.xlu0 %3813, %v3719
    %v3815 = vpop.permute.xlu0 %3814
    %vm3816 = vcmp.eq.s32.totalorder %v3722, 1
    %vm3817 = vcmp.eq.s32.totalorder %v3725, 1
    %vm3818 = vcmp.eq.s32.totalorder %v3728, 1
    %vm3819 = vcmp.eq.s32.totalorder %v3731, 1
    %vm3820 = vcmp.eq.s32.totalorder %v3734, 1
    %vm3821 = vcmp.eq.s32.totalorder %v3737, 1
    %vm3822 = vcmp.eq.s32.totalorder %v3740, 1
    %vm3823 = vcmp.eq.s32.totalorder %v3743, 1
    %vm3824 = vcmp.eq.s32.totalorder %v3746, 1
    %vm3825 = vcmp.eq.s32.totalorder %v3749, 1
    %vm3826 = vcmp.eq.s32.totalorder %v3752, 1
    %vm3827 = vcmp.eq.s32.totalorder %v3755, 1
    %vm3828 = vcmp.eq.s32.totalorder %v3758, 1
    %vm3829 = vcmp.eq.s32.totalorder %v3761, 1
    %vm3830 = vcmp.eq.s32.totalorder %v3764, 1
    %vm3831 = vcmp.eq.s32.totalorder %v3767, 1
    %vm3832 = vcmp.eq.s32.totalorder %v3770, 1
    %vm3833 = vcmp.eq.s32.totalorder %v3773, 1
    %vm3834 = vcmp.eq.s32.totalorder %v3776, 1
    %vm3835 = vcmp.eq.s32.totalorder %v3779, 1
    %vm3836 = vcmp.eq.s32.totalorder %v3782, 1
    %vm3837 = vcmp.eq.s32.totalorder %v3785, 1
    %vm3838 = vcmp.eq.s32.totalorder %v3788, 1
    %vm3839 = vcmp.eq.s32.totalorder %v3791, 1
    %vm3840 = vcmp.eq.s32.totalorder %v3794, 1
    %vm3841 = vcmp.eq.s32.totalorder %v3797, 1
    %vm3842 = vcmp.eq.s32.totalorder %v3800, 1
    %vm3843 = vcmp.eq.s32.totalorder %v3803, 1
    %vm3844 = vcmp.eq.s32.totalorder %v3806, 1
    %vm3845 = vcmp.eq.s32.totalorder %v3809, 1
    %vm3846 = vcmp.eq.s32.totalorder %v3812, 1
    %vm3847 = vcmp.eq.s32.totalorder %v3815, 1
    %v3848 = vsel %vm3816, %v3656, 0.0
    %v3849 = vsel %vm3817, %v3657, 0.0
    %v3850 = vsel %vm3818, %v3658, 0.0
    %v3851 = vsel %vm3819, %v3659, 0.0
    %v3852 = vsel %vm3820, %v3660, 0.0
    %v3853 = vsel %vm3821, %v3661, 0.0
    %v3854 = vsel %vm3822, %v3662, 0.0
    %v3855 = vsel %vm3823, %v3663, 0.0
    %v3856 = vsel %vm3824, %v3664, 0.0
    %v3857 = vsel %vm3825, %v3665, 0.0
    %v3858 = vsel %vm3826, %v3666, 0.0
    %v3859 = vsel %vm3827, %v3667, 0.0
    %v3860 = vsel %vm3828, %v3668, 0.0
    %v3861 = vsel %vm3829, %v3669, 0.0
    %v3862 = vsel %vm3830, %v3670, 0.0
    %v3863 = vsel %vm3831, %v3671, 0.0
    %v3864 = vsel %vm3832, %v3672, 0.0
    %v3865 = vsel %vm3833, %v3673, 0.0
    %v3866 = vsel %vm3834, %v3674, 0.0
    %v3867 = vsel %vm3835, %v3675, 0.0
    %v3868 = vsel %vm3836, %v3676, 0.0
    %v3869 = vsel %vm3837, %v3677, 0.0
    %v3870 = vsel %vm3838, %v3678, 0.0
    %v3871 = vsel %vm3839, %v3679, 0.0
    %v3872 = vsel %vm3840, %v3680, 0.0
    %v3873 = vsel %vm3841, %v3681, 0.0
    %v3874 = vsel %vm3842, %v3682, 0.0
    %v3875 = vsel %vm3843, %v3683, 0.0
    %v3876 = vsel %vm3844, %v3684, 0.0
    %v3877 = vsel %vm3845, %v3685, 0.0
    %v3878 = vsel %vm3846, %v3686, 0.0
    %v3879 = vsel %vm3847, %v3687, 0.0
    %v3880 = vpack.c.bf16 %v3849, %v3848
    %v3881 = vpack.c.bf16 %v3851, %v3850
    %v3882 = vpack.c.bf16 %v3853, %v3852
    %v3883 = vpack.c.bf16 %v3855, %v3854
    %v3884 = vpack.c.bf16 %v3857, %v3856
    %v3885 = vpack.c.bf16 %v3859, %v3858
    %v3886 = vpack.c.bf16 %v3861, %v3860
    %v3887 = vpack.c.bf16 %v3863, %v3862
    %v3888 = vpack.c.bf16 %v3865, %v3864
    %v3889 = vpack.c.bf16 %v3867, %v3866
    %v3890 = vpack.c.bf16 %v3869, %v3868
    %v3891 = vpack.c.bf16 %v3871, %v3870
    %v3892 = vpack.c.bf16 %v3873, %v3872
    %v3893 = vpack.c.bf16 %v3875, %v3874
    %v3894 = vpack.c.bf16 %v3877, %v3876
    %v3895 = vpack.c.bf16 %v3879, %v3878
    %s3896 = scalar_lea.vmem %s4, 32
    %v3897 = vld [vmem:[%s3896] sm:$0xf]
    %v3898 = vld [vmem:[%s3896 + $0x4] sm:$0xf]
    %v3899 = vld [vmem:[%s3896 + $0x8] sm:$0xf]
    %v3900 = vld [vmem:[%s3896 + $0xc] sm:$0xf]
    %v3905 = vunpack.c.l.b16 %v3897
    %v3906 = vunpack.c.l.b16 %v3898
    %v3907 = vunpack.c.l.b16 %v3899
    %v3908 = vunpack.c.l.b16 %v3900
    %v3909 = vpack.c.b16 %v3906, %v3905
    %v3910 = vpack.c.b16 %v3908, %v3907
    %v3914 = vsel %vm43, %v3880, 0
    %v3917 = vsel %vm43, %v3881, 0
    %v3920 = vsel %vm43, %v3882, 0
    %v3923 = vsel %vm43, %v3883, 0
    %v3926 = vsel %vm43, %v3884, 0
    %v3929 = vsel %vm43, %v3885, 0
    %v3932 = vsel %vm43, %v3886, 0
    %v3935 = vsel %vm43, %v3887, 0
    %v3938 = vsel %vm43, %v3888, 0
    %v3941 = vsel %vm43, %v3889, 0
    %v3944 = vsel %vm43, %v3890, 0
    %v3947 = vsel %vm43, %v3891, 0
    %v3950 = vsel %vm43, %v3892, 0
    %v3953 = vsel %vm43, %v3893, 0
    %v3956 = vsel %vm43, %v3894, 0
    %v3959 = vsel %vm43, %v3895, 0
    %3961 = vmatpush.bf16.msra.mxu0 0
    %3962 = vmatpush.bf16.msra.mxu0 0
    %3963 = vmatpush.bf16.msra.mxu0 0
    %3964 = vmatpush.bf16.msra.mxu0 0
    %3965 = vmatpush.bf16.msra.mxu0 0
    %3966 = vmatpush.bf16.msra.mxu0 0
    %3967 = vmatpush.bf16.msra.mxu0 %v3910
    %3968 = vmatpush.bf16.msra.mxu0 %v3909
    %3969 = vmatmul.bf16.gmra.mxu0 %v3914
    %v3970 = vpop.f32.mrf.mxu0
    %v3971 = vadd.f32 0.0, %v3970
    %v3972 = vpop.f32.mrf.mxu0
    %v3973 = vadd.f32 0.0, %v3972
    %3974 = vmatmul.bf16.gmra.mxu0 %v3917
    %v3975 = vpop.f32.mrf.mxu0
    %v3976 = vadd.f32 0.0, %v3975
    %v3977 = vpop.f32.mrf.mxu0
    %v3978 = vadd.f32 0.0, %v3977
    %3979 = vmatmul.bf16.gmra.mxu0 %v3920
    %v3980 = vpop.f32.mrf.mxu0
    %v3981 = vadd.f32 0.0, %v3980
    %v3982 = vpop.f32.mrf.mxu0
    %v3983 = vadd.f32 0.0, %v3982
    %3984 = vmatmul.bf16.gmra.mxu0 %v3923
    %v3985 = vpop.f32.mrf.mxu0
    %v3986 = vadd.f32 0.0, %v3985
    %v3987 = vpop.f32.mrf.mxu0
    %v3988 = vadd.f32 0.0, %v3987
    %3989 = vmatmul.bf16.gmra.mxu0 %v3926
    %v3990 = vpop.f32.mrf.mxu0
    %v3991 = vadd.f32 0.0, %v3990
    %v3992 = vpop.f32.mrf.mxu0
    %v3993 = vadd.f32 0.0, %v3992
    %3994 = vmatmul.bf16.gmra.mxu0 %v3929
    %v3995 = vpop.f32.mrf.mxu0
    %v3996 = vadd.f32 0.0, %v3995
    %v3997 = vpop.f32.mrf.mxu0
    %v3998 = vadd.f32 0.0, %v3997
    %3999 = vmatmul.bf16.gmra.mxu0 %v3932
    %v4000 = vpop.f32.mrf.mxu0
    %v4001 = vadd.f32 0.0, %v4000
    %v4002 = vpop.f32.mrf.mxu0
    %v4003 = vadd.f32 0.0, %v4002
    %4004 = vmatmul.bf16.gmra.mxu0 %v3935
    %v4005 = vpop.f32.mrf.mxu0
    %v4006 = vadd.f32 0.0, %v4005
    %v4007 = vpop.f32.mrf.mxu0
    %v4008 = vadd.f32 0.0, %v4007
    %4009 = vmatmul.bf16.gmra.mxu0 %v3938
    %v4010 = vpop.f32.mrf.mxu0
    %v4011 = vadd.f32 0.0, %v4010
    %v4012 = vpop.f32.mrf.mxu0
    %v4013 = vadd.f32 0.0, %v4012
    %4014 = vmatmul.bf16.gmra.mxu0 %v3941
    %v4015 = vpop.f32.mrf.mxu0
    %v4016 = vadd.f32 0.0, %v4015
    %v4017 = vpop.f32.mrf.mxu0
    %v4018 = vadd.f32 0.0, %v4017
    %4019 = vmatmul.bf16.gmra.mxu0 %v3944
    %v4020 = vpop.f32.mrf.mxu0
    %v4021 = vadd.f32 0.0, %v4020
    %v4022 = vpop.f32.mrf.mxu0
    %v4023 = vadd.f32 0.0, %v4022
    %4024 = vmatmul.bf16.gmra.mxu0 %v3947
    %v4025 = vpop.f32.mrf.mxu0
    %v4026 = vadd.f32 0.0, %v4025
    %v4027 = vpop.f32.mrf.mxu0
    %v4028 = vadd.f32 0.0, %v4027
    %4029 = vmatmul.bf16.gmra.mxu0 %v3950
    %v4030 = vpop.f32.mrf.mxu0
    %v4031 = vadd.f32 0.0, %v4030
    %v4032 = vpop.f32.mrf.mxu0
    %v4033 = vadd.f32 0.0, %v4032
    %4034 = vmatmul.bf16.gmra.mxu0 %v3953
    %v4035 = vpop.f32.mrf.mxu0
    %v4036 = vadd.f32 0.0, %v4035
    %v4037 = vpop.f32.mrf.mxu0
    %v4038 = vadd.f32 0.0, %v4037
    %4039 = vmatmul.bf16.gmra.mxu0 %v3956
    %v4040 = vpop.f32.mrf.mxu0
    %v4041 = vadd.f32 0.0, %v4040
    %v4042 = vpop.f32.mrf.mxu0
    %v4043 = vadd.f32 0.0, %v4042
    %4044 = vmatmul.bf16.gmra.mxu0 %v3959
    %v4045 = vpop.f32.mrf.mxu0
    %v4046 = vadd.f32 0.0, %v4045
    %v4047 = vpop.f32.mrf.mxu0
    %v4048 = vadd.f32 0.0, %v4047
    %4049 = vdwg.mxu0
    %v4050 = vadd.f32 %v3577, %v3971
    %v4051 = vadd.f32 %v3579, %v3973
    %v4052 = vadd.f32 %v3582, %v3976
    %v4053 = vadd.f32 %v3584, %v3978
    %v4054 = vadd.f32 %v3587, %v3981
    %v4055 = vadd.f32 %v3589, %v3983
    %v4056 = vadd.f32 %v3592, %v3986
    %v4057 = vadd.f32 %v3594, %v3988
    %v4058 = vadd.f32 %v3597, %v3991
    %v4059 = vadd.f32 %v3599, %v3993
    %v4060 = vadd.f32 %v3602, %v3996
    %v4061 = vadd.f32 %v3604, %v3998
    %v4062 = vadd.f32 %v3607, %v4001
    %v4063 = vadd.f32 %v3609, %v4003
    %v4064 = vadd.f32 %v3612, %v4006
    %v4065 = vadd.f32 %v3614, %v4008
    %v4066 = vadd.f32 %v3617, %v4011
    %v4067 = vadd.f32 %v3619, %v4013
    %v4068 = vadd.f32 %v3622, %v4016
    %v4069 = vadd.f32 %v3624, %v4018
    %v4070 = vadd.f32 %v3627, %v4021
    %v4071 = vadd.f32 %v3629, %v4023
    %v4072 = vadd.f32 %v3632, %v4026
    %v4073 = vadd.f32 %v3634, %v4028
    %v4074 = vadd.f32 %v3637, %v4031
    %v4075 = vadd.f32 %v3639, %v4033
    %v4076 = vadd.f32 %v3642, %v4036
    %v4077 = vadd.f32 %v3644, %v4038
    %v4078 = vadd.f32 %v3647, %v4041
    %v4079 = vadd.f32 %v3649, %v4043
    %v4080 = vadd.f32 %v3652, %v4046
    %v4081 = vadd.f32 %v3654, %v4048
    %v4082 = vld [vmem:[#allocation2 + $0x46] sm:$0xff]
    %v4083 = vld [vmem:[#allocation2 + $0x4e] sm:$0xff]
    %v4084 = vld [vmem:[#allocation2 + $0x56] sm:$0xff]
    %v4085 = vld [vmem:[#allocation2 + $0x5e] sm:$0xff]
    %v4086 = vld [vmem:[#allocation2 + $0x66] sm:$0xff]
    %v4087 = vld [vmem:[#allocation2 + $0x6e] sm:$0xff]
    %v4088 = vld [vmem:[#allocation2 + $0x76] sm:$0xff]
    %v4089 = vld [vmem:[#allocation2 + $0x7e] sm:$0xff]
    %v4090 = vld [vmem:[#allocation2 + $0x86] sm:$0xff]
    %v4091 = vld [vmem:[#allocation2 + $0x8e] sm:$0xff]
    %v4092 = vld [vmem:[#allocation2 + $0x96] sm:$0xff]
    %v4093 = vld [vmem:[#allocation2 + $0x9e] sm:$0xff]
    %v4094 = vld [vmem:[#allocation2 + $0xa6] sm:$0xff]
    %v4095 = vld [vmem:[#allocation2 + $0xae] sm:$0xff]
    %v4096 = vld [vmem:[#allocation2 + $0xb6] sm:$0xff]
    %v4097 = vld [vmem:[#allocation2 + $0xbe] sm:$0xff]
    %v4098 = vld [vmem:[#allocation2 + $0xc6] sm:$0xff]
    %v4099 = vld [vmem:[#allocation2 + $0xce] sm:$0xff]
    %v4100 = vld [vmem:[#allocation2 + $0xd6] sm:$0xff]
    %v4101 = vld [vmem:[#allocation2 + $0xde] sm:$0xff]
    %v4102 = vld [vmem:[#allocation2 + $0xe6] sm:$0xff]
    %v4103 = vld [vmem:[#allocation2 + $0xee] sm:$0xff]
    %v4104 = vld [vmem:[#allocation2 + $0xf6] sm:$0xff]
    %v4105 = vld [vmem:[#allocation2 + $0xfe] sm:$0xff]
    %v4106 = vld [vmem:[#allocation2 + $0x106] sm:$0xff]
    %v4107 = vld [vmem:[#allocation2 + $0x10e] sm:$0xff]
    %v4108 = vld [vmem:[#allocation2 + $0x116] sm:$0xff]
    %v4109 = vld [vmem:[#allocation2 + $0x11e] sm:$0xff]
    %v4110 = vld [vmem:[#allocation2 + $0x126] sm:$0xff]
    %v4111 = vld [vmem:[#allocation2 + $0x12e] sm:$0xff]
    %v4112 = vld [vmem:[#allocation2 + $0x136] sm:$0xff]
    %v4113 = vld [vmem:[#allocation2 + $0x13e] sm:$0xff]
    %v4114 = vsel %vm3221, %v4082, 0.0
    %v4115 = vsel %vm3222, %v4083, 0.0
    %v4116 = vsel %vm3223, %v4084, 0.0
    %v4117 = vsel %vm3224, %v4085, 0.0
    %v4118 = vsel %vm3225, %v4086, 0.0
    %v4119 = vsel %vm3226, %v4087, 0.0
    %v4120 = vsel %vm3227, %v4088, 0.0
    %v4121 = vsel %vm3228, %v4089, 0.0
    %v4122 = vsel %vm3229, %v4090, 0.0
    %v4123 = vsel %vm3230, %v4091, 0.0
    %v4124 = vsel %vm3231, %v4092, 0.0
    %v4125 = vsel %vm3232, %v4093, 0.0
    %v4126 = vsel %vm3233, %v4094, 0.0
    %v4127 = vsel %vm3234, %v4095, 0.0
    %v4128 = vsel %vm3235, %v4096, 0.0
    %v4129 = vsel %vm3236, %v4097, 0.0
    %v4130 = vsel %vm3237, %v4098, 0.0
    %v4131 = vsel %vm3238, %v4099, 0.0
    %v4132 = vsel %vm3239, %v4100, 0.0
    %v4133 = vsel %vm3240, %v4101, 0.0
    %v4134 = vsel %vm3241, %v4102, 0.0
    %v4135 = vsel %vm3242, %v4103, 0.0
    %v4136 = vsel %vm3243, %v4104, 0.0
    %v4137 = vsel %vm3244, %v4105, 0.0
    %v4138 = vsel %vm3245, %v4106, 0.0
    %v4139 = vsel %vm3246, %v4107, 0.0
    %v4140 = vsel %vm3247, %v4108, 0.0
    %v4141 = vsel %vm3248, %v4109, 0.0
    %v4142 = vsel %vm3249, %v4110, 0.0
    %v4143 = vsel %vm3250, %v4111, 0.0
    %v4144 = vsel %vm3251, %v4112, 0.0
    %v4145 = vsel %vm3252, %v4113, 0.0
    %v4146 = vpack.c.bf16 %v4115, %v4114
    %v4147 = vpack.c.bf16 %v4117, %v4116
    %v4148 = vpack.c.bf16 %v4119, %v4118
    %v4149 = vpack.c.bf16 %v4121, %v4120
    %v4150 = vpack.c.bf16 %v4123, %v4122
    %v4151 = vpack.c.bf16 %v4125, %v4124
    %v4152 = vpack.c.bf16 %v4127, %v4126
    %v4153 = vpack.c.bf16 %v4129, %v4128
    %v4154 = vpack.c.bf16 %v4131, %v4130
    %v4155 = vpack.c.bf16 %v4133, %v4132
    %v4156 = vpack.c.bf16 %v4135, %v4134
    %v4157 = vpack.c.bf16 %v4137, %v4136
    %v4158 = vpack.c.bf16 %v4139, %v4138
    %v4159 = vpack.c.bf16 %v4141, %v4140
    %v4160 = vpack.c.bf16 %v4143, %v4142
    %v4161 = vpack.c.bf16 %v4145, %v4144
    %s4162 = scalar_lea.vmem %s4, 48
    %v4163 = vld [vmem:[%s4162] sm:$0xf]
    %v4164 = vld [vmem:[%s4162 + $0x4] sm:$0xf]
    %v4165 = vld [vmem:[%s4162 + $0x8] sm:$0xf]
    %v4166 = vld [vmem:[%s4162 + $0xc] sm:$0xf]
    %v4171 = vunpack.c.l.b16 %v4163
    %v4172 = vunpack.c.l.b16 %v4164
    %v4173 = vunpack.c.l.b16 %v4165
    %v4174 = vunpack.c.l.b16 %v4166
    %v4175 = vpack.c.b16 %v4172, %v4171
    %v4176 = vpack.c.b16 %v4174, %v4173
    %v4180 = vsel %vm43, %v4146, 0
    %v4183 = vsel %vm43, %v4147, 0
    %v4186 = vsel %vm43, %v4148, 0
    %v4189 = vsel %vm43, %v4149, 0
    %v4192 = vsel %vm43, %v4150, 0
    %v4195 = vsel %vm43, %v4151, 0
    %v4198 = vsel %vm43, %v4152, 0
    %v4201 = vsel %vm43, %v4153, 0
    %v4204 = vsel %vm43, %v4154, 0
    %v4207 = vsel %vm43, %v4155, 0
    %v4210 = vsel %vm43, %v4156, 0
    %v4213 = vsel %vm43, %v4157, 0
    %v4216 = vsel %vm43, %v4158, 0
    %v4219 = vsel %vm43, %v4159, 0
    %v4222 = vsel %vm43, %v4160, 0
    %v4225 = vsel %vm43, %v4161, 0
    %4227 = vmatpush.bf16.msra.mxu0 0
    %4228 = vmatpush.bf16.msra.mxu0 0
    %4229 = vmatpush.bf16.msra.mxu0 0
    %4230 = vmatpush.bf16.msra.mxu0 0
    %4231 = vmatpush.bf16.msra.mxu0 0
    %4232 = vmatpush.bf16.msra.mxu0 0
    %4233 = vmatpush.bf16.msra.mxu0 %v4176
    %4234 = vmatpush.bf16.msra.mxu0 %v4175
    %4235 = vmatmul.bf16.gmra.mxu0 %v4180
    %v4236 = vpop.f32.mrf.mxu0
    %v4237 = vadd.f32 0.0, %v4236
    %v4238 = vpop.f32.mrf.mxu0
    %v4239 = vadd.f32 0.0, %v4238
    %4240 = vmatmul.bf16.gmra.mxu0 %v4183
    %v4241 = vpop.f32.mrf.mxu0
    %v4242 = vadd.f32 0.0, %v4241
    %v4243 = vpop.f32.mrf.mxu0
    %v4244 = vadd.f32 0.0, %v4243
    %4245 = vmatmul.bf16.gmra.mxu0 %v4186
    %v4246 = vpop.f32.mrf.mxu0
    %v4247 = vadd.f32 0.0, %v4246
    %v4248 = vpop.f32.mrf.mxu0
    %v4249 = vadd.f32 0.0, %v4248
    %4250 = vmatmul.bf16.gmra.mxu0 %v4189
    %v4251 = vpop.f32.mrf.mxu0
    %v4252 = vadd.f32 0.0, %v4251
    %v4253 = vpop.f32.mrf.mxu0
    %v4254 = vadd.f32 0.0, %v4253
    %4255 = vmatmul.bf16.gmra.mxu0 %v4192
    %v4256 = vpop.f32.mrf.mxu0
    %v4257 = vadd.f32 0.0, %v4256
    %v4258 = vpop.f32.mrf.mxu0
    %v4259 = vadd.f32 0.0, %v4258
    %4260 = vmatmul.bf16.gmra.mxu0 %v4195
    %v4261 = vpop.f32.mrf.mxu0
    %v4262 = vadd.f32 0.0, %v4261
    %v4263 = vpop.f32.mrf.mxu0
    %v4264 = vadd.f32 0.0, %v4263
    %4265 = vmatmul.bf16.gmra.mxu0 %v4198
    %v4266 = vpop.f32.mrf.mxu0
    %v4267 = vadd.f32 0.0, %v4266
    %v4268 = vpop.f32.mrf.mxu0
    %v4269 = vadd.f32 0.0, %v4268
    %4270 = vmatmul.bf16.gmra.mxu0 %v4201
    %v4271 = vpop.f32.mrf.mxu0
    %v4272 = vadd.f32 0.0, %v4271
    %v4273 = vpop.f32.mrf.mxu0
    %v4274 = vadd.f32 0.0, %v4273
    %4275 = vmatmul.bf16.gmra.mxu0 %v4204
    %v4276 = vpop.f32.mrf.mxu0
    %v4277 = vadd.f32 0.0, %v4276
    %v4278 = vpop.f32.mrf.mxu0
    %v4279 = vadd.f32 0.0, %v4278
    %4280 = vmatmul.bf16.gmra.mxu0 %v4207
    %v4281 = vpop.f32.mrf.mxu0
    %v4282 = vadd.f32 0.0, %v4281
    %v4283 = vpop.f32.mrf.mxu0
    %v4284 = vadd.f32 0.0, %v4283
    %4285 = vmatmul.bf16.gmra.mxu0 %v4210
    %v4286 = vpop.f32.mrf.mxu0
    %v4287 = vadd.f32 0.0, %v4286
    %v4288 = vpop.f32.mrf.mxu0
    %v4289 = vadd.f32 0.0, %v4288
    %4290 = vmatmul.bf16.gmra.mxu0 %v4213
    %v4291 = vpop.f32.mrf.mxu0
    %v4292 = vadd.f32 0.0, %v4291
    %v4293 = vpop.f32.mrf.mxu0
    %v4294 = vadd.f32 0.0, %v4293
    %4295 = vmatmul.bf16.gmra.mxu0 %v4216
    %v4296 = vpop.f32.mrf.mxu0
    %v4297 = vadd.f32 0.0, %v4296
    %v4298 = vpop.f32.mrf.mxu0
    %v4299 = vadd.f32 0.0, %v4298
    %4300 = vmatmul.bf16.gmra.mxu0 %v4219
    %v4301 = vpop.f32.mrf.mxu0
    %v4302 = vadd.f32 0.0, %v4301
    %v4303 = vpop.f32.mrf.mxu0
    %v4304 = vadd.f32 0.0, %v4303
    %4305 = vmatmul.bf16.gmra.mxu0 %v4222
    %v4306 = vpop.f32.mrf.mxu0
    %v4307 = vadd.f32 0.0, %v4306
    %v4308 = vpop.f32.mrf.mxu0
    %v4309 = vadd.f32 0.0, %v4308
    %4310 = vmatmul.bf16.gmra.mxu0 %v4225
    %v4311 = vpop.f32.mrf.mxu0
    %v4312 = vadd.f32 0.0, %v4311
    %v4313 = vpop.f32.mrf.mxu0
    %v4314 = vadd.f32 0.0, %v4313
    %4315 = vdwg.mxu0
    %v4316 = vadd.f32 %v4050, %v4237
    %v4317 = vadd.f32 %v4051, %v4239
    %v4318 = vadd.f32 %v4052, %v4242
    %v4319 = vadd.f32 %v4053, %v4244
    %v4320 = vadd.f32 %v4054, %v4247
    %v4321 = vadd.f32 %v4055, %v4249
    %v4322 = vadd.f32 %v4056, %v4252
    %v4323 = vadd.f32 %v4057, %v4254
    %v4324 = vadd.f32 %v4058, %v4257
    %v4325 = vadd.f32 %v4059, %v4259
    %v4326 = vadd.f32 %v4060, %v4262
    %v4327 = vadd.f32 %v4061, %v4264
    %v4328 = vadd.f32 %v4062, %v4267
    %v4329 = vadd.f32 %v4063, %v4269
    %v4330 = vadd.f32 %v4064, %v4272
    %v4331 = vadd.f32 %v4065, %v4274
    %v4332 = vadd.f32 %v4066, %v4277
    %v4333 = vadd.f32 %v4067, %v4279
    %v4334 = vadd.f32 %v4068, %v4282
    %v4335 = vadd.f32 %v4069, %v4284
    %v4336 = vadd.f32 %v4070, %v4287
    %v4337 = vadd.f32 %v4071, %v4289
    %v4338 = vadd.f32 %v4072, %v4292
    %v4339 = vadd.f32 %v4073, %v4294
    %v4340 = vadd.f32 %v4074, %v4297
    %v4341 = vadd.f32 %v4075, %v4299
    %v4342 = vadd.f32 %v4076, %v4302
    %v4343 = vadd.f32 %v4077, %v4304
    %v4344 = vadd.f32 %v4078, %v4307
    %v4345 = vadd.f32 %v4079, %v4309
    %v4346 = vadd.f32 %v4080, %v4312
    %v4347 = vadd.f32 %v4081, %v4314
    %v4348 = vld [vmem:[#allocation2 + $0x48] sm:$0xff]
    %v4349 = vld [vmem:[#allocation2 + $0x50] sm:$0xff]
    %v4350 = vld [vmem:[#allocation2 + $0x58] sm:$0xff]
    %v4351 = vld [vmem:[#allocation2 + $0x60] sm:$0xff]
    %v4352 = vld [vmem:[#allocation2 + $0x68] sm:$0xff]
    %v4353 = vld [vmem:[#allocation2 + $0x70] sm:$0xff]
    %v4354 = vld [vmem:[#allocation2 + $0x78] sm:$0xff]
    %v4355 = vld [vmem:[#allocation2 + $0x80] sm:$0xff]
    %v4356 = vld [vmem:[#allocation2 + $0x88] sm:$0xff]
    %v4357 = vld [vmem:[#allocation2 + $0x90] sm:$0xff]
    %v4358 = vld [vmem:[#allocation2 + $0x98] sm:$0xff]
    %v4359 = vld [vmem:[#allocation2 + $0xa0] sm:$0xff]
    %v4360 = vld [vmem:[#allocation2 + $0xa8] sm:$0xff]
    %v4361 = vld [vmem:[#allocation2 + $0xb0] sm:$0xff]
    %v4362 = vld [vmem:[#allocation2 + $0xb8] sm:$0xff]
    %v4363 = vld [vmem:[#allocation2 + $0xc0] sm:$0xff]
    %v4364 = vld [vmem:[#allocation2 + $0xc8] sm:$0xff]
    %v4365 = vld [vmem:[#allocation2 + $0xd0] sm:$0xff]
    %v4366 = vld [vmem:[#allocation2 + $0xd8] sm:$0xff]
    %v4367 = vld [vmem:[#allocation2 + $0xe0] sm:$0xff]
    %v4368 = vld [vmem:[#allocation2 + $0xe8] sm:$0xff]
    %v4369 = vld [vmem:[#allocation2 + $0xf0] sm:$0xff]
    %v4370 = vld [vmem:[#allocation2 + $0xf8] sm:$0xff]
    %v4371 = vld [vmem:[#allocation2 + $0x100] sm:$0xff]
    %v4372 = vld [vmem:[#allocation2 + $0x108] sm:$0xff]
    %v4373 = vld [vmem:[#allocation2 + $0x110] sm:$0xff]
    %v4374 = vld [vmem:[#allocation2 + $0x118] sm:$0xff]
    %v4375 = vld [vmem:[#allocation2 + $0x120] sm:$0xff]
    %v4376 = vld [vmem:[#allocation2 + $0x128] sm:$0xff]
    %v4377 = vld [vmem:[#allocation2 + $0x130] sm:$0xff]
    %v4378 = vld [vmem:[#allocation2 + $0x138] sm:$0xff]
    %v4379 = vld [vmem:[#allocation2 + $0x140] sm:$0xff]
    %v4380 = vpack.c.bf16 %v4349, %v4348
    %v4381 = vpack.c.bf16 %v4351, %v4350
    %v4382 = vpack.c.bf16 %v4353, %v4352
    %v4383 = vpack.c.bf16 %v4355, %v4354
    %v4384 = vpack.c.bf16 %v4357, %v4356
    %v4385 = vpack.c.bf16 %v4359, %v4358
    %v4386 = vpack.c.bf16 %v4361, %v4360
    %v4387 = vpack.c.bf16 %v4363, %v4362
    %v4388 = vpack.c.bf16 %v4365, %v4364
    %v4389 = vpack.c.bf16 %v4367, %v4366
    %v4390 = vpack.c.bf16 %v4369, %v4368
    %v4391 = vpack.c.bf16 %v4371, %v4370
    %v4392 = vpack.c.bf16 %v4373, %v4372
    %v4393 = vpack.c.bf16 %v4375, %v4374
    %v4394 = vpack.c.bf16 %v4377, %v4376
    %v4395 = vpack.c.bf16 %v4379, %v4378
    %s4396 = scalar_lea.vmem %s4, 64
    %v4397 = vld [vmem:[%s4396] sm:$0xf]
    %v4398 = vld [vmem:[%s4396 + $0x4] sm:$0xf]
    %v4399 = vld [vmem:[%s4396 + $0x8] sm:$0xf]
    %v4400 = vld [vmem:[%s4396 + $0xc] sm:$0xf]
    %v4405 = vunpack.c.l.b16 %v4397
    %v4406 = vunpack.c.l.b16 %v4398
    %v4407 = vunpack.c.l.b16 %v4399
    %v4408 = vunpack.c.l.b16 %v4400
    %v4409 = vpack.c.b16 %v4406, %v4405
    %v4410 = vpack.c.b16 %v4408, %v4407
    %v4414 = vsel %vm43, %v4380, 0
    %v4417 = vsel %vm43, %v4381, 0
    %v4420 = vsel %vm43, %v4382, 0
    %v4423 = vsel %vm43, %v4383, 0
    %v4426 = vsel %vm43, %v4384, 0
    %v4429 = vsel %vm43, %v4385, 0
    %v4432 = vsel %vm43, %v4386, 0
    %v4435 = vsel %vm43, %v4387, 0
    %v4438 = vsel %vm43, %v4388, 0
    %v4441 = vsel %vm43, %v4389, 0
    %v4444 = vsel %vm43, %v4390, 0
    %v4447 = vsel %vm43, %v4391, 0
    %v4450 = vsel %vm43, %v4392, 0
    %v4453 = vsel %vm43, %v4393, 0
    %v4456 = vsel %vm43, %v4394, 0
    %v4459 = vsel %vm43, %v4395, 0
    %4461 = vmatpush.bf16.msra.mxu0 0
    %4462 = vmatpush.bf16.msra.mxu0 0
    %4463 = vmatpush.bf16.msra.mxu0 0
    %4464 = vmatpush.bf16.msra.mxu0 0
    %4465 = vmatpush.bf16.msra.mxu0 0
    %4466 = vmatpush.bf16.msra.mxu0 0
    %4467 = vmatpush.bf16.msra.mxu0 %v4410
    %4468 = vmatpush.bf16.msra.mxu0 %v4409
    %4469 = vmatmul.bf16.gmra.mxu0 %v4414
    %v4470 = vpop.f32.mrf.mxu0
    %v4471 = vadd.f32 0.0, %v4470
    %v4472 = vpop.f32.mrf.mxu0
    %v4473 = vadd.f32 0.0, %v4472
    %4474 = vmatmul.bf16.gmra.mxu0 %v4417
    %v4475 = vpop.f32.mrf.mxu0
    %v4476 = vadd.f32 0.0, %v4475
    %v4477 = vpop.f32.mrf.mxu0
    %v4478 = vadd.f32 0.0, %v4477
    %4479 = vmatmul.bf16.gmra.mxu0 %v4420
    %v4480 = vpop.f32.mrf.mxu0
    %v4481 = vadd.f32 0.0, %v4480
    %v4482 = vpop.f32.mrf.mxu0
    %v4483 = vadd.f32 0.0, %v4482
    %4484 = vmatmul.bf16.gmra.mxu0 %v4423
    %v4485 = vpop.f32.mrf.mxu0
    %v4486 = vadd.f32 0.0, %v4485
    %v4487 = vpop.f32.mrf.mxu0
    %v4488 = vadd.f32 0.0, %v4487
    %4489 = vmatmul.bf16.gmra.mxu0 %v4426
    %v4490 = vpop.f32.mrf.mxu0
    %v4491 = vadd.f32 0.0, %v4490
    %v4492 = vpop.f32.mrf.mxu0
    %v4493 = vadd.f32 0.0, %v4492
    %4494 = vmatmul.bf16.gmra.mxu0 %v4429
    %v4495 = vpop.f32.mrf.mxu0
    %v4496 = vadd.f32 0.0, %v4495
    %v4497 = vpop.f32.mrf.mxu0
    %v4498 = vadd.f32 0.0, %v4497
    %4499 = vmatmul.bf16.gmra.mxu0 %v4432
    %v4500 = vpop.f32.mrf.mxu0
    %v4501 = vadd.f32 0.0, %v4500
    %v4502 = vpop.f32.mrf.mxu0
    %v4503 = vadd.f32 0.0, %v4502
    %4504 = vmatmul.bf16.gmra.mxu0 %v4435
    %v4505 = vpop.f32.mrf.mxu0
    %v4506 = vadd.f32 0.0, %v4505
    %v4507 = vpop.f32.mrf.mxu0
    %v4508 = vadd.f32 0.0, %v4507
    %4509 = vmatmul.bf16.gmra.mxu0 %v4438
    %v4510 = vpop.f32.mrf.mxu0
    %v4511 = vadd.f32 0.0, %v4510
    %v4512 = vpop.f32.mrf.mxu0
    %v4513 = vadd.f32 0.0, %v4512
    %4514 = vmatmul.bf16.gmra.mxu0 %v4441
    %v4515 = vpop.f32.mrf.mxu0
    %v4516 = vadd.f32 0.0, %v4515
    %v4517 = vpop.f32.mrf.mxu0
    %v4518 = vadd.f32 0.0, %v4517
    %4519 = vmatmul.bf16.gmra.mxu0 %v4444
    %v4520 = vpop.f32.mrf.mxu0
    %v4521 = vadd.f32 0.0, %v4520
    %v4522 = vpop.f32.mrf.mxu0
    %v4523 = vadd.f32 0.0, %v4522
    %4524 = vmatmul.bf16.gmra.mxu0 %v4447
    %v4525 = vpop.f32.mrf.mxu0
    %v4526 = vadd.f32 0.0, %v4525
    %v4527 = vpop.f32.mrf.mxu0
    %v4528 = vadd.f32 0.0, %v4527
    %4529 = vmatmul.bf16.gmra.mxu0 %v4450
    %v4530 = vpop.f32.mrf.mxu0
    %v4531 = vadd.f32 0.0, %v4530
    %v4532 = vpop.f32.mrf.mxu0
    %v4533 = vadd.f32 0.0, %v4532
    %4534 = vmatmul.bf16.gmra.mxu0 %v4453
    %v4535 = vpop.f32.mrf.mxu0
    %v4536 = vadd.f32 0.0, %v4535
    %v4537 = vpop.f32.mrf.mxu0
    %v4538 = vadd.f32 0.0, %v4537
    %4539 = vmatmul.bf16.gmra.mxu0 %v4456
    %v4540 = vpop.f32.mrf.mxu0
    %v4541 = vadd.f32 0.0, %v4540
    %v4542 = vpop.f32.mrf.mxu0
    %v4543 = vadd.f32 0.0, %v4542
    %4544 = vmatmul.bf16.gmra.mxu0 %v4459
    %v4545 = vpop.f32.mrf.mxu0
    %v4546 = vadd.f32 0.0, %v4545
    %v4547 = vpop.f32.mrf.mxu0
    %v4548 = vadd.f32 0.0, %v4547
    %4549 = vdwg.mxu0
    %v4550 = vadd.f32 %v4316, %v4471
    %v4551 = vadd.f32 %v4317, %v4473
    %v4552 = vadd.f32 %v4318, %v4476
    %v4553 = vadd.f32 %v4319, %v4478
    %v4554 = vadd.f32 %v4320, %v4481
    %v4555 = vadd.f32 %v4321, %v4483
    %v4556 = vadd.f32 %v4322, %v4486
    %v4557 = vadd.f32 %v4323, %v4488
    %v4558 = vadd.f32 %v4324, %v4491
    %v4559 = vadd.f32 %v4325, %v4493
    %v4560 = vadd.f32 %v4326, %v4496
    %v4561 = vadd.f32 %v4327, %v4498
    %v4562 = vadd.f32 %v4328, %v4501
    %v4563 = vadd.f32 %v4329, %v4503
    %v4564 = vadd.f32 %v4330, %v4506
    %v4565 = vadd.f32 %v4331, %v4508
    %v4566 = vadd.f32 %v4332, %v4511
    %v4567 = vadd.f32 %v4333, %v4513
    %v4568 = vadd.f32 %v4334, %v4516
    %v4569 = vadd.f32 %v4335, %v4518
    %v4570 = vadd.f32 %v4336, %v4521
    %v4571 = vadd.f32 %v4337, %v4523
    %v4572 = vadd.f32 %v4338, %v4526
    %v4573 = vadd.f32 %v4339, %v4528
    %v4574 = vadd.f32 %v4340, %v4531
    %v4575 = vadd.f32 %v4341, %v4533
    %v4576 = vadd.f32 %v4342, %v4536
    %v4577 = vadd.f32 %v4343, %v4538
    %v4578 = vadd.f32 %v4344, %v4541
    %v4579 = vadd.f32 %v4345, %v4543
    %v4580 = vadd.f32 %v4346, %v4546
    %v4581 = vadd.f32 %v4347, %v4548
    %v4582 = vld [vmem:[#allocation2 + $0x4a] sm:$0xff]
    %v4583 = vld [vmem:[#allocation2 + $0x52] sm:$0xff]
    %v4584 = vld [vmem:[#allocation2 + $0x5a] sm:$0xff]
    %v4585 = vld [vmem:[#allocation2 + $0x62] sm:$0xff]
    %v4586 = vld [vmem:[#allocation2 + $0x6a] sm:$0xff]
    %v4587 = vld [vmem:[#allocation2 + $0x72] sm:$0xff]
    %v4588 = vld [vmem:[#allocation2 + $0x7a] sm:$0xff]
    %v4589 = vld [vmem:[#allocation2 + $0x82] sm:$0xff]
    %v4590 = vld [vmem:[#allocation2 + $0x8a] sm:$0xff]
    %v4591 = vld [vmem:[#allocation2 + $0x92] sm:$0xff]
    %v4592 = vld [vmem:[#allocation2 + $0x9a] sm:$0xff]
    %v4593 = vld [vmem:[#allocation2 + $0xa2] sm:$0xff]
    %v4594 = vld [vmem:[#allocation2 + $0xaa] sm:$0xff]
    %v4595 = vld [vmem:[#allocation2 + $0xb2] sm:$0xff]
    %v4596 = vld [vmem:[#allocation2 + $0xba] sm:$0xff]
    %v4597 = vld [vmem:[#allocation2 + $0xc2] sm:$0xff]
    %v4598 = vld [vmem:[#allocation2 + $0xca] sm:$0xff]
    %v4599 = vld [vmem:[#allocation2 + $0xd2] sm:$0xff]
    %v4600 = vld [vmem:[#allocation2 + $0xda] sm:$0xff]
    %v4601 = vld [vmem:[#allocation2 + $0xe2] sm:$0xff]
    %v4602 = vld [vmem:[#allocation2 + $0xea] sm:$0xff]
    %v4603 = vld [vmem:[#allocation2 + $0xf2] sm:$0xff]
    %v4604 = vld [vmem:[#allocation2 + $0xfa] sm:$0xff]
    %v4605 = vld [vmem:[#allocation2 + $0x102] sm:$0xff]
    %v4606 = vld [vmem:[#allocation2 + $0x10a] sm:$0xff]
    %v4607 = vld [vmem:[#allocation2 + $0x112] sm:$0xff]
    %v4608 = vld [vmem:[#allocation2 + $0x11a] sm:$0xff]
    %v4609 = vld [vmem:[#allocation2 + $0x122] sm:$0xff]
    %v4610 = vld [vmem:[#allocation2 + $0x12a] sm:$0xff]
    %v4611 = vld [vmem:[#allocation2 + $0x132] sm:$0xff]
    %v4612 = vld [vmem:[#allocation2 + $0x13a] sm:$0xff]
    %v4613 = vld [vmem:[#allocation2 + $0x142] sm:$0xff]
    %v4614 = vsel %vm3816, %v4582, 0.0
    %v4615 = vsel %vm3817, %v4583, 0.0
    %v4616 = vsel %vm3818, %v4584, 0.0
    %v4617 = vsel %vm3819, %v4585, 0.0
    %v4618 = vsel %vm3820, %v4586, 0.0
    %v4619 = vsel %vm3821, %v4587, 0.0
    %v4620 = vsel %vm3822, %v4588, 0.0
    %v4621 = vsel %vm3823, %v4589, 0.0
    %v4622 = vsel %vm3824, %v4590, 0.0
    %v4623 = vsel %vm3825, %v4591, 0.0
    %v4624 = vsel %vm3826, %v4592, 0.0
    %v4625 = vsel %vm3827, %v4593, 0.0
    %v4626 = vsel %vm3828, %v4594, 0.0
    %v4627 = vsel %vm3829, %v4595, 0.0
    %v4628 = vsel %vm3830, %v4596, 0.0
    %v4629 = vsel %vm3831, %v4597, 0.0
    %v4630 = vsel %vm3832, %v4598, 0.0
    %v4631 = vsel %vm3833, %v4599, 0.0
    %v4632 = vsel %vm3834, %v4600, 0.0
    %v4633 = vsel %vm3835, %v4601, 0.0
    %v4634 = vsel %vm3836, %v4602, 0.0
    %v4635 = vsel %vm3837, %v4603, 0.0
    %v4636 = vsel %vm3838, %v4604, 0.0
    %v4637 = vsel %vm3839, %v4605, 0.0
    %v4638 = vsel %vm3840, %v4606, 0.0
    %v4639 = vsel %vm3841, %v4607, 0.0
    %v4640 = vsel %vm3842, %v4608, 0.0
    %v4641 = vsel %vm3843, %v4609, 0.0
    %v4642 = vsel %vm3844, %v4610, 0.0
    %v4643 = vsel %vm3845, %v4611, 0.0
    %v4644 = vsel %vm3846, %v4612, 0.0
    %v4645 = vsel %vm3847, %v4613, 0.0
    %v4646 = vpack.c.bf16 %v4615, %v4614
    %v4647 = vpack.c.bf16 %v4617, %v4616
    %v4648 = vpack.c.bf16 %v4619, %v4618
    %v4649 = vpack.c.bf16 %v4621, %v4620
    %v4650 = vpack.c.bf16 %v4623, %v4622
    %v4651 = vpack.c.bf16 %v4625, %v4624
    %v4652 = vpack.c.bf16 %v4627, %v4626
    %v4653 = vpack.c.bf16 %v4629, %v4628
    %v4654 = vpack.c.bf16 %v4631, %v4630
    %v4655 = vpack.c.bf16 %v4633, %v4632
    %v4656 = vpack.c.bf16 %v4635, %v4634
    %v4657 = vpack.c.bf16 %v4637, %v4636
    %v4658 = vpack.c.bf16 %v4639, %v4638
    %v4659 = vpack.c.bf16 %v4641, %v4640
    %v4660 = vpack.c.bf16 %v4643, %v4642
    %v4661 = vpack.c.bf16 %v4645, %v4644
    %s4662 = scalar_lea.vmem %s4, 80
    %v4663 = vld [vmem:[%s4662] sm:$0xf]
    %v4664 = vld [vmem:[%s4662 + $0x4] sm:$0xf]
    %v4665 = vld [vmem:[%s4662 + $0x8] sm:$0xf]
    %v4666 = vld [vmem:[%s4662 + $0xc] sm:$0xf]
    %v4671 = vunpack.c.l.b16 %v4663
    %v4672 = vunpack.c.l.b16 %v4664
    %v4673 = vunpack.c.l.b16 %v4665
    %v4674 = vunpack.c.l.b16 %v4666
    %v4675 = vpack.c.b16 %v4672, %v4671
    %v4676 = vpack.c.b16 %v4674, %v4673
    %v4680 = vsel %vm43, %v4646, 0
    %v4683 = vsel %vm43, %v4647, 0
    %v4686 = vsel %vm43, %v4648, 0
    %v4689 = vsel %vm43, %v4649, 0
    %v4692 = vsel %vm43, %v4650, 0
    %v4695 = vsel %vm43, %v4651, 0
    %v4698 = vsel %vm43, %v4652, 0
    %v4701 = vsel %vm43, %v4653, 0
    %v4704 = vsel %vm43, %v4654, 0
    %v4707 = vsel %vm43, %v4655, 0
    %v4710 = vsel %vm43, %v4656, 0
    %v4713 = vsel %vm43, %v4657, 0
    %v4716 = vsel %vm43, %v4658, 0
    %v4719 = vsel %vm43, %v4659, 0
    %v4722 = vsel %vm43, %v4660, 0
    %v4725 = vsel %vm43, %v4661, 0
    %4727 = vmatpush.bf16.msra.mxu0 0
    %4728 = vmatpush.bf16.msra.mxu0 0
    %4729 = vmatpush.bf16.msra.mxu0 0
    %4730 = vmatpush.bf16.msra.mxu0 0
    %4731 = vmatpush.bf16.msra.mxu0 0
    %4732 = vmatpush.bf16.msra.mxu0 0
    %4733 = vmatpush.bf16.msra.mxu0 %v4676
    %4734 = vmatpush.bf16.msra.mxu0 %v4675
    %4735 = vmatmul.bf16.gmra.mxu0 %v4680
    %v4736 = vpop.f32.mrf.mxu0
    %v4737 = vadd.f32 0.0, %v4736
    %v4738 = vpop.f32.mrf.mxu0
    %v4739 = vadd.f32 0.0, %v4738
    %4740 = vmatmul.bf16.gmra.mxu0 %v4683
    %v4741 = vpop.f32.mrf.mxu0
    %v4742 = vadd.f32 0.0, %v4741
    %v4743 = vpop.f32.mrf.mxu0
    %v4744 = vadd.f32 0.0, %v4743
    %4745 = vmatmul.bf16.gmra.mxu0 %v4686
    %v4746 = vpop.f32.mrf.mxu0
    %v4747 = vadd.f32 0.0, %v4746
    %v4748 = vpop.f32.mrf.mxu0
    %v4749 = vadd.f32 0.0, %v4748
    %4750 = vmatmul.bf16.gmra.mxu0 %v4689
    %v4751 = vpop.f32.mrf.mxu0
    %v4752 = vadd.f32 0.0, %v4751
    %v4753 = vpop.f32.mrf.mxu0
    %v4754 = vadd.f32 0.0, %v4753
    %4755 = vmatmul.bf16.gmra.mxu0 %v4692
    %v4756 = vpop.f32.mrf.mxu0
    %v4757 = vadd.f32 0.0, %v4756
    %v4758 = vpop.f32.mrf.mxu0
    %v4759 = vadd.f32 0.0, %v4758
    %4760 = vmatmul.bf16.gmra.mxu0 %v4695
    %v4761 = vpop.f32.mrf.mxu0
    %v4762 = vadd.f32 0.0, %v4761
    %v4763 = vpop.f32.mrf.mxu0
    %v4764 = vadd.f32 0.0, %v4763
    %4765 = vmatmul.bf16.gmra.mxu0 %v4698
    %v4766 = vpop.f32.mrf.mxu0
    %v4767 = vadd.f32 0.0, %v4766
    %v4768 = vpop.f32.mrf.mxu0
    %v4769 = vadd.f32 0.0, %v4768
    %4770 = vmatmul.bf16.gmra.mxu0 %v4701
    %v4771 = vpop.f32.mrf.mxu0
    %v4772 = vadd.f32 0.0, %v4771
    %v4773 = vpop.f32.mrf.mxu0
    %v4774 = vadd.f32 0.0, %v4773
    %4775 = vmatmul.bf16.gmra.mxu0 %v4704
    %v4776 = vpop.f32.mrf.mxu0
    %v4777 = vadd.f32 0.0, %v4776
    %v4778 = vpop.f32.mrf.mxu0
    %v4779 = vadd.f32 0.0, %v4778
    %4780 = vmatmul.bf16.gmra.mxu0 %v4707
    %v4781 = vpop.f32.mrf.mxu0
    %v4782 = vadd.f32 0.0, %v4781
    %v4783 = vpop.f32.mrf.mxu0
    %v4784 = vadd.f32 0.0, %v4783
    %4785 = vmatmul.bf16.gmra.mxu0 %v4710
    %v4786 = vpop.f32.mrf.mxu0
    %v4787 = vadd.f32 0.0, %v4786
    %v4788 = vpop.f32.mrf.mxu0
    %v4789 = vadd.f32 0.0, %v4788
    %4790 = vmatmul.bf16.gmra.mxu0 %v4713
    %v4791 = vpop.f32.mrf.mxu0
    %v4792 = vadd.f32 0.0, %v4791
    %v4793 = vpop.f32.mrf.mxu0
    %v4794 = vadd.f32 0.0, %v4793
    %4795 = vmatmul.bf16.gmra.mxu0 %v4716
    %v4796 = vpop.f32.mrf.mxu0
    %v4797 = vadd.f32 0.0, %v4796
    %v4798 = vpop.f32.mrf.mxu0
    %v4799 = vadd.f32 0.0, %v4798
    %4800 = vmatmul.bf16.gmra.mxu0 %v4719
    %v4801 = vpop.f32.mrf.mxu0
    %v4802 = vadd.f32 0.0, %v4801
    %v4803 = vpop.f32.mrf.mxu0
    %v4804 = vadd.f32 0.0, %v4803
    %4805 = vmatmul.bf16.gmra.mxu0 %v4722
    %v4806 = vpop.f32.mrf.mxu0
    %v4807 = vadd.f32 0.0, %v4806
    %v4808 = vpop.f32.mrf.mxu0
    %v4809 = vadd.f32 0.0, %v4808
    %4810 = vmatmul.bf16.gmra.mxu0 %v4725
    %v4811 = vpop.f32.mrf.mxu0
    %v4812 = vadd.f32 0.0, %v4811
    %v4813 = vpop.f32.mrf.mxu0
    %v4814 = vadd.f32 0.0, %v4813
    %4815 = vdwg.mxu0
    %v4816 = vadd.f32 %v4550, %v4737
    %v4817 = vadd.f32 %v4551, %v4739
    %v4818 = vadd.f32 %v4552, %v4742
    %v4819 = vadd.f32 %v4553, %v4744
    %v4820 = vadd.f32 %v4554, %v4747
    %v4821 = vadd.f32 %v4555, %v4749
    %v4822 = vadd.f32 %v4556, %v4752
    %v4823 = vadd.f32 %v4557, %v4754
    %v4824 = vadd.f32 %v4558, %v4757
    %v4825 = vadd.f32 %v4559, %v4759
    %v4826 = vadd.f32 %v4560, %v4762
    %v4827 = vadd.f32 %v4561, %v4764
    %v4828 = vadd.f32 %v4562, %v4767
    %v4829 = vadd.f32 %v4563, %v4769
    %v4830 = vadd.f32 %v4564, %v4772
    %v4831 = vadd.f32 %v4565, %v4774
    %v4832 = vadd.f32 %v4566, %v4777
    %v4833 = vadd.f32 %v4567, %v4779
    %v4834 = vadd.f32 %v4568, %v4782
    %v4835 = vadd.f32 %v4569, %v4784
    %v4836 = vadd.f32 %v4570, %v4787
    %v4837 = vadd.f32 %v4571, %v4789
    %v4838 = vadd.f32 %v4572, %v4792
    %v4839 = vadd.f32 %v4573, %v4794
    %v4840 = vadd.f32 %v4574, %v4797
    %v4841 = vadd.f32 %v4575, %v4799
    %v4842 = vadd.f32 %v4576, %v4802
    %v4843 = vadd.f32 %v4577, %v4804
    %v4844 = vadd.f32 %v4578, %v4807
    %v4845 = vadd.f32 %v4579, %v4809
    %v4846 = vadd.f32 %v4580, %v4812
    %v4847 = vadd.f32 %v4581, %v4814
    %v4848 = vld [vmem:[#allocation2 + $0x66] sm:$0xff]
    %v4849 = vld [vmem:[#allocation2 + $0x6e] sm:$0xff]
    %v4850 = vld [vmem:[#allocation2 + $0x76] sm:$0xff]
    %v4851 = vld [vmem:[#allocation2 + $0x7e] sm:$0xff]
    %v4852 = vld [vmem:[#allocation2 + $0x86] sm:$0xff]
    %v4853 = vld [vmem:[#allocation2 + $0x8e] sm:$0xff]
    %v4854 = vld [vmem:[#allocation2 + $0x96] sm:$0xff]
    %v4855 = vld [vmem:[#allocation2 + $0x9e] sm:$0xff]
    %v4856 = vld [vmem:[#allocation2 + $0xa6] sm:$0xff]
    %v4857 = vld [vmem:[#allocation2 + $0xae] sm:$0xff]
    %v4858 = vld [vmem:[#allocation2 + $0xb6] sm:$0xff]
    %v4859 = vld [vmem:[#allocation2 + $0xbe] sm:$0xff]
    %v4860 = vld [vmem:[#allocation2 + $0xc6] sm:$0xff]
    %v4861 = vld [vmem:[#allocation2 + $0xce] sm:$0xff]
    %v4862 = vld [vmem:[#allocation2 + $0xd6] sm:$0xff]
    %v4863 = vld [vmem:[#allocation2 + $0xde] sm:$0xff]
    %v4864 = vld [vmem:[#allocation2 + $0xe6] sm:$0xff]
    %v4865 = vld [vmem:[#allocation2 + $0xee] sm:$0xff]
    %v4866 = vld [vmem:[#allocation2 + $0xf6] sm:$0xff]
    %v4867 = vld [vmem:[#allocation2 + $0xfe] sm:$0xff]
    %v4868 = vld [vmem:[#allocation2 + $0x106] sm:$0xff]
    %v4869 = vld [vmem:[#allocation2 + $0x10e] sm:$0xff]
    %v4870 = vld [vmem:[#allocation2 + $0x116] sm:$0xff]
    %v4871 = vld [vmem:[#allocation2 + $0x11e] sm:$0xff]
    %v4872 = vld [vmem:[#allocation2 + $0x126] sm:$0xff]
    %v4873 = vld [vmem:[#allocation2 + $0x12e] sm:$0xff]
    %v4874 = vld [vmem:[#allocation2 + $0x136] sm:$0xff]
    %v4875 = vld [vmem:[#allocation2 + $0x13e] sm:$0xff]
    %v4876 = vld [vmem:[#allocation2 + $0x146] sm:$0xff]
    %v4877 = vld [vmem:[#allocation2 + $0x14e] sm:$0xff]
    %v4878 = vld [vmem:[#allocation2 + $0x156] sm:$0xff]
    %v4879 = vld [vmem:[#allocation2 + $0x15e] sm:$0xff]
    %v4880 = vsel %vm3221, %v4848, 0.0
    %v4881 = vsel %vm3222, %v4849, 0.0
    %v4882 = vsel %vm3223, %v4850, 0.0
    %v4883 = vsel %vm3224, %v4851, 0.0
    %v4884 = vsel %vm3225, %v4852, 0.0
    %v4885 = vsel %vm3226, %v4853, 0.0
    %v4886 = vsel %vm3227, %v4854, 0.0
    %v4887 = vsel %vm3228, %v4855, 0.0
    %v4888 = vsel %vm3229, %v4856, 0.0
    %v4889 = vsel %vm3230, %v4857, 0.0
    %v4890 = vsel %vm3231, %v4858, 0.0
    %v4891 = vsel %vm3232, %v4859, 0.0
    %v4892 = vsel %vm3233, %v4860, 0.0
    %v4893 = vsel %vm3234, %v4861, 0.0
    %v4894 = vsel %vm3235, %v4862, 0.0
    %v4895 = vsel %vm3236, %v4863, 0.0
    %v4896 = vsel %vm3237, %v4864, 0.0
    %v4897 = vsel %vm3238, %v4865, 0.0
    %v4898 = vsel %vm3239, %v4866, 0.0
    %v4899 = vsel %vm3240, %v4867, 0.0
    %v4900 = vsel %vm3241, %v4868, 0.0
    %v4901 = vsel %vm3242, %v4869, 0.0
    %v4902 = vsel %vm3243, %v4870, 0.0
    %v4903 = vsel %vm3244, %v4871, 0.0
    %v4904 = vsel %vm3245, %v4872, 0.0
    %v4905 = vsel %vm3246, %v4873, 0.0
    %v4906 = vsel %vm3247, %v4874, 0.0
    %v4907 = vsel %vm3248, %v4875, 0.0
    %v4908 = vsel %vm3249, %v4876, 0.0
    %v4909 = vsel %vm3250, %v4877, 0.0
    %v4910 = vsel %vm3251, %v4878, 0.0
    %v4911 = vsel %vm3252, %v4879, 0.0
    %v4912 = vpack.c.bf16 %v4881, %v4880
    %v4913 = vpack.c.bf16 %v4883, %v4882
    %v4914 = vpack.c.bf16 %v4885, %v4884
    %v4915 = vpack.c.bf16 %v4887, %v4886
    %v4916 = vpack.c.bf16 %v4889, %v4888
    %v4917 = vpack.c.bf16 %v4891, %v4890
    %v4918 = vpack.c.bf16 %v4893, %v4892
    %v4919 = vpack.c.bf16 %v4895, %v4894
    %v4920 = vpack.c.bf16 %v4897, %v4896
    %v4921 = vpack.c.bf16 %v4899, %v4898
    %v4922 = vpack.c.bf16 %v4901, %v4900
    %v4923 = vpack.c.bf16 %v4903, %v4902
    %v4924 = vpack.c.bf16 %v4905, %v4904
    %v4925 = vpack.c.bf16 %v4907, %v4906
    %v4926 = vpack.c.bf16 %v4909, %v4908
    %v4927 = vpack.c.bf16 %v4911, %v4910
    %s4928 = scalar_lea.vmem %s4, 96
    %v4929 = vld [vmem:[%s4928] sm:$0xf]
    %v4930 = vld [vmem:[%s4928 + $0x4] sm:$0xf]
    %v4931 = vld [vmem:[%s4928 + $0x8] sm:$0xf]
    %v4932 = vld [vmem:[%s4928 + $0xc] sm:$0xf]
    %v4937 = vunpack.c.l.b16 %v4929
    %v4938 = vunpack.c.l.b16 %v4930
    %v4939 = vunpack.c.l.b16 %v4931
    %v4940 = vunpack.c.l.b16 %v4932
    %v4941 = vpack.c.b16 %v4938, %v4937
    %v4942 = vpack.c.b16 %v4940, %v4939
    %v4946 = vsel %vm43, %v4912, 0
    %v4949 = vsel %vm43, %v4913, 0
    %v4952 = vsel %vm43, %v4914, 0
    %v4955 = vsel %vm43, %v4915, 0
    %v4958 = vsel %vm43, %v4916, 0
    %v4961 = vsel %vm43, %v4917, 0
    %v4964 = vsel %vm43, %v4918, 0
    %v4967 = vsel %vm43, %v4919, 0
    %v4970 = vsel %vm43, %v4920, 0
    %v4973 = vsel %vm43, %v4921, 0
    %v4976 = vsel %vm43, %v4922, 0
    %v4979 = vsel %vm43, %v4923, 0
    %v4982 = vsel %vm43, %v4924, 0
    %v4985 = vsel %vm43, %v4925, 0
    %v4988 = vsel %vm43, %v4926, 0
    %v4991 = vsel %vm43, %v4927, 0
    %4993 = vmatpush.bf16.msra.mxu0 0
    %4994 = vmatpush.bf16.msra.mxu0 0
    %4995 = vmatpush.bf16.msra.mxu0 0
    %4996 = vmatpush.bf16.msra.mxu0 0
    %4997 = vmatpush.bf16.msra.mxu0 0
    %4998 = vmatpush.bf16.msra.mxu0 0
    %4999 = vmatpush.bf16.msra.mxu0 %v4942
    %5000 = vmatpush.bf16.msra.mxu0 %v4941
    %5001 = vmatmul.bf16.gmra.mxu0 %v4946
    %v5002 = vpop.f32.mrf.mxu0
    %v5003 = vadd.f32 0.0, %v5002
    %v5004 = vpop.f32.mrf.mxu0
    %v5005 = vadd.f32 0.0, %v5004
    %5006 = vmatmul.bf16.gmra.mxu0 %v4949
    %v5007 = vpop.f32.mrf.mxu0
    %v5008 = vadd.f32 0.0, %v5007
    %v5009 = vpop.f32.mrf.mxu0
    %v5010 = vadd.f32 0.0, %v5009
    %5011 = vmatmul.bf16.gmra.mxu0 %v4952
    %v5012 = vpop.f32.mrf.mxu0
    %v5013 = vadd.f32 0.0, %v5012
    %v5014 = vpop.f32.mrf.mxu0
    %v5015 = vadd.f32 0.0, %v5014
    %5016 = vmatmul.bf16.gmra.mxu0 %v4955
    %v5017 = vpop.f32.mrf.mxu0
    %v5018 = vadd.f32 0.0, %v5017
    %v5019 = vpop.f32.mrf.mxu0
    %v5020 = vadd.f32 0.0, %v5019
    %5021 = vmatmul.bf16.gmra.mxu0 %v4958
    %v5022 = vpop.f32.mrf.mxu0
    %v5023 = vadd.f32 0.0, %v5022
    %v5024 = vpop.f32.mrf.mxu0
    %v5025 = vadd.f32 0.0, %v5024
    %5026 = vmatmul.bf16.gmra.mxu0 %v4961
    %v5027 = vpop.f32.mrf.mxu0
    %v5028 = vadd.f32 0.0, %v5027
    %v5029 = vpop.f32.mrf.mxu0
    %v5030 = vadd.f32 0.0, %v5029
    %5031 = vmatmul.bf16.gmra.mxu0 %v4964
    %v5032 = vpop.f32.mrf.mxu0
    %v5033 = vadd.f32 0.0, %v5032
    %v5034 = vpop.f32.mrf.mxu0
    %v5035 = vadd.f32 0.0, %v5034
    %5036 = vmatmul.bf16.gmra.mxu0 %v4967
    %v5037 = vpop.f32.mrf.mxu0
    %v5038 = vadd.f32 0.0, %v5037
    %v5039 = vpop.f32.mrf.mxu0
    %v5040 = vadd.f32 0.0, %v5039
    %5041 = vmatmul.bf16.gmra.mxu0 %v4970
    %v5042 = vpop.f32.mrf.mxu0
    %v5043 = vadd.f32 0.0, %v5042
    %v5044 = vpop.f32.mrf.mxu0
    %v5045 = vadd.f32 0.0, %v5044
    %5046 = vmatmul.bf16.gmra.mxu0 %v4973
    %v5047 = vpop.f32.mrf.mxu0
    %v5048 = vadd.f32 0.0, %v5047
    %v5049 = vpop.f32.mrf.mxu0
    %v5050 = vadd.f32 0.0, %v5049
    %5051 = vmatmul.bf16.gmra.mxu0 %v4976
    %v5052 = vpop.f32.mrf.mxu0
    %v5053 = vadd.f32 0.0, %v5052
    %v5054 = vpop.f32.mrf.mxu0
    %v5055 = vadd.f32 0.0, %v5054
    %5056 = vmatmul.bf16.gmra.mxu0 %v4979
    %v5057 = vpop.f32.mrf.mxu0
    %v5058 = vadd.f32 0.0, %v5057
    %v5059 = vpop.f32.mrf.mxu0
    %v5060 = vadd.f32 0.0, %v5059
    %5061 = vmatmul.bf16.gmra.mxu0 %v4982
    %v5062 = vpop.f32.mrf.mxu0
    %v5063 = vadd.f32 0.0, %v5062
    %v5064 = vpop.f32.mrf.mxu0
    %v5065 = vadd.f32 0.0, %v5064
    %5066 = vmatmul.bf16.gmra.mxu0 %v4985
    %v5067 = vpop.f32.mrf.mxu0
    %v5068 = vadd.f32 0.0, %v5067
    %v5069 = vpop.f32.mrf.mxu0
    %v5070 = vadd.f32 0.0, %v5069
    %5071 = vmatmul.bf16.gmra.mxu0 %v4988
    %v5072 = vpop.f32.mrf.mxu0
    %v5073 = vadd.f32 0.0, %v5072
    %v5074 = vpop.f32.mrf.mxu0
    %v5075 = vadd.f32 0.0, %v5074
    %5076 = vmatmul.bf16.gmra.mxu0 %v4991
    %v5077 = vpop.f32.mrf.mxu0
    %v5078 = vadd.f32 0.0, %v5077
    %v5079 = vpop.f32.mrf.mxu0
    %v5080 = vadd.f32 0.0, %v5079
    %5081 = vdwg.mxu0
    %v5082 = vadd.f32 %v4816, %v5003
    %v5083 = vadd.f32 %v4817, %v5005
    %v5084 = vadd.f32 %v4818, %v5008
    %v5085 = vadd.f32 %v4819, %v5010
    %v5086 = vadd.f32 %v4820, %v5013
    %v5087 = vadd.f32 %v4821, %v5015
    %v5088 = vadd.f32 %v4822, %v5018
    %v5089 = vadd.f32 %v4823, %v5020
    %v5090 = vadd.f32 %v4824, %v5023
    %v5091 = vadd.f32 %v4825, %v5025
    %v5092 = vadd.f32 %v4826, %v5028
    %v5093 = vadd.f32 %v4827, %v5030
    %v5094 = vadd.f32 %v4828, %v5033
    %v5095 = vadd.f32 %v4829, %v5035
    %v5096 = vadd.f32 %v4830, %v5038
    %v5097 = vadd.f32 %v4831, %v5040
    %v5098 = vadd.f32 %v4832, %v5043
    %v5099 = vadd.f32 %v4833, %v5045
    %v5100 = vadd.f32 %v4834, %v5048
    %v5101 = vadd.f32 %v4835, %v5050
    %v5102 = vadd.f32 %v4836, %v5053
    %v5103 = vadd.f32 %v4837, %v5055
    %v5104 = vadd.f32 %v4838, %v5058
    %v5105 = vadd.f32 %v4839, %v5060
    %v5106 = vadd.f32 %v4840, %v5063
    %v5107 = vadd.f32 %v4841, %v5065
    %v5108 = vadd.f32 %v4842, %v5068
    %v5109 = vadd.f32 %v4843, %v5070
    %v5110 = vadd.f32 %v4844, %v5073
    %v5111 = vadd.f32 %v4845, %v5075
    %v5112 = vadd.f32 %v4846, %v5078
    %v5113 = vadd.f32 %v4847, %v5080
    %v5114 = vld [vmem:[#allocation2 + $0x68] sm:$0xff]
    %v5115 = vld [vmem:[#allocation2 + $0x70] sm:$0xff]
    %v5116 = vld [vmem:[#allocation2 + $0x78] sm:$0xff]
    %v5117 = vld [vmem:[#allocation2 + $0x80] sm:$0xff]
    %v5118 = vld [vmem:[#allocation2 + $0x88] sm:$0xff]
    %v5119 = vld [vmem:[#allocation2 + $0x90] sm:$0xff]
    %v5120 = vld [vmem:[#allocation2 + $0x98] sm:$0xff]
    %v5121 = vld [vmem:[#allocation2 + $0xa0] sm:$0xff]
    %v5122 = vld [vmem:[#allocation2 + $0xa8] sm:$0xff]
    %v5123 = vld [vmem:[#allocation2 + $0xb0] sm:$0xff]
    %v5124 = vld [vmem:[#allocation2 + $0xb8] sm:$0xff]
    %v5125 = vld [vmem:[#allocation2 + $0xc0] sm:$0xff]
    %v5126 = vld [vmem:[#allocation2 + $0xc8] sm:$0xff]
    %v5127 = vld [vmem:[#allocation2 + $0xd0] sm:$0xff]
    %v5128 = vld [vmem:[#allocation2 + $0xd8] sm:$0xff]
    %v5129 = vld [vmem:[#allocation2 + $0xe0] sm:$0xff]
    %v5130 = vld [vmem:[#allocation2 + $0xe8] sm:$0xff]
    %v5131 = vld [vmem:[#allocation2 + $0xf0] sm:$0xff]
    %v5132 = vld [vmem:[#allocation2 + $0xf8] sm:$0xff]
    %v5133 = vld [vmem:[#allocation2 + $0x100] sm:$0xff]
    %v5134 = vld [vmem:[#allocation2 + $0x108] sm:$0xff]
    %v5135 = vld [vmem:[#allocation2 + $0x110] sm:$0xff]
    %v5136 = vld [vmem:[#allocation2 + $0x118] sm:$0xff]
    %v5137 = vld [vmem:[#allocation2 + $0x120] sm:$0xff]
    %v5138 = vld [vmem:[#allocation2 + $0x128] sm:$0xff]
    %v5139 = vld [vmem:[#allocation2 + $0x130] sm:$0xff]
    %v5140 = vld [vmem:[#allocation2 + $0x138] sm:$0xff]
    %v5141 = vld [vmem:[#allocation2 + $0x140] sm:$0xff]
    %v5142 = vld [vmem:[#allocation2 + $0x148] sm:$0xff]
    %v5143 = vld [vmem:[#allocation2 + $0x150] sm:$0xff]
    %v5144 = vld [vmem:[#allocation2 + $0x158] sm:$0xff]
    %v5145 = vld [vmem:[#allocation2 + $0x160] sm:$0xff]
    %v5146 = vpack.c.bf16 %v5115, %v5114
    %v5147 = vpack.c.bf16 %v5117, %v5116
    %v5148 = vpack.c.bf16 %v5119, %v5118
    %v5149 = vpack.c.bf16 %v5121, %v5120
    %v5150 = vpack.c.bf16 %v5123, %v5122
    %v5151 = vpack.c.bf16 %v5125, %v5124
    %v5152 = vpack.c.bf16 %v5127, %v5126
    %v5153 = vpack.c.bf16 %v5129, %v5128
    %v5154 = vpack.c.bf16 %v5131, %v5130
    %v5155 = vpack.c.bf16 %v5133, %v5132
    %v5156 = vpack.c.bf16 %v5135, %v5134
    %v5157 = vpack.c.bf16 %v5137, %v5136
    %v5158 = vpack.c.bf16 %v5139, %v5138
    %v5159 = vpack.c.bf16 %v5141, %v5140
    %v5160 = vpack.c.bf16 %v5143, %v5142
    %v5161 = vpack.c.bf16 %v5145, %v5144
    %s5162 = scalar_lea.vmem %s4, 112
    %v5163 = vld [vmem:[%s5162] sm:$0xf]
    %v5164 = vld [vmem:[%s5162 + $0x4] sm:$0xf]
    %v5165 = vld [vmem:[%s5162 + $0x8] sm:$0xf]
    %v5166 = vld [vmem:[%s5162 + $0xc] sm:$0xf]
    %v5171 = vunpack.c.l.b16 %v5163
    %v5172 = vunpack.c.l.b16 %v5164
    %v5173 = vunpack.c.l.b16 %v5165
    %v5174 = vunpack.c.l.b16 %v5166
    %v5175 = vpack.c.b16 %v5172, %v5171
    %v5176 = vpack.c.b16 %v5174, %v5173
    %v5180 = vsel %vm43, %v5146, 0
    %v5183 = vsel %vm43, %v5147, 0
    %v5186 = vsel %vm43, %v5148, 0
    %v5189 = vsel %vm43, %v5149, 0
    %v5192 = vsel %vm43, %v5150, 0
    %v5195 = vsel %vm43, %v5151, 0
    %v5198 = vsel %vm43, %v5152, 0
    %v5201 = vsel %vm43, %v5153, 0
    %v5204 = vsel %vm43, %v5154, 0
    %v5207 = vsel %vm43, %v5155, 0
    %v5210 = vsel %vm43, %v5156, 0
    %v5213 = vsel %vm43, %v5157, 0
    %v5216 = vsel %vm43, %v5158, 0
    %v5219 = vsel %vm43, %v5159, 0
    %v5222 = vsel %vm43, %v5160, 0
    %v5225 = vsel %vm43, %v5161, 0
    %5227 = vmatpush.bf16.msra.mxu0 0
    %5228 = vmatpush.bf16.msra.mxu0 0
    %5229 = vmatpush.bf16.msra.mxu0 0
    %5230 = vmatpush.bf16.msra.mxu0 0
    %5231 = vmatpush.bf16.msra.mxu0 0
    %5232 = vmatpush.bf16.msra.mxu0 0
    %5233 = vmatpush.bf16.msra.mxu0 %v5176
    %5234 = vmatpush.bf16.msra.mxu0 %v5175
    %5235 = vmatmul.bf16.gmra.mxu0 %v5180
    %v5236 = vpop.f32.mrf.mxu0
    %v5237 = vadd.f32 0.0, %v5236
    %v5238 = vpop.f32.mrf.mxu0
    %v5239 = vadd.f32 0.0, %v5238
    %5240 = vmatmul.bf16.gmra.mxu0 %v5183
    %v5241 = vpop.f32.mrf.mxu0
    %v5242 = vadd.f32 0.0, %v5241
    %v5243 = vpop.f32.mrf.mxu0
    %v5244 = vadd.f32 0.0, %v5243
    %5245 = vmatmul.bf16.gmra.mxu0 %v5186
    %v5246 = vpop.f32.mrf.mxu0
    %v5247 = vadd.f32 0.0, %v5246
    %v5248 = vpop.f32.mrf.mxu0
    %v5249 = vadd.f32 0.0, %v5248
    %5250 = vmatmul.bf16.gmra.mxu0 %v5189
    %v5251 = vpop.f32.mrf.mxu0
    %v5252 = vadd.f32 0.0, %v5251
    %v5253 = vpop.f32.mrf.mxu0
    %v5254 = vadd.f32 0.0, %v5253
    %5255 = vmatmul.bf16.gmra.mxu0 %v5192
    %v5256 = vpop.f32.mrf.mxu0
    %v5257 = vadd.f32 0.0, %v5256
    %v5258 = vpop.f32.mrf.mxu0
    %v5259 = vadd.f32 0.0, %v5258
    %5260 = vmatmul.bf16.gmra.mxu0 %v5195
    %v5261 = vpop.f32.mrf.mxu0
    %v5262 = vadd.f32 0.0, %v5261
    %v5263 = vpop.f32.mrf.mxu0
    %v5264 = vadd.f32 0.0, %v5263
    %5265 = vmatmul.bf16.gmra.mxu0 %v5198
    %v5266 = vpop.f32.mrf.mxu0
    %v5267 = vadd.f32 0.0, %v5266
    %v5268 = vpop.f32.mrf.mxu0
    %v5269 = vadd.f32 0.0, %v5268
    %5270 = vmatmul.bf16.gmra.mxu0 %v5201
    %v5271 = vpop.f32.mrf.mxu0
    %v5272 = vadd.f32 0.0, %v5271
    %v5273 = vpop.f32.mrf.mxu0
    %v5274 = vadd.f32 0.0, %v5273
    %5275 = vmatmul.bf16.gmra.mxu0 %v5204
    %v5276 = vpop.f32.mrf.mxu0
    %v5277 = vadd.f32 0.0, %v5276
    %v5278 = vpop.f32.mrf.mxu0
    %v5279 = vadd.f32 0.0, %v5278
    %5280 = vmatmul.bf16.gmra.mxu0 %v5207
    %v5281 = vpop.f32.mrf.mxu0
    %v5282 = vadd.f32 0.0, %v5281
    %v5283 = vpop.f32.mrf.mxu0
    %v5284 = vadd.f32 0.0, %v5283
    %5285 = vmatmul.bf16.gmra.mxu0 %v5210
    %v5286 = vpop.f32.mrf.mxu0
    %v5287 = vadd.f32 0.0, %v5286
    %v5288 = vpop.f32.mrf.mxu0
    %v5289 = vadd.f32 0.0, %v5288
    %5290 = vmatmul.bf16.gmra.mxu0 %v5213
    %v5291 = vpop.f32.mrf.mxu0
    %v5292 = vadd.f32 0.0, %v5291
    %v5293 = vpop.f32.mrf.mxu0
    %v5294 = vadd.f32 0.0, %v5293
    %5295 = vmatmul.bf16.gmra.mxu0 %v5216
    %v5296 = vpop.f32.mrf.mxu0
    %v5297 = vadd.f32 0.0, %v5296
    %v5298 = vpop.f32.mrf.mxu0
    %v5299 = vadd.f32 0.0, %v5298
    %5300 = vmatmul.bf16.gmra.mxu0 %v5219
    %v5301 = vpop.f32.mrf.mxu0
    %v5302 = vadd.f32 0.0, %v5301
    %v5303 = vpop.f32.mrf.mxu0
    %v5304 = vadd.f32 0.0, %v5303
    %5305 = vmatmul.bf16.gmra.mxu0 %v5222
    %v5306 = vpop.f32.mrf.mxu0
    %v5307 = vadd.f32 0.0, %v5306
    %v5308 = vpop.f32.mrf.mxu0
    %v5309 = vadd.f32 0.0, %v5308
    %5310 = vmatmul.bf16.gmra.mxu0 %v5225
    %v5311 = vpop.f32.mrf.mxu0
    %v5312 = vadd.f32 0.0, %v5311
    %v5313 = vpop.f32.mrf.mxu0
    %v5314 = vadd.f32 0.0, %v5313
    %5315 = vdwg.mxu0
    %v5316 = vadd.f32 %v5082, %v5237
    %v5317 = vadd.f32 %v5083, %v5239
    %v5318 = vadd.f32 %v5084, %v5242
    %v5319 = vadd.f32 %v5085, %v5244
    %v5320 = vadd.f32 %v5086, %v5247
    %v5321 = vadd.f32 %v5087, %v5249
    %v5322 = vadd.f32 %v5088, %v5252
    %v5323 = vadd.f32 %v5089, %v5254
    %v5324 = vadd.f32 %v5090, %v5257
    %v5325 = vadd.f32 %v5091, %v5259
    %v5326 = vadd.f32 %v5092, %v5262
    %v5327 = vadd.f32 %v5093, %v5264
    %v5328 = vadd.f32 %v5094, %v5267
    %v5329 = vadd.f32 %v5095, %v5269
    %v5330 = vadd.f32 %v5096, %v5272
    %v5331 = vadd.f32 %v5097, %v5274
    %v5332 = vadd.f32 %v5098, %v5277
    %v5333 = vadd.f32 %v5099, %v5279
    %v5334 = vadd.f32 %v5100, %v5282
    %v5335 = vadd.f32 %v5101, %v5284
    %v5336 = vadd.f32 %v5102, %v5287
    %v5337 = vadd.f32 %v5103, %v5289
    %v5338 = vadd.f32 %v5104, %v5292
    %v5339 = vadd.f32 %v5105, %v5294
    %v5340 = vadd.f32 %v5106, %v5297
    %v5341 = vadd.f32 %v5107, %v5299
    %v5342 = vadd.f32 %v5108, %v5302
    %v5343 = vadd.f32 %v5109, %v5304
    %v5344 = vadd.f32 %v5110, %v5307
    %v5345 = vadd.f32 %v5111, %v5309
    %v5346 = vadd.f32 %v5112, %v5312
    %v5347 = vadd.f32 %v5113, %v5314
    %v5348 = vld [vmem:[#allocation2 + $0x6a] sm:$0xff]
    %v5349 = vld [vmem:[#allocation2 + $0x72] sm:$0xff]
    %v5350 = vld [vmem:[#allocation2 + $0x7a] sm:$0xff]
    %v5351 = vld [vmem:[#allocation2 + $0x82] sm:$0xff]
    %v5352 = vld [vmem:[#allocation2 + $0x8a] sm:$0xff]
    %v5353 = vld [vmem:[#allocation2 + $0x92] sm:$0xff]
    %v5354 = vld [vmem:[#allocation2 + $0x9a] sm:$0xff]
    %v5355 = vld [vmem:[#allocation2 + $0xa2] sm:$0xff]
    %v5356 = vld [vmem:[#allocation2 + $0xaa] sm:$0xff]
    %v5357 = vld [vmem:[#allocation2 + $0xb2] sm:$0xff]
    %v5358 = vld [vmem:[#allocation2 + $0xba] sm:$0xff]
    %v5359 = vld [vmem:[#allocation2 + $0xc2] sm:$0xff]
    %v5360 = vld [vmem:[#allocation2 + $0xca] sm:$0xff]
    %v5361 = vld [vmem:[#allocation2 + $0xd2] sm:$0xff]
    %v5362 = vld [vmem:[#allocation2 + $0xda] sm:$0xff]
    %v5363 = vld [vmem:[#allocation2 + $0xe2] sm:$0xff]
    %v5364 = vld [vmem:[#allocation2 + $0xea] sm:$0xff]
    %v5365 = vld [vmem:[#allocation2 + $0xf2] sm:$0xff]
    %v5366 = vld [vmem:[#allocation2 + $0xfa] sm:$0xff]
    %v5367 = vld [vmem:[#allocation2 + $0x102] sm:$0xff]
    %v5368 = vld [vmem:[#allocation2 + $0x10a] sm:$0xff]
    %v5369 = vld [vmem:[#allocation2 + $0x112] sm:$0xff]
    %v5370 = vld [vmem:[#allocation2 + $0x11a] sm:$0xff]
    %v5371 = vld [vmem:[#allocation2 + $0x122] sm:$0xff]
    %v5372 = vld [vmem:[#allocation2 + $0x12a] sm:$0xff]
    %v5373 = vld [vmem:[#allocation2 + $0x132] sm:$0xff]
    %v5374 = vld [vmem:[#allocation2 + $0x13a] sm:$0xff]
    %v5375 = vld [vmem:[#allocation2 + $0x142] sm:$0xff]
    %v5376 = vld [vmem:[#allocation2 + $0x14a] sm:$0xff]
    %v5377 = vld [vmem:[#allocation2 + $0x152] sm:$0xff]
    %v5378 = vld [vmem:[#allocation2 + $0x15a] sm:$0xff]
    %v5379 = vld [vmem:[#allocation2 + $0x162] sm:$0xff]
    %v5380 = vsel %vm3816, %v5348, 0.0
    %v5381 = vsel %vm3817, %v5349, 0.0
    %v5382 = vsel %vm3818, %v5350, 0.0
    %v5383 = vsel %vm3819, %v5351, 0.0
    %v5384 = vsel %vm3820, %v5352, 0.0
    %v5385 = vsel %vm3821, %v5353, 0.0
    %v5386 = vsel %vm3822, %v5354, 0.0
    %v5387 = vsel %vm3823, %v5355, 0.0
    %v5388 = vsel %vm3824, %v5356, 0.0
    %v5389 = vsel %vm3825, %v5357, 0.0
    %v5390 = vsel %vm3826, %v5358, 0.0
    %v5391 = vsel %vm3827, %v5359, 0.0
    %v5392 = vsel %vm3828, %v5360, 0.0
    %v5393 = vsel %vm3829, %v5361, 0.0
    %v5394 = vsel %vm3830, %v5362, 0.0
    %v5395 = vsel %vm3831, %v5363, 0.0
    %v5396 = vsel %vm3832, %v5364, 0.0
    %v5397 = vsel %vm3833, %v5365, 0.0
    %v5398 = vsel %vm3834, %v5366, 0.0
    %v5399 = vsel %vm3835, %v5367, 0.0
    %v5400 = vsel %vm3836, %v5368, 0.0
    %v5401 = vsel %vm3837, %v5369, 0.0
    %v5402 = vsel %vm3838, %v5370, 0.0
    %v5403 = vsel %vm3839, %v5371, 0.0
    %v5404 = vsel %vm3840, %v5372, 0.0
    %v5405 = vsel %vm3841, %v5373, 0.0
    %v5406 = vsel %vm3842, %v5374, 0.0
    %v5407 = vsel %vm3843, %v5375, 0.0
    %v5408 = vsel %vm3844, %v5376, 0.0
    %v5409 = vsel %vm3845, %v5377, 0.0
    %v5410 = vsel %vm3846, %v5378, 0.0
    %v5411 = vsel %vm3847, %v5379, 0.0
    %v5412 = vpack.c.bf16 %v5381, %v5380
    %v5413 = vpack.c.bf16 %v5383, %v5382
    %v5414 = vpack.c.bf16 %v5385, %v5384
    %v5415 = vpack.c.bf16 %v5387, %v5386
    %v5416 = vpack.c.bf16 %v5389, %v5388
    %v5417 = vpack.c.bf16 %v5391, %v5390
    %v5418 = vpack.c.bf16 %v5393, %v5392
    %v5419 = vpack.c.bf16 %v5395, %v5394
    %v5420 = vpack.c.bf16 %v5397, %v5396
    %v5421 = vpack.c.bf16 %v5399, %v5398
    %v5422 = vpack.c.bf16 %v5401, %v5400
    %v5423 = vpack.c.bf16 %v5403, %v5402
    %v5424 = vpack.c.bf16 %v5405, %v5404
    %v5425 = vpack.c.bf16 %v5407, %v5406
    %v5426 = vpack.c.bf16 %v5409, %v5408
    %v5427 = vpack.c.bf16 %v5411, %v5410
    %s5428 = scalar_lea.vmem %s4, 128
    %v5429 = vld [vmem:[%s5428] sm:$0xf]
    %v5430 = vld [vmem:[%s5428 + $0x4] sm:$0xf]
    %v5431 = vld [vmem:[%s5428 + $0x8] sm:$0xf]
    %v5432 = vld [vmem:[%s5428 + $0xc] sm:$0xf]
    %v5437 = vunpack.c.l.b16 %v5429
    %v5438 = vunpack.c.l.b16 %v5430
    %v5439 = vunpack.c.l.b16 %v5431
    %v5440 = vunpack.c.l.b16 %v5432
    %v5441 = vpack.c.b16 %v5438, %v5437
    %v5442 = vpack.c.b16 %v5440, %v5439
    %v5446 = vsel %vm43, %v5412, 0
    %v5449 = vsel %vm43, %v5413, 0
    %v5452 = vsel %vm43, %v5414, 0
    %v5455 = vsel %vm43, %v5415, 0
    %v5458 = vsel %vm43, %v5416, 0
    %v5461 = vsel %vm43, %v5417, 0
    %v5464 = vsel %vm43, %v5418, 0
    %v5467 = vsel %vm43, %v5419, 0
    %v5470 = vsel %vm43, %v5420, 0
    %v5473 = vsel %vm43, %v5421, 0
    %v5476 = vsel %vm43, %v5422, 0
    %v5479 = vsel %vm43, %v5423, 0
    %v5482 = vsel %vm43, %v5424, 0
    %v5485 = vsel %vm43, %v5425, 0
    %v5488 = vsel %vm43, %v5426, 0
    %v5491 = vsel %vm43, %v5427, 0
    %5493 = vmatpush.bf16.msra.mxu0 0
    %5494 = vmatpush.bf16.msra.mxu0 0
    %5495 = vmatpush.bf16.msra.mxu0 0
    %5496 = vmatpush.bf16.msra.mxu0 0
    %5497 = vmatpush.bf16.msra.mxu0 0
    %5498 = vmatpush.bf16.msra.mxu0 0
    %5499 = vmatpush.bf16.msra.mxu0 %v5442
    %5500 = vmatpush.bf16.msra.mxu0 %v5441
    %5501 = vmatmul.bf16.gmra.mxu0 %v5446
    %v5502 = vpop.f32.mrf.mxu0
    %v5503 = vadd.f32 0.0, %v5502
    %v5504 = vpop.f32.mrf.mxu0
    %v5505 = vadd.f32 0.0, %v5504
    %5506 = vmatmul.bf16.gmra.mxu0 %v5449
    %v5507 = vpop.f32.mrf.mxu0
    %v5508 = vadd.f32 0.0, %v5507
    %v5509 = vpop.f32.mrf.mxu0
    %v5510 = vadd.f32 0.0, %v5509
    %5511 = vmatmul.bf16.gmra.mxu0 %v5452
    %v5512 = vpop.f32.mrf.mxu0
    %v5513 = vadd.f32 0.0, %v5512
    %v5514 = vpop.f32.mrf.mxu0
    %v5515 = vadd.f32 0.0, %v5514
    %5516 = vmatmul.bf16.gmra.mxu0 %v5455
    %v5517 = vpop.f32.mrf.mxu0
    %v5518 = vadd.f32 0.0, %v5517
    %v5519 = vpop.f32.mrf.mxu0
    %v5520 = vadd.f32 0.0, %v5519
    %5521 = vmatmul.bf16.gmra.mxu0 %v5458
    %v5522 = vpop.f32.mrf.mxu0
    %v5523 = vadd.f32 0.0, %v5522
    %v5524 = vpop.f32.mrf.mxu0
    %v5525 = vadd.f32 0.0, %v5524
    %5526 = vmatmul.bf16.gmra.mxu0 %v5461
    %v5527 = vpop.f32.mrf.mxu0
    %v5528 = vadd.f32 0.0, %v5527
    %v5529 = vpop.f32.mrf.mxu0
    %v5530 = vadd.f32 0.0, %v5529
    %5531 = vmatmul.bf16.gmra.mxu0 %v5464
    %v5532 = vpop.f32.mrf.mxu0
    %v5533 = vadd.f32 0.0, %v5532
    %v5534 = vpop.f32.mrf.mxu0
    %v5535 = vadd.f32 0.0, %v5534
    %5536 = vmatmul.bf16.gmra.mxu0 %v5467
    %v5537 = vpop.f32.mrf.mxu0
    %v5538 = vadd.f32 0.0, %v5537
    %v5539 = vpop.f32.mrf.mxu0
    %v5540 = vadd.f32 0.0, %v5539
    %5541 = vmatmul.bf16.gmra.mxu0 %v5470
    %v5542 = vpop.f32.mrf.mxu0
    %v5543 = vadd.f32 0.0, %v5542
    %v5544 = vpop.f32.mrf.mxu0
    %v5545 = vadd.f32 0.0, %v5544
    %5546 = vmatmul.bf16.gmra.mxu0 %v5473
    %v5547 = vpop.f32.mrf.mxu0
    %v5548 = vadd.f32 0.0, %v5547
    %v5549 = vpop.f32.mrf.mxu0
    %v5550 = vadd.f32 0.0, %v5549
    %5551 = vmatmul.bf16.gmra.mxu0 %v5476
    %v5552 = vpop.f32.mrf.mxu0
    %v5553 = vadd.f32 0.0, %v5552
    %v5554 = vpop.f32.mrf.mxu0
    %v5555 = vadd.f32 0.0, %v5554
    %5556 = vmatmul.bf16.gmra.mxu0 %v5479
    %v5557 = vpop.f32.mrf.mxu0
    %v5558 = vadd.f32 0.0, %v5557
    %v5559 = vpop.f32.mrf.mxu0
    %v5560 = vadd.f32 0.0, %v5559
    %5561 = vmatmul.bf16.gmra.mxu0 %v5482
    %v5562 = vpop.f32.mrf.mxu0
    %v5563 = vadd.f32 0.0, %v5562
    %v5564 = vpop.f32.mrf.mxu0
    %v5565 = vadd.f32 0.0, %v5564
    %5566 = vmatmul.bf16.gmra.mxu0 %v5485
    %v5567 = vpop.f32.mrf.mxu0
    %v5568 = vadd.f32 0.0, %v5567
    %v5569 = vpop.f32.mrf.mxu0
    %v5570 = vadd.f32 0.0, %v5569
    %5571 = vmatmul.bf16.gmra.mxu0 %v5488
    %v5572 = vpop.f32.mrf.mxu0
    %v5573 = vadd.f32 0.0, %v5572
    %v5574 = vpop.f32.mrf.mxu0
    %v5575 = vadd.f32 0.0, %v5574
    %5576 = vmatmul.bf16.gmra.mxu0 %v5491
    %v5577 = vpop.f32.mrf.mxu0
    %v5578 = vadd.f32 0.0, %v5577
    %v5579 = vpop.f32.mrf.mxu0
    %v5580 = vadd.f32 0.0, %v5579
    %5581 = vdwg.mxu0
    %v5582 = vadd.f32 %v5316, %v5503
    %v5583 = vadd.f32 %v5317, %v5505
    %v5584 = vadd.f32 %v5318, %v5508
    %v5585 = vadd.f32 %v5319, %v5510
    %v5586 = vadd.f32 %v5320, %v5513
    %v5587 = vadd.f32 %v5321, %v5515
    %v5588 = vadd.f32 %v5322, %v5518
    %v5589 = vadd.f32 %v5323, %v5520
    %v5590 = vadd.f32 %v5324, %v5523
    %v5591 = vadd.f32 %v5325, %v5525
    %v5592 = vadd.f32 %v5326, %v5528
    %v5593 = vadd.f32 %v5327, %v5530
    %v5594 = vadd.f32 %v5328, %v5533
    %v5595 = vadd.f32 %v5329, %v5535
    %v5596 = vadd.f32 %v5330, %v5538
    %v5597 = vadd.f32 %v5331, %v5540
    %v5598 = vadd.f32 %v5332, %v5543
    %v5599 = vadd.f32 %v5333, %v5545
    %v5600 = vadd.f32 %v5334, %v5548
    %v5601 = vadd.f32 %v5335, %v5550
    %v5602 = vadd.f32 %v5336, %v5553
    %v5603 = vadd.f32 %v5337, %v5555
    %v5604 = vadd.f32 %v5338, %v5558
    %v5605 = vadd.f32 %v5339, %v5560
    %v5606 = vadd.f32 %v5340, %v5563
    %v5607 = vadd.f32 %v5341, %v5565
    %v5608 = vadd.f32 %v5342, %v5568
    %v5609 = vadd.f32 %v5343, %v5570
    %v5610 = vadd.f32 %v5344, %v5573
    %v5611 = vadd.f32 %v5345, %v5575
    %v5612 = vadd.f32 %v5346, %v5578
    %v5613 = vadd.f32 %v5347, %v5580
    %v5614 = vld [vmem:[%s5] sm:$0x1]
    %v5616 = vperm.slane %v5614, 0
    %v5618 = vadd.f32 %v5582, %v5616
    %v5619 = vadd.f32 %v5583, %v5616
    %v5620 = vadd.f32 %v5584, %v5616
    %v5621 = vadd.f32 %v5585, %v5616
    %v5622 = vadd.f32 %v5586, %v5616
    %v5623 = vadd.f32 %v5587, %v5616
    %v5624 = vadd.f32 %v5588, %v5616
    %v5625 = vadd.f32 %v5589, %v5616
    %v5626 = vadd.f32 %v5590, %v5616
    %v5627 = vadd.f32 %v5591, %v5616
    %v5628 = vadd.f32 %v5592, %v5616
    %v5629 = vadd.f32 %v5593, %v5616
    %v5630 = vadd.f32 %v5594, %v5616
    %v5631 = vadd.f32 %v5595, %v5616
    %v5632 = vadd.f32 %v5596, %v5616
    %v5633 = vadd.f32 %v5597, %v5616
    %v5634 = vadd.f32 %v5598, %v5616
    %v5635 = vadd.f32 %v5599, %v5616
    %v5636 = vadd.f32 %v5600, %v5616
    %v5637 = vadd.f32 %v5601, %v5616
    %v5638 = vadd.f32 %v5602, %v5616
    %v5639 = vadd.f32 %v5603, %v5616
    %v5640 = vadd.f32 %v5604, %v5616
    %v5641 = vadd.f32 %v5605, %v5616
    %v5642 = vadd.f32 %v5606, %v5616
    %v5643 = vadd.f32 %v5607, %v5616
    %v5644 = vadd.f32 %v5608, %v5616
    %v5645 = vadd.f32 %v5609, %v5616
    %v5646 = vadd.f32 %v5610, %v5616
    %v5647 = vadd.f32 %v5611, %v5616
    %v5648 = vadd.f32 %v5612, %v5616
    %v5649 = vadd.f32 %v5613, %v5616
    %v5650 = vmax.f32 %v5618, 0.0
    %v5651 = vmax.f32 %v5619, 0.0
    %v5652 = vmax.f32 %v5620, 0.0
    %v5653 = vmax.f32 %v5621, 0.0
    %v5654 = vmax.f32 %v5622, 0.0
    %v5655 = vmax.f32 %v5623, 0.0
    %v5656 = vmax.f32 %v5624, 0.0
    %v5657 = vmax.f32 %v5625, 0.0
    %v5658 = vmax.f32 %v5626, 0.0
    %v5659 = vmax.f32 %v5627, 0.0
    %v5660 = vmax.f32 %v5628, 0.0
    %v5661 = vmax.f32 %v5629, 0.0
    %v5662 = vmax.f32 %v5630, 0.0
    %v5663 = vmax.f32 %v5631, 0.0
    %v5664 = vmax.f32 %v5632, 0.0
    %v5665 = vmax.f32 %v5633, 0.0
    %v5666 = vmax.f32 %v5634, 0.0
    %v5667 = vmax.f32 %v5635, 0.0
    %v5668 = vmax.f32 %v5636, 0.0
    %v5669 = vmax.f32 %v5637, 0.0
    %v5670 = vmax.f32 %v5638, 0.0
    %v5671 = vmax.f32 %v5639, 0.0
    %v5672 = vmax.f32 %v5640, 0.0
    %v5673 = vmax.f32 %v5641, 0.0
    %v5674 = vmax.f32 %v5642, 0.0
    %v5675 = vmax.f32 %v5643, 0.0
    %v5676 = vmax.f32 %v5644, 0.0
    %v5677 = vmax.f32 %v5645, 0.0
    %v5678 = vmax.f32 %v5646, 0.0
    %v5679 = vmax.f32 %v5647, 0.0
    %v5680 = vmax.f32 %v5648, 0.0
    %v5681 = vmax.f32 %v5649, 0.0
    %5682 = vst.msk [vmem:[#allocation2 + $0x48] sm:$0xff] %vm43, %v5650
    %5683 = vst.msk [vmem:[#allocation2 + $0x50] sm:$0xff] %vm43, %v5651
    %5684 = vst.msk [vmem:[#allocation2 + $0x58] sm:$0xff] %vm43, %v5652
    %5685 = vst.msk [vmem:[#allocation2 + $0x60] sm:$0xff] %vm43, %v5653
    %5686 = vst.msk [vmem:[#allocation2 + $0x68] sm:$0xff] %vm43, %v5654
    %5687 = vst.msk [vmem:[#allocation2 + $0x70] sm:$0xff] %vm43, %v5655
    %5688 = vst.msk [vmem:[#allocation2 + $0x78] sm:$0xff] %vm43, %v5656
    %5689 = vst.msk [vmem:[#allocation2 + $0x80] sm:$0xff] %vm43, %v5657
    %5690 = vst.msk [vmem:[#allocation2 + $0x88] sm:$0xff] %vm43, %v5658
    %5691 = vst.msk [vmem:[#allocation2 + $0x90] sm:$0xff] %vm43, %v5659
    %5692 = vst.msk [vmem:[#allocation2 + $0x98] sm:$0xff] %vm43, %v5660
    %5693 = vst.msk [vmem:[#allocation2 + $0xa0] sm:$0xff] %vm43, %v5661
    %5694 = vst.msk [vmem:[#allocation2 + $0xa8] sm:$0xff] %vm43, %v5662
    %5695 = vst.msk [vmem:[#allocation2 + $0xb0] sm:$0xff] %vm43, %v5663
    %5696 = vst.msk [vmem:[#allocation2 + $0xb8] sm:$0xff] %vm43, %v5664
    %5697 = vst.msk [vmem:[#allocation2 + $0xc0] sm:$0xff] %vm43, %v5665
    %5698 = vst.msk [vmem:[#allocation2 + $0xc8] sm:$0xff] %vm43, %v5666
    %5699 = vst.msk [vmem:[#allocation2 + $0xd0] sm:$0xff] %vm43, %v5667
    %5700 = vst.msk [vmem:[#allocation2 + $0xd8] sm:$0xff] %vm43, %v5668
    %5701 = vst.msk [vmem:[#allocation2 + $0xe0] sm:$0xff] %vm43, %v5669
    %5702 = vst.msk [vmem:[#allocation2 + $0xe8] sm:$0xff] %vm43, %v5670
    %5703 = vst.msk [vmem:[#allocation2 + $0xf0] sm:$0xff] %vm43, %v5671
    %5704 = vst.msk [vmem:[#allocation2 + $0xf8] sm:$0xff] %vm43, %v5672
    %5705 = vst.msk [vmem:[#allocation2 + $0x100] sm:$0xff] %vm43, %v5673
    %5706 = vst.msk [vmem:[#allocation2 + $0x108] sm:$0xff] %vm43, %v5674
    %5707 = vst.msk [vmem:[#allocation2 + $0x110] sm:$0xff] %vm43, %v5675
    %5708 = vst.msk [vmem:[#allocation2 + $0x118] sm:$0xff] %vm43, %v5676
    %5709 = vst.msk [vmem:[#allocation2 + $0x120] sm:$0xff] %vm43, %v5677
    %5710 = vst.msk [vmem:[#allocation2 + $0x128] sm:$0xff] %vm43, %v5678
    %5711 = vst.msk [vmem:[#allocation2 + $0x130] sm:$0xff] %vm43, %v5679
    %5712 = vst.msk [vmem:[#allocation2 + $0x138] sm:$0xff] %vm43, %v5680
    %5713 = vst.msk [vmem:[#allocation2 + $0x140] sm:$0xff] %vm43, %v5681
    %v5714 = vld [vmem:[#allocation2 + $0x48] sm:$0xff]
    %v5715 = vld [vmem:[#allocation2 + $0x50] sm:$0xff]
    %v5716 = vld [vmem:[#allocation2 + $0x58] sm:$0xff]
    %v5717 = vld [vmem:[#allocation2 + $0x60] sm:$0xff]
    %v5718 = vld [vmem:[#allocation2 + $0x68] sm:$0xff]
    %v5719 = vld [vmem:[#allocation2 + $0x70] sm:$0xff]
    %v5720 = vld [vmem:[#allocation2 + $0x78] sm:$0xff]
    %v5721 = vld [vmem:[#allocation2 + $0x80] sm:$0xff]
    %v5722 = vld [vmem:[#allocation2 + $0x88] sm:$0xff]
    %v5723 = vld [vmem:[#allocation2 + $0x90] sm:$0xff]
    %v5724 = vld [vmem:[#allocation2 + $0x98] sm:$0xff]
    %v5725 = vld [vmem:[#allocation2 + $0xa0] sm:$0xff]
    %v5726 = vld [vmem:[#allocation2 + $0xa8] sm:$0xff]
    %v5727 = vld [vmem:[#allocation2 + $0xb0] sm:$0xff]
    %v5728 = vld [vmem:[#allocation2 + $0xb8] sm:$0xff]
    %v5729 = vld [vmem:[#allocation2 + $0xc0] sm:$0xff]
    %v5730 = vld [vmem:[#allocation2 + $0xc8] sm:$0xff]
    %v5731 = vld [vmem:[#allocation2 + $0xd0] sm:$0xff]
    %v5732 = vld [vmem:[#allocation2 + $0xd8] sm:$0xff]
    %v5733 = vld [vmem:[#allocation2 + $0xe0] sm:$0xff]
    %v5734 = vld [vmem:[#allocation2 + $0xe8] sm:$0xff]
    %v5735 = vld [vmem:[#allocation2 + $0xf0] sm:$0xff]
    %v5736 = vld [vmem:[#allocation2 + $0xf8] sm:$0xff]
    %v5737 = vld [vmem:[#allocation2 + $0x100] sm:$0xff]
    %v5738 = vld [vmem:[#allocation2 + $0x108] sm:$0xff]
    %v5739 = vld [vmem:[#allocation2 + $0x110] sm:$0xff]
    %v5740 = vld [vmem:[#allocation2 + $0x118] sm:$0xff]
    %v5741 = vld [vmem:[#allocation2 + $0x120] sm:$0xff]
    %v5742 = vld [vmem:[#allocation2 + $0x128] sm:$0xff]
    %v5743 = vld [vmem:[#allocation2 + $0x130] sm:$0xff]
    %v5744 = vld [vmem:[#allocation2 + $0x138] sm:$0xff]
    %v5745 = vld [vmem:[#allocation2 + $0x140] sm:$0xff]
    %v5746 = vld [vmem:[#allocation2 + $0x4a] sm:$0xff]
    %v5747 = vld [vmem:[#allocation2 + $0x52] sm:$0xff]
    %v5748 = vld [vmem:[#allocation2 + $0x5a] sm:$0xff]
    %v5749 = vld [vmem:[#allocation2 + $0x62] sm:$0xff]
    %v5750 = vld [vmem:[#allocation2 + $0x6a] sm:$0xff]
    %v5751 = vld [vmem:[#allocation2 + $0x72] sm:$0xff]
    %v5752 = vld [vmem:[#allocation2 + $0x7a] sm:$0xff]
    %v5753 = vld [vmem:[#allocation2 + $0x82] sm:$0xff]
    %v5754 = vld [vmem:[#allocation2 + $0x8a] sm:$0xff]
    %v5755 = vld [vmem:[#allocation2 + $0x92] sm:$0xff]
    %v5756 = vld [vmem:[#allocation2 + $0x9a] sm:$0xff]
    %v5757 = vld [vmem:[#allocation2 + $0xa2] sm:$0xff]
    %v5758 = vld [vmem:[#allocation2 + $0xaa] sm:$0xff]
    %v5759 = vld [vmem:[#allocation2 + $0xb2] sm:$0xff]
    %v5760 = vld [vmem:[#allocation2 + $0xba] sm:$0xff]
    %v5761 = vld [vmem:[#allocation2 + $0xc2] sm:$0xff]
    %v5762 = vld [vmem:[#allocation2 + $0xca] sm:$0xff]
    %v5763 = vld [vmem:[#allocation2 + $0xd2] sm:$0xff]
    %v5764 = vld [vmem:[#allocation2 + $0xda] sm:$0xff]
    %v5765 = vld [vmem:[#allocation2 + $0xe2] sm:$0xff]
    %v5766 = vld [vmem:[#allocation2 + $0xea] sm:$0xff]
    %v5767 = vld [vmem:[#allocation2 + $0xf2] sm:$0xff]
    %v5768 = vld [vmem:[#allocation2 + $0xfa] sm:$0xff]
    %v5769 = vld [vmem:[#allocation2 + $0x102] sm:$0xff]
    %v5770 = vld [vmem:[#allocation2 + $0x10a] sm:$0xff]
    %v5771 = vld [vmem:[#allocation2 + $0x112] sm:$0xff]
    %v5772 = vld [vmem:[#allocation2 + $0x11a] sm:$0xff]
    %v5773 = vld [vmem:[#allocation2 + $0x122] sm:$0xff]
    %v5774 = vld [vmem:[#allocation2 + $0x12a] sm:$0xff]
    %v5775 = vld [vmem:[#allocation2 + $0x132] sm:$0xff]
    %v5776 = vld [vmem:[#allocation2 + $0x13a] sm:$0xff]
    %v5777 = vld [vmem:[#allocation2 + $0x142] sm:$0xff]
    %v5778 = vmax.f32 %v5714, %v5746
    %v5779 = vmax.f32 %v5715, %v5747
    %v5780 = vmax.f32 %v5716, %v5748
    %v5781 = vmax.f32 %v5717, %v5749
    %v5782 = vmax.f32 %v5718, %v5750
    %v5783 = vmax.f32 %v5719, %v5751
    %v5784 = vmax.f32 %v5720, %v5752
    %v5785 = vmax.f32 %v5721, %v5753
    %v5786 = vmax.f32 %v5722, %v5754
    %v5787 = vmax.f32 %v5723, %v5755
    %v5788 = vmax.f32 %v5724, %v5756
    %v5789 = vmax.f32 %v5725, %v5757
    %v5790 = vmax.f32 %v5726, %v5758
    %v5791 = vmax.f32 %v5727, %v5759
    %v5792 = vmax.f32 %v5728, %v5760
    %v5793 = vmax.f32 %v5729, %v5761
    %v5794 = vmax.f32 %v5730, %v5762
    %v5795 = vmax.f32 %v5731, %v5763
    %v5796 = vmax.f32 %v5732, %v5764
    %v5797 = vmax.f32 %v5733, %v5765
    %v5798 = vmax.f32 %v5734, %v5766
    %v5799 = vmax.f32 %v5735, %v5767
    %v5800 = vmax.f32 %v5736, %v5768
    %v5801 = vmax.f32 %v5737, %v5769
    %v5802 = vmax.f32 %v5738, %v5770
    %v5803 = vmax.f32 %v5739, %v5771
    %v5804 = vmax.f32 %v5740, %v5772
    %v5805 = vmax.f32 %v5741, %v5773
    %v5806 = vmax.f32 %v5742, %v5774
    %v5807 = vmax.f32 %v5743, %v5775
    %v5808 = vmax.f32 %v5744, %v5776
    %v5809 = vmax.f32 %v5745, %v5777
    %v5810 = vld [vmem:[#allocation2 + $0x148] sm:$0xff]
    %v5811 = vld [vmem:[#allocation2 + $0x150] sm:$0xff]
    %v5812 = vld [vmem:[#allocation2 + $0x158] sm:$0xff]
    %v5813 = vld [vmem:[#allocation2 + $0x160] sm:$0xff]
    %v5814 = vmax.f32 %v5778, %v5718
    %v5815 = vmax.f32 %v5779, %v5719
    %v5816 = vmax.f32 %v5780, %v5720
    %v5817 = vmax.f32 %v5781, %v5721
    %v5818 = vmax.f32 %v5782, %v5722
    %v5819 = vmax.f32 %v5783, %v5723
    %v5820 = vmax.f32 %v5784, %v5724
    %v5821 = vmax.f32 %v5785, %v5725
    %v5822 = vmax.f32 %v5786, %v5726
    %v5823 = vmax.f32 %v5787, %v5727
    %v5824 = vmax.f32 %v5788, %v5728
    %v5825 = vmax.f32 %v5789, %v5729
    %v5826 = vmax.f32 %v5790, %v5730
    %v5827 = vmax.f32 %v5791, %v5731
    %v5828 = vmax.f32 %v5792, %v5732
    %v5829 = vmax.f32 %v5793, %v5733
    %v5830 = vmax.f32 %v5794, %v5734
    %v5831 = vmax.f32 %v5795, %v5735
    %v5832 = vmax.f32 %v5796, %v5736
    %v5833 = vmax.f32 %v5797, %v5737
    %v5834 = vmax.f32 %v5798, %v5738
    %v5835 = vmax.f32 %v5799, %v5739
    %v5836 = vmax.f32 %v5800, %v5740
    %v5837 = vmax.f32 %v5801, %v5741
    %v5838 = vmax.f32 %v5802, %v5742
    %v5839 = vmax.f32 %v5803, %v5743
    %v5840 = vmax.f32 %v5804, %v5744
    %v5841 = vmax.f32 %v5805, %v5745
    %v5842 = vmax.f32 %v5806, %v5810
    %v5843 = vmax.f32 %v5807, %v5811
    %v5844 = vmax.f32 %v5808, %v5812
    %v5845 = vmax.f32 %v5809, %v5813
    %v5846 = vld [vmem:[#allocation2 + $0x14a] sm:$0xff]
    %v5847 = vld [vmem:[#allocation2 + $0x152] sm:$0xff]
    %v5848 = vld [vmem:[#allocation2 + $0x15a] sm:$0xff]
    %v5849 = vld [vmem:[#allocation2 + $0x162] sm:$0xff]
    %v5850 = vmax.f32 %v5814, %v5750
    %v5851 = vmax.f32 %v5815, %v5751
    %v5852 = vmax.f32 %v5816, %v5752
    %v5853 = vmax.f32 %v5817, %v5753
    %v5854 = vmax.f32 %v5818, %v5754
    %v5855 = vmax.f32 %v5819, %v5755
    %v5856 = vmax.f32 %v5820, %v5756
    %v5857 = vmax.f32 %v5821, %v5757
    %v5858 = vmax.f32 %v5822, %v5758
    %v5859 = vmax.f32 %v5823, %v5759
    %v5860 = vmax.f32 %v5824, %v5760
    %v5861 = vmax.f32 %v5825, %v5761
    %v5862 = vmax.f32 %v5826, %v5762
    %v5863 = vmax.f32 %v5827, %v5763
    %v5864 = vmax.f32 %v5828, %v5764
    %v5865 = vmax.f32 %v5829, %v5765
    %v5866 = vmax.f32 %v5830, %v5766
    %v5867 = vmax.f32 %v5831, %v5767
    %v5868 = vmax.f32 %v5832, %v5768
    %v5869 = vmax.f32 %v5833, %v5769
    %v5870 = vmax.f32 %v5834, %v5770
    %v5871 = vmax.f32 %v5835, %v5771
    %v5872 = vmax.f32 %v5836, %v5772
    %v5873 = vmax.f32 %v5837, %v5773
    %v5874 = vmax.f32 %v5838, %v5774
    %v5875 = vmax.f32 %v5839, %v5775
    %v5876 = vmax.f32 %v5840, %v5776
    %v5877 = vmax.f32 %v5841, %v5777
    %v5878 = vmax.f32 %v5842, %v5846
    %v5879 = vmax.f32 %v5843, %v5847
    %v5880 = vmax.f32 %v5844, %v5848
    %v5881 = vmax.f32 %v5845, %v5849
    %5882 = vst.msk [vmem:[#allocation2 + $0x48] sm:$0xff] %vm43, %v5850
    %5883 = vst.msk [vmem:[#allocation2 + $0x50] sm:$0xff] %vm43, %v5851
    %5884 = vst.msk [vmem:[#allocation2 + $0x58] sm:$0xff] %vm43, %v5852
    %5885 = vst.msk [vmem:[#allocation2 + $0x60] sm:$0xff] %vm43, %v5853
    %5886 = vst.msk [vmem:[#allocation2 + $0x68] sm:$0xff] %vm43, %v5854
    %5887 = vst.msk [vmem:[#allocation2 + $0x70] sm:$0xff] %vm43, %v5855
    %5888 = vst.msk [vmem:[#allocation2 + $0x78] sm:$0xff] %vm43, %v5856
    %5889 = vst.msk [vmem:[#allocation2 + $0x80] sm:$0xff] %vm43, %v5857
    %5890 = vst.msk [vmem:[#allocation2 + $0x88] sm:$0xff] %vm43, %v5858
    %5891 = vst.msk [vmem:[#allocation2 + $0x90] sm:$0xff] %vm43, %v5859
    %5892 = vst.msk [vmem:[#allocation2 + $0x98] sm:$0xff] %vm43, %v5860
    %5893 = vst.msk [vmem:[#allocation2 + $0xa0] sm:$0xff] %vm43, %v5861
    %5894 = vst.msk [vmem:[#allocation2 + $0xa8] sm:$0xff] %vm43, %v5862
    %5895 = vst.msk [vmem:[#allocation2 + $0xb0] sm:$0xff] %vm43, %v5863
    %5896 = vst.msk [vmem:[#allocation2 + $0xb8] sm:$0xff] %vm43, %v5864
    %5897 = vst.msk [vmem:[#allocation2 + $0xc0] sm:$0xff] %vm43, %v5865
    %5898 = vst.msk [vmem:[#allocation2 + $0xc8] sm:$0xff] %vm43, %v5866
    %5899 = vst.msk [vmem:[#allocation2 + $0xd0] sm:$0xff] %vm43, %v5867
    %5900 = vst.msk [vmem:[#allocation2 + $0xd8] sm:$0xff] %vm43, %v5868
    %5901 = vst.msk [vmem:[#allocation2 + $0xe0] sm:$0xff] %vm43, %v5869
    %5902 = vst.msk [vmem:[#allocation2 + $0xe8] sm:$0xff] %vm43, %v5870
    %5903 = vst.msk [vmem:[#allocation2 + $0xf0] sm:$0xff] %vm43, %v5871
    %5904 = vst.msk [vmem:[#allocation2 + $0xf8] sm:$0xff] %vm43, %v5872
    %5905 = vst.msk [vmem:[#allocation2 + $0x100] sm:$0xff] %vm43, %v5873
    %5906 = vst.msk [vmem:[#allocation2 + $0x108] sm:$0xff] %vm43, %v5874
    %5907 = vst.msk [vmem:[#allocation2 + $0x110] sm:$0xff] %vm43, %v5875
    %5908 = vst.msk [vmem:[#allocation2 + $0x118] sm:$0xff] %vm43, %v5876
    %5909 = vst.msk [vmem:[#allocation2 + $0x120] sm:$0xff] %vm43, %v5877
    %5910 = vst.msk [vmem:[#allocation2 + $0x128] sm:$0xff] %vm43, %v5878
    %5911 = vst.msk [vmem:[#allocation2 + $0x130] sm:$0xff] %vm43, %v5879
    %5912 = vst.msk [vmem:[#allocation2 + $0x138] sm:$0xff] %vm43, %v5880
    %5913 = vst.msk [vmem:[#allocation2 + $0x140] sm:$0xff] %vm43, %v5881
    %vm5914 = vcmp.ge.s32.totalorder %v94, 4
    %vm5915 = vcmp.ge.s32.totalorder %v95, 4
    %vm5916 = vcmp.ge.s32.totalorder %v96, 4
    %vm5917 = vcmp.ge.s32.totalorder %v97, 4
    %vm5918 = vcmp.ge.s32.totalorder %v98, 4
    %vm5919 = vcmp.ge.s32.totalorder %v99, 4
    %vm5920 = vcmp.ge.s32.totalorder %v100, 4
    %vm5921 = vcmp.ge.s32.totalorder %v101, 4
    %vm5922 = vcmp.ge.s32.totalorder %v102, 4
    %vm5923 = vcmp.ge.s32.totalorder %v103, 4
    %vm5924 = vcmp.ge.s32.totalorder %v104, 4
    %vm5925 = vcmp.ge.s32.totalorder %v105, 4
    %vm5926 = vcmp.ge.s32.totalorder %v106, 4
    %vm5927 = vcmp.ge.s32.totalorder %v107, 4
    %vm5928 = vcmp.ge.s32.totalorder %v108, 4
    %vm5929 = vcmp.ge.s32.totalorder %v109, 4
    %vm5930 = vcmp.ge.s32.totalorder %v110, 4
    %vm5931 = vcmp.ge.s32.totalorder %v111, 4
    %vm5932 = vcmp.ge.s32.totalorder %v112, 4
    %vm5933 = vcmp.ge.s32.totalorder %v113, 4
    %vm5934 = vcmp.ge.s32.totalorder %v114, 4
    %vm5935 = vcmp.ge.s32.totalorder %v115, 4
    %vm5936 = vcmp.ge.s32.totalorder %v116, 4
    %vm5937 = vcmp.ge.s32.totalorder %v117, 4
    %vm5938 = vcmp.ge.s32.totalorder %v118, 4
    %vm5939 = vcmp.ge.s32.totalorder %v119, 4
    %vm5940 = vcmp.ge.s32.totalorder %v120, 4
    %vm5941 = vcmp.ge.s32.totalorder %v121, 4
    %vm5942 = vcmp.ge.s32.totalorder %v122, 4
    %vm5943 = vcmp.ge.s32.totalorder %v123, 4
    %vm5944 = vcmp.ge.s32.totalorder %v124, 4
    %vm5945 = vcmp.ge.s32.totalorder %v125, 4
    %vm5946 = vcmp.lt.s32.totalorder %v94, 12
    %vm5947 = vcmp.lt.s32.totalorder %v95, 12
    %vm5948 = vcmp.lt.s32.totalorder %v96, 12
    %vm5949 = vcmp.lt.s32.totalorder %v97, 12
    %vm5950 = vcmp.lt.s32.totalorder %v98, 12
    %vm5951 = vcmp.lt.s32.totalorder %v99, 12
    %vm5952 = vcmp.lt.s32.totalorder %v100, 12
    %vm5953 = vcmp.lt.s32.totalorder %v101, 12
    %vm5954 = vcmp.lt.s32.totalorder %v102, 12
    %vm5955 = vcmp.lt.s32.totalorder %v103, 12
    %vm5956 = vcmp.lt.s32.totalorder %v104, 12
    %vm5957 = vcmp.lt.s32.totalorder %v105, 12
    %vm5958 = vcmp.lt.s32.totalorder %v106, 12
    %vm5959 = vcmp.lt.s32.totalorder %v107, 12
    %vm5960 = vcmp.lt.s32.totalorder %v108, 12
    %vm5961 = vcmp.lt.s32.totalorder %v109, 12
    %vm5962 = vcmp.lt.s32.totalorder %v110, 12
    %vm5963 = vcmp.lt.s32.totalorder %v111, 12
    %vm5964 = vcmp.lt.s32.totalorder %v112, 12
    %vm5965 = vcmp.lt.s32.totalorder %v113, 12
    %vm5966 = vcmp.lt.s32.totalorder %v114, 12
    %vm5967 = vcmp.lt.s32.totalorder %v115, 12
    %vm5968 = vcmp.lt.s32.totalorder %v116, 12
    %vm5969 = vcmp.lt.s32.totalorder %v117, 12
    %vm5970 = vcmp.lt.s32.totalorder %v118, 12
    %vm5971 = vcmp.lt.s32.totalorder %v119, 12
    %vm5972 = vcmp.lt.s32.totalorder %v120, 12
    %vm5973 = vcmp.lt.s32.totalorder %v121, 12
    %vm5974 = vcmp.lt.s32.totalorder %v122, 12
    %vm5975 = vcmp.lt.s32.totalorder %v123, 12
    %vm5976 = vcmp.lt.s32.totalorder %v124, 12
    %vm5977 = vcmp.lt.s32.totalorder %v125, 12
    %v5978 = vld [vmem:[#allocation2 + $0x4] sm:$0xff]
    %v5979 = vld [vmem:[#allocation2 + $0xc] sm:$0xff]
    %v5980 = vld [vmem:[#allocation2 + $0x14] sm:$0xff]
    %v5981 = vld [vmem:[#allocation2 + $0x1c] sm:$0xff]
    %v5982 = vld [vmem:[#allocation2 + $0x24] sm:$0xff]
    %v5983 = vld [vmem:[#allocation2 + $0x2c] sm:$0xff]
    %v5984 = vld [vmem:[#allocation2 + $0x34] sm:$0xff]
    %v5985 = vld [vmem:[#allocation2 + $0x3c] sm:$0xff]
    %v5986 = vld [vmem:[#allocation2 + $0x44] sm:$0xff]
    %v5987 = vld [vmem:[#allocation2 + $0x4c] sm:$0xff]
    %v5988 = vld [vmem:[#allocation2 + $0x54] sm:$0xff]
    %v5989 = vld [vmem:[#allocation2 + $0x5c] sm:$0xff]
    %v5990 = vld [vmem:[#allocation2 + $0x64] sm:$0xff]
    %v5991 = vld [vmem:[#allocation2 + $0x6c] sm:$0xff]
    %v5992 = vld [vmem:[#allocation2 + $0x74] sm:$0xff]
    %v5993 = vld [vmem:[#allocation2 + $0x7c] sm:$0xff]
    %v5994 = vld [vmem:[#allocation2 + $0x84] sm:$0xff]
    %v5995 = vld [vmem:[#allocation2 + $0x8c] sm:$0xff]
    %v5996 = vld [vmem:[#allocation2 + $0x94] sm:$0xff]
    %v5997 = vld [vmem:[#allocation2 + $0x9c] sm:$0xff]
    %v5998 = vld [vmem:[#allocation2 + $0xa4] sm:$0xff]
    %v5999 = vld [vmem:[#allocation2 + $0xac] sm:$0xff]
    %v6000 = vld [vmem:[#allocation2 + $0xb4] sm:$0xff]
    %v6001 = vld [vmem:[#allocation2 + $0xbc] sm:$0xff]
    %v6002 = vld [vmem:[#allocation2 + $0xc4] sm:$0xff]
    %v6003 = vld [vmem:[#allocation2 + $0xcc] sm:$0xff]
    %v6004 = vld [vmem:[#allocation2 + $0xd4] sm:$0xff]
    %v6005 = vld [vmem:[#allocation2 + $0xdc] sm:$0xff]
    %v6006 = vld [vmem:[#allocation2 + $0xe4] sm:$0xff]
    %v6007 = vld [vmem:[#allocation2 + $0xec] sm:$0xff]
    %v6008 = vld [vmem:[#allocation2 + $0xf4] sm:$0xff]
    %v6009 = vld [vmem:[#allocation2 + $0xfc] sm:$0xff]
    %v6010 = vsel %vm5914, 1, 0
    %v6011 = vsel %vm5915, 1, 0
    %v6012 = vsel %vm5916, 1, 0
    %v6013 = vsel %vm5917, 1, 0
    %v6014 = vsel %vm5918, 1, 0
    %v6015 = vsel %vm5919, 1, 0
    %v6016 = vsel %vm5920, 1, 0
    %v6017 = vsel %vm5921, 1, 0
    %v6018 = vsel %vm5922, 1, 0
    %v6019 = vsel %vm5923, 1, 0
    %v6020 = vsel %vm5924, 1, 0
    %v6021 = vsel %vm5925, 1, 0
    %v6022 = vsel %vm5926, 1, 0
    %v6023 = vsel %vm5927, 1, 0
    %v6024 = vsel %vm5928, 1, 0
    %v6025 = vsel %vm5929, 1, 0
    %v6026 = vsel %vm5930, 1, 0
    %v6027 = vsel %vm5931, 1, 0
    %v6028 = vsel %vm5932, 1, 0
    %v6029 = vsel %vm5933, 1, 0
    %v6030 = vsel %vm5934, 1, 0
    %v6031 = vsel %vm5935, 1, 0
    %v6032 = vsel %vm5936, 1, 0
    %v6033 = vsel %vm5937, 1, 0
    %v6034 = vsel %vm5938, 1, 0
    %v6035 = vsel %vm5939, 1, 0
    %v6036 = vsel %vm5940, 1, 0
    %v6037 = vsel %vm5941, 1, 0
    %v6038 = vsel %vm5942, 1, 0
    %v6039 = vsel %vm5943, 1, 0
    %v6040 = vsel %vm5944, 1, 0
    %v6041 = vsel %vm5945, 1, 0
    %6042 = vset.pattern.permute.xlu0 0
    %6043 = vperm.xlu0 %6042, %v6010
    %v6044 = vpop.permute.xlu0 %6043
    %6045 = vset.pattern.permute.xlu0 0
    %6046 = vperm.xlu0 %6045, %v6011
    %v6047 = vpop.permute.xlu0 %6046
    %6048 = vset.pattern.permute.xlu0 0
    %6049 = vperm.xlu0 %6048, %v6012
    %v6050 = vpop.permute.xlu0 %6049
    %6051 = vset.pattern.permute.xlu0 0
    %6052 = vperm.xlu0 %6051, %v6013
    %v6053 = vpop.permute.xlu0 %6052
    %6054 = vset.pattern.permute.xlu0 0
    %6055 = vperm.xlu0 %6054, %v6014
    %v6056 = vpop.permute.xlu0 %6055
    %6057 = vset.pattern.permute.xlu0 0
    %6058 = vperm.xlu0 %6057, %v6015
    %v6059 = vpop.permute.xlu0 %6058
    %6060 = vset.pattern.permute.xlu0 0
    %6061 = vperm.xlu0 %6060, %v6016
    %v6062 = vpop.permute.xlu0 %6061
    %6063 = vset.pattern.permute.xlu0 0
    %6064 = vperm.xlu0 %6063, %v6017
    %v6065 = vpop.permute.xlu0 %6064
    %6066 = vset.pattern.permute.xlu0 0
    %6067 = vperm.xlu0 %6066, %v6018
    %v6068 = vpop.permute.xlu0 %6067
    %6069 = vset.pattern.permute.xlu0 0
    %6070 = vperm.xlu0 %6069, %v6019
    %v6071 = vpop.permute.xlu0 %6070
    %6072 = vset.pattern.permute.xlu0 0
    %6073 = vperm.xlu0 %6072, %v6020
    %v6074 = vpop.permute.xlu0 %6073
    %6075 = vset.pattern.permute.xlu0 0
    %6076 = vperm.xlu0 %6075, %v6021
    %v6077 = vpop.permute.xlu0 %6076
    %6078 = vset.pattern.permute.xlu0 0
    %6079 = vperm.xlu0 %6078, %v6022
    %v6080 = vpop.permute.xlu0 %6079
    %6081 = vset.pattern.permute.xlu0 0
    %6082 = vperm.xlu0 %6081, %v6023
    %v6083 = vpop.permute.xlu0 %6082
    %6084 = vset.pattern.permute.xlu0 0
    %6085 = vperm.xlu0 %6084, %v6024
    %v6086 = vpop.permute.xlu0 %6085
    %6087 = vset.pattern.permute.xlu0 0
    %6088 = vperm.xlu0 %6087, %v6025
    %v6089 = vpop.permute.xlu0 %6088
    %6090 = vset.pattern.permute.xlu0 0
    %6091 = vperm.xlu0 %6090, %v6026
    %v6092 = vpop.permute.xlu0 %6091
    %6093 = vset.pattern.permute.xlu0 0
    %6094 = vperm.xlu0 %6093, %v6027
    %v6095 = vpop.permute.xlu0 %6094
    %6096 = vset.pattern.permute.xlu0 0
    %6097 = vperm.xlu0 %6096, %v6028
    %v6098 = vpop.permute.xlu0 %6097
    %6099 = vset.pattern.permute.xlu0 0
    %6100 = vperm.xlu0 %6099, %v6029
    %v6101 = vpop.permute.xlu0 %6100
    %6102 = vset.pattern.permute.xlu0 0
    %6103 = vperm.xlu0 %6102, %v6030
    %v6104 = vpop.permute.xlu0 %6103
    %6105 = vset.pattern.permute.xlu0 0
    %6106 = vperm.xlu0 %6105, %v6031
    %v6107 = vpop.permute.xlu0 %6106
    %6108 = vset.pattern.permute.xlu0 0
    %6109 = vperm.xlu0 %6108, %v6032
    %v6110 = vpop.permute.xlu0 %6109
    %6111 = vset.pattern.permute.xlu0 0
    %6112 = vperm.xlu0 %6111, %v6033
    %v6113 = vpop.permute.xlu0 %6112
    %6114 = vset.pattern.permute.xlu0 0
    %6115 = vperm.xlu0 %6114, %v6034
    %v6116 = vpop.permute.xlu0 %6115
    %6117 = vset.pattern.permute.xlu0 0
    %6118 = vperm.xlu0 %6117, %v6035
    %v6119 = vpop.permute.xlu0 %6118
    %6120 = vset.pattern.permute.xlu0 0
    %6121 = vperm.xlu0 %6120, %v6036
    %v6122 = vpop.permute.xlu0 %6121
    %6123 = vset.pattern.permute.xlu0 0
    %6124 = vperm.xlu0 %6123, %v6037
    %v6125 = vpop.permute.xlu0 %6124
    %6126 = vset.pattern.permute.xlu0 0
    %6127 = vperm.xlu0 %6126, %v6038
    %v6128 = vpop.permute.xlu0 %6127
    %6129 = vset.pattern.permute.xlu0 0
    %6130 = vperm.xlu0 %6129, %v6039
    %v6131 = vpop.permute.xlu0 %6130
    %6132 = vset.pattern.permute.xlu0 0
    %6133 = vperm.xlu0 %6132, %v6040
    %v6134 = vpop.permute.xlu0 %6133
    %6135 = vset.pattern.permute.xlu0 0
    %6136 = vperm.xlu0 %6135, %v6041
    %v6137 = vpop.permute.xlu0 %6136
    %vm6138 = vcmp.eq.s32.totalorder %v6044, 1
    %vm6139 = vcmp.eq.s32.totalorder %v6047, 1
    %vm6140 = vcmp.eq.s32.totalorder %v6050, 1
    %vm6141 = vcmp.eq.s32.totalorder %v6053, 1
    %vm6142 = vcmp.eq.s32.totalorder %v6056, 1
    %vm6143 = vcmp.eq.s32.totalorder %v6059, 1
    %vm6144 = vcmp.eq.s32.totalorder %v6062, 1
    %vm6145 = vcmp.eq.s32.totalorder %v6065, 1
    %vm6146 = vcmp.eq.s32.totalorder %v6068, 1
    %vm6147 = vcmp.eq.s32.totalorder %v6071, 1
    %vm6148 = vcmp.eq.s32.totalorder %v6074, 1
    %vm6149 = vcmp.eq.s32.totalorder %v6077, 1
    %vm6150 = vcmp.eq.s32.totalorder %v6080, 1
    %vm6151 = vcmp.eq.s32.totalorder %v6083, 1
    %vm6152 = vcmp.eq.s32.totalorder %v6086, 1
    %vm6153 = vcmp.eq.s32.totalorder %v6089, 1
    %vm6154 = vcmp.eq.s32.totalorder %v6092, 1
    %vm6155 = vcmp.eq.s32.totalorder %v6095, 1
    %vm6156 = vcmp.eq.s32.totalorder %v6098, 1
    %vm6157 = vcmp.eq.s32.totalorder %v6101, 1
    %vm6158 = vcmp.eq.s32.totalorder %v6104, 1
    %vm6159 = vcmp.eq.s32.totalorder %v6107, 1
    %vm6160 = vcmp.eq.s32.totalorder %v6110, 1
    %vm6161 = vcmp.eq.s32.totalorder %v6113, 1
    %vm6162 = vcmp.eq.s32.totalorder %v6116, 1
    %vm6163 = vcmp.eq.s32.totalorder %v6119, 1
    %vm6164 = vcmp.eq.s32.totalorder %v6122, 1
    %vm6165 = vcmp.eq.s32.totalorder %v6125, 1
    %vm6166 = vcmp.eq.s32.totalorder %v6128, 1
    %vm6167 = vcmp.eq.s32.totalorder %v6131, 1
    %vm6168 = vcmp.eq.s32.totalorder %v6134, 1
    %vm6169 = vcmp.eq.s32.totalorder %v6137, 1
    %v6170 = vsel %vm6138, %v5978, 0.0
    %v6171 = vsel %vm6139, %v5979, 0.0
    %v6172 = vsel %vm6140, %v5980, 0.0
    %v6173 = vsel %vm6141, %v5981, 0.0
    %v6174 = vsel %vm6142, %v5982, 0.0
    %v6175 = vsel %vm6143, %v5983, 0.0
    %v6176 = vsel %vm6144, %v5984, 0.0
    %v6177 = vsel %vm6145, %v5985, 0.0
    %v6178 = vsel %vm6146, %v5986, 0.0
    %v6179 = vsel %vm6147, %v5987, 0.0
    %v6180 = vsel %vm6148, %v5988, 0.0
    %v6181 = vsel %vm6149, %v5989, 0.0
    %v6182 = vsel %vm6150, %v5990, 0.0
    %v6183 = vsel %vm6151, %v5991, 0.0
    %v6184 = vsel %vm6152, %v5992, 0.0
    %v6185 = vsel %vm6153, %v5993, 0.0
    %v6186 = vsel %vm6154, %v5994, 0.0
    %v6187 = vsel %vm6155, %v5995, 0.0
    %v6188 = vsel %vm6156, %v5996, 0.0
    %v6189 = vsel %vm6157, %v5997, 0.0
    %v6190 = vsel %vm6158, %v5998, 0.0
    %v6191 = vsel %vm6159, %v5999, 0.0
    %v6192 = vsel %vm6160, %v6000, 0.0
    %v6193 = vsel %vm6161, %v6001, 0.0
    %v6194 = vsel %vm6162, %v6002, 0.0
    %v6195 = vsel %vm6163, %v6003, 0.0
    %v6196 = vsel %vm6164, %v6004, 0.0
    %v6197 = vsel %vm6165, %v6005, 0.0
    %v6198 = vsel %vm6166, %v6006, 0.0
    %v6199 = vsel %vm6167, %v6007, 0.0
    %v6200 = vsel %vm6168, %v6008, 0.0
    %v6201 = vsel %vm6169, %v6009, 0.0
    %v6202 = vpack.c.bf16 %v6171, %v6170
    %v6203 = vpack.c.bf16 %v6173, %v6172
    %v6204 = vpack.c.bf16 %v6175, %v6174
    %v6205 = vpack.c.bf16 %v6177, %v6176
    %v6206 = vpack.c.bf16 %v6179, %v6178
    %v6207 = vpack.c.bf16 %v6181, %v6180
    %v6208 = vpack.c.bf16 %v6183, %v6182
    %v6209 = vpack.c.bf16 %v6185, %v6184
    %v6210 = vpack.c.bf16 %v6187, %v6186
    %v6211 = vpack.c.bf16 %v6189, %v6188
    %v6212 = vpack.c.bf16 %v6191, %v6190
    %v6213 = vpack.c.bf16 %v6193, %v6192
    %v6214 = vpack.c.bf16 %v6195, %v6194
    %v6215 = vpack.c.bf16 %v6197, %v6196
    %v6216 = vpack.c.bf16 %v6199, %v6198
    %v6217 = vpack.c.bf16 %v6201, %v6200
    %v6218 = vld [vmem:[%s6] sm:$0xf]
    %v6219 = vld [vmem:[%s6 + $0x4] sm:$0xf]
    %v6220 = vld [vmem:[%s6 + $0x8] sm:$0xf]
    %v6221 = vld [vmem:[%s6 + $0xc] sm:$0xf]
    %v6222 = vld [vmem:[#allocation2 + $0x8] sm:$0xff]
    %v6223 = vld [vmem:[#allocation2 + $0x10] sm:$0xff]
    %v6224 = vld [vmem:[#allocation2 + $0x18] sm:$0xff]
    %v6225 = vld [vmem:[#allocation2 + $0x20] sm:$0xff]
    %v6226 = vld [vmem:[#allocation2 + $0x28] sm:$0xff]
    %v6227 = vld [vmem:[#allocation2 + $0x30] sm:$0xff]
    %v6228 = vld [vmem:[#allocation2 + $0x38] sm:$0xff]
    %v6229 = vld [vmem:[#allocation2 + $0x40] sm:$0xff]
    %v6230 = vld [vmem:[#allocation2 + $0x48] sm:$0xff]
    %v6231 = vld [vmem:[#allocation2 + $0x50] sm:$0xff]
    %v6232 = vld [vmem:[#allocation2 + $0x58] sm:$0xff]
    %v6233 = vld [vmem:[#allocation2 + $0x60] sm:$0xff]
    %v6234 = vld [vmem:[#allocation2 + $0x68] sm:$0xff]
    %v6235 = vld [vmem:[#allocation2 + $0x70] sm:$0xff]
    %v6236 = vld [vmem:[#allocation2 + $0x78] sm:$0xff]
    %v6237 = vld [vmem:[#allocation2 + $0x80] sm:$0xff]
    %v6238 = vld [vmem:[#allocation2 + $0x88] sm:$0xff]
    %v6239 = vld [vmem:[#allocation2 + $0x90] sm:$0xff]
    %v6240 = vld [vmem:[#allocation2 + $0x98] sm:$0xff]
    %v6241 = vld [vmem:[#allocation2 + $0xa0] sm:$0xff]
    %v6242 = vld [vmem:[#allocation2 + $0xa8] sm:$0xff]
    %v6243 = vld [vmem:[#allocation2 + $0xb0] sm:$0xff]
    %v6244 = vld [vmem:[#allocation2 + $0xb8] sm:$0xff]
    %v6245 = vld [vmem:[#allocation2 + $0xc0] sm:$0xff]
    %v6246 = vld [vmem:[#allocation2 + $0xc8] sm:$0xff]
    %v6247 = vld [vmem:[#allocation2 + $0xd0] sm:$0xff]
    %v6248 = vld [vmem:[#allocation2 + $0xd8] sm:$0xff]
    %v6249 = vld [vmem:[#allocation2 + $0xe0] sm:$0xff]
    %v6250 = vld [vmem:[#allocation2 + $0xe8] sm:$0xff]
    %v6251 = vld [vmem:[#allocation2 + $0xf0] sm:$0xff]
    %v6252 = vld [vmem:[#allocation2 + $0xf8] sm:$0xff]
    %v6253 = vld [vmem:[#allocation2 + $0x100] sm:$0xff]
    %v6254 = vpack.c.bf16 %v6223, %v6222
    %v6255 = vpack.c.bf16 %v6225, %v6224
    %v6256 = vpack.c.bf16 %v6227, %v6226
    %v6257 = vpack.c.bf16 %v6229, %v6228
    %v6258 = vpack.c.bf16 %v6231, %v6230
    %v6259 = vpack.c.bf16 %v6233, %v6232
    %v6260 = vpack.c.bf16 %v6235, %v6234
    %v6261 = vpack.c.bf16 %v6237, %v6236
    %v6262 = vpack.c.bf16 %v6239, %v6238
    %v6263 = vpack.c.bf16 %v6241, %v6240
    %v6264 = vpack.c.bf16 %v6243, %v6242
    %v6265 = vpack.c.bf16 %v6245, %v6244
    %v6266 = vpack.c.bf16 %v6247, %v6246
    %v6267 = vpack.c.bf16 %v6249, %v6248
    %v6268 = vpack.c.bf16 %v6251, %v6250
    %v6269 = vpack.c.bf16 %v6253, %v6252
    %s6270 = scalar_lea.vmem %s6, 16
    %v6271 = vld [vmem:[%s6270] sm:$0xf]
    %v6272 = vld [vmem:[%s6270 + $0x4] sm:$0xf]
    %v6273 = vld [vmem:[%s6270 + $0x8] sm:$0xf]
    %v6274 = vld [vmem:[%s6270 + $0xc] sm:$0xf]
    %v6279 = vunpack.c.l.b16 %v6271
    %v6280 = vunpack.c.l.b16 %v6272
    %v6281 = vunpack.c.l.b16 %v6273
    %v6282 = vunpack.c.l.b16 %v6274
    %v6283 = vpack.c.b16 %v6280, %v6279
    %v6284 = vpack.c.b16 %v6282, %v6281
    %v6288 = vsel %vm43, %v6254, 0
    %v6291 = vsel %vm43, %v6255, 0
    %v6294 = vsel %vm43, %v6256, 0
    %v6297 = vsel %vm43, %v6257, 0
    %v6300 = vsel %vm43, %v6258, 0
    %v6303 = vsel %vm43, %v6259, 0
    %v6306 = vsel %vm43, %v6260, 0
    %v6309 = vsel %vm43, %v6261, 0
    %v6312 = vsel %vm43, %v6262, 0
    %v6315 = vsel %vm43, %v6263, 0
    %v6318 = vsel %vm43, %v6264, 0
    %v6321 = vsel %vm43, %v6265, 0
    %v6324 = vsel %vm43, %v6266, 0
    %v6327 = vsel %vm43, %v6267, 0
    %v6330 = vsel %vm43, %v6268, 0
    %v6333 = vsel %vm43, %v6269, 0
    %6335 = vmatpush.bf16.msra.mxu0 0
    %6336 = vmatpush.bf16.msra.mxu0 0
    %6337 = vmatpush.bf16.msra.mxu0 0
    %6338 = vmatpush.bf16.msra.mxu0 0
    %6339 = vmatpush.bf16.msra.mxu0 0
    %6340 = vmatpush.bf16.msra.mxu0 0
    %6341 = vmatpush.bf16.msra.mxu0 %v6284
    %6342 = vmatpush.bf16.msra.mxu0 %v6283
    %6343 = vmatmul.bf16.gmra.mxu0 %v6288
    %v6344 = vpop.f32.mrf.mxu0
    %v6345 = vadd.f32 0.0, %v6344
    %v6346 = vpop.f32.mrf.mxu0
    %v6347 = vadd.f32 0.0, %v6346
    %6348 = vmatmul.bf16.gmra.mxu0 %v6291
    %v6349 = vpop.f32.mrf.mxu0
    %v6350 = vadd.f32 0.0, %v6349
    %v6351 = vpop.f32.mrf.mxu0
    %v6352 = vadd.f32 0.0, %v6351
    %6353 = vmatmul.bf16.gmra.mxu0 %v6294
    %v6354 = vpop.f32.mrf.mxu0
    %v6355 = vadd.f32 0.0, %v6354
    %v6356 = vpop.f32.mrf.mxu0
    %v6357 = vadd.f32 0.0, %v6356
    %6358 = vmatmul.bf16.gmra.mxu0 %v6297
    %v6359 = vpop.f32.mrf.mxu0
    %v6360 = vadd.f32 0.0, %v6359
    %v6361 = vpop.f32.mrf.mxu0
    %v6362 = vadd.f32 0.0, %v6361
    %6363 = vmatmul.bf16.gmra.mxu0 %v6300
    %v6364 = vpop.f32.mrf.mxu0
    %v6365 = vadd.f32 0.0, %v6364
    %v6366 = vpop.f32.mrf.mxu0
    %v6367 = vadd.f32 0.0, %v6366
    %6368 = vmatmul.bf16.gmra.mxu0 %v6303
    %v6369 = vpop.f32.mrf.mxu0
    %v6370 = vadd.f32 0.0, %v6369
    %v6371 = vpop.f32.mrf.mxu0
    %v6372 = vadd.f32 0.0, %v6371
    %6373 = vmatmul.bf16.gmra.mxu0 %v6306
    %v6374 = vpop.f32.mrf.mxu0
    %v6375 = vadd.f32 0.0, %v6374
    %v6376 = vpop.f32.mrf.mxu0
    %v6377 = vadd.f32 0.0, %v6376
    %6378 = vmatmul.bf16.gmra.mxu0 %v6309
    %v6379 = vpop.f32.mrf.mxu0
    %v6380 = vadd.f32 0.0, %v6379
    %v6381 = vpop.f32.mrf.mxu0
    %v6382 = vadd.f32 0.0, %v6381
    %6383 = vmatmul.bf16.gmra.mxu0 %v6312
    %v6384 = vpop.f32.mrf.mxu0
    %v6385 = vadd.f32 0.0, %v6384
    %v6386 = vpop.f32.mrf.mxu0
    %v6387 = vadd.f32 0.0, %v6386
    %6388 = vmatmul.bf16.gmra.mxu0 %v6315
    %v6389 = vpop.f32.mrf.mxu0
    %v6390 = vadd.f32 0.0, %v6389
    %v6391 = vpop.f32.mrf.mxu0
    %v6392 = vadd.f32 0.0, %v6391
    %6393 = vmatmul.bf16.gmra.mxu0 %v6318
    %v6394 = vpop.f32.mrf.mxu0
    %v6395 = vadd.f32 0.0, %v6394
    %v6396 = vpop.f32.mrf.mxu0
    %v6397 = vadd.f32 0.0, %v6396
    %6398 = vmatmul.bf16.gmra.mxu0 %v6321
    %v6399 = vpop.f32.mrf.mxu0
    %v6400 = vadd.f32 0.0, %v6399
    %v6401 = vpop.f32.mrf.mxu0
    %v6402 = vadd.f32 0.0, %v6401
    %6403 = vmatmul.bf16.gmra.mxu0 %v6324
    %v6404 = vpop.f32.mrf.mxu0
    %v6405 = vadd.f32 0.0, %v6404
    %v6406 = vpop.f32.mrf.mxu0
    %v6407 = vadd.f32 0.0, %v6406
    %6408 = vmatmul.bf16.gmra.mxu0 %v6327
    %v6409 = vpop.f32.mrf.mxu0
    %v6410 = vadd.f32 0.0, %v6409
    %v6411 = vpop.f32.mrf.mxu0
    %v6412 = vadd.f32 0.0, %v6411
    %6413 = vmatmul.bf16.gmra.mxu0 %v6330
    %v6414 = vpop.f32.mrf.mxu0
    %v6415 = vadd.f32 0.0, %v6414
    %v6416 = vpop.f32.mrf.mxu0
    %v6417 = vadd.f32 0.0, %v6416
    %6418 = vmatmul.bf16.gmra.mxu0 %v6333
    %v6419 = vpop.f32.mrf.mxu0
    %v6420 = vadd.f32 0.0, %v6419
    %v6421 = vpop.f32.mrf.mxu0
    %v6422 = vadd.f32 0.0, %v6421
    %6423 = vdwg.mxu0
    %v6428 = vunpack.c.l.b16 %v6218
    %v6429 = vunpack.c.l.b16 %v6219
    %v6430 = vunpack.c.l.b16 %v6220
    %v6431 = vunpack.c.l.b16 %v6221
    %v6432 = vpack.c.b16 %v6429, %v6428
    %v6433 = vpack.c.b16 %v6431, %v6430
    %v6437 = vsel %vm43, %v6202, 0
    %v6440 = vsel %vm43, %v6203, 0
    %v6443 = vsel %vm43, %v6204, 0
    %v6446 = vsel %vm43, %v6205, 0
    %v6449 = vsel %vm43, %v6206, 0
    %v6452 = vsel %vm43, %v6207, 0
    %v6455 = vsel %vm43, %v6208, 0
    %v6458 = vsel %vm43, %v6209, 0
    %v6461 = vsel %vm43, %v6210, 0
    %v6464 = vsel %vm43, %v6211, 0
    %v6467 = vsel %vm43, %v6212, 0
    %v6470 = vsel %vm43, %v6213, 0
    %v6473 = vsel %vm43, %v6214, 0
    %v6476 = vsel %vm43, %v6215, 0
    %v6479 = vsel %vm43, %v6216, 0
    %v6482 = vsel %vm43, %v6217, 0
    %6484 = vmatpush.bf16.msra.mxu0 0
    %6485 = vmatpush.bf16.msra.mxu0 0
    %6486 = vmatpush.bf16.msra.mxu0 0
    %6487 = vmatpush.bf16.msra.mxu0 0
    %6488 = vmatpush.bf16.msra.mxu0 0
    %6489 = vmatpush.bf16.msra.mxu0 0
    %6490 = vmatpush.bf16.msra.mxu0 %v6433
    %6491 = vmatpush.bf16.msra.mxu0 %v6432
    %6492 = vmatmul.bf16.gmra.mxu0 %v6437
    %v6493 = vpop.f32.mrf.mxu0
    %v6494 = vadd.f32 %v6345, %v6493
    %v6495 = vpop.f32.mrf.mxu0
    %v6496 = vadd.f32 %v6347, %v6495
    %6497 = vmatmul.bf16.gmra.mxu0 %v6440
    %v6498 = vpop.f32.mrf.mxu0
    %v6499 = vadd.f32 %v6350, %v6498
    %v6500 = vpop.f32.mrf.mxu0
    %v6501 = vadd.f32 %v6352, %v6500
    %6502 = vmatmul.bf16.gmra.mxu0 %v6443
    %v6503 = vpop.f32.mrf.mxu0
    %v6504 = vadd.f32 %v6355, %v6503
    %v6505 = vpop.f32.mrf.mxu0
    %v6506 = vadd.f32 %v6357, %v6505
    %6507 = vmatmul.bf16.gmra.mxu0 %v6446
    %v6508 = vpop.f32.mrf.mxu0
    %v6509 = vadd.f32 %v6360, %v6508
    %v6510 = vpop.f32.mrf.mxu0
    %v6511 = vadd.f32 %v6362, %v6510
    %6512 = vmatmul.bf16.gmra.mxu0 %v6449
    %v6513 = vpop.f32.mrf.mxu0
    %v6514 = vadd.f32 %v6365, %v6513
    %v6515 = vpop.f32.mrf.mxu0
    %v6516 = vadd.f32 %v6367, %v6515
    %6517 = vmatmul.bf16.gmra.mxu0 %v6452
    %v6518 = vpop.f32.mrf.mxu0
    %v6519 = vadd.f32 %v6370, %v6518
    %v6520 = vpop.f32.mrf.mxu0
    %v6521 = vadd.f32 %v6372, %v6520
    %6522 = vmatmul.bf16.gmra.mxu0 %v6455
    %v6523 = vpop.f32.mrf.mxu0
    %v6524 = vadd.f32 %v6375, %v6523
    %v6525 = vpop.f32.mrf.mxu0
    %v6526 = vadd.f32 %v6377, %v6525
    %6527 = vmatmul.bf16.gmra.mxu0 %v6458
    %v6528 = vpop.f32.mrf.mxu0
    %v6529 = vadd.f32 %v6380, %v6528
    %v6530 = vpop.f32.mrf.mxu0
    %v6531 = vadd.f32 %v6382, %v6530
    %6532 = vmatmul.bf16.gmra.mxu0 %v6461
    %v6533 = vpop.f32.mrf.mxu0
    %v6534 = vadd.f32 %v6385, %v6533
    %v6535 = vpop.f32.mrf.mxu0
    %v6536 = vadd.f32 %v6387, %v6535
    %6537 = vmatmul.bf16.gmra.mxu0 %v6464
    %v6538 = vpop.f32.mrf.mxu0
    %v6539 = vadd.f32 %v6390, %v6538
    %v6540 = vpop.f32.mrf.mxu0
    %v6541 = vadd.f32 %v6392, %v6540
    %6542 = vmatmul.bf16.gmra.mxu0 %v6467
    %v6543 = vpop.f32.mrf.mxu0
    %v6544 = vadd.f32 %v6395, %v6543
    %v6545 = vpop.f32.mrf.mxu0
    %v6546 = vadd.f32 %v6397, %v6545
    %6547 = vmatmul.bf16.gmra.mxu0 %v6470
    %v6548 = vpop.f32.mrf.mxu0
    %v6549 = vadd.f32 %v6400, %v6548
    %v6550 = vpop.f32.mrf.mxu0
    %v6551 = vadd.f32 %v6402, %v6550
    %6552 = vmatmul.bf16.gmra.mxu0 %v6473
    %v6553 = vpop.f32.mrf.mxu0
    %v6554 = vadd.f32 %v6405, %v6553
    %v6555 = vpop.f32.mrf.mxu0
    %v6556 = vadd.f32 %v6407, %v6555
    %6557 = vmatmul.bf16.gmra.mxu0 %v6476
    %v6558 = vpop.f32.mrf.mxu0
    %v6559 = vadd.f32 %v6410, %v6558
    %v6560 = vpop.f32.mrf.mxu0
    %v6561 = vadd.f32 %v6412, %v6560
    %6562 = vmatmul.bf16.gmra.mxu0 %v6479
    %v6563 = vpop.f32.mrf.mxu0
    %v6564 = vadd.f32 %v6415, %v6563
    %v6565 = vpop.f32.mrf.mxu0
    %v6566 = vadd.f32 %v6417, %v6565
    %6567 = vmatmul.bf16.gmra.mxu0 %v6482
    %v6568 = vpop.f32.mrf.mxu0
    %v6569 = vadd.f32 %v6420, %v6568
    %v6570 = vpop.f32.mrf.mxu0
    %v6571 = vadd.f32 %v6422, %v6570
    %6572 = vdwg.mxu0
    %v6573 = vld [vmem:[#allocation2 + $0xc] sm:$0xff]
    %v6574 = vld [vmem:[#allocation2 + $0x14] sm:$0xff]
    %v6575 = vld [vmem:[#allocation2 + $0x1c] sm:$0xff]
    %v6576 = vld [vmem:[#allocation2 + $0x24] sm:$0xff]
    %v6577 = vld [vmem:[#allocation2 + $0x2c] sm:$0xff]
    %v6578 = vld [vmem:[#allocation2 + $0x34] sm:$0xff]
    %v6579 = vld [vmem:[#allocation2 + $0x3c] sm:$0xff]
    %v6580 = vld [vmem:[#allocation2 + $0x44] sm:$0xff]
    %v6581 = vld [vmem:[#allocation2 + $0x4c] sm:$0xff]
    %v6582 = vld [vmem:[#allocation2 + $0x54] sm:$0xff]
    %v6583 = vld [vmem:[#allocation2 + $0x5c] sm:$0xff]
    %v6584 = vld [vmem:[#allocation2 + $0x64] sm:$0xff]
    %v6585 = vld [vmem:[#allocation2 + $0x6c] sm:$0xff]
    %v6586 = vld [vmem:[#allocation2 + $0x74] sm:$0xff]
    %v6587 = vld [vmem:[#allocation2 + $0x7c] sm:$0xff]
    %v6588 = vld [vmem:[#allocation2 + $0x84] sm:$0xff]
    %v6589 = vld [vmem:[#allocation2 + $0x8c] sm:$0xff]
    %v6590 = vld [vmem:[#allocation2 + $0x94] sm:$0xff]
    %v6591 = vld [vmem:[#allocation2 + $0x9c] sm:$0xff]
    %v6592 = vld [vmem:[#allocation2 + $0xa4] sm:$0xff]
    %v6593 = vld [vmem:[#allocation2 + $0xac] sm:$0xff]
    %v6594 = vld [vmem:[#allocation2 + $0xb4] sm:$0xff]
    %v6595 = vld [vmem:[#allocation2 + $0xbc] sm:$0xff]
    %v6596 = vld [vmem:[#allocation2 + $0xc4] sm:$0xff]
    %v6597 = vld [vmem:[#allocation2 + $0xcc] sm:$0xff]
    %v6598 = vld [vmem:[#allocation2 + $0xd4] sm:$0xff]
    %v6599 = vld [vmem:[#allocation2 + $0xdc] sm:$0xff]
    %v6600 = vld [vmem:[#allocation2 + $0xe4] sm:$0xff]
    %v6601 = vld [vmem:[#allocation2 + $0xec] sm:$0xff]
    %v6602 = vld [vmem:[#allocation2 + $0xf4] sm:$0xff]
    %v6603 = vld [vmem:[#allocation2 + $0xfc] sm:$0xff]
    %v6604 = vld [vmem:[#allocation2 + $0x104] sm:$0xff]
    %v6605 = vsel %vm5946, 1, 0
    %v6606 = vsel %vm5947, 1, 0
    %v6607 = vsel %vm5948, 1, 0
    %v6608 = vsel %vm5949, 1, 0
    %v6609 = vsel %vm5950, 1, 0
    %v6610 = vsel %vm5951, 1, 0
    %v6611 = vsel %vm5952, 1, 0
    %v6612 = vsel %vm5953, 1, 0
    %v6613 = vsel %vm5954, 1, 0
    %v6614 = vsel %vm5955, 1, 0
    %v6615 = vsel %vm5956, 1, 0
    %v6616 = vsel %vm5957, 1, 0
    %v6617 = vsel %vm5958, 1, 0
    %v6618 = vsel %vm5959, 1, 0
    %v6619 = vsel %vm5960, 1, 0
    %v6620 = vsel %vm5961, 1, 0
    %v6621 = vsel %vm5962, 1, 0
    %v6622 = vsel %vm5963, 1, 0
    %v6623 = vsel %vm5964, 1, 0
    %v6624 = vsel %vm5965, 1, 0
    %v6625 = vsel %vm5966, 1, 0
    %v6626 = vsel %vm5967, 1, 0
    %v6627 = vsel %vm5968, 1, 0
    %v6628 = vsel %vm5969, 1, 0
    %v6629 = vsel %vm5970, 1, 0
    %v6630 = vsel %vm5971, 1, 0
    %v6631 = vsel %vm5972, 1, 0
    %v6632 = vsel %vm5973, 1, 0
    %v6633 = vsel %vm5974, 1, 0
    %v6634 = vsel %vm5975, 1, 0
    %v6635 = vsel %vm5976, 1, 0
    %v6636 = vsel %vm5977, 1, 0
    %6637 = vset.pattern.permute.xlu0 0
    %6638 = vperm.xlu0 %6637, %v6605
    %v6639 = vpop.permute.xlu0 %6638
    %6640 = vset.pattern.permute.xlu0 0
    %6641 = vperm.xlu0 %6640, %v6606
    %v6642 = vpop.permute.xlu0 %6641
    %6643 = vset.pattern.permute.xlu0 0
    %6644 = vperm.xlu0 %6643, %v6607
    %v6645 = vpop.permute.xlu0 %6644
    %6646 = vset.pattern.permute.xlu0 0
    %6647 = vperm.xlu0 %6646, %v6608
    %v6648 = vpop.permute.xlu0 %6647
    %6649 = vset.pattern.permute.xlu0 0
    %6650 = vperm.xlu0 %6649, %v6609
    %v6651 = vpop.permute.xlu0 %6650
    %6652 = vset.pattern.permute.xlu0 0
    %6653 = vperm.xlu0 %6652, %v6610
    %v6654 = vpop.permute.xlu0 %6653
    %6655 = vset.pattern.permute.xlu0 0
    %6656 = vperm.xlu0 %6655, %v6611
    %v6657 = vpop.permute.xlu0 %6656
    %6658 = vset.pattern.permute.xlu0 0
    %6659 = vperm.xlu0 %6658, %v6612
    %v6660 = vpop.permute.xlu0 %6659
    %6661 = vset.pattern.permute.xlu0 0
    %6662 = vperm.xlu0 %6661, %v6613
    %v6663 = vpop.permute.xlu0 %6662
    %6664 = vset.pattern.permute.xlu0 0
    %6665 = vperm.xlu0 %6664, %v6614
    %v6666 = vpop.permute.xlu0 %6665
    %6667 = vset.pattern.permute.xlu0 0
    %6668 = vperm.xlu0 %6667, %v6615
    %v6669 = vpop.permute.xlu0 %6668
    %6670 = vset.pattern.permute.xlu0 0
    %6671 = vperm.xlu0 %6670, %v6616
    %v6672 = vpop.permute.xlu0 %6671
    %6673 = vset.pattern.permute.xlu0 0
    %6674 = vperm.xlu0 %6673, %v6617
    %v6675 = vpop.permute.xlu0 %6674
    %6676 = vset.pattern.permute.xlu0 0
    %6677 = vperm.xlu0 %6676, %v6618
    %v6678 = vpop.permute.xlu0 %6677
    %6679 = vset.pattern.permute.xlu0 0
    %6680 = vperm.xlu0 %6679, %v6619
    %v6681 = vpop.permute.xlu0 %6680
    %6682 = vset.pattern.permute.xlu0 0
    %6683 = vperm.xlu0 %6682, %v6620
    %v6684 = vpop.permute.xlu0 %6683
    %6685 = vset.pattern.permute.xlu0 0
    %6686 = vperm.xlu0 %6685, %v6621
    %v6687 = vpop.permute.xlu0 %6686
    %6688 = vset.pattern.permute.xlu0 0
    %6689 = vperm.xlu0 %6688, %v6622
    %v6690 = vpop.permute.xlu0 %6689
    %6691 = vset.pattern.permute.xlu0 0
    %6692 = vperm.xlu0 %6691, %v6623
    %v6693 = vpop.permute.xlu0 %6692
    %6694 = vset.pattern.permute.xlu0 0
    %6695 = vperm.xlu0 %6694, %v6624
    %v6696 = vpop.permute.xlu0 %6695
    %6697 = vset.pattern.permute.xlu0 0
    %6698 = vperm.xlu0 %6697, %v6625
    %v6699 = vpop.permute.xlu0 %6698
    %6700 = vset.pattern.permute.xlu0 0
    %6701 = vperm.xlu0 %6700, %v6626
    %v6702 = vpop.permute.xlu0 %6701
    %6703 = vset.pattern.permute.xlu0 0
    %6704 = vperm.xlu0 %6703, %v6627
    %v6705 = vpop.permute.xlu0 %6704
    %6706 = vset.pattern.permute.xlu0 0
    %6707 = vperm.xlu0 %6706, %v6628
    %v6708 = vpop.permute.xlu0 %6707
    %6709 = vset.pattern.permute.xlu0 0
    %6710 = vperm.xlu0 %6709, %v6629
    %v6711 = vpop.permute.xlu0 %6710
    %6712 = vset.pattern.permute.xlu0 0
    %6713 = vperm.xlu0 %6712, %v6630
    %v6714 = vpop.permute.xlu0 %6713
    %6715 = vset.pattern.permute.xlu0 0
    %6716 = vperm.xlu0 %6715, %v6631
    %v6717 = vpop.permute.xlu0 %6716
    %6718 = vset.pattern.permute.xlu0 0
    %6719 = vperm.xlu0 %6718, %v6632
    %v6720 = vpop.permute.xlu0 %6719
    %6721 = vset.pattern.permute.xlu0 0
    %6722 = vperm.xlu0 %6721, %v6633
    %v6723 = vpop.permute.xlu0 %6722
    %6724 = vset.pattern.permute.xlu0 0
    %6725 = vperm.xlu0 %6724, %v6634
    %v6726 = vpop.permute.xlu0 %6725
    %6727 = vset.pattern.permute.xlu0 0
    %6728 = vperm.xlu0 %6727, %v6635
    %v6729 = vpop.permute.xlu0 %6728
    %6730 = vset.pattern.permute.xlu0 0
    %6731 = vperm.xlu0 %6730, %v6636
    %v6732 = vpop.permute.xlu0 %6731
    %vm6733 = vcmp.eq.s32.totalorder %v6639, 1
    %vm6734 = vcmp.eq.s32.totalorder %v6642, 1
    %vm6735 = vcmp.eq.s32.totalorder %v6645, 1
    %vm6736 = vcmp.eq.s32.totalorder %v6648, 1
    %vm6737 = vcmp.eq.s32.totalorder %v6651, 1
    %vm6738 = vcmp.eq.s32.totalorder %v6654, 1
    %vm6739 = vcmp.eq.s32.totalorder %v6657, 1
    %vm6740 = vcmp.eq.s32.totalorder %v6660, 1
    %vm6741 = vcmp.eq.s32.totalorder %v6663, 1
    %vm6742 = vcmp.eq.s32.totalorder %v6666, 1
    %vm6743 = vcmp.eq.s32.totalorder %v6669, 1
    %vm6744 = vcmp.eq.s32.totalorder %v6672, 1
    %vm6745 = vcmp.eq.s32.totalorder %v6675, 1
    %vm6746 = vcmp.eq.s32.totalorder %v6678, 1
    %vm6747 = vcmp.eq.s32.totalorder %v6681, 1
    %vm6748 = vcmp.eq.s32.totalorder %v6684, 1
    %vm6749 = vcmp.eq.s32.totalorder %v6687, 1
    %vm6750 = vcmp.eq.s32.totalorder %v6690, 1
    %vm6751 = vcmp.eq.s32.totalorder %v6693, 1
    %vm6752 = vcmp.eq.s32.totalorder %v6696, 1
    %vm6753 = vcmp.eq.s32.totalorder %v6699, 1
    %vm6754 = vcmp.eq.s32.totalorder %v6702, 1
    %vm6755 = vcmp.eq.s32.totalorder %v6705, 1
    %vm6756 = vcmp.eq.s32.totalorder %v6708, 1
    %vm6757 = vcmp.eq.s32.totalorder %v6711, 1
    %vm6758 = vcmp.eq.s32.totalorder %v6714, 1
    %vm6759 = vcmp.eq.s32.totalorder %v6717, 1
    %vm6760 = vcmp.eq.s32.totalorder %v6720, 1
    %vm6761 = vcmp.eq.s32.totalorder %v6723, 1
    %vm6762 = vcmp.eq.s32.totalorder %v6726, 1
    %vm6763 = vcmp.eq.s32.totalorder %v6729, 1
    %vm6764 = vcmp.eq.s32.totalorder %v6732, 1
    %v6765 = vsel %vm6733, %v6573, 0.0
    %v6766 = vsel %vm6734, %v6574, 0.0
    %v6767 = vsel %vm6735, %v6575, 0.0
    %v6768 = vsel %vm6736, %v6576, 0.0
    %v6769 = vsel %vm6737, %v6577, 0.0
    %v6770 = vsel %vm6738, %v6578, 0.0
    %v6771 = vsel %vm6739, %v6579, 0.0
    %v6772 = vsel %vm6740, %v6580, 0.0
    %v6773 = vsel %vm6741, %v6581, 0.0
    %v6774 = vsel %vm6742, %v6582, 0.0
    %v6775 = vsel %vm6743, %v6583, 0.0
    %v6776 = vsel %vm6744, %v6584, 0.0
    %v6777 = vsel %vm6745, %v6585, 0.0
    %v6778 = vsel %vm6746, %v6586, 0.0
    %v6779 = vsel %vm6747, %v6587, 0.0
    %v6780 = vsel %vm6748, %v6588, 0.0
    %v6781 = vsel %vm6749, %v6589, 0.0
    %v6782 = vsel %vm6750, %v6590, 0.0
    %v6783 = vsel %vm6751, %v6591, 0.0
    %v6784 = vsel %vm6752, %v6592, 0.0
    %v6785 = vsel %vm6753, %v6593, 0.0
    %v6786 = vsel %vm6754, %v6594, 0.0
    %v6787 = vsel %vm6755, %v6595, 0.0
    %v6788 = vsel %vm6756, %v6596, 0.0
    %v6789 = vsel %vm6757, %v6597, 0.0
    %v6790 = vsel %vm6758, %v6598, 0.0
    %v6791 = vsel %vm6759, %v6599, 0.0
    %v6792 = vsel %vm6760, %v6600, 0.0
    %v6793 = vsel %vm6761, %v6601, 0.0
    %v6794 = vsel %vm6762, %v6602, 0.0
    %v6795 = vsel %vm6763, %v6603, 0.0
    %v6796 = vsel %vm6764, %v6604, 0.0
    %v6797 = vpack.c.bf16 %v6766, %v6765
    %v6798 = vpack.c.bf16 %v6768, %v6767
    %v6799 = vpack.c.bf16 %v6770, %v6769
    %v6800 = vpack.c.bf16 %v6772, %v6771
    %v6801 = vpack.c.bf16 %v6774, %v6773
    %v6802 = vpack.c.bf16 %v6776, %v6775
    %v6803 = vpack.c.bf16 %v6778, %v6777
    %v6804 = vpack.c.bf16 %v6780, %v6779
    %v6805 = vpack.c.bf16 %v6782, %v6781
    %v6806 = vpack.c.bf16 %v6784, %v6783
    %v6807 = vpack.c.bf16 %v6786, %v6785
    %v6808 = vpack.c.bf16 %v6788, %v6787
    %v6809 = vpack.c.bf16 %v6790, %v6789
    %v6810 = vpack.c.bf16 %v6792, %v6791
    %v6811 = vpack.c.bf16 %v6794, %v6793
    %v6812 = vpack.c.bf16 %v6796, %v6795
    %s6813 = scalar_lea.vmem %s6, 32
    %v6814 = vld [vmem:[%s6813] sm:$0xf]
    %v6815 = vld [vmem:[%s6813 + $0x4] sm:$0xf]
    %v6816 = vld [vmem:[%s6813 + $0x8] sm:$0xf]
    %v6817 = vld [vmem:[%s6813 + $0xc] sm:$0xf]
    %v6822 = vunpack.c.l.b16 %v6814
    %v6823 = vunpack.c.l.b16 %v6815
    %v6824 = vunpack.c.l.b16 %v6816
    %v6825 = vunpack.c.l.b16 %v6817
    %v6826 = vpack.c.b16 %v6823, %v6822
    %v6827 = vpack.c.b16 %v6825, %v6824
    %v6831 = vsel %vm43, %v6797, 0
    %v6834 = vsel %vm43, %v6798, 0
    %v6837 = vsel %vm43, %v6799, 0
    %v6840 = vsel %vm43, %v6800, 0
    %v6843 = vsel %vm43, %v6801, 0
    %v6846 = vsel %vm43, %v6802, 0
    %v6849 = vsel %vm43, %v6803, 0
    %v6852 = vsel %vm43, %v6804, 0
    %v6855 = vsel %vm43, %v6805, 0
    %v6858 = vsel %vm43, %v6806, 0
    %v6861 = vsel %vm43, %v6807, 0
    %v6864 = vsel %vm43, %v6808, 0
    %v6867 = vsel %vm43, %v6809, 0
    %v6870 = vsel %vm43, %v6810, 0
    %v6873 = vsel %vm43, %v6811, 0
    %v6876 = vsel %vm43, %v6812, 0
    %6878 = vmatpush.bf16.msra.mxu0 0
    %6879 = vmatpush.bf16.msra.mxu0 0
    %6880 = vmatpush.bf16.msra.mxu0 0
    %6881 = vmatpush.bf16.msra.mxu0 0
    %6882 = vmatpush.bf16.msra.mxu0 0
    %6883 = vmatpush.bf16.msra.mxu0 0
    %6884 = vmatpush.bf16.msra.mxu0 %v6827
    %6885 = vmatpush.bf16.msra.mxu0 %v6826
    %6886 = vmatmul.bf16.gmra.mxu0 %v6831
    %v6887 = vpop.f32.mrf.mxu0
    %v6888 = vadd.f32 0.0, %v6887
    %v6889 = vpop.f32.mrf.mxu0
    %v6890 = vadd.f32 0.0, %v6889
    %6891 = vmatmul.bf16.gmra.mxu0 %v6834
    %v6892 = vpop.f32.mrf.mxu0
    %v6893 = vadd.f32 0.0, %v6892
    %v6894 = vpop.f32.mrf.mxu0
    %v6895 = vadd.f32 0.0, %v6894
    %6896 = vmatmul.bf16.gmra.mxu0 %v6837
    %v6897 = vpop.f32.mrf.mxu0
    %v6898 = vadd.f32 0.0, %v6897
    %v6899 = vpop.f32.mrf.mxu0
    %v6900 = vadd.f32 0.0, %v6899
    %6901 = vmatmul.bf16.gmra.mxu0 %v6840
    %v6902 = vpop.f32.mrf.mxu0
    %v6903 = vadd.f32 0.0, %v6902
    %v6904 = vpop.f32.mrf.mxu0
    %v6905 = vadd.f32 0.0, %v6904
    %6906 = vmatmul.bf16.gmra.mxu0 %v6843
    %v6907 = vpop.f32.mrf.mxu0
    %v6908 = vadd.f32 0.0, %v6907
    %v6909 = vpop.f32.mrf.mxu0
    %v6910 = vadd.f32 0.0, %v6909
    %6911 = vmatmul.bf16.gmra.mxu0 %v6846
    %v6912 = vpop.f32.mrf.mxu0
    %v6913 = vadd.f32 0.0, %v6912
    %v6914 = vpop.f32.mrf.mxu0
    %v6915 = vadd.f32 0.0, %v6914
    %6916 = vmatmul.bf16.gmra.mxu0 %v6849
    %v6917 = vpop.f32.mrf.mxu0
    %v6918 = vadd.f32 0.0, %v6917
    %v6919 = vpop.f32.mrf.mxu0
    %v6920 = vadd.f32 0.0, %v6919
    %6921 = vmatmul.bf16.gmra.mxu0 %v6852
    %v6922 = vpop.f32.mrf.mxu0
    %v6923 = vadd.f32 0.0, %v6922
    %v6924 = vpop.f32.mrf.mxu0
    %v6925 = vadd.f32 0.0, %v6924
    %6926 = vmatmul.bf16.gmra.mxu0 %v6855
    %v6927 = vpop.f32.mrf.mxu0
    %v6928 = vadd.f32 0.0, %v6927
    %v6929 = vpop.f32.mrf.mxu0
    %v6930 = vadd.f32 0.0, %v6929
    %6931 = vmatmul.bf16.gmra.mxu0 %v6858
    %v6932 = vpop.f32.mrf.mxu0
    %v6933 = vadd.f32 0.0, %v6932
    %v6934 = vpop.f32.mrf.mxu0
    %v6935 = vadd.f32 0.0, %v6934
    %6936 = vmatmul.bf16.gmra.mxu0 %v6861
    %v6937 = vpop.f32.mrf.mxu0
    %v6938 = vadd.f32 0.0, %v6937
    %v6939 = vpop.f32.mrf.mxu0
    %v6940 = vadd.f32 0.0, %v6939
    %6941 = vmatmul.bf16.gmra.mxu0 %v6864
    %v6942 = vpop.f32.mrf.mxu0
    %v6943 = vadd.f32 0.0, %v6942
    %v6944 = vpop.f32.mrf.mxu0
    %v6945 = vadd.f32 0.0, %v6944
    %6946 = vmatmul.bf16.gmra.mxu0 %v6867
    %v6947 = vpop.f32.mrf.mxu0
    %v6948 = vadd.f32 0.0, %v6947
    %v6949 = vpop.f32.mrf.mxu0
    %v6950 = vadd.f32 0.0, %v6949
    %6951 = vmatmul.bf16.gmra.mxu0 %v6870
    %v6952 = vpop.f32.mrf.mxu0
    %v6953 = vadd.f32 0.0, %v6952
    %v6954 = vpop.f32.mrf.mxu0
    %v6955 = vadd.f32 0.0, %v6954
    %6956 = vmatmul.bf16.gmra.mxu0 %v6873
    %v6957 = vpop.f32.mrf.mxu0
    %v6958 = vadd.f32 0.0, %v6957
    %v6959 = vpop.f32.mrf.mxu0
    %v6960 = vadd.f32 0.0, %v6959
    %6961 = vmatmul.bf16.gmra.mxu0 %v6876
    %v6962 = vpop.f32.mrf.mxu0
    %v6963 = vadd.f32 0.0, %v6962
    %v6964 = vpop.f32.mrf.mxu0
    %v6965 = vadd.f32 0.0, %v6964
    %6966 = vdwg.mxu0
    %v6967 = vadd.f32 %v6494, %v6888
    %v6968 = vadd.f32 %v6496, %v6890
    %v6969 = vadd.f32 %v6499, %v6893
    %v6970 = vadd.f32 %v6501, %v6895
    %v6971 = vadd.f32 %v6504, %v6898
    %v6972 = vadd.f32 %v6506, %v6900
    %v6973 = vadd.f32 %v6509, %v6903
    %v6974 = vadd.f32 %v6511, %v6905
    %v6975 = vadd.f32 %v6514, %v6908
    %v6976 = vadd.f32 %v6516, %v6910
    %v6977 = vadd.f32 %v6519, %v6913
    %v6978 = vadd.f32 %v6521, %v6915
    %v6979 = vadd.f32 %v6524, %v6918
    %v6980 = vadd.f32 %v6526, %v6920
    %v6981 = vadd.f32 %v6529, %v6923
    %v6982 = vadd.f32 %v6531, %v6925
    %v6983 = vadd.f32 %v6534, %v6928
    %v6984 = vadd.f32 %v6536, %v6930
    %v6985 = vadd.f32 %v6539, %v6933
    %v6986 = vadd.f32 %v6541, %v6935
    %v6987 = vadd.f32 %v6544, %v6938
    %v6988 = vadd.f32 %v6546, %v6940
    %v6989 = vadd.f32 %v6549, %v6943
    %v6990 = vadd.f32 %v6551, %v6945
    %v6991 = vadd.f32 %v6554, %v6948
    %v6992 = vadd.f32 %v6556, %v6950
    %v6993 = vadd.f32 %v6559, %v6953
    %v6994 = vadd.f32 %v6561, %v6955
    %v6995 = vadd.f32 %v6564, %v6958
    %v6996 = vadd.f32 %v6566, %v6960
    %v6997 = vadd.f32 %v6569, %v6963
    %v6998 = vadd.f32 %v6571, %v6965
    %v6999 = vld [vmem:[#allocation2 + $0x44] sm:$0xff]
    %v7000 = vld [vmem:[#allocation2 + $0x4c] sm:$0xff]
    %v7001 = vld [vmem:[#allocation2 + $0x54] sm:$0xff]
    %v7002 = vld [vmem:[#allocation2 + $0x5c] sm:$0xff]
    %v7003 = vld [vmem:[#allocation2 + $0x64] sm:$0xff]
    %v7004 = vld [vmem:[#allocation2 + $0x6c] sm:$0xff]
    %v7005 = vld [vmem:[#allocation2 + $0x74] sm:$0xff]
    %v7006 = vld [vmem:[#allocation2 + $0x7c] sm:$0xff]
    %v7007 = vld [vmem:[#allocation2 + $0x84] sm:$0xff]
    %v7008 = vld [vmem:[#allocation2 + $0x8c] sm:$0xff]
    %v7009 = vld [vmem:[#allocation2 + $0x94] sm:$0xff]
    %v7010 = vld [vmem:[#allocation2 + $0x9c] sm:$0xff]
    %v7011 = vld [vmem:[#allocation2 + $0xa4] sm:$0xff]
    %v7012 = vld [vmem:[#allocation2 + $0xac] sm:$0xff]
    %v7013 = vld [vmem:[#allocation2 + $0xb4] sm:$0xff]
    %v7014 = vld [vmem:[#allocation2 + $0xbc] sm:$0xff]
    %v7015 = vld [vmem:[#allocation2 + $0xc4] sm:$0xff]
    %v7016 = vld [vmem:[#allocation2 + $0xcc] sm:$0xff]
    %v7017 = vld [vmem:[#allocation2 + $0xd4] sm:$0xff]
    %v7018 = vld [vmem:[#allocation2 + $0xdc] sm:$0xff]
    %v7019 = vld [vmem:[#allocation2 + $0xe4] sm:$0xff]
    %v7020 = vld [vmem:[#allocation2 + $0xec] sm:$0xff]
    %v7021 = vld [vmem:[#allocation2 + $0xf4] sm:$0xff]
    %v7022 = vld [vmem:[#allocation2 + $0xfc] sm:$0xff]
    %v7023 = vld [vmem:[#allocation2 + $0x104] sm:$0xff]
    %v7024 = vld [vmem:[#allocation2 + $0x10c] sm:$0xff]
    %v7025 = vld [vmem:[#allocation2 + $0x114] sm:$0xff]
    %v7026 = vld [vmem:[#allocation2 + $0x11c] sm:$0xff]
    %v7027 = vld [vmem:[#allocation2 + $0x124] sm:$0xff]
    %v7028 = vld [vmem:[#allocation2 + $0x12c] sm:$0xff]
    %v7029 = vld [vmem:[#allocation2 + $0x134] sm:$0xff]
    %v7030 = vld [vmem:[#allocation2 + $0x13c] sm:$0xff]
    %v7031 = vsel %vm6138, %v6999, 0.0
    %v7032 = vsel %vm6139, %v7000, 0.0
    %v7033 = vsel %vm6140, %v7001, 0.0
    %v7034 = vsel %vm6141, %v7002, 0.0
    %v7035 = vsel %vm6142, %v7003, 0.0
    %v7036 = vsel %vm6143, %v7004, 0.0
    %v7037 = vsel %vm6144, %v7005, 0.0
    %v7038 = vsel %vm6145, %v7006, 0.0
    %v7039 = vsel %vm6146, %v7007, 0.0
    %v7040 = vsel %vm6147, %v7008, 0.0
    %v7041 = vsel %vm6148, %v7009, 0.0
    %v7042 = vsel %vm6149, %v7010, 0.0
    %v7043 = vsel %vm6150, %v7011, 0.0
    %v7044 = vsel %vm6151, %v7012, 0.0
    %v7045 = vsel %vm6152, %v7013, 0.0
    %v7046 = vsel %vm6153, %v7014, 0.0
    %v7047 = vsel %vm6154, %v7015, 0.0
    %v7048 = vsel %vm6155, %v7016, 0.0
    %v7049 = vsel %vm6156, %v7017, 0.0
    %v7050 = vsel %vm6157, %v7018, 0.0
    %v7051 = vsel %vm6158, %v7019, 0.0
    %v7052 = vsel %vm6159, %v7020, 0.0
    %v7053 = vsel %vm6160, %v7021, 0.0
    %v7054 = vsel %vm6161, %v7022, 0.0
    %v7055 = vsel %vm6162, %v7023, 0.0
    %v7056 = vsel %vm6163, %v7024, 0.0
    %v7057 = vsel %vm6164, %v7025, 0.0
    %v7058 = vsel %vm6165, %v7026, 0.0
    %v7059 = vsel %vm6166, %v7027, 0.0
    %v7060 = vsel %vm6167, %v7028, 0.0
    %v7061 = vsel %vm6168, %v7029, 0.0
    %v7062 = vsel %vm6169, %v7030, 0.0
    %v7063 = vpack.c.bf16 %v7032, %v7031
    %v7064 = vpack.c.bf16 %v7034, %v7033
    %v7065 = vpack.c.bf16 %v7036, %v7035
    %v7066 = vpack.c.bf16 %v7038, %v7037
    %v7067 = vpack.c.bf16 %v7040, %v7039
    %v7068 = vpack.c.bf16 %v7042, %v7041
    %v7069 = vpack.c.bf16 %v7044, %v7043
    %v7070 = vpack.c.bf16 %v7046, %v7045
    %v7071 = vpack.c.bf16 %v7048, %v7047
    %v7072 = vpack.c.bf16 %v7050, %v7049
    %v7073 = vpack.c.bf16 %v7052, %v7051
    %v7074 = vpack.c.bf16 %v7054, %v7053
    %v7075 = vpack.c.bf16 %v7056, %v7055
    %v7076 = vpack.c.bf16 %v7058, %v7057
    %v7077 = vpack.c.bf16 %v7060, %v7059
    %v7078 = vpack.c.bf16 %v7062, %v7061
    %s7079 = scalar_lea.vmem %s6, 48
    %v7080 = vld [vmem:[%s7079] sm:$0xf]
    %v7081 = vld [vmem:[%s7079 + $0x4] sm:$0xf]
    %v7082 = vld [vmem:[%s7079 + $0x8] sm:$0xf]
    %v7083 = vld [vmem:[%s7079 + $0xc] sm:$0xf]
    %v7088 = vunpack.c.l.b16 %v7080
    %v7089 = vunpack.c.l.b16 %v7081
    %v7090 = vunpack.c.l.b16 %v7082
    %v7091 = vunpack.c.l.b16 %v7083
    %v7092 = vpack.c.b16 %v7089, %v7088
    %v7093 = vpack.c.b16 %v7091, %v7090
    %v7097 = vsel %vm43, %v7063, 0
    %v7100 = vsel %vm43, %v7064, 0
    %v7103 = vsel %vm43, %v7065, 0
    %v7106 = vsel %vm43, %v7066, 0
    %v7109 = vsel %vm43, %v7067, 0
    %v7112 = vsel %vm43, %v7068, 0
    %v7115 = vsel %vm43, %v7069, 0
    %v7118 = vsel %vm43, %v7070, 0
    %v7121 = vsel %vm43, %v7071, 0
    %v7124 = vsel %vm43, %v7072, 0
    %v7127 = vsel %vm43, %v7073, 0
    %v7130 = vsel %vm43, %v7074, 0
    %v7133 = vsel %vm43, %v7075, 0
    %v7136 = vsel %vm43, %v7076, 0
    %v7139 = vsel %vm43, %v7077, 0
    %v7142 = vsel %vm43, %v7078, 0
    %7144 = vmatpush.bf16.msra.mxu0 0
    %7145 = vmatpush.bf16.msra.mxu0 0
    %7146 = vmatpush.bf16.msra.mxu0 0
    %7147 = vmatpush.bf16.msra.mxu0 0
    %7148 = vmatpush.bf16.msra.mxu0 0
    %7149 = vmatpush.bf16.msra.mxu0 0
    %7150 = vmatpush.bf16.msra.mxu0 %v7093
    %7151 = vmatpush.bf16.msra.mxu0 %v7092
    %7152 = vmatmul.bf16.gmra.mxu0 %v7097
    %v7153 = vpop.f32.mrf.mxu0
    %v7154 = vadd.f32 0.0, %v7153
    %v7155 = vpop.f32.mrf.mxu0
    %v7156 = vadd.f32 0.0, %v7155
    %7157 = vmatmul.bf16.gmra.mxu0 %v7100
    %v7158 = vpop.f32.mrf.mxu0
    %v7159 = vadd.f32 0.0, %v7158
    %v7160 = vpop.f32.mrf.mxu0
    %v7161 = vadd.f32 0.0, %v7160
    %7162 = vmatmul.bf16.gmra.mxu0 %v7103
    %v7163 = vpop.f32.mrf.mxu0
    %v7164 = vadd.f32 0.0, %v7163
    %v7165 = vpop.f32.mrf.mxu0
    %v7166 = vadd.f32 0.0, %v7165
    %7167 = vmatmul.bf16.gmra.mxu0 %v7106
    %v7168 = vpop.f32.mrf.mxu0
    %v7169 = vadd.f32 0.0, %v7168
    %v7170 = vpop.f32.mrf.mxu0
    %v7171 = vadd.f32 0.0, %v7170
    %7172 = vmatmul.bf16.gmra.mxu0 %v7109
    %v7173 = vpop.f32.mrf.mxu0
    %v7174 = vadd.f32 0.0, %v7173
    %v7175 = vpop.f32.mrf.mxu0
    %v7176 = vadd.f32 0.0, %v7175
    %7177 = vmatmul.bf16.gmra.mxu0 %v7112
    %v7178 = vpop.f32.mrf.mxu0
    %v7179 = vadd.f32 0.0, %v7178
    %v7180 = vpop.f32.mrf.mxu0
    %v7181 = vadd.f32 0.0, %v7180
    %7182 = vmatmul.bf16.gmra.mxu0 %v7115
    %v7183 = vpop.f32.mrf.mxu0
    %v7184 = vadd.f32 0.0, %v7183
    %v7185 = vpop.f32.mrf.mxu0
    %v7186 = vadd.f32 0.0, %v7185
    %7187 = vmatmul.bf16.gmra.mxu0 %v7118
    %v7188 = vpop.f32.mrf.mxu0
    %v7189 = vadd.f32 0.0, %v7188
    %v7190 = vpop.f32.mrf.mxu0
    %v7191 = vadd.f32 0.0, %v7190
    %7192 = vmatmul.bf16.gmra.mxu0 %v7121
    %v7193 = vpop.f32.mrf.mxu0
    %v7194 = vadd.f32 0.0, %v7193
    %v7195 = vpop.f32.mrf.mxu0
    %v7196 = vadd.f32 0.0, %v7195
    %7197 = vmatmul.bf16.gmra.mxu0 %v7124
    %v7198 = vpop.f32.mrf.mxu0
    %v7199 = vadd.f32 0.0, %v7198
    %v7200 = vpop.f32.mrf.mxu0
    %v7201 = vadd.f32 0.0, %v7200
    %7202 = vmatmul.bf16.gmra.mxu0 %v7127
    %v7203 = vpop.f32.mrf.mxu0
    %v7204 = vadd.f32 0.0, %v7203
    %v7205 = vpop.f32.mrf.mxu0
    %v7206 = vadd.f32 0.0, %v7205
    %7207 = vmatmul.bf16.gmra.mxu0 %v7130
    %v7208 = vpop.f32.mrf.mxu0
    %v7209 = vadd.f32 0.0, %v7208
    %v7210 = vpop.f32.mrf.mxu0
    %v7211 = vadd.f32 0.0, %v7210
    %7212 = vmatmul.bf16.gmra.mxu0 %v7133
    %v7213 = vpop.f32.mrf.mxu0
    %v7214 = vadd.f32 0.0, %v7213
    %v7215 = vpop.f32.mrf.mxu0
    %v7216 = vadd.f32 0.0, %v7215
    %7217 = vmatmul.bf16.gmra.mxu0 %v7136
    %v7218 = vpop.f32.mrf.mxu0
    %v7219 = vadd.f32 0.0, %v7218
    %v7220 = vpop.f32.mrf.mxu0
    %v7221 = vadd.f32 0.0, %v7220
    %7222 = vmatmul.bf16.gmra.mxu0 %v7139
    %v7223 = vpop.f32.mrf.mxu0
    %v7224 = vadd.f32 0.0, %v7223
    %v7225 = vpop.f32.mrf.mxu0
    %v7226 = vadd.f32 0.0, %v7225
    %7227 = vmatmul.bf16.gmra.mxu0 %v7142
    %v7228 = vpop.f32.mrf.mxu0
    %v7229 = vadd.f32 0.0, %v7228
    %v7230 = vpop.f32.mrf.mxu0
    %v7231 = vadd.f32 0.0, %v7230
    %7232 = vdwg.mxu0
    %v7233 = vadd.f32 %v6967, %v7154
    %v7234 = vadd.f32 %v6968, %v7156
    %v7235 = vadd.f32 %v6969, %v7159
    %v7236 = vadd.f32 %v6970, %v7161
    %v7237 = vadd.f32 %v6971, %v7164
    %v7238 = vadd.f32 %v6972, %v7166
    %v7239 = vadd.f32 %v6973, %v7169
    %v7240 = vadd.f32 %v6974, %v7171
    %v7241 = vadd.f32 %v6975, %v7174
    %v7242 = vadd.f32 %v6976, %v7176
    %v7243 = vadd.f32 %v6977, %v7179
    %v7244 = vadd.f32 %v6978, %v7181
    %v7245 = vadd.f32 %v6979, %v7184
    %v7246 = vadd.f32 %v6980, %v7186
    %v7247 = vadd.f32 %v6981, %v7189
    %v7248 = vadd.f32 %v6982, %v7191
    %v7249 = vadd.f32 %v6983, %v7194
    %v7250 = vadd.f32 %v6984, %v7196
    %v7251 = vadd.f32 %v6985, %v7199
    %v7252 = vadd.f32 %v6986, %v7201
    %v7253 = vadd.f32 %v6987, %v7204
    %v7254 = vadd.f32 %v6988, %v7206
    %v7255 = vadd.f32 %v6989, %v7209
    %v7256 = vadd.f32 %v6990, %v7211
    %v7257 = vadd.f32 %v6991, %v7214
    %v7258 = vadd.f32 %v6992, %v7216
    %v7259 = vadd.f32 %v6993, %v7219
    %v7260 = vadd.f32 %v6994, %v7221
    %v7261 = vadd.f32 %v6995, %v7224
    %v7262 = vadd.f32 %v6996, %v7226
    %v7263 = vadd.f32 %v6997, %v7229
    %v7264 = vadd.f32 %v6998, %v7231
    %v7265 = vld [vmem:[#allocation2 + $0x48] sm:$0xff]
    %v7266 = vld [vmem:[#allocation2 + $0x50] sm:$0xff]
    %v7267 = vld [vmem:[#allocation2 + $0x58] sm:$0xff]
    %v7268 = vld [vmem:[#allocation2 + $0x60] sm:$0xff]
    %v7269 = vld [vmem:[#allocation2 + $0x68] sm:$0xff]
    %v7270 = vld [vmem:[#allocation2 + $0x70] sm:$0xff]
    %v7271 = vld [vmem:[#allocation2 + $0x78] sm:$0xff]
    %v7272 = vld [vmem:[#allocation2 + $0x80] sm:$0xff]
    %v7273 = vld [vmem:[#allocation2 + $0x88] sm:$0xff]
    %v7274 = vld [vmem:[#allocation2 + $0x90] sm:$0xff]
    %v7275 = vld [vmem:[#allocation2 + $0x98] sm:$0xff]
    %v7276 = vld [vmem:[#allocation2 + $0xa0] sm:$0xff]
    %v7277 = vld [vmem:[#allocation2 + $0xa8] sm:$0xff]
    %v7278 = vld [vmem:[#allocation2 + $0xb0] sm:$0xff]
    %v7279 = vld [vmem:[#allocation2 + $0xb8] sm:$0xff]
    %v7280 = vld [vmem:[#allocation2 + $0xc0] sm:$0xff]
    %v7281 = vld [vmem:[#allocation2 + $0xc8] sm:$0xff]
    %v7282 = vld [vmem:[#allocation2 + $0xd0] sm:$0xff]
    %v7283 = vld [vmem:[#allocation2 + $0xd8] sm:$0xff]
    %v7284 = vld [vmem:[#allocation2 + $0xe0] sm:$0xff]
    %v7285 = vld [vmem:[#allocation2 + $0xe8] sm:$0xff]
    %v7286 = vld [vmem:[#allocation2 + $0xf0] sm:$0xff]
    %v7287 = vld [vmem:[#allocation2 + $0xf8] sm:$0xff]
    %v7288 = vld [vmem:[#allocation2 + $0x100] sm:$0xff]
    %v7289 = vld [vmem:[#allocation2 + $0x108] sm:$0xff]
    %v7290 = vld [vmem:[#allocation2 + $0x110] sm:$0xff]
    %v7291 = vld [vmem:[#allocation2 + $0x118] sm:$0xff]
    %v7292 = vld [vmem:[#allocation2 + $0x120] sm:$0xff]
    %v7293 = vld [vmem:[#allocation2 + $0x128] sm:$0xff]
    %v7294 = vld [vmem:[#allocation2 + $0x130] sm:$0xff]
    %v7295 = vld [vmem:[#allocation2 + $0x138] sm:$0xff]
    %v7296 = vld [vmem:[#allocation2 + $0x140] sm:$0xff]
    %v7297 = vpack.c.bf16 %v7266, %v7265
    %v7298 = vpack.c.bf16 %v7268, %v7267
    %v7299 = vpack.c.bf16 %v7270, %v7269
    %v7300 = vpack.c.bf16 %v7272, %v7271
    %v7301 = vpack.c.bf16 %v7274, %v7273
    %v7302 = vpack.c.bf16 %v7276, %v7275
    %v7303 = vpack.c.bf16 %v7278, %v7277
    %v7304 = vpack.c.bf16 %v7280, %v7279
    %v7305 = vpack.c.bf16 %v7282, %v7281
    %v7306 = vpack.c.bf16 %v7284, %v7283
    %v7307 = vpack.c.bf16 %v7286, %v7285
    %v7308 = vpack.c.bf16 %v7288, %v7287
    %v7309 = vpack.c.bf16 %v7290, %v7289
    %v7310 = vpack.c.bf16 %v7292, %v7291
    %v7311 = vpack.c.bf16 %v7294, %v7293
    %v7312 = vpack.c.bf16 %v7296, %v7295
    %s7313 = scalar_lea.vmem %s6, 64
    %v7314 = vld [vmem:[%s7313] sm:$0xf]
    %v7315 = vld [vmem:[%s7313 + $0x4] sm:$0xf]
    %v7316 = vld [vmem:[%s7313 + $0x8] sm:$0xf]
    %v7317 = vld [vmem:[%s7313 + $0xc] sm:$0xf]
    %v7322 = vunpack.c.l.b16 %v7314
    %v7323 = vunpack.c.l.b16 %v7315
    %v7324 = vunpack.c.l.b16 %v7316
    %v7325 = vunpack.c.l.b16 %v7317
    %v7326 = vpack.c.b16 %v7323, %v7322
    %v7327 = vpack.c.b16 %v7325, %v7324
    %v7331 = vsel %vm43, %v7297, 0
    %v7334 = vsel %vm43, %v7298, 0
    %v7337 = vsel %vm43, %v7299, 0
    %v7340 = vsel %vm43, %v7300, 0
    %v7343 = vsel %vm43, %v7301, 0
    %v7346 = vsel %vm43, %v7302, 0
    %v7349 = vsel %vm43, %v7303, 0
    %v7352 = vsel %vm43, %v7304, 0
    %v7355 = vsel %vm43, %v7305, 0
    %v7358 = vsel %vm43, %v7306, 0
    %v7361 = vsel %vm43, %v7307, 0
    %v7364 = vsel %vm43, %v7308, 0
    %v7367 = vsel %vm43, %v7309, 0
    %v7370 = vsel %vm43, %v7310, 0
    %v7373 = vsel %vm43, %v7311, 0
    %v7376 = vsel %vm43, %v7312, 0
    %7378 = vmatpush.bf16.msra.mxu0 0
    %7379 = vmatpush.bf16.msra.mxu0 0
    %7380 = vmatpush.bf16.msra.mxu0 0
    %7381 = vmatpush.bf16.msra.mxu0 0
    %7382 = vmatpush.bf16.msra.mxu0 0
    %7383 = vmatpush.bf16.msra.mxu0 0
    %7384 = vmatpush.bf16.msra.mxu0 %v7327
    %7385 = vmatpush.bf16.msra.mxu0 %v7326
    %7386 = vmatmul.bf16.gmra.mxu0 %v7331
    %v7387 = vpop.f32.mrf.mxu0
    %v7388 = vadd.f32 0.0, %v7387
    %v7389 = vpop.f32.mrf.mxu0
    %v7390 = vadd.f32 0.0, %v7389
    %7391 = vmatmul.bf16.gmra.mxu0 %v7334
    %v7392 = vpop.f32.mrf.mxu0
    %v7393 = vadd.f32 0.0, %v7392
    %v7394 = vpop.f32.mrf.mxu0
    %v7395 = vadd.f32 0.0, %v7394
    %7396 = vmatmul.bf16.gmra.mxu0 %v7337
    %v7397 = vpop.f32.mrf.mxu0
    %v7398 = vadd.f32 0.0, %v7397
    %v7399 = vpop.f32.mrf.mxu0
    %v7400 = vadd.f32 0.0, %v7399
    %7401 = vmatmul.bf16.gmra.mxu0 %v7340
    %v7402 = vpop.f32.mrf.mxu0
    %v7403 = vadd.f32 0.0, %v7402
    %v7404 = vpop.f32.mrf.mxu0
    %v7405 = vadd.f32 0.0, %v7404
    %7406 = vmatmul.bf16.gmra.mxu0 %v7343
    %v7407 = vpop.f32.mrf.mxu0
    %v7408 = vadd.f32 0.0, %v7407
    %v7409 = vpop.f32.mrf.mxu0
    %v7410 = vadd.f32 0.0, %v7409
    %7411 = vmatmul.bf16.gmra.mxu0 %v7346
    %v7412 = vpop.f32.mrf.mxu0
    %v7413 = vadd.f32 0.0, %v7412
    %v7414 = vpop.f32.mrf.mxu0
    %v7415 = vadd.f32 0.0, %v7414
    %7416 = vmatmul.bf16.gmra.mxu0 %v7349
    %v7417 = vpop.f32.mrf.mxu0
    %v7418 = vadd.f32 0.0, %v7417
    %v7419 = vpop.f32.mrf.mxu0
    %v7420 = vadd.f32 0.0, %v7419
    %7421 = vmatmul.bf16.gmra.mxu0 %v7352
    %v7422 = vpop.f32.mrf.mxu0
    %v7423 = vadd.f32 0.0, %v7422
    %v7424 = vpop.f32.mrf.mxu0
    %v7425 = vadd.f32 0.0, %v7424
    %7426 = vmatmul.bf16.gmra.mxu0 %v7355
    %v7427 = vpop.f32.mrf.mxu0
    %v7428 = vadd.f32 0.0, %v7427
    %v7429 = vpop.f32.mrf.mxu0
    %v7430 = vadd.f32 0.0, %v7429
    %7431 = vmatmul.bf16.gmra.mxu0 %v7358
    %v7432 = vpop.f32.mrf.mxu0
    %v7433 = vadd.f32 0.0, %v7432
    %v7434 = vpop.f32.mrf.mxu0
    %v7435 = vadd.f32 0.0, %v7434
    %7436 = vmatmul.bf16.gmra.mxu0 %v7361
    %v7437 = vpop.f32.mrf.mxu0
    %v7438 = vadd.f32 0.0, %v7437
    %v7439 = vpop.f32.mrf.mxu0
    %v7440 = vadd.f32 0.0, %v7439
    %7441 = vmatmul.bf16.gmra.mxu0 %v7364
    %v7442 = vpop.f32.mrf.mxu0
    %v7443 = vadd.f32 0.0, %v7442
    %v7444 = vpop.f32.mrf.mxu0
    %v7445 = vadd.f32 0.0, %v7444
    %7446 = vmatmul.bf16.gmra.mxu0 %v7367
    %v7447 = vpop.f32.mrf.mxu0
    %v7448 = vadd.f32 0.0, %v7447
    %v7449 = vpop.f32.mrf.mxu0
    %v7450 = vadd.f32 0.0, %v7449
    %7451 = vmatmul.bf16.gmra.mxu0 %v7370
    %v7452 = vpop.f32.mrf.mxu0
    %v7453 = vadd.f32 0.0, %v7452
    %v7454 = vpop.f32.mrf.mxu0
    %v7455 = vadd.f32 0.0, %v7454
    %7456 = vmatmul.bf16.gmra.mxu0 %v7373
    %v7457 = vpop.f32.mrf.mxu0
    %v7458 = vadd.f32 0.0, %v7457
    %v7459 = vpop.f32.mrf.mxu0
    %v7460 = vadd.f32 0.0, %v7459
    %7461 = vmatmul.bf16.gmra.mxu0 %v7376
    %v7462 = vpop.f32.mrf.mxu0
    %v7463 = vadd.f32 0.0, %v7462
    %v7464 = vpop.f32.mrf.mxu0
    %v7465 = vadd.f32 0.0, %v7464
    %7466 = vdwg.mxu0
    %v7467 = vadd.f32 %v7233, %v7388
    %v7468 = vadd.f32 %v7234, %v7390
    %v7469 = vadd.f32 %v7235, %v7393
    %v7470 = vadd.f32 %v7236, %v7395
    %v7471 = vadd.f32 %v7237, %v7398
    %v7472 = vadd.f32 %v7238, %v7400
    %v7473 = vadd.f32 %v7239, %v7403
    %v7474 = vadd.f32 %v7240, %v7405
    %v7475 = vadd.f32 %v7241, %v7408
    %v7476 = vadd.f32 %v7242, %v7410
    %v7477 = vadd.f32 %v7243, %v7413
    %v7478 = vadd.f32 %v7244, %v7415
    %v7479 = vadd.f32 %v7245, %v7418
    %v7480 = vadd.f32 %v7246, %v7420
    %v7481 = vadd.f32 %v7247, %v7423
    %v7482 = vadd.f32 %v7248, %v7425
    %v7483 = vadd.f32 %v7249, %v7428
    %v7484 = vadd.f32 %v7250, %v7430
    %v7485 = vadd.f32 %v7251, %v7433
    %v7486 = vadd.f32 %v7252, %v7435
    %v7487 = vadd.f32 %v7253, %v7438
    %v7488 = vadd.f32 %v7254, %v7440
    %v7489 = vadd.f32 %v7255, %v7443
    %v7490 = vadd.f32 %v7256, %v7445
    %v7491 = vadd.f32 %v7257, %v7448
    %v7492 = vadd.f32 %v7258, %v7450
    %v7493 = vadd.f32 %v7259, %v7453
    %v7494 = vadd.f32 %v7260, %v7455
    %v7495 = vadd.f32 %v7261, %v7458
    %v7496 = vadd.f32 %v7262, %v7460
    %v7497 = vadd.f32 %v7263, %v7463
    %v7498 = vadd.f32 %v7264, %v7465
    %v7499 = vld [vmem:[#allocation2 + $0x4c] sm:$0xff]
    %v7500 = vld [vmem:[#allocation2 + $0x54] sm:$0xff]
    %v7501 = vld [vmem:[#allocation2 + $0x5c] sm:$0xff]
    %v7502 = vld [vmem:[#allocation2 + $0x64] sm:$0xff]
    %v7503 = vld [vmem:[#allocation2 + $0x6c] sm:$0xff]
    %v7504 = vld [vmem:[#allocation2 + $0x74] sm:$0xff]
    %v7505 = vld [vmem:[#allocation2 + $0x7c] sm:$0xff]
    %v7506 = vld [vmem:[#allocation2 + $0x84] sm:$0xff]
    %v7507 = vld [vmem:[#allocation2 + $0x8c] sm:$0xff]
    %v7508 = vld [vmem:[#allocation2 + $0x94] sm:$0xff]
    %v7509 = vld [vmem:[#allocation2 + $0x9c] sm:$0xff]
    %v7510 = vld [vmem:[#allocation2 + $0xa4] sm:$0xff]
    %v7511 = vld [vmem:[#allocation2 + $0xac] sm:$0xff]
    %v7512 = vld [vmem:[#allocation2 + $0xb4] sm:$0xff]
    %v7513 = vld [vmem:[#allocation2 + $0xbc] sm:$0xff]
    %v7514 = vld [vmem:[#allocation2 + $0xc4] sm:$0xff]
    %v7515 = vld [vmem:[#allocation2 + $0xcc] sm:$0xff]
    %v7516 = vld [vmem:[#allocation2 + $0xd4] sm:$0xff]
    %v7517 = vld [vmem:[#allocation2 + $0xdc] sm:$0xff]
    %v7518 = vld [vmem:[#allocation2 + $0xe4] sm:$0xff]
    %v7519 = vld [vmem:[#allocation2 + $0xec] sm:$0xff]
    %v7520 = vld [vmem:[#allocation2 + $0xf4] sm:$0xff]
    %v7521 = vld [vmem:[#allocation2 + $0xfc] sm:$0xff]
    %v7522 = vld [vmem:[#allocation2 + $0x104] sm:$0xff]
    %v7523 = vld [vmem:[#allocation2 + $0x10c] sm:$0xff]
    %v7524 = vld [vmem:[#allocation2 + $0x114] sm:$0xff]
    %v7525 = vld [vmem:[#allocation2 + $0x11c] sm:$0xff]
    %v7526 = vld [vmem:[#allocation2 + $0x124] sm:$0xff]
    %v7527 = vld [vmem:[#allocation2 + $0x12c] sm:$0xff]
    %v7528 = vld [vmem:[#allocation2 + $0x134] sm:$0xff]
    %v7529 = vld [vmem:[#allocation2 + $0x13c] sm:$0xff]
    %v7530 = vld [vmem:[#allocation2 + $0x144] sm:$0xff]
    %v7531 = vsel %vm6733, %v7499, 0.0
    %v7532 = vsel %vm6734, %v7500, 0.0
    %v7533 = vsel %vm6735, %v7501, 0.0
    %v7534 = vsel %vm6736, %v7502, 0.0
    %v7535 = vsel %vm6737, %v7503, 0.0
    %v7536 = vsel %vm6738, %v7504, 0.0
    %v7537 = vsel %vm6739, %v7505, 0.0
    %v7538 = vsel %vm6740, %v7506, 0.0
    %v7539 = vsel %vm6741, %v7507, 0.0
    %v7540 = vsel %vm6742, %v7508, 0.0
    %v7541 = vsel %vm6743, %v7509, 0.0
    %v7542 = vsel %vm6744, %v7510, 0.0
    %v7543 = vsel %vm6745, %v7511, 0.0
    %v7544 = vsel %vm6746, %v7512, 0.0
    %v7545 = vsel %vm6747, %v7513, 0.0
    %v7546 = vsel %vm6748, %v7514, 0.0
    %v7547 = vsel %vm6749, %v7515, 0.0
    %v7548 = vsel %vm6750, %v7516, 0.0
    %v7549 = vsel %vm6751, %v7517, 0.0
    %v7550 = vsel %vm6752, %v7518, 0.0
    %v7551 = vsel %vm6753, %v7519, 0.0
    %v7552 = vsel %vm6754, %v7520, 0.0
    %v7553 = vsel %vm6755, %v7521, 0.0
    %v7554 = vsel %vm6756, %v7522, 0.0
    %v7555 = vsel %vm6757, %v7523, 0.0
    %v7556 = vsel %vm6758, %v7524, 0.0
    %v7557 = vsel %vm6759, %v7525, 0.0
    %v7558 = vsel %vm6760, %v7526, 0.0
    %v7559 = vsel %vm6761, %v7527, 0.0
    %v7560 = vsel %vm6762, %v7528, 0.0
    %v7561 = vsel %vm6763, %v7529, 0.0
    %v7562 = vsel %vm6764, %v7530, 0.0
    %v7563 = vpack.c.bf16 %v7532, %v7531
    %v7564 = vpack.c.bf16 %v7534, %v7533
    %v7565 = vpack.c.bf16 %v7536, %v7535
    %v7566 = vpack.c.bf16 %v7538, %v7537
    %v7567 = vpack.c.bf16 %v7540, %v7539
    %v7568 = vpack.c.bf16 %v7542, %v7541
    %v7569 = vpack.c.bf16 %v7544, %v7543
    %v7570 = vpack.c.bf16 %v7546, %v7545
    %v7571 = vpack.c.bf16 %v7548, %v7547
    %v7572 = vpack.c.bf16 %v7550, %v7549
    %v7573 = vpack.c.bf16 %v7552, %v7551
    %v7574 = vpack.c.bf16 %v7554, %v7553
    %v7575 = vpack.c.bf16 %v7556, %v7555
    %v7576 = vpack.c.bf16 %v7558, %v7557
    %v7577 = vpack.c.bf16 %v7560, %v7559
    %v7578 = vpack.c.bf16 %v7562, %v7561
    %s7579 = scalar_lea.vmem %s6, 80
    %v7580 = vld [vmem:[%s7579] sm:$0xf]
    %v7581 = vld [vmem:[%s7579 + $0x4] sm:$0xf]
    %v7582 = vld [vmem:[%s7579 + $0x8] sm:$0xf]
    %v7583 = vld [vmem:[%s7579 + $0xc] sm:$0xf]
    %v7588 = vunpack.c.l.b16 %v7580
    %v7589 = vunpack.c.l.b16 %v7581
    %v7590 = vunpack.c.l.b16 %v7582
    %v7591 = vunpack.c.l.b16 %v7583
    %v7592 = vpack.c.b16 %v7589, %v7588
    %v7593 = vpack.c.b16 %v7591, %v7590
    %v7597 = vsel %vm43, %v7563, 0
    %v7600 = vsel %vm43, %v7564, 0
    %v7603 = vsel %vm43, %v7565, 0
    %v7606 = vsel %vm43, %v7566, 0
    %v7609 = vsel %vm43, %v7567, 0
    %v7612 = vsel %vm43, %v7568, 0
    %v7615 = vsel %vm43, %v7569, 0
    %v7618 = vsel %vm43, %v7570, 0
    %v7621 = vsel %vm43, %v7571, 0
    %v7624 = vsel %vm43, %v7572, 0
    %v7627 = vsel %vm43, %v7573, 0
    %v7630 = vsel %vm43, %v7574, 0
    %v7633 = vsel %vm43, %v7575, 0
    %v7636 = vsel %vm43, %v7576, 0
    %v7639 = vsel %vm43, %v7577, 0
    %v7642 = vsel %vm43, %v7578, 0
    %7644 = vmatpush.bf16.msra.mxu0 0
    %7645 = vmatpush.bf16.msra.mxu0 0
    %7646 = vmatpush.bf16.msra.mxu0 0
    %7647 = vmatpush.bf16.msra.mxu0 0
    %7648 = vmatpush.bf16.msra.mxu0 0
    %7649 = vmatpush.bf16.msra.mxu0 0
    %7650 = vmatpush.bf16.msra.mxu0 %v7593
    %7651 = vmatpush.bf16.msra.mxu0 %v7592
    %7652 = vmatmul.bf16.gmra.mxu0 %v7597
    %v7653 = vpop.f32.mrf.mxu0
    %v7654 = vadd.f32 0.0, %v7653
    %v7655 = vpop.f32.mrf.mxu0
    %v7656 = vadd.f32 0.0, %v7655
    %7657 = vmatmul.bf16.gmra.mxu0 %v7600
    %v7658 = vpop.f32.mrf.mxu0
    %v7659 = vadd.f32 0.0, %v7658
    %v7660 = vpop.f32.mrf.mxu0
    %v7661 = vadd.f32 0.0, %v7660
    %7662 = vmatmul.bf16.gmra.mxu0 %v7603
    %v7663 = vpop.f32.mrf.mxu0
    %v7664 = vadd.f32 0.0, %v7663
    %v7665 = vpop.f32.mrf.mxu0
    %v7666 = vadd.f32 0.0, %v7665
    %7667 = vmatmul.bf16.gmra.mxu0 %v7606
    %v7668 = vpop.f32.mrf.mxu0
    %v7669 = vadd.f32 0.0, %v7668
    %v7670 = vpop.f32.mrf.mxu0
    %v7671 = vadd.f32 0.0, %v7670
    %7672 = vmatmul.bf16.gmra.mxu0 %v7609
    %v7673 = vpop.f32.mrf.mxu0
    %v7674 = vadd.f32 0.0, %v7673
    %v7675 = vpop.f32.mrf.mxu0
    %v7676 = vadd.f32 0.0, %v7675
    %7677 = vmatmul.bf16.gmra.mxu0 %v7612
    %v7678 = vpop.f32.mrf.mxu0
    %v7679 = vadd.f32 0.0, %v7678
    %v7680 = vpop.f32.mrf.mxu0
    %v7681 = vadd.f32 0.0, %v7680
    %7682 = vmatmul.bf16.gmra.mxu0 %v7615
    %v7683 = vpop.f32.mrf.mxu0
    %v7684 = vadd.f32 0.0, %v7683
    %v7685 = vpop.f32.mrf.mxu0
    %v7686 = vadd.f32 0.0, %v7685
    %7687 = vmatmul.bf16.gmra.mxu0 %v7618
    %v7688 = vpop.f32.mrf.mxu0
    %v7689 = vadd.f32 0.0, %v7688
    %v7690 = vpop.f32.mrf.mxu0
    %v7691 = vadd.f32 0.0, %v7690
    %7692 = vmatmul.bf16.gmra.mxu0 %v7621
    %v7693 = vpop.f32.mrf.mxu0
    %v7694 = vadd.f32 0.0, %v7693
    %v7695 = vpop.f32.mrf.mxu0
    %v7696 = vadd.f32 0.0, %v7695
    %7697 = vmatmul.bf16.gmra.mxu0 %v7624
    %v7698 = vpop.f32.mrf.mxu0
    %v7699 = vadd.f32 0.0, %v7698
    %v7700 = vpop.f32.mrf.mxu0
    %v7701 = vadd.f32 0.0, %v7700
    %7702 = vmatmul.bf16.gmra.mxu0 %v7627
    %v7703 = vpop.f32.mrf.mxu0
    %v7704 = vadd.f32 0.0, %v7703
    %v7705 = vpop.f32.mrf.mxu0
    %v7706 = vadd.f32 0.0, %v7705
    %7707 = vmatmul.bf16.gmra.mxu0 %v7630
    %v7708 = vpop.f32.mrf.mxu0
    %v7709 = vadd.f32 0.0, %v7708
    %v7710 = vpop.f32.mrf.mxu0
    %v7711 = vadd.f32 0.0, %v7710
    %7712 = vmatmul.bf16.gmra.mxu0 %v7633
    %v7713 = vpop.f32.mrf.mxu0
    %v7714 = vadd.f32 0.0, %v7713
    %v7715 = vpop.f32.mrf.mxu0
    %v7716 = vadd.f32 0.0, %v7715
    %7717 = vmatmul.bf16.gmra.mxu0 %v7636
    %v7718 = vpop.f32.mrf.mxu0
    %v7719 = vadd.f32 0.0, %v7718
    %v7720 = vpop.f32.mrf.mxu0
    %v7721 = vadd.f32 0.0, %v7720
    %7722 = vmatmul.bf16.gmra.mxu0 %v7639
    %v7723 = vpop.f32.mrf.mxu0
    %v7724 = vadd.f32 0.0, %v7723
    %v7725 = vpop.f32.mrf.mxu0
    %v7726 = vadd.f32 0.0, %v7725
    %7727 = vmatmul.bf16.gmra.mxu0 %v7642
    %v7728 = vpop.f32.mrf.mxu0
    %v7729 = vadd.f32 0.0, %v7728
    %v7730 = vpop.f32.mrf.mxu0
    %v7731 = vadd.f32 0.0, %v7730
    %7732 = vdwg.mxu0
    %v7733 = vadd.f32 %v7467, %v7654
    %v7734 = vadd.f32 %v7468, %v7656
    %v7735 = vadd.f32 %v7469, %v7659
    %v7736 = vadd.f32 %v7470, %v7661
    %v7737 = vadd.f32 %v7471, %v7664
    %v7738 = vadd.f32 %v7472, %v7666
    %v7739 = vadd.f32 %v7473, %v7669
    %v7740 = vadd.f32 %v7474, %v7671
    %v7741 = vadd.f32 %v7475, %v7674
    %v7742 = vadd.f32 %v7476, %v7676
    %v7743 = vadd.f32 %v7477, %v7679
    %v7744 = vadd.f32 %v7478, %v7681
    %v7745 = vadd.f32 %v7479, %v7684
    %v7746 = vadd.f32 %v7480, %v7686
    %v7747 = vadd.f32 %v7481, %v7689
    %v7748 = vadd.f32 %v7482, %v7691
    %v7749 = vadd.f32 %v7483, %v7694
    %v7750 = vadd.f32 %v7484, %v7696
    %v7751 = vadd.f32 %v7485, %v7699
    %v7752 = vadd.f32 %v7486, %v7701
    %v7753 = vadd.f32 %v7487, %v7704
    %v7754 = vadd.f32 %v7488, %v7706
    %v7755 = vadd.f32 %v7489, %v7709
    %v7756 = vadd.f32 %v7490, %v7711
    %v7757 = vadd.f32 %v7491, %v7714
    %v7758 = vadd.f32 %v7492, %v7716
    %v7759 = vadd.f32 %v7493, %v7719
    %v7760 = vadd.f32 %v7494, %v7721
    %v7761 = vadd.f32 %v7495, %v7724
    %v7762 = vadd.f32 %v7496, %v7726
    %v7763 = vadd.f32 %v7497, %v7729
    %v7764 = vadd.f32 %v7498, %v7731
    %v7765 = vld [vmem:[#allocation2 + $0x84] sm:$0xff]
    %v7766 = vld [vmem:[#allocation2 + $0x8c] sm:$0xff]
    %v7767 = vld [vmem:[#allocation2 + $0x94] sm:$0xff]
    %v7768 = vld [vmem:[#allocation2 + $0x9c] sm:$0xff]
    %v7769 = vld [vmem:[#allocation2 + $0xa4] sm:$0xff]
    %v7770 = vld [vmem:[#allocation2 + $0xac] sm:$0xff]
    %v7771 = vld [vmem:[#allocation2 + $0xb4] sm:$0xff]
    %v7772 = vld [vmem:[#allocation2 + $0xbc] sm:$0xff]
    %v7773 = vld [vmem:[#allocation2 + $0xc4] sm:$0xff]
    %v7774 = vld [vmem:[#allocation2 + $0xcc] sm:$0xff]
    %v7775 = vld [vmem:[#allocation2 + $0xd4] sm:$0xff]
    %v7776 = vld [vmem:[#allocation2 + $0xdc] sm:$0xff]
    %v7777 = vld [vmem:[#allocation2 + $0xe4] sm:$0xff]
    %v7778 = vld [vmem:[#allocation2 + $0xec] sm:$0xff]
    %v7779 = vld [vmem:[#allocation2 + $0xf4] sm:$0xff]
    %v7780 = vld [vmem:[#allocation2 + $0xfc] sm:$0xff]
    %v7781 = vld [vmem:[#allocation2 + $0x104] sm:$0xff]
    %v7782 = vld [vmem:[#allocation2 + $0x10c] sm:$0xff]
    %v7783 = vld [vmem:[#allocation2 + $0x114] sm:$0xff]
    %v7784 = vld [vmem:[#allocation2 + $0x11c] sm:$0xff]
    %v7785 = vld [vmem:[#allocation2 + $0x124] sm:$0xff]
    %v7786 = vld [vmem:[#allocation2 + $0x12c] sm:$0xff]
    %v7787 = vld [vmem:[#allocation2 + $0x134] sm:$0xff]
    %v7788 = vld [vmem:[#allocation2 + $0x13c] sm:$0xff]
    %v7789 = vld [vmem:[#allocation2 + $0x144] sm:$0xff]
    %v7790 = vld [vmem:[#allocation2 + $0x14c] sm:$0xff]
    %v7791 = vld [vmem:[#allocation2 + $0x154] sm:$0xff]
    %v7792 = vld [vmem:[#allocation2 + $0x15c] sm:$0xff]
    %v7793 = vld [vmem:[#allocation2 + $0x164] sm:$0xff]
    %v7794 = vld [vmem:[#allocation2 + $0x16c] sm:$0xff]
    %v7795 = vld [vmem:[#allocation2 + $0x174] sm:$0xff]
    %v7796 = vld [vmem:[#allocation2 + $0x17c] sm:$0xff]
    %v7797 = vsel %vm6138, %v7765, 0.0
    %v7798 = vsel %vm6139, %v7766, 0.0
    %v7799 = vsel %vm6140, %v7767, 0.0
    %v7800 = vsel %vm6141, %v7768, 0.0
    %v7801 = vsel %vm6142, %v7769, 0.0
    %v7802 = vsel %vm6143, %v7770, 0.0
    %v7803 = vsel %vm6144, %v7771, 0.0
    %v7804 = vsel %vm6145, %v7772, 0.0
    %v7805 = vsel %vm6146, %v7773, 0.0
    %v7806 = vsel %vm6147, %v7774, 0.0
    %v7807 = vsel %vm6148, %v7775, 0.0
    %v7808 = vsel %vm6149, %v7776, 0.0
    %v7809 = vsel %vm6150, %v7777, 0.0
    %v7810 = vsel %vm6151, %v7778, 0.0
    %v7811 = vsel %vm6152, %v7779, 0.0
    %v7812 = vsel %vm6153, %v7780, 0.0
    %v7813 = vsel %vm6154, %v7781, 0.0
    %v7814 = vsel %vm6155, %v7782, 0.0
    %v7815 = vsel %vm6156, %v7783, 0.0
    %v7816 = vsel %vm6157, %v7784, 0.0
    %v7817 = vsel %vm6158, %v7785, 0.0
    %v7818 = vsel %vm6159, %v7786, 0.0
    %v7819 = vsel %vm6160, %v7787, 0.0
    %v7820 = vsel %vm6161, %v7788, 0.0
    %v7821 = vsel %vm6162, %v7789, 0.0
    %v7822 = vsel %vm6163, %v7790, 0.0
    %v7823 = vsel %vm6164, %v7791, 0.0
    %v7824 = vsel %vm6165, %v7792, 0.0
    %v7825 = vsel %vm6166, %v7793, 0.0
    %v7826 = vsel %vm6167, %v7794, 0.0
    %v7827 = vsel %vm6168, %v7795, 0.0
    %v7828 = vsel %vm6169, %v7796, 0.0
    %v7829 = vpack.c.bf16 %v7798, %v7797
    %v7830 = vpack.c.bf16 %v7800, %v7799
    %v7831 = vpack.c.bf16 %v7802, %v7801
    %v7832 = vpack.c.bf16 %v7804, %v7803
    %v7833 = vpack.c.bf16 %v7806, %v7805
    %v7834 = vpack.c.bf16 %v7808, %v7807
    %v7835 = vpack.c.bf16 %v7810, %v7809
    %v7836 = vpack.c.bf16 %v7812, %v7811
    %v7837 = vpack.c.bf16 %v7814, %v7813
    %v7838 = vpack.c.bf16 %v7816, %v7815
    %v7839 = vpack.c.bf16 %v7818, %v7817
    %v7840 = vpack.c.bf16 %v7820, %v7819
    %v7841 = vpack.c.bf16 %v7822, %v7821
    %v7842 = vpack.c.bf16 %v7824, %v7823
    %v7843 = vpack.c.bf16 %v7826, %v7825
    %v7844 = vpack.c.bf16 %v7828, %v7827
    %s7845 = scalar_lea.vmem %s6, 96
    %v7846 = vld [vmem:[%s7845] sm:$0xf]
    %v7847 = vld [vmem:[%s7845 + $0x4] sm:$0xf]
    %v7848 = vld [vmem:[%s7845 + $0x8] sm:$0xf]
    %v7849 = vld [vmem:[%s7845 + $0xc] sm:$0xf]
    %v7854 = vunpack.c.l.b16 %v7846
    %v7855 = vunpack.c.l.b16 %v7847
    %v7856 = vunpack.c.l.b16 %v7848
    %v7857 = vunpack.c.l.b16 %v7849
    %v7858 = vpack.c.b16 %v7855, %v7854
    %v7859 = vpack.c.b16 %v7857, %v7856
    %v7863 = vsel %vm43, %v7829, 0
    %v7866 = vsel %vm43, %v7830, 0
    %v7869 = vsel %vm43, %v7831, 0
    %v7872 = vsel %vm43, %v7832, 0
    %v7875 = vsel %vm43, %v7833, 0
    %v7878 = vsel %vm43, %v7834, 0
    %v7881 = vsel %vm43, %v7835, 0
    %v7884 = vsel %vm43, %v7836, 0
    %v7887 = vsel %vm43, %v7837, 0
    %v7890 = vsel %vm43, %v7838, 0
    %v7893 = vsel %vm43, %v7839, 0
    %v7896 = vsel %vm43, %v7840, 0
    %v7899 = vsel %vm43, %v7841, 0
    %v7902 = vsel %vm43, %v7842, 0
    %v7905 = vsel %vm43, %v7843, 0
    %v7908 = vsel %vm43, %v7844, 0
    %7910 = vmatpush.bf16.msra.mxu0 0
    %7911 = vmatpush.bf16.msra.mxu0 0
    %7912 = vmatpush.bf16.msra.mxu0 0
    %7913 = vmatpush.bf16.msra.mxu0 0
    %7914 = vmatpush.bf16.msra.mxu0 0
    %7915 = vmatpush.bf16.msra.mxu0 0
    %7916 = vmatpush.bf16.msra.mxu0 %v7859
    %7917 = vmatpush.bf16.msra.mxu0 %v7858
    %7918 = vmatmul.bf16.gmra.mxu0 %v7863
    %v7919 = vpop.f32.mrf.mxu0
    %v7920 = vadd.f32 0.0, %v7919
    %v7921 = vpop.f32.mrf.mxu0
    %v7922 = vadd.f32 0.0, %v7921
    %7923 = vmatmul.bf16.gmra.mxu0 %v7866
    %v7924 = vpop.f32.mrf.mxu0
    %v7925 = vadd.f32 0.0, %v7924
    %v7926 = vpop.f32.mrf.mxu0
    %v7927 = vadd.f32 0.0, %v7926
    %7928 = vmatmul.bf16.gmra.mxu0 %v7869
    %v7929 = vpop.f32.mrf.mxu0
    %v7930 = vadd.f32 0.0, %v7929
    %v7931 = vpop.f32.mrf.mxu0
    %v7932 = vadd.f32 0.0, %v7931
    %7933 = vmatmul.bf16.gmra.mxu0 %v7872
    %v7934 = vpop.f32.mrf.mxu0
    %v7935 = vadd.f32 0.0, %v7934
    %v7936 = vpop.f32.mrf.mxu0
    %v7937 = vadd.f32 0.0, %v7936
    %7938 = vmatmul.bf16.gmra.mxu0 %v7875
    %v7939 = vpop.f32.mrf.mxu0
    %v7940 = vadd.f32 0.0, %v7939
    %v7941 = vpop.f32.mrf.mxu0
    %v7942 = vadd.f32 0.0, %v7941
    %7943 = vmatmul.bf16.gmra.mxu0 %v7878
    %v7944 = vpop.f32.mrf.mxu0
    %v7945 = vadd.f32 0.0, %v7944
    %v7946 = vpop.f32.mrf.mxu0
    %v7947 = vadd.f32 0.0, %v7946
    %7948 = vmatmul.bf16.gmra.mxu0 %v7881
    %v7949 = vpop.f32.mrf.mxu0
    %v7950 = vadd.f32 0.0, %v7949
    %v7951 = vpop.f32.mrf.mxu0
    %v7952 = vadd.f32 0.0, %v7951
    %7953 = vmatmul.bf16.gmra.mxu0 %v7884
    %v7954 = vpop.f32.mrf.mxu0
    %v7955 = vadd.f32 0.0, %v7954
    %v7956 = vpop.f32.mrf.mxu0
    %v7957 = vadd.f32 0.0, %v7956
    %7958 = vmatmul.bf16.gmra.mxu0 %v7887
    %v7959 = vpop.f32.mrf.mxu0
    %v7960 = vadd.f32 0.0, %v7959
    %v7961 = vpop.f32.mrf.mxu0
    %v7962 = vadd.f32 0.0, %v7961
    %7963 = vmatmul.bf16.gmra.mxu0 %v7890
    %v7964 = vpop.f32.mrf.mxu0
    %v7965 = vadd.f32 0.0, %v7964
    %v7966 = vpop.f32.mrf.mxu0
    %v7967 = vadd.f32 0.0, %v7966
    %7968 = vmatmul.bf16.gmra.mxu0 %v7893
    %v7969 = vpop.f32.mrf.mxu0
    %v7970 = vadd.f32 0.0, %v7969
    %v7971 = vpop.f32.mrf.mxu0
    %v7972 = vadd.f32 0.0, %v7971
    %7973 = vmatmul.bf16.gmra.mxu0 %v7896
    %v7974 = vpop.f32.mrf.mxu0
    %v7975 = vadd.f32 0.0, %v7974
    %v7976 = vpop.f32.mrf.mxu0
    %v7977 = vadd.f32 0.0, %v7976
    %7978 = vmatmul.bf16.gmra.mxu0 %v7899
    %v7979 = vpop.f32.mrf.mxu0
    %v7980 = vadd.f32 0.0, %v7979
    %v7981 = vpop.f32.mrf.mxu0
    %v7982 = vadd.f32 0.0, %v7981
    %7983 = vmatmul.bf16.gmra.mxu0 %v7902
    %v7984 = vpop.f32.mrf.mxu0
    %v7985 = vadd.f32 0.0, %v7984
    %v7986 = vpop.f32.mrf.mxu0
    %v7987 = vadd.f32 0.0, %v7986
    %7988 = vmatmul.bf16.gmra.mxu0 %v7905
    %v7989 = vpop.f32.mrf.mxu0
    %v7990 = vadd.f32 0.0, %v7989
    %v7991 = vpop.f32.mrf.mxu0
    %v7992 = vadd.f32 0.0, %v7991
    %7993 = vmatmul.bf16.gmra.mxu0 %v7908
    %v7994 = vpop.f32.mrf.mxu0
    %v7995 = vadd.f32 0.0, %v7994
    %v7996 = vpop.f32.mrf.mxu0
    %v7997 = vadd.f32 0.0, %v7996
    %7998 = vdwg.mxu0
    %v7999 = vadd.f32 %v7733, %v7920
    %v8000 = vadd.f32 %v7734, %v7922
    %v8001 = vadd.f32 %v7735, %v7925
    %v8002 = vadd.f32 %v7736, %v7927
    %v8003 = vadd.f32 %v7737, %v7930
    %v8004 = vadd.f32 %v7738, %v7932
    %v8005 = vadd.f32 %v7739, %v7935
    %v8006 = vadd.f32 %v7740, %v7937
    %v8007 = vadd.f32 %v7741, %v7940
    %v8008 = vadd.f32 %v7742, %v7942
    %v8009 = vadd.f32 %v7743, %v7945
    %v8010 = vadd.f32 %v7744, %v7947
    %v8011 = vadd.f32 %v7745, %v7950
    %v8012 = vadd.f32 %v7746, %v7952
    %v8013 = vadd.f32 %v7747, %v7955
    %v8014 = vadd.f32 %v7748, %v7957
    %v8015 = vadd.f32 %v7749, %v7960
    %v8016 = vadd.f32 %v7750, %v7962
    %v8017 = vadd.f32 %v7751, %v7965
    %v8018 = vadd.f32 %v7752, %v7967
    %v8019 = vadd.f32 %v7753, %v7970
    %v8020 = vadd.f32 %v7754, %v7972
    %v8021 = vadd.f32 %v7755, %v7975
    %v8022 = vadd.f32 %v7756, %v7977
    %v8023 = vadd.f32 %v7757, %v7980
    %v8024 = vadd.f32 %v7758, %v7982
    %v8025 = vadd.f32 %v7759, %v7985
    %v8026 = vadd.f32 %v7760, %v7987
    %v8027 = vadd.f32 %v7761, %v7990
    %v8028 = vadd.f32 %v7762, %v7992
    %v8029 = vadd.f32 %v7763, %v7995
    %v8030 = vadd.f32 %v7764, %v7997
    %v8031 = vld [vmem:[#allocation2 + $0x88] sm:$0xff]
    %v8032 = vld [vmem:[#allocation2 + $0x90] sm:$0xff]
    %v8033 = vld [vmem:[#allocation2 + $0x98] sm:$0xff]
    %v8034 = vld [vmem:[#allocation2 + $0xa0] sm:$0xff]
    %v8035 = vld [vmem:[#allocation2 + $0xa8] sm:$0xff]
    %v8036 = vld [vmem:[#allocation2 + $0xb0] sm:$0xff]
    %v8037 = vld [vmem:[#allocation2 + $0xb8] sm:$0xff]
    %v8038 = vld [vmem:[#allocation2 + $0xc0] sm:$0xff]
    %v8039 = vld [vmem:[#allocation2 + $0xc8] sm:$0xff]
    %v8040 = vld [vmem:[#allocation2 + $0xd0] sm:$0xff]
    %v8041 = vld [vmem:[#allocation2 + $0xd8] sm:$0xff]
    %v8042 = vld [vmem:[#allocation2 + $0xe0] sm:$0xff]
    %v8043 = vld [vmem:[#allocation2 + $0xe8] sm:$0xff]
    %v8044 = vld [vmem:[#allocation2 + $0xf0] sm:$0xff]
    %v8045 = vld [vmem:[#allocation2 + $0xf8] sm:$0xff]
    %v8046 = vld [vmem:[#allocation2 + $0x100] sm:$0xff]
    %v8047 = vld [vmem:[#allocation2 + $0x108] sm:$0xff]
    %v8048 = vld [vmem:[#allocation2 + $0x110] sm:$0xff]
    %v8049 = vld [vmem:[#allocation2 + $0x118] sm:$0xff]
    %v8050 = vld [vmem:[#allocation2 + $0x120] sm:$0xff]
    %v8051 = vld [vmem:[#allocation2 + $0x128] sm:$0xff]
    %v8052 = vld [vmem:[#allocation2 + $0x130] sm:$0xff]
    %v8053 = vld [vmem:[#allocation2 + $0x138] sm:$0xff]
    %v8054 = vld [vmem:[#allocation2 + $0x140] sm:$0xff]
    %v8055 = vld [vmem:[#allocation2 + $0x148] sm:$0xff]
    %v8056 = vld [vmem:[#allocation2 + $0x150] sm:$0xff]
    %v8057 = vld [vmem:[#allocation2 + $0x158] sm:$0xff]
    %v8058 = vld [vmem:[#allocation2 + $0x160] sm:$0xff]
    %v8059 = vld [vmem:[#allocation2 + $0x168] sm:$0xff]
    %v8060 = vld [vmem:[#allocation2 + $0x170] sm:$0xff]
    %v8061 = vld [vmem:[#allocation2 + $0x178] sm:$0xff]
    %v8062 = vld [vmem:[#allocation2 + $0x180] sm:$0xff]
    %v8063 = vpack.c.bf16 %v8032, %v8031
    %v8064 = vpack.c.bf16 %v8034, %v8033
    %v8065 = vpack.c.bf16 %v8036, %v8035
    %v8066 = vpack.c.bf16 %v8038, %v8037
    %v8067 = vpack.c.bf16 %v8040, %v8039
    %v8068 = vpack.c.bf16 %v8042, %v8041
    %v8069 = vpack.c.bf16 %v8044, %v8043
    %v8070 = vpack.c.bf16 %v8046, %v8045
    %v8071 = vpack.c.bf16 %v8048, %v8047
    %v8072 = vpack.c.bf16 %v8050, %v8049
    %v8073 = vpack.c.bf16 %v8052, %v8051
    %v8074 = vpack.c.bf16 %v8054, %v8053
    %v8075 = vpack.c.bf16 %v8056, %v8055
    %v8076 = vpack.c.bf16 %v8058, %v8057
    %v8077 = vpack.c.bf16 %v8060, %v8059
    %v8078 = vpack.c.bf16 %v8062, %v8061
    %s8079 = scalar_lea.vmem %s6, 112
    %v8080 = vld [vmem:[%s8079] sm:$0xf]
    %v8081 = vld [vmem:[%s8079 + $0x4] sm:$0xf]
    %v8082 = vld [vmem:[%s8079 + $0x8] sm:$0xf]
    %v8083 = vld [vmem:[%s8079 + $0xc] sm:$0xf]
    %v8088 = vunpack.c.l.b16 %v8080
    %v8089 = vunpack.c.l.b16 %v8081
    %v8090 = vunpack.c.l.b16 %v8082
    %v8091 = vunpack.c.l.b16 %v8083
    %v8092 = vpack.c.b16 %v8089, %v8088
    %v8093 = vpack.c.b16 %v8091, %v8090
    %v8097 = vsel %vm43, %v8063, 0
    %v8100 = vsel %vm43, %v8064, 0
    %v8103 = vsel %vm43, %v8065, 0
    %v8106 = vsel %vm43, %v8066, 0
    %v8109 = vsel %vm43, %v8067, 0
    %v8112 = vsel %vm43, %v8068, 0
    %v8115 = vsel %vm43, %v8069, 0
    %v8118 = vsel %vm43, %v8070, 0
    %v8121 = vsel %vm43, %v8071, 0
    %v8124 = vsel %vm43, %v8072, 0
    %v8127 = vsel %vm43, %v8073, 0
    %v8130 = vsel %vm43, %v8074, 0
    %v8133 = vsel %vm43, %v8075, 0
    %v8136 = vsel %vm43, %v8076, 0
    %v8139 = vsel %vm43, %v8077, 0
    %v8142 = vsel %vm43, %v8078, 0
    %8144 = vmatpush.bf16.msra.mxu0 0
    %8145 = vmatpush.bf16.msra.mxu0 0
    %8146 = vmatpush.bf16.msra.mxu0 0
    %8147 = vmatpush.bf16.msra.mxu0 0
    %8148 = vmatpush.bf16.msra.mxu0 0
    %8149 = vmatpush.bf16.msra.mxu0 0
    %8150 = vmatpush.bf16.msra.mxu0 %v8093
    %8151 = vmatpush.bf16.msra.mxu0 %v8092
    %8152 = vmatmul.bf16.gmra.mxu0 %v8097
    %v8153 = vpop.f32.mrf.mxu0
    %v8154 = vadd.f32 0.0, %v8153
    %v8155 = vpop.f32.mrf.mxu0
    %v8156 = vadd.f32 0.0, %v8155
    %8157 = vmatmul.bf16.gmra.mxu0 %v8100
    %v8158 = vpop.f32.mrf.mxu0
    %v8159 = vadd.f32 0.0, %v8158
    %v8160 = vpop.f32.mrf.mxu0
    %v8161 = vadd.f32 0.0, %v8160
    %8162 = vmatmul.bf16.gmra.mxu0 %v8103
    %v8163 = vpop.f32.mrf.mxu0
    %v8164 = vadd.f32 0.0, %v8163
    %v8165 = vpop.f32.mrf.mxu0
    %v8166 = vadd.f32 0.0, %v8165
    %8167 = vmatmul.bf16.gmra.mxu0 %v8106
    %v8168 = vpop.f32.mrf.mxu0
    %v8169 = vadd.f32 0.0, %v8168
    %v8170 = vpop.f32.mrf.mxu0
    %v8171 = vadd.f32 0.0, %v8170
    %8172 = vmatmul.bf16.gmra.mxu0 %v8109
    %v8173 = vpop.f32.mrf.mxu0
    %v8174 = vadd.f32 0.0, %v8173
    %v8175 = vpop.f32.mrf.mxu0
    %v8176 = vadd.f32 0.0, %v8175
    %8177 = vmatmul.bf16.gmra.mxu0 %v8112
    %v8178 = vpop.f32.mrf.mxu0
    %v8179 = vadd.f32 0.0, %v8178
    %v8180 = vpop.f32.mrf.mxu0
    %v8181 = vadd.f32 0.0, %v8180
    %8182 = vmatmul.bf16.gmra.mxu0 %v8115
    %v8183 = vpop.f32.mrf.mxu0
    %v8184 = vadd.f32 0.0, %v8183
    %v8185 = vpop.f32.mrf.mxu0
    %v8186 = vadd.f32 0.0, %v8185
    %8187 = vmatmul.bf16.gmra.mxu0 %v8118
    %v8188 = vpop.f32.mrf.mxu0
    %v8189 = vadd.f32 0.0, %v8188
    %v8190 = vpop.f32.mrf.mxu0
    %v8191 = vadd.f32 0.0, %v8190
    %8192 = vmatmul.bf16.gmra.mxu0 %v8121
    %v8193 = vpop.f32.mrf.mxu0
    %v8194 = vadd.f32 0.0, %v8193
    %v8195 = vpop.f32.mrf.mxu0
    %v8196 = vadd.f32 0.0, %v8195
    %8197 = vmatmul.bf16.gmra.mxu0 %v8124
    %v8198 = vpop.f32.mrf.mxu0
    %v8199 = vadd.f32 0.0, %v8198
    %v8200 = vpop.f32.mrf.mxu0
    %v8201 = vadd.f32 0.0, %v8200
    %8202 = vmatmul.bf16.gmra.mxu0 %v8127
    %v8203 = vpop.f32.mrf.mxu0
    %v8204 = vadd.f32 0.0, %v8203
    %v8205 = vpop.f32.mrf.mxu0
    %v8206 = vadd.f32 0.0, %v8205
    %8207 = vmatmul.bf16.gmra.mxu0 %v8130
    %v8208 = vpop.f32.mrf.mxu0
    %v8209 = vadd.f32 0.0, %v8208
    %v8210 = vpop.f32.mrf.mxu0
    %v8211 = vadd.f32 0.0, %v8210
    %8212 = vmatmul.bf16.gmra.mxu0 %v8133
    %v8213 = vpop.f32.mrf.mxu0
    %v8214 = vadd.f32 0.0, %v8213
    %v8215 = vpop.f32.mrf.mxu0
    %v8216 = vadd.f32 0.0, %v8215
    %8217 = vmatmul.bf16.gmra.mxu0 %v8136
    %v8218 = vpop.f32.mrf.mxu0
    %v8219 = vadd.f32 0.0, %v8218
    %v8220 = vpop.f32.mrf.mxu0
    %v8221 = vadd.f32 0.0, %v8220
    %8222 = vmatmul.bf16.gmra.mxu0 %v8139
    %v8223 = vpop.f32.mrf.mxu0
    %v8224 = vadd.f32 0.0, %v8223
    %v8225 = vpop.f32.mrf.mxu0
    %v8226 = vadd.f32 0.0, %v8225
    %8227 = vmatmul.bf16.gmra.mxu0 %v8142
    %v8228 = vpop.f32.mrf.mxu0
    %v8229 = vadd.f32 0.0, %v8228
    %v8230 = vpop.f32.mrf.mxu0
    %v8231 = vadd.f32 0.0, %v8230
    %8232 = vdwg.mxu0
    %v8233 = vadd.f32 %v7999, %v8154
    %v8234 = vadd.f32 %v8000, %v8156
    %v8235 = vadd.f32 %v8001, %v8159
    %v8236 = vadd.f32 %v8002, %v8161
    %v8237 = vadd.f32 %v8003, %v8164
    %v8238 = vadd.f32 %v8004, %v8166
    %v8239 = vadd.f32 %v8005, %v8169
    %v8240 = vadd.f32 %v8006, %v8171
    %v8241 = vadd.f32 %v8007, %v8174
    %v8242 = vadd.f32 %v8008, %v8176
    %v8243 = vadd.f32 %v8009, %v8179
    %v8244 = vadd.f32 %v8010, %v8181
    %v8245 = vadd.f32 %v8011, %v8184
    %v8246 = vadd.f32 %v8012, %v8186
    %v8247 = vadd.f32 %v8013, %v8189
    %v8248 = vadd.f32 %v8014, %v8191
    %v8249 = vadd.f32 %v8015, %v8194
    %v8250 = vadd.f32 %v8016, %v8196
    %v8251 = vadd.f32 %v8017, %v8199
    %v8252 = vadd.f32 %v8018, %v8201
    %v8253 = vadd.f32 %v8019, %v8204
    %v8254 = vadd.f32 %v8020, %v8206
    %v8255 = vadd.f32 %v8021, %v8209
    %v8256 = vadd.f32 %v8022, %v8211
    %v8257 = vadd.f32 %v8023, %v8214
    %v8258 = vadd.f32 %v8024, %v8216
    %v8259 = vadd.f32 %v8025, %v8219
    %v8260 = vadd.f32 %v8026, %v8221
    %v8261 = vadd.f32 %v8027, %v8224
    %v8262 = vadd.f32 %v8028, %v8226
    %v8263 = vadd.f32 %v8029, %v8229
    %v8264 = vadd.f32 %v8030, %v8231
    %v8265 = vld [vmem:[#allocation2 + $0x8c] sm:$0xff]
    %v8266 = vld [vmem:[#allocation2 + $0x94] sm:$0xff]
    %v8267 = vld [vmem:[#allocation2 + $0x9c] sm:$0xff]
    %v8268 = vld [vmem:[#allocation2 + $0xa4] sm:$0xff]
    %v8269 = vld [vmem:[#allocation2 + $0xac] sm:$0xff]
    %v8270 = vld [vmem:[#allocation2 + $0xb4] sm:$0xff]
    %v8271 = vld [vmem:[#allocation2 + $0xbc] sm:$0xff]
    %v8272 = vld [vmem:[#allocation2 + $0xc4] sm:$0xff]
    %v8273 = vld [vmem:[#allocation2 + $0xcc] sm:$0xff]
    %v8274 = vld [vmem:[#allocation2 + $0xd4] sm:$0xff]
    %v8275 = vld [vmem:[#allocation2 + $0xdc] sm:$0xff]
    %v8276 = vld [vmem:[#allocation2 + $0xe4] sm:$0xff]
    %v8277 = vld [vmem:[#allocation2 + $0xec] sm:$0xff]
    %v8278 = vld [vmem:[#allocation2 + $0xf4] sm:$0xff]
    %v8279 = vld [vmem:[#allocation2 + $0xfc] sm:$0xff]
    %v8280 = vld [vmem:[#allocation2 + $0x104] sm:$0xff]
    %v8281 = vld [vmem:[#allocation2 + $0x10c] sm:$0xff]
    %v8282 = vld [vmem:[#allocation2 + $0x114] sm:$0xff]
    %v8283 = vld [vmem:[#allocation2 + $0x11c] sm:$0xff]
    %v8284 = vld [vmem:[#allocation2 + $0x124] sm:$0xff]
    %v8285 = vld [vmem:[#allocation2 + $0x12c] sm:$0xff]
    %v8286 = vld [vmem:[#allocation2 + $0x134] sm:$0xff]
    %v8287 = vld [vmem:[#allocation2 + $0x13c] sm:$0xff]
    %v8288 = vld [vmem:[#allocation2 + $0x144] sm:$0xff]
    %v8289 = vld [vmem:[#allocation2 + $0x14c] sm:$0xff]
    %v8290 = vld [vmem:[#allocation2 + $0x154] sm:$0xff]
    %v8291 = vld [vmem:[#allocation2 + $0x15c] sm:$0xff]
    %v8292 = vld [vmem:[#allocation2 + $0x164] sm:$0xff]
    %v8293 = vld [vmem:[#allocation2 + $0x16c] sm:$0xff]
    %v8294 = vld [vmem:[#allocation2 + $0x174] sm:$0xff]
    %v8295 = vld [vmem:[#allocation2 + $0x17c] sm:$0xff]
    %v8296 = vld [vmem:[#allocation2 + $0x184] sm:$0xff]
    %v8297 = vsel %vm6733, %v8265, 0.0
    %v8298 = vsel %vm6734, %v8266, 0.0
    %v8299 = vsel %vm6735, %v8267, 0.0
    %v8300 = vsel %vm6736, %v8268, 0.0
    %v8301 = vsel %vm6737, %v8269, 0.0
    %v8302 = vsel %vm6738, %v8270, 0.0
    %v8303 = vsel %vm6739, %v8271, 0.0
    %v8304 = vsel %vm6740, %v8272, 0.0
    %v8305 = vsel %vm6741, %v8273, 0.0
    %v8306 = vsel %vm6742, %v8274, 0.0
    %v8307 = vsel %vm6743, %v8275, 0.0
    %v8308 = vsel %vm6744, %v8276, 0.0
    %v8309 = vsel %vm6745, %v8277, 0.0
    %v8310 = vsel %vm6746, %v8278, 0.0
    %v8311 = vsel %vm6747, %v8279, 0.0
    %v8312 = vsel %vm6748, %v8280, 0.0
    %v8313 = vsel %vm6749, %v8281, 0.0
    %v8314 = vsel %vm6750, %v8282, 0.0
    %v8315 = vsel %vm6751, %v8283, 0.0
    %v8316 = vsel %vm6752, %v8284, 0.0
    %v8317 = vsel %vm6753, %v8285, 0.0
    %v8318 = vsel %vm6754, %v8286, 0.0
    %v8319 = vsel %vm6755, %v8287, 0.0
    %v8320 = vsel %vm6756, %v8288, 0.0
    %v8321 = vsel %vm6757, %v8289, 0.0
    %v8322 = vsel %vm6758, %v8290, 0.0
    %v8323 = vsel %vm6759, %v8291, 0.0
    %v8324 = vsel %vm6760, %v8292, 0.0
    %v8325 = vsel %vm6761, %v8293, 0.0
    %v8326 = vsel %vm6762, %v8294, 0.0
    %v8327 = vsel %vm6763, %v8295, 0.0
    %v8328 = vsel %vm6764, %v8296, 0.0
    %v8329 = vpack.c.bf16 %v8298, %v8297
    %v8330 = vpack.c.bf16 %v8300, %v8299
    %v8331 = vpack.c.bf16 %v8302, %v8301
    %v8332 = vpack.c.bf16 %v8304, %v8303
    %v8333 = vpack.c.bf16 %v8306, %v8305
    %v8334 = vpack.c.bf16 %v8308, %v8307
    %v8335 = vpack.c.bf16 %v8310, %v8309
    %v8336 = vpack.c.bf16 %v8312, %v8311
    %v8337 = vpack.c.bf16 %v8314, %v8313
    %v8338 = vpack.c.bf16 %v8316, %v8315
    %v8339 = vpack.c.bf16 %v8318, %v8317
    %v8340 = vpack.c.bf16 %v8320, %v8319
    %v8341 = vpack.c.bf16 %v8322, %v8321
    %v8342 = vpack.c.bf16 %v8324, %v8323
    %v8343 = vpack.c.bf16 %v8326, %v8325
    %v8344 = vpack.c.bf16 %v8328, %v8327
    %s8345 = scalar_lea.vmem %s6, 128
    %v8346 = vld [vmem:[%s8345] sm:$0xf]
    %v8347 = vld [vmem:[%s8345 + $0x4] sm:$0xf]
    %v8348 = vld [vmem:[%s8345 + $0x8] sm:$0xf]
    %v8349 = vld [vmem:[%s8345 + $0xc] sm:$0xf]
    %v8354 = vunpack.c.l.b16 %v8346
    %v8355 = vunpack.c.l.b16 %v8347
    %v8356 = vunpack.c.l.b16 %v8348
    %v8357 = vunpack.c.l.b16 %v8349
    %v8358 = vpack.c.b16 %v8355, %v8354
    %v8359 = vpack.c.b16 %v8357, %v8356
    %v8363 = vsel %vm43, %v8329, 0
    %v8366 = vsel %vm43, %v8330, 0
    %v8369 = vsel %vm43, %v8331, 0
    %v8372 = vsel %vm43, %v8332, 0
    %v8375 = vsel %vm43, %v8333, 0
    %v8378 = vsel %vm43, %v8334, 0
    %v8381 = vsel %vm43, %v8335, 0
    %v8384 = vsel %vm43, %v8336, 0
    %v8387 = vsel %vm43, %v8337, 0
    %v8390 = vsel %vm43, %v8338, 0
    %v8393 = vsel %vm43, %v8339, 0
    %v8396 = vsel %vm43, %v8340, 0
    %v8399 = vsel %vm43, %v8341, 0
    %v8402 = vsel %vm43, %v8342, 0
    %v8405 = vsel %vm43, %v8343, 0
    %v8408 = vsel %vm43, %v8344, 0
    %8410 = vmatpush.bf16.msra.mxu0 0
    %8411 = vmatpush.bf16.msra.mxu0 0
    %8412 = vmatpush.bf16.msra.mxu0 0
    %8413 = vmatpush.bf16.msra.mxu0 0
    %8414 = vmatpush.bf16.msra.mxu0 0
    %8415 = vmatpush.bf16.msra.mxu0 0
    %8416 = vmatpush.bf16.msra.mxu0 %v8359
    %8417 = vmatpush.bf16.msra.mxu0 %v8358
    %8418 = vmatmul.bf16.gmra.mxu0 %v8363
    %v8419 = vpop.f32.mrf.mxu0
    %v8420 = vadd.f32 0.0, %v8419
    %v8421 = vpop.f32.mrf.mxu0
    %v8422 = vadd.f32 0.0, %v8421
    %8423 = vmatmul.bf16.gmra.mxu0 %v8366
    %v8424 = vpop.f32.mrf.mxu0
    %v8425 = vadd.f32 0.0, %v8424
    %v8426 = vpop.f32.mrf.mxu0
    %v8427 = vadd.f32 0.0, %v8426
    %8428 = vmatmul.bf16.gmra.mxu0 %v8369
    %v8429 = vpop.f32.mrf.mxu0
    %v8430 = vadd.f32 0.0, %v8429
    %v8431 = vpop.f32.mrf.mxu0
    %v8432 = vadd.f32 0.0, %v8431
    %8433 = vmatmul.bf16.gmra.mxu0 %v8372
    %v8434 = vpop.f32.mrf.mxu0
    %v8435 = vadd.f32 0.0, %v8434
    %v8436 = vpop.f32.mrf.mxu0
    %v8437 = vadd.f32 0.0, %v8436
    %8438 = vmatmul.bf16.gmra.mxu0 %v8375
    %v8439 = vpop.f32.mrf.mxu0
    %v8440 = vadd.f32 0.0, %v8439
    %v8441 = vpop.f32.mrf.mxu0
    %v8442 = vadd.f32 0.0, %v8441
    %8443 = vmatmul.bf16.gmra.mxu0 %v8378
    %v8444 = vpop.f32.mrf.mxu0
    %v8445 = vadd.f32 0.0, %v8444
    %v8446 = vpop.f32.mrf.mxu0
    %v8447 = vadd.f32 0.0, %v8446
    %8448 = vmatmul.bf16.gmra.mxu0 %v8381
    %v8449 = vpop.f32.mrf.mxu0
    %v8450 = vadd.f32 0.0, %v8449
    %v8451 = vpop.f32.mrf.mxu0
    %v8452 = vadd.f32 0.0, %v8451
    %8453 = vmatmul.bf16.gmra.mxu0 %v8384
    %v8454 = vpop.f32.mrf.mxu0
    %v8455 = vadd.f32 0.0, %v8454
    %v8456 = vpop.f32.mrf.mxu0
    %v8457 = vadd.f32 0.0, %v8456
    %8458 = vmatmul.bf16.gmra.mxu0 %v8387
    %v8459 = vpop.f32.mrf.mxu0
    %v8460 = vadd.f32 0.0, %v8459
    %v8461 = vpop.f32.mrf.mxu0
    %v8462 = vadd.f32 0.0, %v8461
    %8463 = vmatmul.bf16.gmra.mxu0 %v8390
    %v8464 = vpop.f32.mrf.mxu0
    %v8465 = vadd.f32 0.0, %v8464
    %v8466 = vpop.f32.mrf.mxu0
    %v8467 = vadd.f32 0.0, %v8466
    %8468 = vmatmul.bf16.gmra.mxu0 %v8393
    %v8469 = vpop.f32.mrf.mxu0
    %v8470 = vadd.f32 0.0, %v8469
    %v8471 = vpop.f32.mrf.mxu0
    %v8472 = vadd.f32 0.0, %v8471
    %8473 = vmatmul.bf16.gmra.mxu0 %v8396
    %v8474 = vpop.f32.mrf.mxu0
    %v8475 = vadd.f32 0.0, %v8474
    %v8476 = vpop.f32.mrf.mxu0
    %v8477 = vadd.f32 0.0, %v8476
    %8478 = vmatmul.bf16.gmra.mxu0 %v8399
    %v8479 = vpop.f32.mrf.mxu0
    %v8480 = vadd.f32 0.0, %v8479
    %v8481 = vpop.f32.mrf.mxu0
    %v8482 = vadd.f32 0.0, %v8481
    %8483 = vmatmul.bf16.gmra.mxu0 %v8402
    %v8484 = vpop.f32.mrf.mxu0
    %v8485 = vadd.f32 0.0, %v8484
    %v8486 = vpop.f32.mrf.mxu0
    %v8487 = vadd.f32 0.0, %v8486
    %8488 = vmatmul.bf16.gmra.mxu0 %v8405
    %v8489 = vpop.f32.mrf.mxu0
    %v8490 = vadd.f32 0.0, %v8489
    %v8491 = vpop.f32.mrf.mxu0
    %v8492 = vadd.f32 0.0, %v8491
    %8493 = vmatmul.bf16.gmra.mxu0 %v8408
    %v8494 = vpop.f32.mrf.mxu0
    %v8495 = vadd.f32 0.0, %v8494
    %v8496 = vpop.f32.mrf.mxu0
    %v8497 = vadd.f32 0.0, %v8496
    %8498 = vdwg.mxu0
    %v8499 = vadd.f32 %v8233, %v8420
    %v8500 = vadd.f32 %v8234, %v8422
    %v8501 = vadd.f32 %v8235, %v8425
    %v8502 = vadd.f32 %v8236, %v8427
    %v8503 = vadd.f32 %v8237, %v8430
    %v8504 = vadd.f32 %v8238, %v8432
    %v8505 = vadd.f32 %v8239, %v8435
    %v8506 = vadd.f32 %v8240, %v8437
    %v8507 = vadd.f32 %v8241, %v8440
    %v8508 = vadd.f32 %v8242, %v8442
    %v8509 = vadd.f32 %v8243, %v8445
    %v8510 = vadd.f32 %v8244, %v8447
    %v8511 = vadd.f32 %v8245, %v8450
    %v8512 = vadd.f32 %v8246, %v8452
    %v8513 = vadd.f32 %v8247, %v8455
    %v8514 = vadd.f32 %v8248, %v8457
    %v8515 = vadd.f32 %v8249, %v8460
    %v8516 = vadd.f32 %v8250, %v8462
    %v8517 = vadd.f32 %v8251, %v8465
    %v8518 = vadd.f32 %v8252, %v8467
    %v8519 = vadd.f32 %v8253, %v8470
    %v8520 = vadd.f32 %v8254, %v8472
    %v8521 = vadd.f32 %v8255, %v8475
    %v8522 = vadd.f32 %v8256, %v8477
    %v8523 = vadd.f32 %v8257, %v8480
    %v8524 = vadd.f32 %v8258, %v8482
    %v8525 = vadd.f32 %v8259, %v8485
    %v8526 = vadd.f32 %v8260, %v8487
    %v8527 = vadd.f32 %v8261, %v8490
    %v8528 = vadd.f32 %v8262, %v8492
    %v8529 = vadd.f32 %v8263, %v8495
    %v8530 = vadd.f32 %v8264, %v8497
    %v8531 = vld [vmem:[%s7] sm:$0x1]
    %v8533 = vperm.slane %v8531, 0
    %v8535 = vadd.f32 %v8499, %v8533
    %v8536 = vadd.f32 %v8500, %v8533
    %v8537 = vadd.f32 %v8501, %v8533
    %v8538 = vadd.f32 %v8502, %v8533
    %v8539 = vadd.f32 %v8503, %v8533
    %v8540 = vadd.f32 %v8504, %v8533
    %v8541 = vadd.f32 %v8505, %v8533
    %v8542 = vadd.f32 %v8506, %v8533
    %v8543 = vadd.f32 %v8507, %v8533
    %v8544 = vadd.f32 %v8508, %v8533
    %v8545 = vadd.f32 %v8509, %v8533
    %v8546 = vadd.f32 %v8510, %v8533
    %v8547 = vadd.f32 %v8511, %v8533
    %v8548 = vadd.f32 %v8512, %v8533
    %v8549 = vadd.f32 %v8513, %v8533
    %v8550 = vadd.f32 %v8514, %v8533
    %v8551 = vadd.f32 %v8515, %v8533
    %v8552 = vadd.f32 %v8516, %v8533
    %v8553 = vadd.f32 %v8517, %v8533
    %v8554 = vadd.f32 %v8518, %v8533
    %v8555 = vadd.f32 %v8519, %v8533
    %v8556 = vadd.f32 %v8520, %v8533
    %v8557 = vadd.f32 %v8521, %v8533
    %v8558 = vadd.f32 %v8522, %v8533
    %v8559 = vadd.f32 %v8523, %v8533
    %v8560 = vadd.f32 %v8524, %v8533
    %v8561 = vadd.f32 %v8525, %v8533
    %v8562 = vadd.f32 %v8526, %v8533
    %v8563 = vadd.f32 %v8527, %v8533
    %v8564 = vadd.f32 %v8528, %v8533
    %v8565 = vadd.f32 %v8529, %v8533
    %v8566 = vadd.f32 %v8530, %v8533
    %v8567 = vmax.f32 %v8535, 0.0
    %v8568 = vmax.f32 %v8536, 0.0
    %v8569 = vmax.f32 %v8537, 0.0
    %v8570 = vmax.f32 %v8538, 0.0
    %v8571 = vmax.f32 %v8539, 0.0
    %v8572 = vmax.f32 %v8540, 0.0
    %v8573 = vmax.f32 %v8541, 0.0
    %v8574 = vmax.f32 %v8542, 0.0
    %v8575 = vmax.f32 %v8543, 0.0
    %v8576 = vmax.f32 %v8544, 0.0
    %v8577 = vmax.f32 %v8545, 0.0
    %v8578 = vmax.f32 %v8546, 0.0
    %v8579 = vmax.f32 %v8547, 0.0
    %v8580 = vmax.f32 %v8548, 0.0
    %v8581 = vmax.f32 %v8549, 0.0
    %v8582 = vmax.f32 %v8550, 0.0
    %v8583 = vmax.f32 %v8551, 0.0
    %v8584 = vmax.f32 %v8552, 0.0
    %v8585 = vmax.f32 %v8553, 0.0
    %v8586 = vmax.f32 %v8554, 0.0
    %v8587 = vmax.f32 %v8555, 0.0
    %v8588 = vmax.f32 %v8556, 0.0
    %v8589 = vmax.f32 %v8557, 0.0
    %v8590 = vmax.f32 %v8558, 0.0
    %v8591 = vmax.f32 %v8559, 0.0
    %v8592 = vmax.f32 %v8560, 0.0
    %v8593 = vmax.f32 %v8561, 0.0
    %v8594 = vmax.f32 %v8562, 0.0
    %v8595 = vmax.f32 %v8563, 0.0
    %v8596 = vmax.f32 %v8564, 0.0
    %v8597 = vmax.f32 %v8565, 0.0
    %v8598 = vmax.f32 %v8566, 0.0
    %8599 = vst.msk [vmem:[#allocation2 + $0x48] sm:$0xff] %vm43, %v8567
    %8600 = vst.msk [vmem:[#allocation2 + $0x50] sm:$0xff] %vm43, %v8568
    %8601 = vst.msk [vmem:[#allocation2 + $0x58] sm:$0xff] %vm43, %v8569
    %8602 = vst.msk [vmem:[#allocation2 + $0x60] sm:$0xff] %vm43, %v8570
    %8603 = vst.msk [vmem:[#allocation2 + $0x68] sm:$0xff] %vm43, %v8571
    %8604 = vst.msk [vmem:[#allocation2 + $0x70] sm:$0xff] %vm43, %v8572
    %8605 = vst.msk [vmem:[#allocation2 + $0x78] sm:$0xff] %vm43, %v8573
    %8606 = vst.msk [vmem:[#allocation2 + $0x80] sm:$0xff] %vm43, %v8574
    %8607 = vst.msk [vmem:[#allocation2 + $0x88] sm:$0xff] %vm43, %v8575
    %8608 = vst.msk [vmem:[#allocation2 + $0x90] sm:$0xff] %vm43, %v8576
    %8609 = vst.msk [vmem:[#allocation2 + $0x98] sm:$0xff] %vm43, %v8577
    %8610 = vst.msk [vmem:[#allocation2 + $0xa0] sm:$0xff] %vm43, %v8578
    %8611 = vst.msk [vmem:[#allocation2 + $0xa8] sm:$0xff] %vm43, %v8579
    %8612 = vst.msk [vmem:[#allocation2 + $0xb0] sm:$0xff] %vm43, %v8580
    %8613 = vst.msk [vmem:[#allocation2 + $0xb8] sm:$0xff] %vm43, %v8581
    %8614 = vst.msk [vmem:[#allocation2 + $0xc0] sm:$0xff] %vm43, %v8582
    %8615 = vst.msk [vmem:[#allocation2 + $0xc8] sm:$0xff] %vm43, %v8583
    %8616 = vst.msk [vmem:[#allocation2 + $0xd0] sm:$0xff] %vm43, %v8584
    %8617 = vst.msk [vmem:[#allocation2 + $0xd8] sm:$0xff] %vm43, %v8585
    %8618 = vst.msk [vmem:[#allocation2 + $0xe0] sm:$0xff] %vm43, %v8586
    %8619 = vst.msk [vmem:[#allocation2 + $0xe8] sm:$0xff] %vm43, %v8587
    %8620 = vst.msk [vmem:[#allocation2 + $0xf0] sm:$0xff] %vm43, %v8588
    %8621 = vst.msk [vmem:[#allocation2 + $0xf8] sm:$0xff] %vm43, %v8589
    %8622 = vst.msk [vmem:[#allocation2 + $0x100] sm:$0xff] %vm43, %v8590
    %8623 = vst.msk [vmem:[#allocation2 + $0x108] sm:$0xff] %vm43, %v8591
    %8624 = vst.msk [vmem:[#allocation2 + $0x110] sm:$0xff] %vm43, %v8592
    %8625 = vst.msk [vmem:[#allocation2 + $0x118] sm:$0xff] %vm43, %v8593
    %8626 = vst.msk [vmem:[#allocation2 + $0x120] sm:$0xff] %vm43, %v8594
    %8627 = vst.msk [vmem:[#allocation2 + $0x128] sm:$0xff] %vm43, %v8595
    %8628 = vst.msk [vmem:[#allocation2 + $0x130] sm:$0xff] %vm43, %v8596
    %8629 = vst.msk [vmem:[#allocation2 + $0x138] sm:$0xff] %vm43, %v8597
    %8630 = vst.msk [vmem:[#allocation2 + $0x140] sm:$0xff] %vm43, %v8598
    %v8631 = vld [vmem:[#allocation2 + $0x48] sm:$0xff]
    %v8632 = vld [vmem:[#allocation2 + $0x50] sm:$0xff]
    %v8633 = vld [vmem:[#allocation2 + $0x58] sm:$0xff]
    %v8634 = vld [vmem:[#allocation2 + $0x60] sm:$0xff]
    %v8635 = vld [vmem:[#allocation2 + $0x68] sm:$0xff]
    %v8636 = vld [vmem:[#allocation2 + $0x70] sm:$0xff]
    %v8637 = vld [vmem:[#allocation2 + $0x78] sm:$0xff]
    %v8638 = vld [vmem:[#allocation2 + $0x80] sm:$0xff]
    %v8639 = vld [vmem:[#allocation2 + $0x88] sm:$0xff]
    %v8640 = vld [vmem:[#allocation2 + $0x90] sm:$0xff]
    %v8641 = vld [vmem:[#allocation2 + $0x98] sm:$0xff]
    %v8642 = vld [vmem:[#allocation2 + $0xa0] sm:$0xff]
    %v8643 = vld [vmem:[#allocation2 + $0xa8] sm:$0xff]
    %v8644 = vld [vmem:[#allocation2 + $0xb0] sm:$0xff]
    %v8645 = vld [vmem:[#allocation2 + $0xb8] sm:$0xff]
    %v8646 = vld [vmem:[#allocation2 + $0xc0] sm:$0xff]
    %v8647 = vld [vmem:[#allocation2 + $0xc8] sm:$0xff]
    %v8648 = vld [vmem:[#allocation2 + $0xd0] sm:$0xff]
    %v8649 = vld [vmem:[#allocation2 + $0xd8] sm:$0xff]
    %v8650 = vld [vmem:[#allocation2 + $0xe0] sm:$0xff]
    %v8651 = vld [vmem:[#allocation2 + $0xe8] sm:$0xff]
    %v8652 = vld [vmem:[#allocation2 + $0xf0] sm:$0xff]
    %v8653 = vld [vmem:[#allocation2 + $0xf8] sm:$0xff]
    %v8654 = vld [vmem:[#allocation2 + $0x100] sm:$0xff]
    %v8655 = vld [vmem:[#allocation2 + $0x108] sm:$0xff]
    %v8656 = vld [vmem:[#allocation2 + $0x110] sm:$0xff]
    %v8657 = vld [vmem:[#allocation2 + $0x118] sm:$0xff]
    %v8658 = vld [vmem:[#allocation2 + $0x120] sm:$0xff]
    %v8659 = vld [vmem:[#allocation2 + $0x128] sm:$0xff]
    %v8660 = vld [vmem:[#allocation2 + $0x130] sm:$0xff]
    %v8661 = vld [vmem:[#allocation2 + $0x138] sm:$0xff]
    %v8662 = vld [vmem:[#allocation2 + $0x140] sm:$0xff]
    %v8663 = vld [vmem:[#allocation2 + $0x4c] sm:$0xff]
    %v8664 = vld [vmem:[#allocation2 + $0x54] sm:$0xff]
    %v8665 = vld [vmem:[#allocation2 + $0x5c] sm:$0xff]
    %v8666 = vld [vmem:[#allocation2 + $0x64] sm:$0xff]
    %v8667 = vld [vmem:[#allocation2 + $0x6c] sm:$0xff]
    %v8668 = vld [vmem:[#allocation2 + $0x74] sm:$0xff]
    %v8669 = vld [vmem:[#allocation2 + $0x7c] sm:$0xff]
    %v8670 = vld [vmem:[#allocation2 + $0x84] sm:$0xff]
    %v8671 = vld [vmem:[#allocation2 + $0x8c] sm:$0xff]
    %v8672 = vld [vmem:[#allocation2 + $0x94] sm:$0xff]
    %v8673 = vld [vmem:[#allocation2 + $0x9c] sm:$0xff]
    %v8674 = vld [vmem:[#allocation2 + $0xa4] sm:$0xff]
    %v8675 = vld [vmem:[#allocation2 + $0xac] sm:$0xff]
    %v8676 = vld [vmem:[#allocation2 + $0xb4] sm:$0xff]
    %v8677 = vld [vmem:[#allocation2 + $0xbc] sm:$0xff]
    %v8678 = vld [vmem:[#allocation2 + $0xc4] sm:$0xff]
    %v8679 = vld [vmem:[#allocation2 + $0xcc] sm:$0xff]
    %v8680 = vld [vmem:[#allocation2 + $0xd4] sm:$0xff]
    %v8681 = vld [vmem:[#allocation2 + $0xdc] sm:$0xff]
    %v8682 = vld [vmem:[#allocation2 + $0xe4] sm:$0xff]
    %v8683 = vld [vmem:[#allocation2 + $0xec] sm:$0xff]
    %v8684 = vld [vmem:[#allocation2 + $0xf4] sm:$0xff]
    %v8685 = vld [vmem:[#allocation2 + $0xfc] sm:$0xff]
    %v8686 = vld [vmem:[#allocation2 + $0x104] sm:$0xff]
    %v8687 = vld [vmem:[#allocation2 + $0x10c] sm:$0xff]
    %v8688 = vld [vmem:[#allocation2 + $0x114] sm:$0xff]
    %v8689 = vld [vmem:[#allocation2 + $0x11c] sm:$0xff]
    %v8690 = vld [vmem:[#allocation2 + $0x124] sm:$0xff]
    %v8691 = vld [vmem:[#allocation2 + $0x12c] sm:$0xff]
    %v8692 = vld [vmem:[#allocation2 + $0x134] sm:$0xff]
    %v8693 = vld [vmem:[#allocation2 + $0x13c] sm:$0xff]
    %v8694 = vld [vmem:[#allocation2 + $0x144] sm:$0xff]
    %v8695 = vmax.f32 %v8631, %v8663
    %v8696 = vmax.f32 %v8632, %v8664
    %v8697 = vmax.f32 %v8633, %v8665
    %v8698 = vmax.f32 %v8634, %v8666
    %v8699 = vmax.f32 %v8635, %v8667
    %v8700 = vmax.f32 %v8636, %v8668
    %v8701 = vmax.f32 %v8637, %v8669
    %v8702 = vmax.f32 %v8638, %v8670
    %v8703 = vmax.f32 %v8639, %v8671
    %v8704 = vmax.f32 %v8640, %v8672
    %v8705 = vmax.f32 %v8641, %v8673
    %v8706 = vmax.f32 %v8642, %v8674
    %v8707 = vmax.f32 %v8643, %v8675
    %v8708 = vmax.f32 %v8644, %v8676
    %v8709 = vmax.f32 %v8645, %v8677
    %v8710 = vmax.f32 %v8646, %v8678
    %v8711 = vmax.f32 %v8647, %v8679
    %v8712 = vmax.f32 %v8648, %v8680
    %v8713 = vmax.f32 %v8649, %v8681
    %v8714 = vmax.f32 %v8650, %v8682
    %v8715 = vmax.f32 %v8651, %v8683
    %v8716 = vmax.f32 %v8652, %v8684
    %v8717 = vmax.f32 %v8653, %v8685
    %v8718 = vmax.f32 %v8654, %v8686
    %v8719 = vmax.f32 %v8655, %v8687
    %v8720 = vmax.f32 %v8656, %v8688
    %v8721 = vmax.f32 %v8657, %v8689
    %v8722 = vmax.f32 %v8658, %v8690
    %v8723 = vmax.f32 %v8659, %v8691
    %v8724 = vmax.f32 %v8660, %v8692
    %v8725 = vmax.f32 %v8661, %v8693
    %v8726 = vmax.f32 %v8662, %v8694
    %v8727 = vld [vmem:[#allocation2 + $0x148] sm:$0xff]
    %v8728 = vld [vmem:[#allocation2 + $0x150] sm:$0xff]
    %v8729 = vld [vmem:[#allocation2 + $0x158] sm:$0xff]
    %v8730 = vld [vmem:[#allocation2 + $0x160] sm:$0xff]
    %v8731 = vld [vmem:[#allocation2 + $0x168] sm:$0xff]
    %v8732 = vld [vmem:[#allocation2 + $0x170] sm:$0xff]
    %v8733 = vld [vmem:[#allocation2 + $0x178] sm:$0xff]
    %v8734 = vld [vmem:[#allocation2 + $0x180] sm:$0xff]
    %v8735 = vmax.f32 %v8695, %v8639
    %v8736 = vmax.f32 %v8696, %v8640
    %v8737 = vmax.f32 %v8697, %v8641
    %v8738 = vmax.f32 %v8698, %v8642
    %v8739 = vmax.f32 %v8699, %v8643
    %v8740 = vmax.f32 %v8700, %v8644
    %v8741 = vmax.f32 %v8701, %v8645
    %v8742 = vmax.f32 %v8702, %v8646
    %v8743 = vmax.f32 %v8703, %v8647
    %v8744 = vmax.f32 %v8704, %v8648
    %v8745 = vmax.f32 %v8705, %v8649
    %v8746 = vmax.f32 %v8706, %v8650
    %v8747 = vmax.f32 %v8707, %v8651
    %v8748 = vmax.f32 %v8708, %v8652
    %v8749 = vmax.f32 %v8709, %v8653
    %v8750 = vmax.f32 %v8710, %v8654
    %v8751 = vmax.f32 %v8711, %v8655
    %v8752 = vmax.f32 %v8712, %v8656
    %v8753 = vmax.f32 %v8713, %v8657
    %v8754 = vmax.f32 %v8714, %v8658
    %v8755 = vmax.f32 %v8715, %v8659
    %v8756 = vmax.f32 %v8716, %v8660
    %v8757 = vmax.f32 %v8717, %v8661
    %v8758 = vmax.f32 %v8718, %v8662
    %v8759 = vmax.f32 %v8719, %v8727
    %v8760 = vmax.f32 %v8720, %v8728
    %v8761 = vmax.f32 %v8721, %v8729
    %v8762 = vmax.f32 %v8722, %v8730
    %v8763 = vmax.f32 %v8723, %v8731
    %v8764 = vmax.f32 %v8724, %v8732
    %v8765 = vmax.f32 %v8725, %v8733
    %v8766 = vmax.f32 %v8726, %v8734
    %v8767 = vld [vmem:[#allocation2 + $0x14c] sm:$0xff]
    %v8768 = vld [vmem:[#allocation2 + $0x154] sm:$0xff]
    %v8769 = vld [vmem:[#allocation2 + $0x15c] sm:$0xff]
    %v8770 = vld [vmem:[#allocation2 + $0x164] sm:$0xff]
    %v8771 = vld [vmem:[#allocation2 + $0x16c] sm:$0xff]
    %v8772 = vld [vmem:[#allocation2 + $0x174] sm:$0xff]
    %v8773 = vld [vmem:[#allocation2 + $0x17c] sm:$0xff]
    %v8774 = vld [vmem:[#allocation2 + $0x184] sm:$0xff]
    %v8775 = vmax.f32 %v8735, %v8671
    %v8776 = vmax.f32 %v8736, %v8672
    %v8777 = vmax.f32 %v8737, %v8673
    %v8778 = vmax.f32 %v8738, %v8674
    %v8779 = vmax.f32 %v8739, %v8675
    %v8780 = vmax.f32 %v8740, %v8676
    %v8781 = vmax.f32 %v8741, %v8677
    %v8782 = vmax.f32 %v8742, %v8678
    %v8783 = vmax.f32 %v8743, %v8679
    %v8784 = vmax.f32 %v8744, %v8680
    %v8785 = vmax.f32 %v8745, %v8681
    %v8786 = vmax.f32 %v8746, %v8682
    %v8787 = vmax.f32 %v8747, %v8683
    %v8788 = vmax.f32 %v8748, %v8684
    %v8789 = vmax.f32 %v8749, %v8685
    %v8790 = vmax.f32 %v8750, %v8686
    %v8791 = vmax.f32 %v8751, %v8687
    %v8792 = vmax.f32 %v8752, %v8688
    %v8793 = vmax.f32 %v8753, %v8689
    %v8794 = vmax.f32 %v8754, %v8690
    %v8795 = vmax.f32 %v8755, %v8691
    %v8796 = vmax.f32 %v8756, %v8692
    %v8797 = vmax.f32 %v8757, %v8693
    %v8798 = vmax.f32 %v8758, %v8694
    %v8799 = vmax.f32 %v8759, %v8767
    %v8800 = vmax.f32 %v8760, %v8768
    %v8801 = vmax.f32 %v8761, %v8769
    %v8802 = vmax.f32 %v8762, %v8770
    %v8803 = vmax.f32 %v8763, %v8771
    %v8804 = vmax.f32 %v8764, %v8772
    %v8805 = vmax.f32 %v8765, %v8773
    %v8806 = vmax.f32 %v8766, %v8774
    %8807 = vst.msk [vmem:[#allocation2 + $0x48] sm:$0xff] %vm43, %v8775
    %8808 = vst.msk [vmem:[#allocation2 + $0x50] sm:$0xff] %vm43, %v8776
    %8809 = vst.msk [vmem:[#allocation2 + $0x58] sm:$0xff] %vm43, %v8777
    %8810 = vst.msk [vmem:[#allocation2 + $0x60] sm:$0xff] %vm43, %v8778
    %8811 = vst.msk [vmem:[#allocation2 + $0x68] sm:$0xff] %vm43, %v8779
    %8812 = vst.msk [vmem:[#allocation2 + $0x70] sm:$0xff] %vm43, %v8780
    %8813 = vst.msk [vmem:[#allocation2 + $0x78] sm:$0xff] %vm43, %v8781
    %8814 = vst.msk [vmem:[#allocation2 + $0x80] sm:$0xff] %vm43, %v8782
    %8815 = vst.msk [vmem:[#allocation2 + $0x88] sm:$0xff] %vm43, %v8783
    %8816 = vst.msk [vmem:[#allocation2 + $0x90] sm:$0xff] %vm43, %v8784
    %8817 = vst.msk [vmem:[#allocation2 + $0x98] sm:$0xff] %vm43, %v8785
    %8818 = vst.msk [vmem:[#allocation2 + $0xa0] sm:$0xff] %vm43, %v8786
    %8819 = vst.msk [vmem:[#allocation2 + $0xa8] sm:$0xff] %vm43, %v8787
    %8820 = vst.msk [vmem:[#allocation2 + $0xb0] sm:$0xff] %vm43, %v8788
    %8821 = vst.msk [vmem:[#allocation2 + $0xb8] sm:$0xff] %vm43, %v8789
    %8822 = vst.msk [vmem:[#allocation2 + $0xc0] sm:$0xff] %vm43, %v8790
    %8823 = vst.msk [vmem:[#allocation2 + $0xc8] sm:$0xff] %vm43, %v8791
    %8824 = vst.msk [vmem:[#allocation2 + $0xd0] sm:$0xff] %vm43, %v8792
    %8825 = vst.msk [vmem:[#allocation2 + $0xd8] sm:$0xff] %vm43, %v8793
    %8826 = vst.msk [vmem:[#allocation2 + $0xe0] sm:$0xff] %vm43, %v8794
    %8827 = vst.msk [vmem:[#allocation2 + $0xe8] sm:$0xff] %vm43, %v8795
    %8828 = vst.msk [vmem:[#allocation2 + $0xf0] sm:$0xff] %vm43, %v8796
    %8829 = vst.msk [vmem:[#allocation2 + $0xf8] sm:$0xff] %vm43, %v8797
    %8830 = vst.msk [vmem:[#allocation2 + $0x100] sm:$0xff] %vm43, %v8798
    %8831 = vst.msk [vmem:[#allocation2 + $0x108] sm:$0xff] %vm43, %v8799
    %8832 = vst.msk [vmem:[#allocation2 + $0x110] sm:$0xff] %vm43, %v8800
    %8833 = vst.msk [vmem:[#allocation2 + $0x118] sm:$0xff] %vm43, %v8801
    %8834 = vst.msk [vmem:[#allocation2 + $0x120] sm:$0xff] %vm43, %v8802
    %8835 = vst.msk [vmem:[#allocation2 + $0x128] sm:$0xff] %vm43, %v8803
    %8836 = vst.msk [vmem:[#allocation2 + $0x130] sm:$0xff] %vm43, %v8804
    %8837 = vst.msk [vmem:[#allocation2 + $0x138] sm:$0xff] %vm43, %v8805
    %8838 = vst.msk [vmem:[#allocation2 + $0x140] sm:$0xff] %vm43, %v8806
    %v8839 = vld [vmem:[#allocation2 + $0x48] sm:$0x1]
    %v8840 = vld [vmem:[%s8] sm:$0xff]
    %v8841 = vld [vmem:[%s8 + $0x8] sm:$0xff]
    %v8842 = vld [vmem:[%s8 + $0x10] sm:$0xff]
    %v8843 = vld [vmem:[%s8 + $0x18] sm:$0xff]
    %v8844 = vld [vmem:[#allocation2 + $0x50] sm:$0x1]
    %s8845 = scalar_lea.vmem %s8, 32
    %v8846 = vld [vmem:[%s8845] sm:$0xff]
    %v8847 = vld [vmem:[%s8845 + $0x8] sm:$0xff]
    %v8848 = vld [vmem:[%s8845 + $0x10] sm:$0xff]
    %v8849 = vld [vmem:[%s8845 + $0x18] sm:$0xff]
    %v8851 = vsel %vm43, %v8844, 0
    %8853 = vmatpush.msra.mxu0 0.0
    %8854 = vmatpush.msra.mxu0 0.0
    %8855 = vmatpush.msra.mxu0 0.0
    %8856 = vmatpush.msra.mxu0 0.0
    %8857 = vmatpush.msra.mxu0 0.0
    %8858 = vmatpush.msra.mxu0 0.0
    %8859 = vmatpush.msra.mxu0 0.0
    %8860 = vmatpush.msra.mxu0 0.0
    %8861 = vmatpush.msra.mxu0 0.0
    %8862 = vmatpush.msra.mxu0 0.0
    %8863 = vmatpush.msra.mxu0 0.0
    %8864 = vmatpush.msra.mxu0 0.0
    %8865 = vmatpush.msra.mxu0 %v8849
    %8866 = vmatpush.msra.mxu0 %v8848
    %8867 = vmatpush.msra.mxu0 %v8847
    %8868 = vmatpush.msra.mxu0 %v8846
    %8869 = vmatmul.f32.gmra.mxu0 %v8851
    %v8870 = vpop.f32.mrf.mxu0
    %v8871 = vadd.f32 0.0, %v8870
    %8872 = vdwg.mxu0
    %v8874 = vsel %vm43, %v8839, 0
    %8876 = vmatpush.msra.mxu0 0.0
    %8877 = vmatpush.msra.mxu0 0.0
    %8878 = vmatpush.msra.mxu0 0.0
    %8879 = vmatpush.msra.mxu0 0.0
    %8880 = vmatpush.msra.mxu0 0.0
    %8881 = vmatpush.msra.mxu0 0.0
    %8882 = vmatpush.msra.mxu0 0.0
    %8883 = vmatpush.msra.mxu0 0.0
    %8884 = vmatpush.msra.mxu0 0.0
    %8885 = vmatpush.msra.mxu0 0.0
    %8886 = vmatpush.msra.mxu0 0.0
    %8887 = vmatpush.msra.mxu0 0.0
    %8888 = vmatpush.msra.mxu0 %v8843
    %8889 = vmatpush.msra.mxu0 %v8842
    %8890 = vmatpush.msra.mxu0 %v8841
    %8891 = vmatpush.msra.mxu0 %v8840
    %8892 = vmatmul.f32.gmra.mxu0 %v8874
    %v8893 = vpop.f32.mrf.mxu0
    %v8894 = vadd.f32 %v8871, %v8893
    %8895 = vdwg.mxu0
    %v8896 = vld [vmem:[#allocation2 + $0xc8] sm:$0x1]
    %s8897 = scalar_lea.vmem %s8, 64
    %v8898 = vld [vmem:[%s8897] sm:$0xff]
    %v8899 = vld [vmem:[%s8897 + $0x8] sm:$0xff]
    %v8900 = vld [vmem:[%s8897 + $0x10] sm:$0xff]
    %v8901 = vld [vmem:[%s8897 + $0x18] sm:$0xff]
    %v8903 = vsel %vm43, %v8896, 0
    %8905 = vmatpush.msra.mxu0 0.0
    %8906 = vmatpush.msra.mxu0 0.0
    %8907 = vmatpush.msra.mxu0 0.0
    %8908 = vmatpush.msra.mxu0 0.0
    %8909 = vmatpush.msra.mxu0 0.0
    %8910 = vmatpush.msra.mxu0 0.0
    %8911 = vmatpush.msra.mxu0 0.0
    %8912 = vmatpush.msra.mxu0 0.0
    %8913 = vmatpush.msra.mxu0 0.0
    %8914 = vmatpush.msra.mxu0 0.0
    %8915 = vmatpush.msra.mxu0 0.0
    %8916 = vmatpush.msra.mxu0 0.0
    %8917 = vmatpush.msra.mxu0 %v8901
    %8918 = vmatpush.msra.mxu0 %v8900
    %8919 = vmatpush.msra.mxu0 %v8899
    %8920 = vmatpush.msra.mxu0 %v8898
    %8921 = vmatmul.f32.gmra.mxu0 %v8903
    %v8922 = vpop.f32.mrf.mxu0
    %v8923 = vadd.f32 0.0, %v8922
    %8924 = vdwg.mxu0
    %v8925 = vadd.f32 %v8894, %v8923
    %v8926 = vld [vmem:[#allocation2 + $0xd0] sm:$0x1]
    %s8927 = scalar_lea.vmem %s8, 96
    %v8928 = vld [vmem:[%s8927] sm:$0xff]
    %v8929 = vld [vmem:[%s8927 + $0x8] sm:$0xff]
    %v8930 = vld [vmem:[%s8927 + $0x10] sm:$0xff]
    %v8931 = vld [vmem:[%s8927 + $0x18] sm:$0xff]
    %v8933 = vsel %vm43, %v8926, 0
    %8935 = vmatpush.msra.mxu0 0.0
    %8936 = vmatpush.msra.mxu0 0.0
    %8937 = vmatpush.msra.mxu0 0.0
    %8938 = vmatpush.msra.mxu0 0.0
    %8939 = vmatpush.msra.mxu0 0.0
    %8940 = vmatpush.msra.mxu0 0.0
    %8941 = vmatpush.msra.mxu0 0.0
    %8942 = vmatpush.msra.mxu0 0.0
    %8943 = vmatpush.msra.mxu0 0.0
    %8944 = vmatpush.msra.mxu0 0.0
    %8945 = vmatpush.msra.mxu0 0.0
    %8946 = vmatpush.msra.mxu0 0.0
    %8947 = vmatpush.msra.mxu0 %v8931
    %8948 = vmatpush.msra.mxu0 %v8930
    %8949 = vmatpush.msra.mxu0 %v8929
    %8950 = vmatpush.msra.mxu0 %v8928
    %8951 = vmatmul.f32.gmra.mxu0 %v8933
    %v8952 = vpop.f32.mrf.mxu0
    %v8953 = vadd.f32 0.0, %v8952
    %8954 = vdwg.mxu0
    %v8955 = vadd.f32 %v8925, %v8953
    %v8956 = vld [vmem:[%s9] sm:$0x1]
    %v8957 = vadd.f32 %v8955, %v8956
    %v8958 = vmax.f32 %v8957, 0.0
    %v8959 = vld [vmem:[%s10] sm:$0xff]
    %v8960 = vld [vmem:[%s10 + $0x8] sm:$0xff]
    %v8961 = vld [vmem:[%s10 + $0x10] sm:$0xff]
    %v8962 = vld [vmem:[%s10 + $0x18] sm:$0xff]
    %v8963 = vld [vmem:[%s11] sm:$0x1]
    %v8965 = vsel %vm43, %v8958, 0
    %8967 = vmatpush.msra.mxu0 0.0
    %8968 = vmatpush.msra.mxu0 0.0
    %8969 = vmatpush.msra.mxu0 0.0
    %8970 = vmatpush.msra.mxu0 0.0
    %8971 = vmatpush.msra.mxu0 0.0
    %8972 = vmatpush.msra.mxu0 0.0
    %8973 = vmatpush.msra.mxu0 0.0
    %8974 = vmatpush.msra.mxu0 0.0
    %8975 = vmatpush.msra.mxu0 0.0
    %8976 = vmatpush.msra.mxu0 0.0
    %8977 = vmatpush.msra.mxu0 0.0
    %8978 = vmatpush.msra.mxu0 0.0
    %8979 = vmatpush.msra.mxu0 %v8962
    %8980 = vmatpush.msra.mxu0 %v8961
    %8981 = vmatpush.msra.mxu0 %v8960
    %8982 = vmatpush.msra.mxu0 %v8959
    %8983 = vmatmul.f32.gmra.mxu0 %v8965
    %v8984 = vpop.f32.mrf.mxu0
    %v8985 = vadd.f32 %v8963, %v8984
    %8986 = vdwg.mxu0
    %v8987 = vmul.f32 %v8985, %v8985
    %vm8988 = vcmask 24576
    %v8989 = vsel %vm8988, %v8987, 0.0
    %8990 = vadd.xlane.f32.xlu0 %v8989
    %v8991 = vpop.xlane.xlu0 %8990
    %v8992 = vmax.f32 %v8991, 1e-24
    %v8993 = vrsqrt.pop %v8992
    %v8994 = vmul.f32 %v8993, %v8992
    %v8995 = vmul.f32 %v8994, %v8993
    %v8996 = vmul.f32 0.5, %v8995
    %v8997 = vsub.f32 1.5, %v8996
    %v8998 = vmul.f32 %v8993, %v8997
    %vm8999 = vweird.f32 %v8992
    %vm9000 = vweird.f32 %v8993
    %vm9001 = vmor %vm8999, %vm9000
    %v9002 = vsel %vm9001, %v8993, %v8998
    %v9003 = vmul.f32 %v8985, %v9002
    %9004 = vst.msk [vmem:[#allocation3] sm:$0x1] %vm8988, %v9003
    // Predicated region
    $region50: #{tpu_custom_call.1} parent=1 // pred_check
      _
    $region51: #{tpu_custom_call.1} parent=1 // pred_check_branch
      %9006 = sbr.rel (0) target = $region53
    $region52: #{tpu_custom_call.1} parent=1 // pred_region
      %9008 = vsyncadd [#allocation4], 0
      %s9010 = sshll.u32 [#allocation3], 4
      %s9011 = int_to_ptr.vmem [resolvable:$true] %s9010
      %s9012 = sshll.u32 %s12, 4
      %s9013 = int_to_ptr.hbm [resolvable:$true] %s9012
      %9015 = dma.vmem_to_hbm [thread:$0]  %s9011, 16, %s9013, [#allocation4]
    $region53: #{tpu_custom_call.1} parent=1 // pred_fallthru
      _
    // Predicated region
    $region54: #{tpu_custom_call.1} parent=1 // pred_check
      _
    $region55: #{tpu_custom_call.1} parent=1 // pred_check_branch
      %9017 = sbr.rel (0) target = $region57
    $region56: #{tpu_custom_call.1} parent=1 // pred_region
      %9019 = dma.done [#allocation4], 16
    $region57: #{tpu_custom_call.1} parent=1 // pred_fallthru
      _
    %9020 = vsyncpa [#allocation4], 1

</llo_original>
